<compile_context>
chip_gen: v6e
topology: v6e:2x2x1
jax: 0.10.0
libtpu: 0.0.40
codegen_flags: <defaults>
</compile_context>

<pallas_src>
import functools
import math

import numpy as np
import jax
import jax.numpy as jnp
from jax import lax
from jax.experimental import pallas as pl
from jax.experimental.pallas import tpu as pltpu

ARGS = dict(
    coder_rnn='gru', coder_actf='tanh', coder_dropout=0.0,
    coder_units=16, coder_layers=1,
    block_length=16, block_padding=4, redundancy=4,
    rate='onethird', channel='continuous', continuous_coder=False,
)

G_PAD = 128      # padded fused hidden width (6*16 real + 1 bias lane + pad)
NL_PAD = 128     # padded output lane width (3*16 real + pad)


def coder_fused_kernel(gx_ref, whh_ref, wlin_ref, blin_ref, out_ref, hs_sc,
                       *, T, G, bias_lane):
    """Fused 6-way bidirectional GRU recurrence + single deferred Linear + tanh.

    Column layout of fused width G=128: group sd = 2*stream + dir occupies
    lanes [sd*H, (sd+1)*H); lane `bias_lane` (=96) is pinned to 1.0 so the
    bias row of whh injects b_hh each step; lanes 97..127 are zero pad.
    Gate columns of gh/gx are gate-major over 3G = 384: [ r(128) | z(128) | n(128) ].

    gx_ref  : (T, B, 3G)  x_t*W_ih + b_ih for all groups (backward groups already
                          time-reversed); bias/pad lanes are zero.
    whh_ref : (G, 3G)     block-diagonal W_hh^T; row `bias_lane` carries b_hh and a
                          +60 self-gate on its own z column.
    wlin_ref: (T*G, NLp)  Linear weights, row s*G+lane -> output; bias/pad rows zero.
    blin_ref: (1, NLp)
    out_ref : (B, NLp)
    hs_sc   : (B, T*G)    VMEM stash of all hidden states (lane-aligned stores).
    """
    B = out_ref.shape[0]
    whh = whh_ref[...]                                             # (G, 3G)

    # h0 = 0 everywhere except the bias lane (pinned to 1.0 forever by the
    # sigmoid(60)=1 self-gate in whh's z block).
    lane = lax.broadcasted_iota(jnp.int32, (B, G), 1)
    h = jnp.where(lane == bias_lane, 1.0, 0.0).astype(jnp.float32)

    # ---- fused recurrence: one serial T-step chain for all 6 GRUs -----------
    # Fully unrolled (T static & small); every gate slice is one vreg lane tile.
    for s in range(T):
        gh = jnp.dot(h, whh, preferred_element_type=jnp.float32)  # (B, 3G)
        gx = gx_ref[s]                                            # (B, 3G)
        r = jax.nn.sigmoid(gx[:, :G] + gh[:, :G])
        z = jax.nn.sigmoid(gx[:, G:2 * G] + gh[:, G:2 * G])
        n = jnp.tanh(gx[:, 2 * G:] + r * gh[:, 2 * G:])
        h = (1.0 - z) * n + z * h
        hs_sc[:, s * G:(s + 1) * G] = h                           # lane-aligned store

    # ---- deferred Linear: one (B, T*G) @ (T*G, NLp) matmul, then tanh -------
    out_ref[...] = jnp.tanh(
        jnp.dot(hs_sc[...], wlin_ref[...], preferred_element_type=jnp.float32)
        + blin_ref[...]).astype(out_ref.dtype)


def pack_coder_params(params, args, T):
    """One-time host-side packing of all weights (pure fixed cost, not per call)."""
    H = args['coder_units']
    L = args['block_length']
    C = 3 if args['rate'] == 'onethird' else 2
    S = 2 * C                      # (stream, direction) groups
    G = G_PAD
    BIAS = S * H                   # bias lane index (96)
    NLP = NL_PAD

    w_in = np.zeros((S, 3 * G), np.float32)       # per-group input weights
    b_in = np.zeros((1, 1, 3 * G), np.float32)    # b_ih only (b_hh lives in whh)
    whh = np.zeros((G, 3 * G), np.float32)
    wlin = np.zeros((T * G, NLP), np.float32)
    blin = np.zeros((1, NLP), np.float32)

    for k in range(C):
        p = params[k]
        for d, sfx in enumerate(('f', 'b')):
            sd = 2 * k + d
            w_ih = np.asarray(p['w_ih_' + sfx])[:, 0]       # (3H,) input_size == 1
            b_ih = np.asarray(p['b_ih_' + sfx])             # (3H,)
            w_hh_t = np.asarray(p['w_hh_' + sfx]).T         # (H, 3H) pre-transposed
            b_hh = np.asarray(p['b_hh_' + sfx])             # (3H,)
            for g in range(3):                               # PyTorch gate order r|z|n
                cols = slice(g * G + sd * H, g * G + (sd + 1) * H)
                w_in[sd, cols] = w_ih[g * H:(g + 1) * H]
                b_in[0, 0, cols] = b_ih[g * H:(g + 1) * H]
                whh[sd * H:(sd + 1) * H, cols] = w_hh_t[:, g * H:(g + 1) * H]
                whh[BIAS, cols] = b_hh[g * H:(g + 1) * H]    # b_hh via bias lane

        # Linear weights, flattened layout index = t*2H + dir*H + h.
        wlt = np.asarray(p['w_lin']).T.reshape(T, 2, H, L)
        for s in range(T):
            r0 = s * G + 2 * k * H
            wlin[r0:r0 + H, k * L:(k + 1) * L] = wlt[s, 0]            # forward: t = s
            wlin[r0 + H:r0 + 2 * H, k * L:(k + 1) * L] = wlt[T - 1 - s, 1]  # backward
        blin[0, k * L:(k + 1) * L] = np.asarray(p['b_lin'])

    # Bias-lane self-gate: z_bias = sigmoid(60) == 1.0 in f32 => h[:, BIAS] stays 1.0.
    whh[BIAS, G + BIAS] = 60.0

    return dict(w_in=jnp.asarray(w_in), b_in=jnp.asarray(b_in),
                whh=jnp.asarray(whh), wlin=jnp.asarray(wlin),
                blin=jnp.asarray(blin))


def coder_rnn_forward(inputs, packed, args):
    """inputs: (B, T, C) float32; packed: output of pack_coder_params.
    Returns (B, block_length, C)."""
    B, T, C = inputs.shape
    H = args['coder_units']
    L = args['block_length']
    n_streams = 3 if args['rate'] == 'onethird' else 2
    assert C == n_streams
    G = packed['whh'].shape[0]            # 128
    NLP = packed['blin'].shape[1]         # 128
    bias_lane = 2 * n_streams * H         # 96
    f32 = jnp.float32

    # Per-call input projection: one small einsum (no per-call scatters).
    # Group order sd = 2*stream + dir: [s0f, s0b, s1f, s1b, s2f, s2b].
    x_groups = jnp.stack([inputs, inputs[:, ::-1, :]], axis=-1).reshape(
        B, T, 2 * n_streams)
    gx = jnp.einsum('bts,sg->tbg', x_groups, packed['w_in'],
                    preferred_element_type=f32) + packed['b_in']       # (T, B, 3G)

    kern = functools.partial(coder_fused_kernel, T=T, G=G, bias_lane=bias_lane)
    vmem = pltpu.MemorySpace.VMEM
    out = pl.pallas_call(
        kern,
        out_shape=jax.ShapeDtypeStruct((B, NLP), f32),
        in_specs=[pl.BlockSpec(memory_space=vmem)] * 4,
        out_specs=pl.BlockSpec(memory_space=vmem),
        scratch_shapes=[pltpu.VMEM((B, T * G), f32)],    # hidden-state stash
    )(gx, packed['whh'], packed['wlin'], packed['blin'])

    # Drop output pad lanes; (B, 3L) -> (B, L, 3) == torch.cat([...], dim=2).
    out = out[:, :n_streams * L]
    x = jnp.transpose(out.reshape(B, n_streams, L), (0, 2, 1))
    # coder_dropout=0.0 => Dropout is identity at inference.
    # TODO(synk): Quantizer.apply is not defined in the provided source; with
    # channel='continuous' and continuous_coder=False the branch is skipped.
    return x


def coder_rnn_reference(inputs, params, args):
    """Pure-JAX reference of the PyTorch forward (GRU semantics)."""
    B, T, C = inputs.shape
    H = args['coder_units']
    L = args['block_length']
    n_streams = 3 if args['rate'] == 'onethird' else 2
    outs = []
    for s in range(n_streams):
        p = params[s]
        x = inputs[:, :, s:s + 1]                            # (B, T, 1)

        def gru_dir(x_seq, w_ih, w_hh, b_ih, b_hh):
            def step(h, x_t):
                gx = x_t @ w_ih.T + b_ih
                gh = h @ w_hh.T + b_hh
                r = jax.nn.sigmoid(gx[:, :H] + gh[:, :H])
                z = jax.nn.sigmoid(gx[:, H:2 * H] + gh[:, H:2 * H])
                n = jnp.tanh(gx[:, 2 * H:] + r * gh[:, 2 * H:])
                h_new = (1.0 - z) * n + z * h
                return h_new, h_new
            h0 = jnp.zeros((B, H), jnp.float32)
            _, ys = lax.scan(step, h0, jnp.transpose(x_seq, (1, 0, 2)))
            return jnp.transpose(ys, (1, 0, 2))              # (B, T, H)

        y_f = gru_dir(x, p['w_ih_f'], p['w_hh_f'], p['b_ih_f'], p['b_hh_f'])
        y_b = gru_dir(x[:, ::-1], p['w_ih_b'], p['w_hh_b'],
                      p['b_ih_b'], p['b_hh_b'])[:, ::-1]
        y = jnp.concatenate([y_f, y_b], axis=-1)             # (B, T, 2H)
        flat = y.reshape(B, T * 2 * H)                       # torch.flatten(start_dim=1)
        lin = flat @ p['w_lin'].T + p['b_lin']
        outs.append(jnp.tanh(lin)[:, :, None])
    return jnp.concatenate(outs, axis=2)


def init_params(key, args, T):
    H = args['coder_units']
    L = args['block_length']
    n_streams = 3 if args['rate'] == 'onethird' else 2
    b_rnn = 1.0 / math.sqrt(H)
    b_lin = 1.0 / math.sqrt(2 * H * T)

    def u(k, shape, b):
        return jax.random.uniform(k, shape, jnp.float32, -b, b)

    params = []
    keys = jax.random.split(key, n_streams)
    for s in range(n_streams):
        ks = jax.random.split(keys[s], 10)
        params.append(dict(
            w_ih_f=u(ks[0], (3 * H, 1), b_rnn),
            w_hh_f=u(ks[1], (3 * H, H), b_rnn),
            b_ih_f=u(ks[2], (3 * H,), b_rnn),
            b_hh_f=u(ks[3], (3 * H,), b_rnn),
            w_ih_b=u(ks[4], (3 * H, 1), b_rnn),
            w_hh_b=u(ks[5], (3 * H, H), b_rnn),
            b_ih_b=u(ks[6], (3 * H,), b_rnn),
            b_hh_b=u(ks[7], (3 * H,), b_rnn),
            w_lin=u(ks[8], (L, 2 * H * T), b_lin),
            b_lin=u(ks[9], (L,), b_lin),
        ))
    return params


if __name__ == "__main__":
    args = ARGS
    B = 2
    T = args['block_length'] + args['block_padding'] + args['redundancy']   # 24
    C = 3 if args['rate'] == 'onethird' else 2

    key = jax.random.PRNGKey(0)
    k_in, k_par = jax.random.split(key)
    inputs = jax.random.normal(k_in, (B, T, C), jnp.float32)
    params = init_params(k_par, args, T)

    # One-time weight packing, outside the per-call jitted path.
    packed = pack_coder_params(params, args, T)

    fwd = jax.jit(lambda x, pk: coder_rnn_forward(x, pk, args))
    out = jax.block_until_ready(fwd(inputs, packed))
    ref = coder_rnn_reference(inputs, params, args)

    assert out.shape == (B, args['block_length'], C), out.shape
    assert bool(jnp.allclose(out, ref, atol=2e-3, rtol=2e-3)), \
        float(jnp.max(jnp.abs(out - ref)))
    print("KERNEL_OK")
</pallas_src>

<mosaic_0001>
module attributes {stable_mosaic.version = 11 : i64} {
  func.func @coder_fused_kernel(%arg0: memref<24x2x384xf32, #tpu.memory_space<vmem>>, %arg1: memref<128x384xf32, #tpu.memory_space<vmem>>, %arg2: memref<3072x128xf32, #tpu.memory_space<vmem>>, %arg3: memref<1x128xf32, #tpu.memory_space<vmem>>, %arg4: memref<2x128xf32, #tpu.memory_space<vmem>>, %arg5: memref<2x3072xf32, #tpu.memory_space<vmem>>) attributes {dimension_semantics = [], scalar_prefetch = 0 : i64, scratch_operands = 1 : i64, tpu.core_type = #tpu.core_type<tc>} {
    %c0 = arith.constant 0 : index
    %c0_0 = arith.constant 0 : index
    %0 = vector.load %arg1[%c0, %c0_0] : memref<128x384xf32, #tpu.memory_space<vmem>>, vector<128x384xf32>
    %1 = tpu.iota {dimensions = array<i32: 1>} : vector<2x128xi32>
    %c96_i32 = arith.constant 96 : i32
    %2 = vector.broadcast %c96_i32 : i32 to vector<2x128xi32>
    %3 = arith.cmpi eq, %1, %2 : vector<2x128xi32>
    %cst = arith.constant 1.000000e+00 : f32
    %cst_1 = arith.constant 0.000000e+00 : f32
    %4 = vector.broadcast %cst : f32 to vector<2x128xf32>
    %5 = vector.broadcast %cst_1 : f32 to vector<2x128xf32>
    %6 = arith.select %3, %4, %5 : vector<2x128xi1>, vector<2x128xf32>
    %cst_2 = arith.constant dense<0.000000e+00> : vector<2x384xf32>
    %7 = tpu.matmul %6, %0, %cst_2 {dimension_numbers = #tpu.dot_dimension_numbers<[1], [0], [0], [1], [0, 0, 1, 1], [], []>} : vector<2x128xf32>, vector<128x384xf32>, vector<2x384xf32> -> vector<2x384xf32>
    %c0_3 = arith.constant 0 : index
    %c0_4 = arith.constant 0 : index
    %c0_5 = arith.constant 0 : index
    %8 = vector.load %arg0[%c0_3, %c0_4, %c0_5] : memref<24x2x384xf32, #tpu.memory_space<vmem>>, vector<1x2x384xf32>
    %9 = vector.shape_cast %8 : vector<1x2x384xf32> to vector<2x384xf32>
    %10 = vector.extract_strided_slice %9 {offsets = [0, 0], sizes = [2, 128], strides = [1, 1]} : vector<2x384xf32> to vector<2x128xf32>
    %11 = vector.extract_strided_slice %7 {offsets = [0, 0], sizes = [2, 128], strides = [1, 1]} : vector<2x384xf32> to vector<2x128xf32>
    %12 = arith.addf %10, %11 : vector<2x128xf32>
    %13 = arith.negf %12 : vector<2x128xf32>
    %14 = math.exp %13 : vector<2x128xf32>
    %cst_6 = arith.constant 1.000000e+00 : f32
    %15 = vector.broadcast %cst_6 : f32 to vector<2x128xf32>
    %16 = arith.addf %15, %14 : vector<2x128xf32>
    %17 = arith.divf %15, %16 : vector<2x128xf32>
    %18 = vector.extract_strided_slice %9 {offsets = [0, 128], sizes = [2, 128], strides = [1, 1]} : vector<2x384xf32> to vector<2x128xf32>
    %19 = vector.extract_strided_slice %7 {offsets = [0, 128], sizes = [2, 128], strides = [1, 1]} : vector<2x384xf32> to vector<2x128xf32>
    %20 = arith.addf %18, %19 : vector<2x128xf32>
    %21 = arith.negf %20 : vector<2x128xf32>
    %22 = math.exp %21 : vector<2x128xf32>
    %cst_7 = arith.constant 1.000000e+00 : f32
    %23 = vector.broadcast %cst_7 : f32 to vector<2x128xf32>
    %24 = arith.addf %23, %22 : vector<2x128xf32>
    %25 = arith.divf %23, %24 : vector<2x128xf32>
    %26 = vector.extract_strided_slice %9 {offsets = [0, 256], sizes = [2, 128], strides = [1, 1]} : vector<2x384xf32> to vector<2x128xf32>
    %27 = vector.extract_strided_slice %7 {offsets = [0, 256], sizes = [2, 128], strides = [1, 1]} : vector<2x384xf32> to vector<2x128xf32>
    %28 = arith.mulf %17, %27 : vector<2x128xf32>
    %29 = arith.addf %26, %28 : vector<2x128xf32>
    %30 = math.tanh %29 : vector<2x128xf32>
    %cst_8 = arith.constant 1.000000e+00 : f32
    %31 = vector.broadcast %cst_8 : f32 to vector<2x128xf32>
    %32 = arith.subf %31, %25 : vector<2x128xf32>
    %33 = arith.mulf %32, %30 : vector<2x128xf32>
    %34 = arith.mulf %25, %6 : vector<2x128xf32>
    %35 = arith.addf %33, %34 : vector<2x128xf32>
    %c0_9 = arith.constant 0 : index
    %c0_10 = arith.constant 0 : index
    %36 = vector.load %arg5[%c0_9, %c0_10] : memref<2x3072xf32, #tpu.memory_space<vmem>>, vector<2x128xf32>
    tpu.vector_store %arg5[%c0_9, %c0_10], %35 {strides = array<i32>} : memref<2x3072xf32, #tpu.memory_space<vmem>>, vector<2x128xf32>,
    %cst_11 = arith.constant dense<0.000000e+00> : vector<2x384xf32>
    %37 = tpu.matmul %35, %0, %cst_11 {dimension_numbers = #tpu.dot_dimension_numbers<[1], [0], [0], [1], [0, 0, 1, 1], [], []>} : vector<2x128xf32>, vector<128x384xf32>, vector<2x384xf32> -> vector<2x384xf32>
    %c1 = arith.constant 1 : index
    %c0_12 = arith.constant 0 : index
    %c0_13 = arith.constant 0 : index
    %38 = vector.load %arg0[%c1, %c0_12, %c0_13] : memref<24x2x384xf32, #tpu.memory_space<vmem>>, vector<1x2x384xf32>
    %39 = vector.shape_cast %38 : vector<1x2x384xf32> to vector<2x384xf32>
    %40 = vector.extract_strided_slice %39 {offsets = [0, 0], sizes = [2, 128], strides = [1, 1]} : vector<2x384xf32> to vector<2x128xf32>
    %41 = vector.extract_strided_slice %37 {offsets = [0, 0], sizes = [2, 128], strides = [1, 1]} : vector<2x384xf32> to vector<2x128xf32>
    %42 = arith.addf %40, %41 : vector<2x128xf32>
    %43 = arith.negf %42 : vector<2x128xf32>
    %44 = math.exp %43 : vector<2x128xf32>
    %cst_14 = arith.constant 1.000000e+00 : f32
    %45 = vector.broadcast %cst_14 : f32 to vector<2x128xf32>
    %46 = arith.addf %45, %44 : vector<2x128xf32>
    %47 = arith.divf %45, %46 : vector<2x128xf32>
    %48 = vector.extract_strided_slice %39 {offsets = [0, 128], sizes = [2, 128], strides = [1, 1]} : vector<2x384xf32> to vector<2x128xf32>
    %49 = vector.extract_strided_slice %37 {offsets = [0, 128], sizes = [2, 128], strides = [1, 1]} : vector<2x384xf32> to vector<2x128xf32>
    %50 = arith.addf %48, %49 : vector<2x128xf32>
    %51 = arith.negf %50 : vector<2x128xf32>
    %52 = math.exp %51 : vector<2x128xf32>
    %cst_15 = arith.constant 1.000000e+00 : f32
    %53 = vector.broadcast %cst_15 : f32 to vector<2x128xf32>
    %54 = arith.addf %53, %52 : vector<2x128xf32>
    %55 = arith.divf %53, %54 : vector<2x128xf32>
    %56 = vector.extract_strided_slice %39 {offsets = [0, 256], sizes = [2, 128], strides = [1, 1]} : vector<2x384xf32> to vector<2x128xf32>
    %57 = vector.extract_strided_slice %37 {offsets = [0, 256], sizes = [2, 128], strides = [1, 1]} : vector<2x384xf32> to vector<2x128xf32>
    %58 = arith.mulf %47, %57 : vector<2x128xf32>
    %59 = arith.addf %56, %58 : vector<2x128xf32>
    %60 = math.tanh %59 : vector<2x128xf32>
    %cst_16 = arith.constant 1.000000e+00 : f32
    %61 = vector.broadcast %cst_16 : f32 to vector<2x128xf32>
    %62 = arith.subf %61, %55 : vector<2x128xf32>
    %63 = arith.mulf %62, %60 : vector<2x128xf32>
    %64 = arith.mulf %55, %35 : vector<2x128xf32>
    %65 = arith.addf %63, %64 : vector<2x128xf32>
    %c0_17 = arith.constant 0 : index
    %c128 = arith.constant 128 : index
    %66 = vector.load %arg5[%c0_17, %c128] : memref<2x3072xf32, #tpu.memory_space<vmem>>, vector<2x128xf32>
    tpu.vector_store %arg5[%c0_17, %c128], %65 {strides = array<i32>} : memref<2x3072xf32, #tpu.memory_space<vmem>>, vector<2x128xf32>,
    %cst_18 = arith.constant dense<0.000000e+00> : vector<2x384xf32>
    %67 = tpu.matmul %65, %0, %cst_18 {dimension_numbers = #tpu.dot_dimension_numbers<[1], [0], [0], [1], [0, 0, 1, 1], [], []>} : vector<2x128xf32>, vector<128x384xf32>, vector<2x384xf32> -> vector<2x384xf32>
    %c2 = arith.constant 2 : index
    %c0_19 = arith.constant 0 : index
    %c0_20 = arith.constant 0 : index
    %68 = vector.load %arg0[%c2, %c0_19, %c0_20] : memref<24x2x384xf32, #tpu.memory_space<vmem>>, vector<1x2x384xf32>
    %69 = vector.shape_cast %68 : vector<1x2x384xf32> to vector<2x384xf32>
    %70 = vector.extract_strided_slice %69 {offsets = [0, 0], sizes = [2, 128], strides = [1, 1]} : vector<2x384xf32> to vector<2x128xf32>
    %71 = vector.extract_strided_slice %67 {offsets = [0, 0], sizes = [2, 128], strides = [1, 1]} : vector<2x384xf32> to vector<2x128xf32>
    %72 = arith.addf %70, %71 : vector<2x128xf32>
    %73 = arith.negf %72 : vector<2x128xf32>
    %74 = math.exp %73 : vector<2x128xf32>
    %cst_21 = arith.constant 1.000000e+00 : f32
    %75 = vector.broadcast %cst_21 : f32 to vector<2x128xf32>
    %76 = arith.addf %75, %74 : vector<2x128xf32>
    %77 = arith.divf %75, %76 : vector<2x128xf32>
    %78 = vector.extract_strided_slice %69 {offsets = [0, 128], sizes = [2, 128], strides = [1, 1]} : vector<2x384xf32> to vector<2x128xf32>
    %79 = vector.extract_strided_slice %67 {offsets = [0, 128], sizes = [2, 128], strides = [1, 1]} : vector<2x384xf32> to vector<2x128xf32>
    %80 = arith.addf %78, %79 : vector<2x128xf32>
    %81 = arith.negf %80 : vector<2x128xf32>
    %82 = math.exp %81 : vector<2x128xf32>
    %cst_22 = arith.constant 1.000000e+00 : f32
    %83 = vector.broadcast %cst_22 : f32 to vector<2x128xf32>
    %84 = arith.addf %83, %82 : vector<2x128xf32>
    %85 = arith.divf %83, %84 : vector<2x128xf32>
    %86 = vector.extract_strided_slice %69 {offsets = [0, 256], sizes = [2, 128], strides = [1, 1]} : vector<2x384xf32> to vector<2x128xf32>
    %87 = vector.extract_strided_slice %67 {offsets = [0, 256], sizes = [2, 128], strides = [1, 1]} : vector<2x384xf32> to vector<2x128xf32>
    %88 = arith.mulf %77, %87 : vector<2x128xf32>
    %89 = arith.addf %86, %88 : vector<2x128xf32>
    %90 = math.tanh %89 : vector<2x128xf32>
    %cst_23 = arith.constant 1.000000e+00 : f32
    %91 = vector.broadcast %cst_23 : f32 to vector<2x128xf32>
    %92 = arith.subf %91, %85 : vector<2x128xf32>
    %93 = arith.mulf %92, %90 : vector<2x128xf32>
    %94 = arith.mulf %85, %65 : vector<2x128xf32>
    %95 = arith.addf %93, %94 : vector<2x128xf32>
    %c0_24 = arith.constant 0 : index
    %c256 = arith.constant 256 : index
    %96 = vector.load %arg5[%c0_24, %c256] : memref<2x3072xf32, #tpu.memory_space<vmem>>, vector<2x128xf32>
    tpu.vector_store %arg5[%c0_24, %c256], %95 {strides = array<i32>} : memref<2x3072xf32, #tpu.memory_space<vmem>>, vector<2x128xf32>,
    %cst_25 = arith.constant dense<0.000000e+00> : vector<2x384xf32>
    %97 = tpu.matmul %95, %0, %cst_25 {dimension_numbers = #tpu.dot_dimension_numbers<[1], [0], [0], [1], [0, 0, 1, 1], [], []>} : vector<2x128xf32>, vector<128x384xf32>, vector<2x384xf32> -> vector<2x384xf32>
    %c3 = arith.constant 3 : index
    %c0_26 = arith.constant 0 : index
    %c0_27 = arith.constant 0 : index
    %98 = vector.load %arg0[%c3, %c0_26, %c0_27] : memref<24x2x384xf32, #tpu.memory_space<vmem>>, vector<1x2x384xf32>
    %99 = vector.shape_cast %98 : vector<1x2x384xf32> to vector<2x384xf32>
    %100 = vector.extract_strided_slice %99 {offsets = [0, 0], sizes = [2, 128], strides = [1, 1]} : vector<2x384xf32> to vector<2x128xf32>
    %101 = vector.extract_strided_slice %97 {offsets = [0, 0], sizes = [2, 128], strides = [1, 1]} : vector<2x384xf32> to vector<2x128xf32>
    %102 = arith.addf %100, %101 : vector<2x128xf32>
    %103 = arith.negf %102 : vector<2x128xf32>
    %104 = math.exp %103 : vector<2x128xf32>
    %cst_28 = arith.constant 1.000000e+00 : f32
    %105 = vector.broadcast %cst_28 : f32 to vector<2x128xf32>
    %106 = arith.addf %105, %104 : vector<2x128xf32>
    %107 = arith.divf %105, %106 : vector<2x128xf32>
    %108 = vector.extract_strided_slice %99 {offsets = [0, 128], sizes = [2, 128], strides = [1, 1]} : vector<2x384xf32> to vector<2x128xf32>
    %109 = vector.extract_strided_slice %97 {offsets = [0, 128], sizes = [2, 128], strides = [1, 1]} : vector<2x384xf32> to vector<2x128xf32>
    %110 = arith.addf %108, %109 : vector<2x128xf32>
    %111 = arith.negf %110 : vector<2x128xf32>
    %112 = math.exp %111 : vector<2x128xf32>
    %cst_29 = arith.constant 1.000000e+00 : f32
    %113 = vector.broadcast %cst_29 : f32 to vector<2x128xf32>
    %114 = arith.addf %113, %112 : vector<2x128xf32>
    %115 = arith.divf %113, %114 : vector<2x128xf32>
    %116 = vector.extract_strided_slice %99 {offsets = [0, 256], sizes = [2, 128], strides = [1, 1]} : vector<2x384xf32> to vector<2x128xf32>
    %117 = vector.extract_strided_slice %97 {offsets = [0, 256], sizes = [2, 128], strides = [1, 1]} : vector<2x384xf32> to vector<2x128xf32>
    %118 = arith.mulf %107, %117 : vector<2x128xf32>
    %119 = arith.addf %116, %118 : vector<2x128xf32>
    %120 = math.tanh %119 : vector<2x128xf32>
    %cst_30 = arith.constant 1.000000e+00 : f32
    %121 = vector.broadcast %cst_30 : f32 to vector<2x128xf32>
    %122 = arith.subf %121, %115 : vector<2x128xf32>
    %123 = arith.mulf %122, %120 : vector<2x128xf32>
    %124 = arith.mulf %115, %95 : vector<2x128xf32>
    %125 = arith.addf %123, %124 : vector<2x128xf32>
    %c0_31 = arith.constant 0 : index
    %c384 = arith.constant 384 : index
    %126 = vector.load %arg5[%c0_31, %c384] : memref<2x3072xf32, #tpu.memory_space<vmem>>, vector<2x128xf32>
    tpu.vector_store %arg5[%c0_31, %c384], %125 {strides = array<i32>} : memref<2x3072xf32, #tpu.memory_space<vmem>>, vector<2x128xf32>,
    %cst_32 = arith.constant dense<0.000000e+00> : vector<2x384xf32>
    %127 = tpu.matmul %125, %0, %cst_32 {dimension_numbers = #tpu.dot_dimension_numbers<[1], [0], [0], [1], [0, 0, 1, 1], [], []>} : vector<2x128xf32>, vector<128x384xf32>, vector<2x384xf32> -> vector<2x384xf32>
    %c4 = arith.constant 4 : index
    %c0_33 = arith.constant 0 : index
    %c0_34 = arith.constant 0 : index
    %128 = vector.load %arg0[%c4, %c0_33, %c0_34] : memref<24x2x384xf32, #tpu.memory_space<vmem>>, vector<1x2x384xf32>
    %129 = vector.shape_cast %128 : vector<1x2x384xf32> to vector<2x384xf32>
    %130 = vector.extract_strided_slice %129 {offsets = [0, 0], sizes = [2, 128], strides = [1, 1]} : vector<2x384xf32> to vector<2x128xf32>
    %131 = vector.extract_strided_slice %127 {offsets = [0, 0], sizes = [2, 128], strides = [1, 1]} : vector<2x384xf32> to vector<2x128xf32>
    %132 = arith.addf %130, %131 : vector<2x128xf32>
    %133 = arith.negf %132 : vector<2x128xf32>
    %134 = math.exp %133 : vector<2x128xf32>
    %cst_35 = arith.constant 1.000000e+00 : f32
    %135 = vector.broadcast %cst_35 : f32 to vector<2x128xf32>
    %136 = arith.addf %135, %134 : vector<2x128xf32>
    %137 = arith.divf %135, %136 : vector<2x128xf32>
    %138 = vector.extract_strided_slice %129 {offsets = [0, 128], sizes = [2, 128], strides = [1, 1]} : vector<2x384xf32> to vector<2x128xf32>
    %139 = vector.extract_strided_slice %127 {offsets = [0, 128], sizes = [2, 128], strides = [1, 1]} : vector<2x384xf32> to vector<2x128xf32>
    %140 = arith.addf %138, %139 : vector<2x128xf32>
    %141 = arith.negf %140 : vector<2x128xf32>
    %142 = math.exp %141 : vector<2x128xf32>
    %cst_36 = arith.constant 1.000000e+00 : f32
    %143 = vector.broadcast %cst_36 : f32 to vector<2x128xf32>
    %144 = arith.addf %143, %142 : vector<2x128xf32>
    %145 = arith.divf %143, %144 : vector<2x128xf32>
    %146 = vector.extract_strided_slice %129 {offsets = [0, 256], sizes = [2, 128], strides = [1, 1]} : vector<2x384xf32> to vector<2x128xf32>
    %147 = vector.extract_strided_slice %127 {offsets = [0, 256], sizes = [2, 128], strides = [1, 1]} : vector<2x384xf32> to vector<2x128xf32>
    %148 = arith.mulf %137, %147 : vector<2x128xf32>
    %149 = arith.addf %146, %148 : vector<2x128xf32>
    %150 = math.tanh %149 : vector<2x128xf32>
    %cst_37 = arith.constant 1.000000e+00 : f32
    %151 = vector.broadcast %cst_37 : f32 to vector<2x128xf32>
    %152 = arith.subf %151, %145 : vector<2x128xf32>
    %153 = arith.mulf %152, %150 : vector<2x128xf32>
    %154 = arith.mulf %145, %125 : vector<2x128xf32>
    %155 = arith.addf %153, %154 : vector<2x128xf32>
    %c0_38 = arith.constant 0 : index
    %c512 = arith.constant 512 : index
    %156 = vector.load %arg5[%c0_38, %c512] : memref<2x3072xf32, #tpu.memory_space<vmem>>, vector<2x128xf32>
    tpu.vector_store %arg5[%c0_38, %c512], %155 {strides = array<i32>} : memref<2x3072xf32, #tpu.memory_space<vmem>>, vector<2x128xf32>,
    %cst_39 = arith.constant dense<0.000000e+00> : vector<2x384xf32>
    %157 = tpu.matmul %155, %0, %cst_39 {dimension_numbers = #tpu.dot_dimension_numbers<[1], [0], [0], [1], [0, 0, 1, 1], [], []>} : vector<2x128xf32>, vector<128x384xf32>, vector<2x384xf32> -> vector<2x384xf32>
    %c5 = arith.constant 5 : index
    %c0_40 = arith.constant 0 : index
    %c0_41 = arith.constant 0 : index
    %158 = vector.load %arg0[%c5, %c0_40, %c0_41] : memref<24x2x384xf32, #tpu.memory_space<vmem>>, vector<1x2x384xf32>
    %159 = vector.shape_cast %158 : vector<1x2x384xf32> to vector<2x384xf32>
    %160 = vector.extract_strided_slice %159 {offsets = [0, 0], sizes = [2, 128], strides = [1, 1]} : vector<2x384xf32> to vector<2x128xf32>
    %161 = vector.extract_strided_slice %157 {offsets = [0, 0], sizes = [2, 128], strides = [1, 1]} : vector<2x384xf32> to vector<2x128xf32>
    %162 = arith.addf %160, %161 : vector<2x128xf32>
    %163 = arith.negf %162 : vector<2x128xf32>
    %164 = math.exp %163 : vector<2x128xf32>
    %cst_42 = arith.constant 1.000000e+00 : f32
    %165 = vector.broadcast %cst_42 : f32 to vector<2x128xf32>
    %166 = arith.addf %165, %164 : vector<2x128xf32>
    %167 = arith.divf %165, %166 : vector<2x128xf32>
    %168 = vector.extract_strided_slice %159 {offsets = [0, 128], sizes = [2, 128], strides = [1, 1]} : vector<2x384xf32> to vector<2x128xf32>
    %169 = vector.extract_strided_slice %157 {offsets = [0, 128], sizes = [2, 128], strides = [1, 1]} : vector<2x384xf32> to vector<2x128xf32>
    %170 = arith.addf %168, %169 : vector<2x128xf32>
    %171 = arith.negf %170 : vector<2x128xf32>
    %172 = math.exp %171 : vector<2x128xf32>
    %cst_43 = arith.constant 1.000000e+00 : f32
    %173 = vector.broadcast %cst_43 : f32 to vector<2x128xf32>
    %174 = arith.addf %173, %172 : vector<2x128xf32>
    %175 = arith.divf %173, %174 : vector<2x128xf32>
    %176 = vector.extract_strided_slice %159 {offsets = [0, 256], sizes = [2, 128], strides = [1, 1]} : vector<2x384xf32> to vector<2x128xf32>
    %177 = vector.extract_strided_slice %157 {offsets = [0, 256], sizes = [2, 128], strides = [1, 1]} : vector<2x384xf32> to vector<2x128xf32>
    %178 = arith.mulf %167, %177 : vector<2x128xf32>
    %179 = arith.addf %176, %178 : vector<2x128xf32>
    %180 = math.tanh %179 : vector<2x128xf32>
    %cst_44 = arith.constant 1.000000e+00 : f32
    %181 = vector.broadcast %cst_44 : f32 to vector<2x128xf32>
    %182 = arith.subf %181, %175 : vector<2x128xf32>
    %183 = arith.mulf %182, %180 : vector<2x128xf32>
    %184 = arith.mulf %175, %155 : vector<2x128xf32>
    %185 = arith.addf %183, %184 : vector<2x128xf32>
    %c0_45 = arith.constant 0 : index
    %c640 = arith.constant 640 : index
    %186 = vector.load %arg5[%c0_45, %c640] : memref<2x3072xf32, #tpu.memory_space<vmem>>, vector<2x128xf32>
    tpu.vector_store %arg5[%c0_45, %c640], %185 {strides = array<i32>} : memref<2x3072xf32, #tpu.memory_space<vmem>>, vector<2x128xf32>,
    %cst_46 = arith.constant dense<0.000000e+00> : vector<2x384xf32>
    %187 = tpu.matmul %185, %0, %cst_46 {dimension_numbers = #tpu.dot_dimension_numbers<[1], [0], [0], [1], [0, 0, 1, 1], [], []>} : vector<2x128xf32>, vector<128x384xf32>, vector<2x384xf32> -> vector<2x384xf32>
    %c6 = arith.constant 6 : index
    %c0_47 = arith.constant 0 : index
    %c0_48 = arith.constant 0 : index
    %188 = vector.load %arg0[%c6, %c0_47, %c0_48] : memref<24x2x384xf32, #tpu.memory_space<vmem>>, vector<1x2x384xf32>
    %189 = vector.shape_cast %188 : vector<1x2x384xf32> to vector<2x384xf32>
    %190 = vector.extract_strided_slice %189 {offsets = [0, 0], sizes = [2, 128], strides = [1, 1]} : vector<2x384xf32> to vector<2x128xf32>
    %191 = vector.extract_strided_slice %187 {offsets = [0, 0], sizes = [2, 128], strides = [1, 1]} : vector<2x384xf32> to vector<2x128xf32>
    %192 = arith.addf %190, %191 : vector<2x128xf32>
    %193 = arith.negf %192 : vector<2x128xf32>
    %194 = math.exp %193 : vector<2x128xf32>
    %cst_49 = arith.constant 1.000000e+00 : f32
    %195 = vector.broadcast %cst_49 : f32 to vector<2x128xf32>
    %196 = arith.addf %195, %194 : vector<2x128xf32>
    %197 = arith.divf %195, %196 : vector<2x128xf32>
    %198 = vector.extract_strided_slice %189 {offsets = [0, 128], sizes = [2, 128], strides = [1, 1]} : vector<2x384xf32> to vector<2x128xf32>
    %199 = vector.extract_strided_slice %187 {offsets = [0, 128], sizes = [2, 128], strides = [1, 1]} : vector<2x384xf32> to vector<2x128xf32>
    %200 = arith.addf %198, %199 : vector<2x128xf32>
    %201 = arith.negf %200 : vector<2x128xf32>
    %202 = math.exp %201 : vector<2x128xf32>
    %cst_50 = arith.constant 1.000000e+00 : f32
    %203 = vector.broadcast %cst_50 : f32 to vector<2x128xf32>
    %204 = arith.addf %203, %202 : vector<2x128xf32>
    %205 = arith.divf %203, %204 : vector<2x128xf32>
    %206 = vector.extract_strided_slice %189 {offsets = [0, 256], sizes = [2, 128], strides = [1, 1]} : vector<2x384xf32> to vector<2x128xf32>
    %207 = vector.extract_strided_slice %187 {offsets = [0, 256], sizes = [2, 128], strides = [1, 1]} : vector<2x384xf32> to vector<2x128xf32>
    %208 = arith.mulf %197, %207 : vector<2x128xf32>
    %209 = arith.addf %206, %208 : vector<2x128xf32>
    %210 = math.tanh %209 : vector<2x128xf32>
    %cst_51 = arith.constant 1.000000e+00 : f32
    %211 = vector.broadcast %cst_51 : f32 to vector<2x128xf32>
    %212 = arith.subf %211, %205 : vector<2x128xf32>
    %213 = arith.mulf %212, %210 : vector<2x128xf32>
    %214 = arith.mulf %205, %185 : vector<2x128xf32>
    %215 = arith.addf %213, %214 : vector<2x128xf32>
    %c0_52 = arith.constant 0 : index
    %c768 = arith.constant 768 : index
    %216 = vector.load %arg5[%c0_52, %c768] : memref<2x3072xf32, #tpu.memory_space<vmem>>, vector<2x128xf32>
    tpu.vector_store %arg5[%c0_52, %c768], %215 {strides = array<i32>} : memref<2x3072xf32, #tpu.memory_space<vmem>>, vector<2x128xf32>,
    %cst_53 = arith.constant dense<0.000000e+00> : vector<2x384xf32>
    %217 = tpu.matmul %215, %0, %cst_53 {dimension_numbers = #tpu.dot_dimension_numbers<[1], [0], [0], [1], [0, 0, 1, 1], [], []>} : vector<2x128xf32>, vector<128x384xf32>, vector<2x384xf32> -> vector<2x384xf32>
    %c7 = arith.constant 7 : index
    %c0_54 = arith.constant 0 : index
    %c0_55 = arith.constant 0 : index
    %218 = vector.load %arg0[%c7, %c0_54, %c0_55] : memref<24x2x384xf32, #tpu.memory_space<vmem>>, vector<1x2x384xf32>
    %219 = vector.shape_cast %218 : vector<1x2x384xf32> to vector<2x384xf32>
    %220 = vector.extract_strided_slice %219 {offsets = [0, 0], sizes = [2, 128], strides = [1, 1]} : vector<2x384xf32> to vector<2x128xf32>
    %221 = vector.extract_strided_slice %217 {offsets = [0, 0], sizes = [2, 128], strides = [1, 1]} : vector<2x384xf32> to vector<2x128xf32>
    %222 = arith.addf %220, %221 : vector<2x128xf32>
    %223 = arith.negf %222 : vector<2x128xf32>
    %224 = math.exp %223 : vector<2x128xf32>
    %cst_56 = arith.constant 1.000000e+00 : f32
    %225 = vector.broadcast %cst_56 : f32 to vector<2x128xf32>
    %226 = arith.addf %225, %224 : vector<2x128xf32>
    %227 = arith.divf %225, %226 : vector<2x128xf32>
    %228 = vector.extract_strided_slice %219 {offsets = [0, 128], sizes = [2, 128], strides = [1, 1]} : vector<2x384xf32> to vector<2x128xf32>
    %229 = vector.extract_strided_slice %217 {offsets = [0, 128], sizes = [2, 128], strides = [1, 1]} : vector<2x384xf32> to vector<2x128xf32>
    %230 = arith.addf %228, %229 : vector<2x128xf32>
    %231 = arith.negf %230 : vector<2x128xf32>
    %232 = math.exp %231 : vector<2x128xf32>
    %cst_57 = arith.constant 1.000000e+00 : f32
    %233 = vector.broadcast %cst_57 : f32 to vector<2x128xf32>
    %234 = arith.addf %233, %232 : vector<2x128xf32>
    %235 = arith.divf %233, %234 : vector<2x128xf32>
    %236 = vector.extract_strided_slice %219 {offsets = [0, 256], sizes = [2, 128], strides = [1, 1]} : vector<2x384xf32> to vector<2x128xf32>
    %237 = vector.extract_strided_slice %217 {offsets = [0, 256], sizes = [2, 128], strides = [1, 1]} : vector<2x384xf32> to vector<2x128xf32>
    %238 = arith.mulf %227, %237 : vector<2x128xf32>
    %239 = arith.addf %236, %238 : vector<2x128xf32>
    %240 = math.tanh %239 : vector<2x128xf32>
    %cst_58 = arith.constant 1.000000e+00 : f32
    %241 = vector.broadcast %cst_58 : f32 to vector<2x128xf32>
    %242 = arith.subf %241, %235 : vector<2x128xf32>
    %243 = arith.mulf %242, %240 : vector<2x128xf32>
    %244 = arith.mulf %235, %215 : vector<2x128xf32>
    %245 = arith.addf %243, %244 : vector<2x128xf32>
    %c0_59 = arith.constant 0 : index
    %c896 = arith.constant 896 : index
    %246 = vector.load %arg5[%c0_59, %c896] : memref<2x3072xf32, #tpu.memory_space<vmem>>, vector<2x128xf32>
    tpu.vector_store %arg5[%c0_59, %c896], %245 {strides = array<i32>} : memref<2x3072xf32, #tpu.memory_space<vmem>>, vector<2x128xf32>,
    %cst_60 = arith.constant dense<0.000000e+00> : vector<2x384xf32>
    %247 = tpu.matmul %245, %0, %cst_60 {dimension_numbers = #tpu.dot_dimension_numbers<[1], [0], [0], [1], [0, 0, 1, 1], [], []>} : vector<2x128xf32>, vector<128x384xf32>, vector<2x384xf32> -> vector<2x384xf32>
    %c8 = arith.constant 8 : index
    %c0_61 = arith.constant 0 : index
    %c0_62 = arith.constant 0 : index
    %248 = vector.load %arg0[%c8, %c0_61, %c0_62] : memref<24x2x384xf32, #tpu.memory_space<vmem>>, vector<1x2x384xf32>
    %249 = vector.shape_cast %248 : vector<1x2x384xf32> to vector<2x384xf32>
    %250 = vector.extract_strided_slice %249 {offsets = [0, 0], sizes = [2, 128], strides = [1, 1]} : vector<2x384xf32> to vector<2x128xf32>
    %251 = vector.extract_strided_slice %247 {offsets = [0, 0], sizes = [2, 128], strides = [1, 1]} : vector<2x384xf32> to vector<2x128xf32>
    %252 = arith.addf %250, %251 : vector<2x128xf32>
    %253 = arith.negf %252 : vector<2x128xf32>
    %254 = math.exp %253 : vector<2x128xf32>
    %cst_63 = arith.constant 1.000000e+00 : f32
    %255 = vector.broadcast %cst_63 : f32 to vector<2x128xf32>
    %256 = arith.addf %255, %254 : vector<2x128xf32>
    %257 = arith.divf %255, %256 : vector<2x128xf32>
    %258 = vector.extract_strided_slice %249 {offsets = [0, 128], sizes = [2, 128], strides = [1, 1]} : vector<2x384xf32> to vector<2x128xf32>
    %259 = vector.extract_strided_slice %247 {offsets = [0, 128], sizes = [2, 128], strides = [1, 1]} : vector<2x384xf32> to vector<2x128xf32>
    %260 = arith.addf %258, %259 : vector<2x128xf32>
    %261 = arith.negf %260 : vector<2x128xf32>
    %262 = math.exp %261 : vector<2x128xf32>
    %cst_64 = arith.constant 1.000000e+00 : f32
    %263 = vector.broadcast %cst_64 : f32 to vector<2x128xf32>
    %264 = arith.addf %263, %262 : vector<2x128xf32>
    %265 = arith.divf %263, %264 : vector<2x128xf32>
    %266 = vector.extract_strided_slice %249 {offsets = [0, 256], sizes = [2, 128], strides = [1, 1]} : vector<2x384xf32> to vector<2x128xf32>
    %267 = vector.extract_strided_slice %247 {offsets = [0, 256], sizes = [2, 128], strides = [1, 1]} : vector<2x384xf32> to vector<2x128xf32>
    %268 = arith.mulf %257, %267 : vector<2x128xf32>
    %269 = arith.addf %266, %268 : vector<2x128xf32>
    %270 = math.tanh %269 : vector<2x128xf32>
    %cst_65 = arith.constant 1.000000e+00 : f32
    %271 = vector.broadcast %cst_65 : f32 to vector<2x128xf32>
    %272 = arith.subf %271, %265 : vector<2x128xf32>
    %273 = arith.mulf %272, %270 : vector<2x128xf32>
    %274 = arith.mulf %265, %245 : vector<2x128xf32>
    %275 = arith.addf %273, %274 : vector<2x128xf32>
    %c0_66 = arith.constant 0 : index
    %c1024 = arith.constant 1024 : index
    %276 = vector.load %arg5[%c0_66, %c1024] : memref<2x3072xf32, #tpu.memory_space<vmem>>, vector<2x128xf32>
    tpu.vector_store %arg5[%c0_66, %c1024], %275 {strides = array<i32>} : memref<2x3072xf32, #tpu.memory_space<vmem>>, vector<2x128xf32>,
    %cst_67 = arith.constant dense<0.000000e+00> : vector<2x384xf32>
    %277 = tpu.matmul %275, %0, %cst_67 {dimension_numbers = #tpu.dot_dimension_numbers<[1], [0], [0], [1], [0, 0, 1, 1], [], []>} : vector<2x128xf32>, vector<128x384xf32>, vector<2x384xf32> -> vector<2x384xf32>
    %c9 = arith.constant 9 : index
    %c0_68 = arith.constant 0 : index
    %c0_69 = arith.constant 0 : index
    %278 = vector.load %arg0[%c9, %c0_68, %c0_69] : memref<24x2x384xf32, #tpu.memory_space<vmem>>, vector<1x2x384xf32>
    %279 = vector.shape_cast %278 : vector<1x2x384xf32> to vector<2x384xf32>
    %280 = vector.extract_strided_slice %279 {offsets = [0, 0], sizes = [2, 128], strides = [1, 1]} : vector<2x384xf32> to vector<2x128xf32>
    %281 = vector.extract_strided_slice %277 {offsets = [0, 0], sizes = [2, 128], strides = [1, 1]} : vector<2x384xf32> to vector<2x128xf32>
    %282 = arith.addf %280, %281 : vector<2x128xf32>
    %283 = arith.negf %282 : vector<2x128xf32>
    %284 = math.exp %283 : vector<2x128xf32>
    %cst_70 = arith.constant 1.000000e+00 : f32
    %285 = vector.broadcast %cst_70 : f32 to vector<2x128xf32>
    %286 = arith.addf %285, %284 : vector<2x128xf32>
    %287 = arith.divf %285, %286 : vector<2x128xf32>
    %288 = vector.extract_strided_slice %279 {offsets = [0, 128], sizes = [2, 128], strides = [1, 1]} : vector<2x384xf32> to vector<2x128xf32>
    %289 = vector.extract_strided_slice %277 {offsets = [0, 128], sizes = [2, 128], strides = [1, 1]} : vector<2x384xf32> to vector<2x128xf32>
    %290 = arith.addf %288, %289 : vector<2x128xf32>
    %291 = arith.negf %290 : vector<2x128xf32>
    %292 = math.exp %291 : vector<2x128xf32>
    %cst_71 = arith.constant 1.000000e+00 : f32
    %293 = vector.broadcast %cst_71 : f32 to vector<2x128xf32>
    %294 = arith.addf %293, %292 : vector<2x128xf32>
    %295 = arith.divf %293, %294 : vector<2x128xf32>
    %296 = vector.extract_strided_slice %279 {offsets = [0, 256], sizes = [2, 128], strides = [1, 1]} : vector<2x384xf32> to vector<2x128xf32>
    %297 = vector.extract_strided_slice %277 {offsets = [0, 256], sizes = [2, 128], strides = [1, 1]} : vector<2x384xf32> to vector<2x128xf32>
    %298 = arith.mulf %287, %297 : vector<2x128xf32>
    %299 = arith.addf %296, %298 : vector<2x128xf32>
    %300 = math.tanh %299 : vector<2x128xf32>
    %cst_72 = arith.constant 1.000000e+00 : f32
    %301 = vector.broadcast %cst_72 : f32 to vector<2x128xf32>
    %302 = arith.subf %301, %295 : vector<2x128xf32>
    %303 = arith.mulf %302, %300 : vector<2x128xf32>
    %304 = arith.mulf %295, %275 : vector<2x128xf32>
    %305 = arith.addf %303, %304 : vector<2x128xf32>
    %c0_73 = arith.constant 0 : index
    %c1152 = arith.constant 1152 : index
    %306 = vector.load %arg5[%c0_73, %c1152] : memref<2x3072xf32, #tpu.memory_space<vmem>>, vector<2x128xf32>
    tpu.vector_store %arg5[%c0_73, %c1152], %305 {strides = array<i32>} : memref<2x3072xf32, #tpu.memory_space<vmem>>, vector<2x128xf32>,
    %cst_74 = arith.constant dense<0.000000e+00> : vector<2x384xf32>
    %307 = tpu.matmul %305, %0, %cst_74 {dimension_numbers = #tpu.dot_dimension_numbers<[1], [0], [0], [1], [0, 0, 1, 1], [], []>} : vector<2x128xf32>, vector<128x384xf32>, vector<2x384xf32> -> vector<2x384xf32>
    %c10 = arith.constant 10 : index
    %c0_75 = arith.constant 0 : index
    %c0_76 = arith.constant 0 : index
    %308 = vector.load %arg0[%c10, %c0_75, %c0_76] : memref<24x2x384xf32, #tpu.memory_space<vmem>>, vector<1x2x384xf32>
    %309 = vector.shape_cast %308 : vector<1x2x384xf32> to vector<2x384xf32>
    %310 = vector.extract_strided_slice %309 {offsets = [0, 0], sizes = [2, 128], strides = [1, 1]} : vector<2x384xf32> to vector<2x128xf32>
    %311 = vector.extract_strided_slice %307 {offsets = [0, 0], sizes = [2, 128], strides = [1, 1]} : vector<2x384xf32> to vector<2x128xf32>
    %312 = arith.addf %310, %311 : vector<2x128xf32>
    %313 = arith.negf %312 : vector<2x128xf32>
    %314 = math.exp %313 : vector<2x128xf32>
    %cst_77 = arith.constant 1.000000e+00 : f32
    %315 = vector.broadcast %cst_77 : f32 to vector<2x128xf32>
    %316 = arith.addf %315, %314 : vector<2x128xf32>
    %317 = arith.divf %315, %316 : vector<2x128xf32>
    %318 = vector.extract_strided_slice %309 {offsets = [0, 128], sizes = [2, 128], strides = [1, 1]} : vector<2x384xf32> to vector<2x128xf32>
    %319 = vector.extract_strided_slice %307 {offsets = [0, 128], sizes = [2, 128], strides = [1, 1]} : vector<2x384xf32> to vector<2x128xf32>
    %320 = arith.addf %318, %319 : vector<2x128xf32>
    %321 = arith.negf %320 : vector<2x128xf32>
    %322 = math.exp %321 : vector<2x128xf32>
    %cst_78 = arith.constant 1.000000e+00 : f32
    %323 = vector.broadcast %cst_78 : f32 to vector<2x128xf32>
    %324 = arith.addf %323, %322 : vector<2x128xf32>
    %325 = arith.divf %323, %324 : vector<2x128xf32>
    %326 = vector.extract_strided_slice %309 {offsets = [0, 256], sizes = [2, 128], strides = [1, 1]} : vector<2x384xf32> to vector<2x128xf32>
    %327 = vector.extract_strided_slice %307 {offsets = [0, 256], sizes = [2, 128], strides = [1, 1]} : vector<2x384xf32> to vector<2x128xf32>
    %328 = arith.mulf %317, %327 : vector<2x128xf32>
    %329 = arith.addf %326, %328 : vector<2x128xf32>
    %330 = math.tanh %329 : vector<2x128xf32>
    %cst_79 = arith.constant 1.000000e+00 : f32
    %331 = vector.broadcast %cst_79 : f32 to vector<2x128xf32>
    %332 = arith.subf %331, %325 : vector<2x128xf32>
    %333 = arith.mulf %332, %330 : vector<2x128xf32>
    %334 = arith.mulf %325, %305 : vector<2x128xf32>
    %335 = arith.addf %333, %334 : vector<2x128xf32>
    %c0_80 = arith.constant 0 : index
    %c1280 = arith.constant 1280 : index
    %336 = vector.load %arg5[%c0_80, %c1280] : memref<2x3072xf32, #tpu.memory_space<vmem>>, vector<2x128xf32>
    tpu.vector_store %arg5[%c0_80, %c1280], %335 {strides = array<i32>} : memref<2x3072xf32, #tpu.memory_space<vmem>>, vector<2x128xf32>,
    %cst_81 = arith.constant dense<0.000000e+00> : vector<2x384xf32>
    %337 = tpu.matmul %335, %0, %cst_81 {dimension_numbers = #tpu.dot_dimension_numbers<[1], [0], [0], [1], [0, 0, 1, 1], [], []>} : vector<2x128xf32>, vector<128x384xf32>, vector<2x384xf32> -> vector<2x384xf32>
    %c11 = arith.constant 11 : index
    %c0_82 = arith.constant 0 : index
    %c0_83 = arith.constant 0 : index
    %338 = vector.load %arg0[%c11, %c0_82, %c0_83] : memref<24x2x384xf32, #tpu.memory_space<vmem>>, vector<1x2x384xf32>
    %339 = vector.shape_cast %338 : vector<1x2x384xf32> to vector<2x384xf32>
    %340 = vector.extract_strided_slice %339 {offsets = [0, 0], sizes = [2, 128], strides = [1, 1]} : vector<2x384xf32> to vector<2x128xf32>
    %341 = vector.extract_strided_slice %337 {offsets = [0, 0], sizes = [2, 128], strides = [1, 1]} : vector<2x384xf32> to vector<2x128xf32>
    %342 = arith.addf %340, %341 : vector<2x128xf32>
    %343 = arith.negf %342 : vector<2x128xf32>
    %344 = math.exp %343 : vector<2x128xf32>
    %cst_84 = arith.constant 1.000000e+00 : f32
    %345 = vector.broadcast %cst_84 : f32 to vector<2x128xf32>
    %346 = arith.addf %345, %344 : vector<2x128xf32>
    %347 = arith.divf %345, %346 : vector<2x128xf32>
    %348 = vector.extract_strided_slice %339 {offsets = [0, 128], sizes = [2, 128], strides = [1, 1]} : vector<2x384xf32> to vector<2x128xf32>
    %349 = vector.extract_strided_slice %337 {offsets = [0, 128], sizes = [2, 128], strides = [1, 1]} : vector<2x384xf32> to vector<2x128xf32>
    %350 = arith.addf %348, %349 : vector<2x128xf32>
    %351 = arith.negf %350 : vector<2x128xf32>
    %352 = math.exp %351 : vector<2x128xf32>
    %cst_85 = arith.constant 1.000000e+00 : f32
    %353 = vector.broadcast %cst_85 : f32 to vector<2x128xf32>
    %354 = arith.addf %353, %352 : vector<2x128xf32>
    %355 = arith.divf %353, %354 : vector<2x128xf32>
    %356 = vector.extract_strided_slice %339 {offsets = [0, 256], sizes = [2, 128], strides = [1, 1]} : vector<2x384xf32> to vector<2x128xf32>
    %357 = vector.extract_strided_slice %337 {offsets = [0, 256], sizes = [2, 128], strides = [1, 1]} : vector<2x384xf32> to vector<2x128xf32>
    %358 = arith.mulf %347, %357 : vector<2x128xf32>
    %359 = arith.addf %356, %358 : vector<2x128xf32>
    %360 = math.tanh %359 : vector<2x128xf32>
    %cst_86 = arith.constant 1.000000e+00 : f32
    %361 = vector.broadcast %cst_86 : f32 to vector<2x128xf32>
    %362 = arith.subf %361, %355 : vector<2x128xf32>
    %363 = arith.mulf %362, %360 : vector<2x128xf32>
    %364 = arith.mulf %355, %335 : vector<2x128xf32>
    %365 = arith.addf %363, %364 : vector<2x128xf32>
    %c0_87 = arith.constant 0 : index
    %c1408 = arith.constant 1408 : index
    %366 = vector.load %arg5[%c0_87, %c1408] : memref<2x3072xf32, #tpu.memory_space<vmem>>, vector<2x128xf32>
    tpu.vector_store %arg5[%c0_87, %c1408], %365 {strides = array<i32>} : memref<2x3072xf32, #tpu.memory_space<vmem>>, vector<2x128xf32>,
    %cst_88 = arith.constant dense<0.000000e+00> : vector<2x384xf32>
    %367 = tpu.matmul %365, %0, %cst_88 {dimension_numbers = #tpu.dot_dimension_numbers<[1], [0], [0], [1], [0, 0, 1, 1], [], []>} : vector<2x128xf32>, vector<128x384xf32>, vector<2x384xf32> -> vector<2x384xf32>
    %c12 = arith.constant 12 : index
    %c0_89 = arith.constant 0 : index
    %c0_90 = arith.constant 0 : index
    %368 = vector.load %arg0[%c12, %c0_89, %c0_90] : memref<24x2x384xf32, #tpu.memory_space<vmem>>, vector<1x2x384xf32>
    %369 = vector.shape_cast %368 : vector<1x2x384xf32> to vector<2x384xf32>
    %370 = vector.extract_strided_slice %369 {offsets = [0, 0], sizes = [2, 128], strides = [1, 1]} : vector<2x384xf32> to vector<2x128xf32>
    %371 = vector.extract_strided_slice %367 {offsets = [0, 0], sizes = [2, 128], strides = [1, 1]} : vector<2x384xf32> to vector<2x128xf32>
    %372 = arith.addf %370, %371 : vector<2x128xf32>
    %373 = arith.negf %372 : vector<2x128xf32>
    %374 = math.exp %373 : vector<2x128xf32>
    %cst_91 = arith.constant 1.000000e+00 : f32
    %375 = vector.broadcast %cst_91 : f32 to vector<2x128xf32>
    %376 = arith.addf %375, %374 : vector<2x128xf32>
    %377 = arith.divf %375, %376 : vector<2x128xf32>
    %378 = vector.extract_strided_slice %369 {offsets = [0, 128], sizes = [2, 128], strides = [1, 1]} : vector<2x384xf32> to vector<2x128xf32>
    %379 = vector.extract_strided_slice %367 {offsets = [0, 128], sizes = [2, 128], strides = [1, 1]} : vector<2x384xf32> to vector<2x128xf32>
    %380 = arith.addf %378, %379 : vector<2x128xf32>
    %381 = arith.negf %380 : vector<2x128xf32>
    %382 = math.exp %381 : vector<2x128xf32>
    %cst_92 = arith.constant 1.000000e+00 : f32
    %383 = vector.broadcast %cst_92 : f32 to vector<2x128xf32>
    %384 = arith.addf %383, %382 : vector<2x128xf32>
    %385 = arith.divf %383, %384 : vector<2x128xf32>
    %386 = vector.extract_strided_slice %369 {offsets = [0, 256], sizes = [2, 128], strides = [1, 1]} : vector<2x384xf32> to vector<2x128xf32>
    %387 = vector.extract_strided_slice %367 {offsets = [0, 256], sizes = [2, 128], strides = [1, 1]} : vector<2x384xf32> to vector<2x128xf32>
    %388 = arith.mulf %377, %387 : vector<2x128xf32>
    %389 = arith.addf %386, %388 : vector<2x128xf32>
    %390 = math.tanh %389 : vector<2x128xf32>
    %cst_93 = arith.constant 1.000000e+00 : f32
    %391 = vector.broadcast %cst_93 : f32 to vector<2x128xf32>
    %392 = arith.subf %391, %385 : vector<2x128xf32>
    %393 = arith.mulf %392, %390 : vector<2x128xf32>
    %394 = arith.mulf %385, %365 : vector<2x128xf32>
    %395 = arith.addf %393, %394 : vector<2x128xf32>
    %c0_94 = arith.constant 0 : index
    %c1536 = arith.constant 1536 : index
    %396 = vector.load %arg5[%c0_94, %c1536] : memref<2x3072xf32, #tpu.memory_space<vmem>>, vector<2x128xf32>
    tpu.vector_store %arg5[%c0_94, %c1536], %395 {strides = array<i32>} : memref<2x3072xf32, #tpu.memory_space<vmem>>, vector<2x128xf32>,
    %cst_95 = arith.constant dense<0.000000e+00> : vector<2x384xf32>
    %397 = tpu.matmul %395, %0, %cst_95 {dimension_numbers = #tpu.dot_dimension_numbers<[1], [0], [0], [1], [0, 0, 1, 1], [], []>} : vector<2x128xf32>, vector<128x384xf32>, vector<2x384xf32> -> vector<2x384xf32>
    %c13 = arith.constant 13 : index
    %c0_96 = arith.constant 0 : index
    %c0_97 = arith.constant 0 : index
    %398 = vector.load %arg0[%c13, %c0_96, %c0_97] : memref<24x2x384xf32, #tpu.memory_space<vmem>>, vector<1x2x384xf32>
    %399 = vector.shape_cast %398 : vector<1x2x384xf32> to vector<2x384xf32>
    %400 = vector.extract_strided_slice %399 {offsets = [0, 0], sizes = [2, 128], strides = [1, 1]} : vector<2x384xf32> to vector<2x128xf32>
    %401 = vector.extract_strided_slice %397 {offsets = [0, 0], sizes = [2, 128], strides = [1, 1]} : vector<2x384xf32> to vector<2x128xf32>
    %402 = arith.addf %400, %401 : vector<2x128xf32>
    %403 = arith.negf %402 : vector<2x128xf32>
    %404 = math.exp %403 : vector<2x128xf32>
    %cst_98 = arith.constant 1.000000e+00 : f32
    %405 = vector.broadcast %cst_98 : f32 to vector<2x128xf32>
    %406 = arith.addf %405, %404 : vector<2x128xf32>
    %407 = arith.divf %405, %406 : vector<2x128xf32>
    %408 = vector.extract_strided_slice %399 {offsets = [0, 128], sizes = [2, 128], strides = [1, 1]} : vector<2x384xf32> to vector<2x128xf32>
    %409 = vector.extract_strided_slice %397 {offsets = [0, 128], sizes = [2, 128], strides = [1, 1]} : vector<2x384xf32> to vector<2x128xf32>
    %410 = arith.addf %408, %409 : vector<2x128xf32>
    %411 = arith.negf %410 : vector<2x128xf32>
    %412 = math.exp %411 : vector<2x128xf32>
    %cst_99 = arith.constant 1.000000e+00 : f32
    %413 = vector.broadcast %cst_99 : f32 to vector<2x128xf32>
    %414 = arith.addf %413, %412 : vector<2x128xf32>
    %415 = arith.divf %413, %414 : vector<2x128xf32>
    %416 = vector.extract_strided_slice %399 {offsets = [0, 256], sizes = [2, 128], strides = [1, 1]} : vector<2x384xf32> to vector<2x128xf32>
    %417 = vector.extract_strided_slice %397 {offsets = [0, 256], sizes = [2, 128], strides = [1, 1]} : vector<2x384xf32> to vector<2x128xf32>
    %418 = arith.mulf %407, %417 : vector<2x128xf32>
    %419 = arith.addf %416, %418 : vector<2x128xf32>
    %420 = math.tanh %419 : vector<2x128xf32>
    %cst_100 = arith.constant 1.000000e+00 : f32
    %421 = vector.broadcast %cst_100 : f32 to vector<2x128xf32>
    %422 = arith.subf %421, %415 : vector<2x128xf32>
    %423 = arith.mulf %422, %420 : vector<2x128xf32>
    %424 = arith.mulf %415, %395 : vector<2x128xf32>
    %425 = arith.addf %423, %424 : vector<2x128xf32>
    %c0_101 = arith.constant 0 : index
    %c1664 = arith.constant 1664 : index
    %426 = vector.load %arg5[%c0_101, %c1664] : memref<2x3072xf32, #tpu.memory_space<vmem>>, vector<2x128xf32>
    tpu.vector_store %arg5[%c0_101, %c1664], %425 {strides = array<i32>} : memref<2x3072xf32, #tpu.memory_space<vmem>>, vector<2x128xf32>,
    %cst_102 = arith.constant dense<0.000000e+00> : vector<2x384xf32>
    %427 = tpu.matmul %425, %0, %cst_102 {dimension_numbers = #tpu.dot_dimension_numbers<[1], [0], [0], [1], [0, 0, 1, 1], [], []>} : vector<2x128xf32>, vector<128x384xf32>, vector<2x384xf32> -> vector<2x384xf32>
    %c14 = arith.constant 14 : index
    %c0_103 = arith.constant 0 : index
    %c0_104 = arith.constant 0 : index
    %428 = vector.load %arg0[%c14, %c0_103, %c0_104] : memref<24x2x384xf32, #tpu.memory_space<vmem>>, vector<1x2x384xf32>
    %429 = vector.shape_cast %428 : vector<1x2x384xf32> to vector<2x384xf32>
    %430 = vector.extract_strided_slice %429 {offsets = [0, 0], sizes = [2, 128], strides = [1, 1]} : vector<2x384xf32> to vector<2x128xf32>
    %431 = vector.extract_strided_slice %427 {offsets = [0, 0], sizes = [2, 128], strides = [1, 1]} : vector<2x384xf32> to vector<2x128xf32>
    %432 = arith.addf %430, %431 : vector<2x128xf32>
    %433 = arith.negf %432 : vector<2x128xf32>
    %434 = math.exp %433 : vector<2x128xf32>
    %cst_105 = arith.constant 1.000000e+00 : f32
    %435 = vector.broadcast %cst_105 : f32 to vector<2x128xf32>
    %436 = arith.addf %435, %434 : vector<2x128xf32>
    %437 = arith.divf %435, %436 : vector<2x128xf32>
    %438 = vector.extract_strided_slice %429 {offsets = [0, 128], sizes = [2, 128], strides = [1, 1]} : vector<2x384xf32> to vector<2x128xf32>
    %439 = vector.extract_strided_slice %427 {offsets = [0, 128], sizes = [2, 128], strides = [1, 1]} : vector<2x384xf32> to vector<2x128xf32>
    %440 = arith.addf %438, %439 : vector<2x128xf32>
    %441 = arith.negf %440 : vector<2x128xf32>
    %442 = math.exp %441 : vector<2x128xf32>
    %cst_106 = arith.constant 1.000000e+00 : f32
    %443 = vector.broadcast %cst_106 : f32 to vector<2x128xf32>
    %444 = arith.addf %443, %442 : vector<2x128xf32>
    %445 = arith.divf %443, %444 : vector<2x128xf32>
    %446 = vector.extract_strided_slice %429 {offsets = [0, 256], sizes = [2, 128], strides = [1, 1]} : vector<2x384xf32> to vector<2x128xf32>
    %447 = vector.extract_strided_slice %427 {offsets = [0, 256], sizes = [2, 128], strides = [1, 1]} : vector<2x384xf32> to vector<2x128xf32>
    %448 = arith.mulf %437, %447 : vector<2x128xf32>
    %449 = arith.addf %446, %448 : vector<2x128xf32>
    %450 = math.tanh %449 : vector<2x128xf32>
    %cst_107 = arith.constant 1.000000e+00 : f32
    %451 = vector.broadcast %cst_107 : f32 to vector<2x128xf32>
    %452 = arith.subf %451, %445 : vector<2x128xf32>
    %453 = arith.mulf %452, %450 : vector<2x128xf32>
    %454 = arith.mulf %445, %425 : vector<2x128xf32>
    %455 = arith.addf %453, %454 : vector<2x128xf32>
    %c0_108 = arith.constant 0 : index
    %c1792 = arith.constant 1792 : index
    %456 = vector.load %arg5[%c0_108, %c1792] : memref<2x3072xf32, #tpu.memory_space<vmem>>, vector<2x128xf32>
    tpu.vector_store %arg5[%c0_108, %c1792], %455 {strides = array<i32>} : memref<2x3072xf32, #tpu.memory_space<vmem>>, vector<2x128xf32>,
    %cst_109 = arith.constant dense<0.000000e+00> : vector<2x384xf32>
    %457 = tpu.matmul %455, %0, %cst_109 {dimension_numbers = #tpu.dot_dimension_numbers<[1], [0], [0], [1], [0, 0, 1, 1], [], []>} : vector<2x128xf32>, vector<128x384xf32>, vector<2x384xf32> -> vector<2x384xf32>
    %c15 = arith.constant 15 : index
    %c0_110 = arith.constant 0 : index
    %c0_111 = arith.constant 0 : index
    %458 = vector.load %arg0[%c15, %c0_110, %c0_111] : memref<24x2x384xf32, #tpu.memory_space<vmem>>, vector<1x2x384xf32>
    %459 = vector.shape_cast %458 : vector<1x2x384xf32> to vector<2x384xf32>
    %460 = vector.extract_strided_slice %459 {offsets = [0, 0], sizes = [2, 128], strides = [1, 1]} : vector<2x384xf32> to vector<2x128xf32>
    %461 = vector.extract_strided_slice %457 {offsets = [0, 0], sizes = [2, 128], strides = [1, 1]} : vector<2x384xf32> to vector<2x128xf32>
    %462 = arith.addf %460, %461 : vector<2x128xf32>
    %463 = arith.negf %462 : vector<2x128xf32>
    %464 = math.exp %463 : vector<2x128xf32>
    %cst_112 = arith.constant 1.000000e+00 : f32
    %465 = vector.broadcast %cst_112 : f32 to vector<2x128xf32>
    %466 = arith.addf %465, %464 : vector<2x128xf32>
    %467 = arith.divf %465, %466 : vector<2x128xf32>
    %468 = vector.extract_strided_slice %459 {offsets = [0, 128], sizes = [2, 128], strides = [1, 1]} : vector<2x384xf32> to vector<2x128xf32>
    %469 = vector.extract_strided_slice %457 {offsets = [0, 128], sizes = [2, 128], strides = [1, 1]} : vector<2x384xf32> to vector<2x128xf32>
    %470 = arith.addf %468, %469 : vector<2x128xf32>
    %471 = arith.negf %470 : vector<2x128xf32>
    %472 = math.exp %471 : vector<2x128xf32>
    %cst_113 = arith.constant 1.000000e+00 : f32
    %473 = vector.broadcast %cst_113 : f32 to vector<2x128xf32>
    %474 = arith.addf %473, %472 : vector<2x128xf32>
    %475 = arith.divf %473, %474 : vector<2x128xf32>
    %476 = vector.extract_strided_slice %459 {offsets = [0, 256], sizes = [2, 128], strides = [1, 1]} : vector<2x384xf32> to vector<2x128xf32>
    %477 = vector.extract_strided_slice %457 {offsets = [0, 256], sizes = [2, 128], strides = [1, 1]} : vector<2x384xf32> to vector<2x128xf32>
    %478 = arith.mulf %467, %477 : vector<2x128xf32>
    %479 = arith.addf %476, %478 : vector<2x128xf32>
    %480 = math.tanh %479 : vector<2x128xf32>
    %cst_114 = arith.constant 1.000000e+00 : f32
    %481 = vector.broadcast %cst_114 : f32 to vector<2x128xf32>
    %482 = arith.subf %481, %475 : vector<2x128xf32>
    %483 = arith.mulf %482, %480 : vector<2x128xf32>
    %484 = arith.mulf %475, %455 : vector<2x128xf32>
    %485 = arith.addf %483, %484 : vector<2x128xf32>
    %c0_115 = arith.constant 0 : index
    %c1920 = arith.constant 1920 : index
    %486 = vector.load %arg5[%c0_115, %c1920] : memref<2x3072xf32, #tpu.memory_space<vmem>>, vector<2x128xf32>
    tpu.vector_store %arg5[%c0_115, %c1920], %485 {strides = array<i32>} : memref<2x3072xf32, #tpu.memory_space<vmem>>, vector<2x128xf32>,
    %cst_116 = arith.constant dense<0.000000e+00> : vector<2x384xf32>
    %487 = tpu.matmul %485, %0, %cst_116 {dimension_numbers = #tpu.dot_dimension_numbers<[1], [0], [0], [1], [0, 0, 1, 1], [], []>} : vector<2x128xf32>, vector<128x384xf32>, vector<2x384xf32> -> vector<2x384xf32>
    %c16 = arith.constant 16 : index
    %c0_117 = arith.constant 0 : index
    %c0_118 = arith.constant 0 : index
    %488 = vector.load %arg0[%c16, %c0_117, %c0_118] : memref<24x2x384xf32, #tpu.memory_space<vmem>>, vector<1x2x384xf32>
    %489 = vector.shape_cast %488 : vector<1x2x384xf32> to vector<2x384xf32>
    %490 = vector.extract_strided_slice %489 {offsets = [0, 0], sizes = [2, 128], strides = [1, 1]} : vector<2x384xf32> to vector<2x128xf32>
    %491 = vector.extract_strided_slice %487 {offsets = [0, 0], sizes = [2, 128], strides = [1, 1]} : vector<2x384xf32> to vector<2x128xf32>
    %492 = arith.addf %490, %491 : vector<2x128xf32>
    %493 = arith.negf %492 : vector<2x128xf32>
    %494 = math.exp %493 : vector<2x128xf32>
    %cst_119 = arith.constant 1.000000e+00 : f32
    %495 = vector.broadcast %cst_119 : f32 to vector<2x128xf32>
    %496 = arith.addf %495, %494 : vector<2x128xf32>
    %497 = arith.divf %495, %496 : vector<2x128xf32>
    %498 = vector.extract_strided_slice %489 {offsets = [0, 128], sizes = [2, 128], strides = [1, 1]} : vector<2x384xf32> to vector<2x128xf32>
    %499 = vector.extract_strided_slice %487 {offsets = [0, 128], sizes = [2, 128], strides = [1, 1]} : vector<2x384xf32> to vector<2x128xf32>
    %500 = arith.addf %498, %499 : vector<2x128xf32>
    %501 = arith.negf %500 : vector<2x128xf32>
    %502 = math.exp %501 : vector<2x128xf32>
    %cst_120 = arith.constant 1.000000e+00 : f32
    %503 = vector.broadcast %cst_120 : f32 to vector<2x128xf32>
    %504 = arith.addf %503, %502 : vector<2x128xf32>
    %505 = arith.divf %503, %504 : vector<2x128xf32>
    %506 = vector.extract_strided_slice %489 {offsets = [0, 256], sizes = [2, 128], strides = [1, 1]} : vector<2x384xf32> to vector<2x128xf32>
    %507 = vector.extract_strided_slice %487 {offsets = [0, 256], sizes = [2, 128], strides = [1, 1]} : vector<2x384xf32> to vector<2x128xf32>
    %508 = arith.mulf %497, %507 : vector<2x128xf32>
    %509 = arith.addf %506, %508 : vector<2x128xf32>
    %510 = math.tanh %509 : vector<2x128xf32>
    %cst_121 = arith.constant 1.000000e+00 : f32
    %511 = vector.broadcast %cst_121 : f32 to vector<2x128xf32>
    %512 = arith.subf %511, %505 : vector<2x128xf32>
    %513 = arith.mulf %512, %510 : vector<2x128xf32>
    %514 = arith.mulf %505, %485 : vector<2x128xf32>
    %515 = arith.addf %513, %514 : vector<2x128xf32>
    %c0_122 = arith.constant 0 : index
    %c2048 = arith.constant 2048 : index
    %516 = vector.load %arg5[%c0_122, %c2048] : memref<2x3072xf32, #tpu.memory_space<vmem>>, vector<2x128xf32>
    tpu.vector_store %arg5[%c0_122, %c2048], %515 {strides = array<i32>} : memref<2x3072xf32, #tpu.memory_space<vmem>>, vector<2x128xf32>,
    %cst_123 = arith.constant dense<0.000000e+00> : vector<2x384xf32>
    %517 = tpu.matmul %515, %0, %cst_123 {dimension_numbers = #tpu.dot_dimension_numbers<[1], [0], [0], [1], [0, 0, 1, 1], [], []>} : vector<2x128xf32>, vector<128x384xf32>, vector<2x384xf32> -> vector<2x384xf32>
    %c17 = arith.constant 17 : index
    %c0_124 = arith.constant 0 : index
    %c0_125 = arith.constant 0 : index
    %518 = vector.load %arg0[%c17, %c0_124, %c0_125] : memref<24x2x384xf32, #tpu.memory_space<vmem>>, vector<1x2x384xf32>
    %519 = vector.shape_cast %518 : vector<1x2x384xf32> to vector<2x384xf32>
    %520 = vector.extract_strided_slice %519 {offsets = [0, 0], sizes = [2, 128], strides = [1, 1]} : vector<2x384xf32> to vector<2x128xf32>
    %521 = vector.extract_strided_slice %517 {offsets = [0, 0], sizes = [2, 128], strides = [1, 1]} : vector<2x384xf32> to vector<2x128xf32>
    %522 = arith.addf %520, %521 : vector<2x128xf32>
    %523 = arith.negf %522 : vector<2x128xf32>
    %524 = math.exp %523 : vector<2x128xf32>
    %cst_126 = arith.constant 1.000000e+00 : f32
    %525 = vector.broadcast %cst_126 : f32 to vector<2x128xf32>
    %526 = arith.addf %525, %524 : vector<2x128xf32>
    %527 = arith.divf %525, %526 : vector<2x128xf32>
    %528 = vector.extract_strided_slice %519 {offsets = [0, 128], sizes = [2, 128], strides = [1, 1]} : vector<2x384xf32> to vector<2x128xf32>
    %529 = vector.extract_strided_slice %517 {offsets = [0, 128], sizes = [2, 128], strides = [1, 1]} : vector<2x384xf32> to vector<2x128xf32>
    %530 = arith.addf %528, %529 : vector<2x128xf32>
    %531 = arith.negf %530 : vector<2x128xf32>
    %532 = math.exp %531 : vector<2x128xf32>
    %cst_127 = arith.constant 1.000000e+00 : f32
    %533 = vector.broadcast %cst_127 : f32 to vector<2x128xf32>
    %534 = arith.addf %533, %532 : vector<2x128xf32>
    %535 = arith.divf %533, %534 : vector<2x128xf32>
    %536 = vector.extract_strided_slice %519 {offsets = [0, 256], sizes = [2, 128], strides = [1, 1]} : vector<2x384xf32> to vector<2x128xf32>
    %537 = vector.extract_strided_slice %517 {offsets = [0, 256], sizes = [2, 128], strides = [1, 1]} : vector<2x384xf32> to vector<2x128xf32>
    %538 = arith.mulf %527, %537 : vector<2x128xf32>
    %539 = arith.addf %536, %538 : vector<2x128xf32>
    %540 = math.tanh %539 : vector<2x128xf32>
    %cst_128 = arith.constant 1.000000e+00 : f32
    %541 = vector.broadcast %cst_128 : f32 to vector<2x128xf32>
    %542 = arith.subf %541, %535 : vector<2x128xf32>
    %543 = arith.mulf %542, %540 : vector<2x128xf32>
    %544 = arith.mulf %535, %515 : vector<2x128xf32>
    %545 = arith.addf %543, %544 : vector<2x128xf32>
    %c0_129 = arith.constant 0 : index
    %c2176 = arith.constant 2176 : index
    %546 = vector.load %arg5[%c0_129, %c2176] : memref<2x3072xf32, #tpu.memory_space<vmem>>, vector<2x128xf32>
    tpu.vector_store %arg5[%c0_129, %c2176], %545 {strides = array<i32>} : memref<2x3072xf32, #tpu.memory_space<vmem>>, vector<2x128xf32>,
    %cst_130 = arith.constant dense<0.000000e+00> : vector<2x384xf32>
    %547 = tpu.matmul %545, %0, %cst_130 {dimension_numbers = #tpu.dot_dimension_numbers<[1], [0], [0], [1], [0, 0, 1, 1], [], []>} : vector<2x128xf32>, vector<128x384xf32>, vector<2x384xf32> -> vector<2x384xf32>
    %c18 = arith.constant 18 : index
    %c0_131 = arith.constant 0 : index
    %c0_132 = arith.constant 0 : index
    %548 = vector.load %arg0[%c18, %c0_131, %c0_132] : memref<24x2x384xf32, #tpu.memory_space<vmem>>, vector<1x2x384xf32>
    %549 = vector.shape_cast %548 : vector<1x2x384xf32> to vector<2x384xf32>
    %550 = vector.extract_strided_slice %549 {offsets = [0, 0], sizes = [2, 128], strides = [1, 1]} : vector<2x384xf32> to vector<2x128xf32>
    %551 = vector.extract_strided_slice %547 {offsets = [0, 0], sizes = [2, 128], strides = [1, 1]} : vector<2x384xf32> to vector<2x128xf32>
    %552 = arith.addf %550, %551 : vector<2x128xf32>
    %553 = arith.negf %552 : vector<2x128xf32>
    %554 = math.exp %553 : vector<2x128xf32>
    %cst_133 = arith.constant 1.000000e+00 : f32
    %555 = vector.broadcast %cst_133 : f32 to vector<2x128xf32>
    %556 = arith.addf %555, %554 : vector<2x128xf32>
    %557 = arith.divf %555, %556 : vector<2x128xf32>
    %558 = vector.extract_strided_slice %549 {offsets = [0, 128], sizes = [2, 128], strides = [1, 1]} : vector<2x384xf32> to vector<2x128xf32>
    %559 = vector.extract_strided_slice %547 {offsets = [0, 128], sizes = [2, 128], strides = [1, 1]} : vector<2x384xf32> to vector<2x128xf32>
    %560 = arith.addf %558, %559 : vector<2x128xf32>
    %561 = arith.negf %560 : vector<2x128xf32>
    %562 = math.exp %561 : vector<2x128xf32>
    %cst_134 = arith.constant 1.000000e+00 : f32
    %563 = vector.broadcast %cst_134 : f32 to vector<2x128xf32>
    %564 = arith.addf %563, %562 : vector<2x128xf32>
    %565 = arith.divf %563, %564 : vector<2x128xf32>
    %566 = vector.extract_strided_slice %549 {offsets = [0, 256], sizes = [2, 128], strides = [1, 1]} : vector<2x384xf32> to vector<2x128xf32>
    %567 = vector.extract_strided_slice %547 {offsets = [0, 256], sizes = [2, 128], strides = [1, 1]} : vector<2x384xf32> to vector<2x128xf32>
    %568 = arith.mulf %557, %567 : vector<2x128xf32>
    %569 = arith.addf %566, %568 : vector<2x128xf32>
    %570 = math.tanh %569 : vector<2x128xf32>
    %cst_135 = arith.constant 1.000000e+00 : f32
    %571 = vector.broadcast %cst_135 : f32 to vector<2x128xf32>
    %572 = arith.subf %571, %565 : vector<2x128xf32>
    %573 = arith.mulf %572, %570 : vector<2x128xf32>
    %574 = arith.mulf %565, %545 : vector<2x128xf32>
    %575 = arith.addf %573, %574 : vector<2x128xf32>
    %c0_136 = arith.constant 0 : index
    %c2304 = arith.constant 2304 : index
    %576 = vector.load %arg5[%c0_136, %c2304] : memref<2x3072xf32, #tpu.memory_space<vmem>>, vector<2x128xf32>
    tpu.vector_store %arg5[%c0_136, %c2304], %575 {strides = array<i32>} : memref<2x3072xf32, #tpu.memory_space<vmem>>, vector<2x128xf32>,
    %cst_137 = arith.constant dense<0.000000e+00> : vector<2x384xf32>
    %577 = tpu.matmul %575, %0, %cst_137 {dimension_numbers = #tpu.dot_dimension_numbers<[1], [0], [0], [1], [0, 0, 1, 1], [], []>} : vector<2x128xf32>, vector<128x384xf32>, vector<2x384xf32> -> vector<2x384xf32>
    %c19 = arith.constant 19 : index
    %c0_138 = arith.constant 0 : index
    %c0_139 = arith.constant 0 : index
    %578 = vector.load %arg0[%c19, %c0_138, %c0_139] : memref<24x2x384xf32, #tpu.memory_space<vmem>>, vector<1x2x384xf32>
    %579 = vector.shape_cast %578 : vector<1x2x384xf32> to vector<2x384xf32>
    %580 = vector.extract_strided_slice %579 {offsets = [0, 0], sizes = [2, 128], strides = [1, 1]} : vector<2x384xf32> to vector<2x128xf32>
    %581 = vector.extract_strided_slice %577 {offsets = [0, 0], sizes = [2, 128], strides = [1, 1]} : vector<2x384xf32> to vector<2x128xf32>
    %582 = arith.addf %580, %581 : vector<2x128xf32>
    %583 = arith.negf %582 : vector<2x128xf32>
    %584 = math.exp %583 : vector<2x128xf32>
    %cst_140 = arith.constant 1.000000e+00 : f32
    %585 = vector.broadcast %cst_140 : f32 to vector<2x128xf32>
    %586 = arith.addf %585, %584 : vector<2x128xf32>
    %587 = arith.divf %585, %586 : vector<2x128xf32>
    %588 = vector.extract_strided_slice %579 {offsets = [0, 128], sizes = [2, 128], strides = [1, 1]} : vector<2x384xf32> to vector<2x128xf32>
    %589 = vector.extract_strided_slice %577 {offsets = [0, 128], sizes = [2, 128], strides = [1, 1]} : vector<2x384xf32> to vector<2x128xf32>
    %590 = arith.addf %588, %589 : vector<2x128xf32>
    %591 = arith.negf %590 : vector<2x128xf32>
    %592 = math.exp %591 : vector<2x128xf32>
    %cst_141 = arith.constant 1.000000e+00 : f32
    %593 = vector.broadcast %cst_141 : f32 to vector<2x128xf32>
    %594 = arith.addf %593, %592 : vector<2x128xf32>
    %595 = arith.divf %593, %594 : vector<2x128xf32>
    %596 = vector.extract_strided_slice %579 {offsets = [0, 256], sizes = [2, 128], strides = [1, 1]} : vector<2x384xf32> to vector<2x128xf32>
    %597 = vector.extract_strided_slice %577 {offsets = [0, 256], sizes = [2, 128], strides = [1, 1]} : vector<2x384xf32> to vector<2x128xf32>
    %598 = arith.mulf %587, %597 : vector<2x128xf32>
    %599 = arith.addf %596, %598 : vector<2x128xf32>
    %600 = math.tanh %599 : vector<2x128xf32>
    %cst_142 = arith.constant 1.000000e+00 : f32
    %601 = vector.broadcast %cst_142 : f32 to vector<2x128xf32>
    %602 = arith.subf %601, %595 : vector<2x128xf32>
    %603 = arith.mulf %602, %600 : vector<2x128xf32>
    %604 = arith.mulf %595, %575 : vector<2x128xf32>
    %605 = arith.addf %603, %604 : vector<2x128xf32>
    %c0_143 = arith.constant 0 : index
    %c2432 = arith.constant 2432 : index
    %606 = vector.load %arg5[%c0_143, %c2432] : memref<2x3072xf32, #tpu.memory_space<vmem>>, vector<2x128xf32>
    tpu.vector_store %arg5[%c0_143, %c2432], %605 {strides = array<i32>} : memref<2x3072xf32, #tpu.memory_space<vmem>>, vector<2x128xf32>,
    %cst_144 = arith.constant dense<0.000000e+00> : vector<2x384xf32>
    %607 = tpu.matmul %605, %0, %cst_144 {dimension_numbers = #tpu.dot_dimension_numbers<[1], [0], [0], [1], [0, 0, 1, 1], [], []>} : vector<2x128xf32>, vector<128x384xf32>, vector<2x384xf32> -> vector<2x384xf32>
    %c20 = arith.constant 20 : index
    %c0_145 = arith.constant 0 : index
    %c0_146 = arith.constant 0 : index
    %608 = vector.load %arg0[%c20, %c0_145, %c0_146] : memref<24x2x384xf32, #tpu.memory_space<vmem>>, vector<1x2x384xf32>
    %609 = vector.shape_cast %608 : vector<1x2x384xf32> to vector<2x384xf32>
    %610 = vector.extract_strided_slice %609 {offsets = [0, 0], sizes = [2, 128], strides = [1, 1]} : vector<2x384xf32> to vector<2x128xf32>
    %611 = vector.extract_strided_slice %607 {offsets = [0, 0], sizes = [2, 128], strides = [1, 1]} : vector<2x384xf32> to vector<2x128xf32>
    %612 = arith.addf %610, %611 : vector<2x128xf32>
    %613 = arith.negf %612 : vector<2x128xf32>
    %614 = math.exp %613 : vector<2x128xf32>
    %cst_147 = arith.constant 1.000000e+00 : f32
    %615 = vector.broadcast %cst_147 : f32 to vector<2x128xf32>
    %616 = arith.addf %615, %614 : vector<2x128xf32>
    %617 = arith.divf %615, %616 : vector<2x128xf32>
    %618 = vector.extract_strided_slice %609 {offsets = [0, 128], sizes = [2, 128], strides = [1, 1]} : vector<2x384xf32> to vector<2x128xf32>
    %619 = vector.extract_strided_slice %607 {offsets = [0, 128], sizes = [2, 128], strides = [1, 1]} : vector<2x384xf32> to vector<2x128xf32>
    %620 = arith.addf %618, %619 : vector<2x128xf32>
    %621 = arith.negf %620 : vector<2x128xf32>
    %622 = math.exp %621 : vector<2x128xf32>
    %cst_148 = arith.constant 1.000000e+00 : f32
    %623 = vector.broadcast %cst_148 : f32 to vector<2x128xf32>
    %624 = arith.addf %623, %622 : vector<2x128xf32>
    %625 = arith.divf %623, %624 : vector<2x128xf32>
    %626 = vector.extract_strided_slice %609 {offsets = [0, 256], sizes = [2, 128], strides = [1, 1]} : vector<2x384xf32> to vector<2x128xf32>
    %627 = vector.extract_strided_slice %607 {offsets = [0, 256], sizes = [2, 128], strides = [1, 1]} : vector<2x384xf32> to vector<2x128xf32>
    %628 = arith.mulf %617, %627 : vector<2x128xf32>
    %629 = arith.addf %626, %628 : vector<2x128xf32>
    %630 = math.tanh %629 : vector<2x128xf32>
    %cst_149 = arith.constant 1.000000e+00 : f32
    %631 = vector.broadcast %cst_149 : f32 to vector<2x128xf32>
    %632 = arith.subf %631, %625 : vector<2x128xf32>
    %633 = arith.mulf %632, %630 : vector<2x128xf32>
    %634 = arith.mulf %625, %605 : vector<2x128xf32>
    %635 = arith.addf %633, %634 : vector<2x128xf32>
    %c0_150 = arith.constant 0 : index
    %c2560 = arith.constant 2560 : index
    %636 = vector.load %arg5[%c0_150, %c2560] : memref<2x3072xf32, #tpu.memory_space<vmem>>, vector<2x128xf32>
    tpu.vector_store %arg5[%c0_150, %c2560], %635 {strides = array<i32>} : memref<2x3072xf32, #tpu.memory_space<vmem>>, vector<2x128xf32>,
    %cst_151 = arith.constant dense<0.000000e+00> : vector<2x384xf32>
    %637 = tpu.matmul %635, %0, %cst_151 {dimension_numbers = #tpu.dot_dimension_numbers<[1], [0], [0], [1], [0, 0, 1, 1], [], []>} : vector<2x128xf32>, vector<128x384xf32>, vector<2x384xf32> -> vector<2x384xf32>
    %c21 = arith.constant 21 : index
    %c0_152 = arith.constant 0 : index
    %c0_153 = arith.constant 0 : index
    %638 = vector.load %arg0[%c21, %c0_152, %c0_153] : memref<24x2x384xf32, #tpu.memory_space<vmem>>, vector<1x2x384xf32>
    %639 = vector.shape_cast %638 : vector<1x2x384xf32> to vector<2x384xf32>
    %640 = vector.extract_strided_slice %639 {offsets = [0, 0], sizes = [2, 128], strides = [1, 1]} : vector<2x384xf32> to vector<2x128xf32>
    %641 = vector.extract_strided_slice %637 {offsets = [0, 0], sizes = [2, 128], strides = [1, 1]} : vector<2x384xf32> to vector<2x128xf32>
    %642 = arith.addf %640, %641 : vector<2x128xf32>
    %643 = arith.negf %642 : vector<2x128xf32>
    %644 = math.exp %643 : vector<2x128xf32>
    %cst_154 = arith.constant 1.000000e+00 : f32
    %645 = vector.broadcast %cst_154 : f32 to vector<2x128xf32>
    %646 = arith.addf %645, %644 : vector<2x128xf32>
    %647 = arith.divf %645, %646 : vector<2x128xf32>
    %648 = vector.extract_strided_slice %639 {offsets = [0, 128], sizes = [2, 128], strides = [1, 1]} : vector<2x384xf32> to vector<2x128xf32>
    %649 = vector.extract_strided_slice %637 {offsets = [0, 128], sizes = [2, 128], strides = [1, 1]} : vector<2x384xf32> to vector<2x128xf32>
    %650 = arith.addf %648, %649 : vector<2x128xf32>
    %651 = arith.negf %650 : vector<2x128xf32>
    %652 = math.exp %651 : vector<2x128xf32>
    %cst_155 = arith.constant 1.000000e+00 : f32
    %653 = vector.broadcast %cst_155 : f32 to vector<2x128xf32>
    %654 = arith.addf %653, %652 : vector<2x128xf32>
    %655 = arith.divf %653, %654 : vector<2x128xf32>
    %656 = vector.extract_strided_slice %639 {offsets = [0, 256], sizes = [2, 128], strides = [1, 1]} : vector<2x384xf32> to vector<2x128xf32>
    %657 = vector.extract_strided_slice %637 {offsets = [0, 256], sizes = [2, 128], strides = [1, 1]} : vector<2x384xf32> to vector<2x128xf32>
    %658 = arith.mulf %647, %657 : vector<2x128xf32>
    %659 = arith.addf %656, %658 : vector<2x128xf32>
    %660 = math.tanh %659 : vector<2x128xf32>
    %cst_156 = arith.constant 1.000000e+00 : f32
    %661 = vector.broadcast %cst_156 : f32 to vector<2x128xf32>
    %662 = arith.subf %661, %655 : vector<2x128xf32>
    %663 = arith.mulf %662, %660 : vector<2x128xf32>
    %664 = arith.mulf %655, %635 : vector<2x128xf32>
    %665 = arith.addf %663, %664 : vector<2x128xf32>
    %c0_157 = arith.constant 0 : index
    %c2688 = arith.constant 2688 : index
    %666 = vector.load %arg5[%c0_157, %c2688] : memref<2x3072xf32, #tpu.memory_space<vmem>>, vector<2x128xf32>
    tpu.vector_store %arg5[%c0_157, %c2688], %665 {strides = array<i32>} : memref<2x3072xf32, #tpu.memory_space<vmem>>, vector<2x128xf32>,
    %cst_158 = arith.constant dense<0.000000e+00> : vector<2x384xf32>
    %667 = tpu.matmul %665, %0, %cst_158 {dimension_numbers = #tpu.dot_dimension_numbers<[1], [0], [0], [1], [0, 0, 1, 1], [], []>} : vector<2x128xf32>, vector<128x384xf32>, vector<2x384xf32> -> vector<2x384xf32>
    %c22 = arith.constant 22 : index
    %c0_159 = arith.constant 0 : index
    %c0_160 = arith.constant 0 : index
    %668 = vector.load %arg0[%c22, %c0_159, %c0_160] : memref<24x2x384xf32, #tpu.memory_space<vmem>>, vector<1x2x384xf32>
    %669 = vector.shape_cast %668 : vector<1x2x384xf32> to vector<2x384xf32>
    %670 = vector.extract_strided_slice %669 {offsets = [0, 0], sizes = [2, 128], strides = [1, 1]} : vector<2x384xf32> to vector<2x128xf32>
    %671 = vector.extract_strided_slice %667 {offsets = [0, 0], sizes = [2, 128], strides = [1, 1]} : vector<2x384xf32> to vector<2x128xf32>
    %672 = arith.addf %670, %671 : vector<2x128xf32>
    %673 = arith.negf %672 : vector<2x128xf32>
    %674 = math.exp %673 : vector<2x128xf32>
    %cst_161 = arith.constant 1.000000e+00 : f32
    %675 = vector.broadcast %cst_161 : f32 to vector<2x128xf32>
    %676 = arith.addf %675, %674 : vector<2x128xf32>
    %677 = arith.divf %675, %676 : vector<2x128xf32>
    %678 = vector.extract_strided_slice %669 {offsets = [0, 128], sizes = [2, 128], strides = [1, 1]} : vector<2x384xf32> to vector<2x128xf32>
    %679 = vector.extract_strided_slice %667 {offsets = [0, 128], sizes = [2, 128], strides = [1, 1]} : vector<2x384xf32> to vector<2x128xf32>
    %680 = arith.addf %678, %679 : vector<2x128xf32>
    %681 = arith.negf %680 : vector<2x128xf32>
    %682 = math.exp %681 : vector<2x128xf32>
    %cst_162 = arith.constant 1.000000e+00 : f32
    %683 = vector.broadcast %cst_162 : f32 to vector<2x128xf32>
    %684 = arith.addf %683, %682 : vector<2x128xf32>
    %685 = arith.divf %683, %684 : vector<2x128xf32>
    %686 = vector.extract_strided_slice %669 {offsets = [0, 256], sizes = [2, 128], strides = [1, 1]} : vector<2x384xf32> to vector<2x128xf32>
    %687 = vector.extract_strided_slice %667 {offsets = [0, 256], sizes = [2, 128], strides = [1, 1]} : vector<2x384xf32> to vector<2x128xf32>
    %688 = arith.mulf %677, %687 : vector<2x128xf32>
    %689 = arith.addf %686, %688 : vector<2x128xf32>
    %690 = math.tanh %689 : vector<2x128xf32>
    %cst_163 = arith.constant 1.000000e+00 : f32
    %691 = vector.broadcast %cst_163 : f32 to vector<2x128xf32>
    %692 = arith.subf %691, %685 : vector<2x128xf32>
    %693 = arith.mulf %692, %690 : vector<2x128xf32>
    %694 = arith.mulf %685, %665 : vector<2x128xf32>
    %695 = arith.addf %693, %694 : vector<2x128xf32>
    %c0_164 = arith.constant 0 : index
    %c2816 = arith.constant 2816 : index
    %696 = vector.load %arg5[%c0_164, %c2816] : memref<2x3072xf32, #tpu.memory_space<vmem>>, vector<2x128xf32>
    tpu.vector_store %arg5[%c0_164, %c2816], %695 {strides = array<i32>} : memref<2x3072xf32, #tpu.memory_space<vmem>>, vector<2x128xf32>,
    %cst_165 = arith.constant dense<0.000000e+00> : vector<2x384xf32>
    %697 = tpu.matmul %695, %0, %cst_165 {dimension_numbers = #tpu.dot_dimension_numbers<[1], [0], [0], [1], [0, 0, 1, 1], [], []>} : vector<2x128xf32>, vector<128x384xf32>, vector<2x384xf32> -> vector<2x384xf32>
    %c23 = arith.constant 23 : index
    %c0_166 = arith.constant 0 : index
    %c0_167 = arith.constant 0 : index
    %698 = vector.load %arg0[%c23, %c0_166, %c0_167] : memref<24x2x384xf32, #tpu.memory_space<vmem>>, vector<1x2x384xf32>
    %699 = vector.shape_cast %698 : vector<1x2x384xf32> to vector<2x384xf32>
    %700 = vector.extract_strided_slice %699 {offsets = [0, 0], sizes = [2, 128], strides = [1, 1]} : vector<2x384xf32> to vector<2x128xf32>
    %701 = vector.extract_strided_slice %697 {offsets = [0, 0], sizes = [2, 128], strides = [1, 1]} : vector<2x384xf32> to vector<2x128xf32>
    %702 = arith.addf %700, %701 : vector<2x128xf32>
    %703 = arith.negf %702 : vector<2x128xf32>
    %704 = math.exp %703 : vector<2x128xf32>
    %cst_168 = arith.constant 1.000000e+00 : f32
    %705 = vector.broadcast %cst_168 : f32 to vector<2x128xf32>
    %706 = arith.addf %705, %704 : vector<2x128xf32>
    %707 = arith.divf %705, %706 : vector<2x128xf32>
    %708 = vector.extract_strided_slice %699 {offsets = [0, 128], sizes = [2, 128], strides = [1, 1]} : vector<2x384xf32> to vector<2x128xf32>
    %709 = vector.extract_strided_slice %697 {offsets = [0, 128], sizes = [2, 128], strides = [1, 1]} : vector<2x384xf32> to vector<2x128xf32>
    %710 = arith.addf %708, %709 : vector<2x128xf32>
    %711 = arith.negf %710 : vector<2x128xf32>
    %712 = math.exp %711 : vector<2x128xf32>
    %cst_169 = arith.constant 1.000000e+00 : f32
    %713 = vector.broadcast %cst_169 : f32 to vector<2x128xf32>
    %714 = arith.addf %713, %712 : vector<2x128xf32>
    %715 = arith.divf %713, %714 : vector<2x128xf32>
    %716 = vector.extract_strided_slice %699 {offsets = [0, 256], sizes = [2, 128], strides = [1, 1]} : vector<2x384xf32> to vector<2x128xf32>
    %717 = vector.extract_strided_slice %697 {offsets = [0, 256], sizes = [2, 128], strides = [1, 1]} : vector<2x384xf32> to vector<2x128xf32>
    %718 = arith.mulf %707, %717 : vector<2x128xf32>
    %719 = arith.addf %716, %718 : vector<2x128xf32>
    %720 = math.tanh %719 : vector<2x128xf32>
    %cst_170 = arith.constant 1.000000e+00 : f32
    %721 = vector.broadcast %cst_170 : f32 to vector<2x128xf32>
    %722 = arith.subf %721, %715 : vector<2x128xf32>
    %723 = arith.mulf %722, %720 : vector<2x128xf32>
    %724 = arith.mulf %715, %695 : vector<2x128xf32>
    %725 = arith.addf %723, %724 : vector<2x128xf32>
    %c0_171 = arith.constant 0 : index
    %c2944 = arith.constant 2944 : index
    %726 = vector.load %arg5[%c0_171, %c2944] : memref<2x3072xf32, #tpu.memory_space<vmem>>, vector<2x128xf32>
    tpu.vector_store %arg5[%c0_171, %c2944], %725 {strides = array<i32>} : memref<2x3072xf32, #tpu.memory_space<vmem>>, vector<2x128xf32>,
    %c0_172 = arith.constant 0 : index
    %c0_173 = arith.constant 0 : index
    %727 = vector.load %arg5[%c0_172, %c0_173] : memref<2x3072xf32, #tpu.memory_space<vmem>>, vector<2x3072xf32>
    %c0_174 = arith.constant 0 : index
    %c0_175 = arith.constant 0 : index
    %728 = vector.load %arg2[%c0_174, %c0_175] : memref<3072x128xf32, #tpu.memory_space<vmem>>, vector<3072x128xf32>
    %cst_176 = arith.constant dense<0.000000e+00> : vector<2x128xf32>
    %729 = tpu.matmul %727, %728, %cst_176 {dimension_numbers = #tpu.dot_dimension_numbers<[1], [0], [0], [1], [0, 0, 1, 1], [], []>} : vector<2x3072xf32>, vector<3072x128xf32>, vector<2x128xf32> -> vector<2x128xf32>
    %c0_177 = arith.constant 0 : index
    %c0_178 = arith.constant 0 : index
    %730 = vector.load %arg3[%c0_177, %c0_178] : memref<1x128xf32, #tpu.memory_space<vmem>>, vector<1x128xf32>
    %731 = vector.broadcast %730 : vector<1x128xf32> to vector<2x128xf32>
    %732 = arith.addf %729, %731 : vector<2x128xf32>
    %733 = math.tanh %732 : vector<2x128xf32>
    %c0_179 = arith.constant 0 : index
    %c0_180 = arith.constant 0 : index
    %734 = vector.load %arg4[%c0_179, %c0_180] : memref<2x128xf32, #tpu.memory_space<vmem>>, vector<2x128xf32>
    tpu.vector_store %arg4[%c0_179, %c0_180], %733 {strides = array<i32>} : memref<2x128xf32, #tpu.memory_space<vmem>>, vector<2x128xf32>,
    return
  }
}

</mosaic_0001>

<llo_original>
// kernel: _lambda_.1
$region0: #{_lambda_.1}
  #allocation0 [shape = 'u32[]', space=smem, size = 0x4, offset = 0x4, fixed_abs, tag = 'smem constant byte address 0x4 - core index']
  #allocation1 [shape = 'u32[144,128]{1,0:T(1,128)}', space=vmem, size = 0x12000, scoped, tag = 'internal scratch']
  #allocation2 [shape = 'f32[2,3072]{1,0:T(2,128)}', space=vmem, size = 0x6000, scoped, tag = 'scratch operand']
  %s0 = inlined_call_operand.vmem [shape: f32[24,2,384], index: 0, kind: input, shape index: {}]
  %s1 = inlined_call_operand.hbm [shape: f32[128,384], index: 1, kind: input, shape index: {}]
  %s2 = inlined_call_operand.hbm [shape: f32[3072,128], index: 2, kind: input, shape index: {}]
  %s3 = inlined_call_operand.hbm [shape: f32[1,128], index: 3, kind: input, shape index: {}]
  %s4 = inlined_call_operand.vmem [shape: f32[2,128], index: 4, kind: output, shape index: {}]
  %s5 = sld [smem:[#allocation0]]
  $region38: #{_lambda_.1} parent=0
    _
  %s7 = ssub.s32 1, %s5
  %s8 = scalar_select 0, %s7, %s5
  $region1: #{_lambda_.1} parent=0
    #allocation3 [shape = 'u8[196608]{0}', space=vmem, size = 0x30000, scoped, tag = 'input window, operand 1, single buffered']
    #allocation4 [shape = 's32[1]{0}', space=sflag, size = 0x4, scoped, tag = 'scoped memory for _lambda_.1']
    #allocation5 [shape = 'u8[1572864]{0}', space=vmem, size = 0x180000, scoped, tag = 'input window, operand 2, single buffered']
    #allocation6 [shape = 's32[1]{0}', space=sflag, size = 0x4, scoped, tag = 'scoped memory for _lambda_.1']
    #allocation7 [shape = 'u8[512]{0}', space=vmem, size = 0x400, scoped, tag = 'input window, operand 3, single buffered']
    %9 = vsyncpa [#allocation4], 0
    %10 = vsyncpa [#allocation6], 0
    // Predicated region
    $region2: #{_lambda_.1} parent=1 // pred_check
      _
    $region3: #{_lambda_.1} parent=1 // pred_check_branch
      %12 = sbr.rel (0) target = $region5
    $region4: #{_lambda_.1} parent=1 // pred_region
      _
    $region5: #{_lambda_.1} parent=1 // pred_fallthru
      _
    // Predicated region
    $region6: #{_lambda_.1} parent=1 // pred_check
      _
    $region7: #{_lambda_.1} parent=1 // pred_check_branch
      %14 = sbr.rel (0) target = $region9
    $region8: #{_lambda_.1} parent=1 // pred_region
      %s16 = ssub.s32 6144, 6144
      %17 = vsyncadd [#allocation4], %s16
      %s18 = sshll.u32 [#allocation3], 4
      %s19 = int_to_ptr.vmem [resolvable:$true] %s18
      %24 = dma.hbm_to_vmem [thread:$0]  %s1, 6144, %s19, [#allocation4], 384, 384, 24
    $region9: #{_lambda_.1} parent=1 // pred_fallthru
      _
    // Predicated region
    $region10: #{_lambda_.1} parent=1 // pred_check
      _
    $region11: #{_lambda_.1} parent=1 // pred_check_branch
      %26 = sbr.rel (0) target = $region13
    $region12: #{_lambda_.1} parent=1 // pred_region
      %s28 = ssub.s32 49152, 49152
      %29 = vsyncadd [#allocation6], %s28
      %s30 = sshll.u32 [#allocation5], 4
      %s31 = int_to_ptr.vmem [resolvable:$true] %s30
      %36 = dma.hbm_to_vmem [thread:$0]  %s2, 49152, %s31, [#allocation6], 128, 128, 8
    $region13: #{_lambda_.1} parent=1 // pred_fallthru
      _
    // Predicated region
    $region14: #{_lambda_.1} parent=1 // pred_check
      _
    $region15: #{_lambda_.1} parent=1 // pred_check_branch
      %38 = sbr.rel (0) target = $region17
    $region16: #{_lambda_.1} parent=1 // pred_region
      %s40 = ssub.s32 16, 16
      %41 = vsyncadd [#allocation6], %s40
      %s43 = sshll.u32 [#allocation7], 4
      %s44 = int_to_ptr.vmem [resolvable:$true] %s43
      %46 = dma.hbm_to_vmem [thread:$0]  %s3, 16, %s44, [#allocation6]
    $region17: #{_lambda_.1} parent=1 // pred_fallthru
      _
    // Predicated region
    $region18: #{_lambda_.1} parent=1 // pred_check
      _
    $region19: #{_lambda_.1} parent=1 // pred_check_branch
      %48 = sbr.rel (0) target = $region21
    $region20: #{_lambda_.1} parent=1 // pred_region
      %49 = dma.done [#allocation4], 6144
    $region21: #{_lambda_.1} parent=1 // pred_fallthru
      _
    // Predicated region
    $region22: #{_lambda_.1} parent=1 // pred_check
      _
    $region23: #{_lambda_.1} parent=1 // pred_check_branch
      %51 = sbr.rel (0) target = $region25
    $region24: #{_lambda_.1} parent=1 // pred_region
      %52 = dma.done [#allocation6], 49152
    $region25: #{_lambda_.1} parent=1 // pred_fallthru
      _
    // Predicated region
    $region26: #{_lambda_.1} parent=1 // pred_check
      _
    $region27: #{_lambda_.1} parent=1 // pred_check_branch
      %54 = sbr.rel (0) target = $region29
    $region28: #{_lambda_.1} parent=1 // pred_region
      %55 = dma.done [#allocation6], 16
    $region29: #{_lambda_.1} parent=1 // pred_fallthru
      _
    %v56 = vld [vmem:[#allocation3] sm:$0xff]
    %v57 = vld [vmem:[#allocation3 + $0x8] sm:$0xff]
    %v58 = vld [vmem:[#allocation3 + $0x10] sm:$0xff]
    %v59 = vld [vmem:[#allocation3 + $0x18] sm:$0xff]
    %v60 = vld [vmem:[#allocation3 + $0x20] sm:$0xff]
    %v61 = vld [vmem:[#allocation3 + $0x28] sm:$0xff]
    %v62 = vld [vmem:[#allocation3 + $0x30] sm:$0xff]
    %v63 = vld [vmem:[#allocation3 + $0x38] sm:$0xff]
    %v64 = vld [vmem:[#allocation3 + $0x40] sm:$0xff]
    %v65 = vld [vmem:[#allocation3 + $0x48] sm:$0xff]
    %v66 = vld [vmem:[#allocation3 + $0x50] sm:$0xff]
    %v67 = vld [vmem:[#allocation3 + $0x58] sm:$0xff]
    %v68 = vld [vmem:[#allocation3 + $0x60] sm:$0xff]
    %v69 = vld [vmem:[#allocation3 + $0x68] sm:$0xff]
    %v70 = vld [vmem:[#allocation3 + $0x70] sm:$0xff]
    %v71 = vld [vmem:[#allocation3 + $0x78] sm:$0xff]
    %v72 = vld [vmem:[#allocation3 + $0x80] sm:$0xff]
    %v73 = vld [vmem:[#allocation3 + $0x88] sm:$0xff]
    %v74 = vld [vmem:[#allocation3 + $0x90] sm:$0xff]
    %v75 = vld [vmem:[#allocation3 + $0x98] sm:$0xff]
    %v76 = vld [vmem:[#allocation3 + $0xa0] sm:$0xff]
    %v77 = vld [vmem:[#allocation3 + $0xa8] sm:$0xff]
    %v78 = vld [vmem:[#allocation3 + $0xb0] sm:$0xff]
    %v79 = vld [vmem:[#allocation3 + $0xb8] sm:$0xff]
    %v80 = vld [vmem:[#allocation3 + $0xc0] sm:$0xff]
    %v81 = vld [vmem:[#allocation3 + $0xc8] sm:$0xff]
    %v82 = vld [vmem:[#allocation3 + $0xd0] sm:$0xff]
    %v83 = vld [vmem:[#allocation3 + $0xd8] sm:$0xff]
    %v84 = vld [vmem:[#allocation3 + $0xe0] sm:$0xff]
    %v85 = vld [vmem:[#allocation3 + $0xe8] sm:$0xff]
    %v86 = vld [vmem:[#allocation3 + $0xf0] sm:$0xff]
    %v87 = vld [vmem:[#allocation3 + $0xf8] sm:$0xff]
    %v88 = vld [vmem:[#allocation3 + $0x100] sm:$0xff]
    %v89 = vld [vmem:[#allocation3 + $0x108] sm:$0xff]
    %v90 = vld [vmem:[#allocation3 + $0x110] sm:$0xff]
    %v91 = vld [vmem:[#allocation3 + $0x118] sm:$0xff]
    %v92 = vld [vmem:[#allocation3 + $0x120] sm:$0xff]
    %v93 = vld [vmem:[#allocation3 + $0x128] sm:$0xff]
    %v94 = vld [vmem:[#allocation3 + $0x130] sm:$0xff]
    %v95 = vld [vmem:[#allocation3 + $0x138] sm:$0xff]
    %v96 = vld [vmem:[#allocation3 + $0x140] sm:$0xff]
    %v97 = vld [vmem:[#allocation3 + $0x148] sm:$0xff]
    %v98 = vld [vmem:[#allocation3 + $0x150] sm:$0xff]
    %v99 = vld [vmem:[#allocation3 + $0x158] sm:$0xff]
    %v100 = vld [vmem:[#allocation3 + $0x160] sm:$0xff]
    %v101 = vld [vmem:[#allocation3 + $0x168] sm:$0xff]
    %v102 = vld [vmem:[#allocation3 + $0x170] sm:$0xff]
    %v103 = vld [vmem:[#allocation3 + $0x178] sm:$0xff]
    %v104 = vlaneseq
    %v105 = vand.u32 %v104, 127
    %vm106 = vcmp.eq.s32.totalorder %v105, 96
    %v107 = vsel %vm106, 1.0, 0.0
    %108 = vmatprep.subr.mxu0 %v102
    %109 = vmatpush1.msra.mxu0 %v101
    %110 = vmatprep.subr.mxu0 %v99
    %111 = vmatpush1.msra.mxu0 %v98
    %112 = vmatprep.subr.mxu0 %v96
    %113 = vmatpush1.msra.mxu0 %v95
    %114 = vmatprep.subr.mxu0 %v93
    %115 = vmatpush1.msra.mxu0 %v92
    %116 = vmatprep.subr.mxu0 %v90
    %117 = vmatpush1.msra.mxu0 %v89
    %118 = vmatprep.subr.mxu0 %v87
    %119 = vmatpush1.msra.mxu0 %v86
    %120 = vmatprep.subr.mxu0 %v84
    %121 = vmatpush1.msra.mxu0 %v83
    %122 = vmatprep.subr.mxu0 %v81
    %123 = vmatpush1.msra.mxu0 %v80
    %124 = vmatprep.subr.mxu0 %v78
    %125 = vmatpush1.msra.mxu0 %v77
    %126 = vmatprep.subr.mxu0 %v75
    %127 = vmatpush1.msra.mxu0 %v74
    %128 = vmatprep.subr.mxu0 %v72
    %129 = vmatpush1.msra.mxu0 %v71
    %130 = vmatprep.subr.mxu0 %v69
    %131 = vmatpush1.msra.mxu0 %v68
    %132 = vmatprep.subr.mxu0 %v66
    %133 = vmatpush1.msra.mxu0 %v65
    %134 = vmatprep.subr.mxu0 %v63
    %135 = vmatpush1.msra.mxu0 %v62
    %136 = vmatprep.subr.mxu0 %v60
    %137 = vmatpush1.msra.mxu0 %v59
    %138 = vmatprep.subr.mxu0 %v57
    %139 = vmatpush1.msra.mxu0 %v56
    %140 = vmatprep.subr.mxu0 0.0
    %141 = vmatpush2.msra.mxu0 0.0
    %142 = vmatprep.subr.mxu0 0.0
    %143 = vmatpush2.msra.mxu0 0.0
    %144 = vmatprep.subr.mxu0 0.0
    %145 = vmatpush2.msra.mxu0 0.0
    %146 = vmatprep.subr.mxu0 0.0
    %147 = vmatpush2.msra.mxu0 0.0
    %148 = vmatprep.subr.mxu0 0.0
    %149 = vmatpush2.msra.mxu0 0.0
    %150 = vmatprep.subr.mxu0 0.0
    %151 = vmatpush2.msra.mxu0 0.0
    %152 = vmatprep.subr.mxu0 0.0
    %153 = vmatpush2.msra.mxu0 0.0
    %154 = vmatprep.subr.mxu0 0.0
    %155 = vmatpush2.msra.mxu0 0.0
    %156 = vmatprep.subr.mxu0 0.0
    %157 = vmatpush2.msra.mxu0 0.0
    %158 = vmatprep.subr.mxu0 0.0
    %159 = vmatpush2.msra.mxu0 0.0
    %160 = vmatprep.subr.mxu0 0.0
    %161 = vmatpush2.msra.mxu0 0.0
    %162 = vmatprep.subr.mxu0 0.0
    %163 = vmatpush2.msra.mxu0 0.0
    %164 = vmatprep.subr.mxu0 0.0
    %165 = vmatpush2.msra.mxu0 0.0
    %166 = vmatprep.subr.mxu0 0.0
    %167 = vmatpush2.msra.mxu0 0.0
    %168 = vmatprep.subr.mxu0 0.0
    %169 = vmatpush2.msra.mxu0 0.0
    %170 = vmatprep.subr.mxu0 0.0
    %171 = vmatpush2.msra.mxu0 0.0
    %172 = vmatprep.mubr.f32.mxu0 0.0
    %173 = vmatmul.mubr.f32.gmra.mxu0 %v107
    %v174 = vpop.f32.mrf.mxu0
    %v175 = vadd.f32 0.0, %v174
    %v176 = vpop.f32.mrf.mxu0
    %v177 = vadd.f32 0.0, %v176
    %178 = vdwg.mxu0
    %179 = vmatprep.subr.mxu0 0.0
    %180 = vmatpush1.msra.mxu0 %v103
    %181 = vmatprep.subr.mxu0 0.0
    %182 = vmatpush1.msra.mxu0 %v100
    %183 = vmatprep.subr.mxu0 0.0
    %184 = vmatpush1.msra.mxu0 %v97
    %185 = vmatprep.subr.mxu0 0.0
    %186 = vmatpush1.msra.mxu0 %v94
    %187 = vmatprep.subr.mxu0 0.0
    %188 = vmatpush1.msra.mxu0 %v91
    %189 = vmatprep.subr.mxu0 0.0
    %190 = vmatpush1.msra.mxu0 %v88
    %191 = vmatprep.subr.mxu0 0.0
    %192 = vmatpush1.msra.mxu0 %v85
    %193 = vmatprep.subr.mxu0 0.0
    %194 = vmatpush1.msra.mxu0 %v82
    %195 = vmatprep.subr.mxu0 0.0
    %196 = vmatpush1.msra.mxu0 %v79
    %197 = vmatprep.subr.mxu0 0.0
    %198 = vmatpush1.msra.mxu0 %v76
    %199 = vmatprep.subr.mxu0 0.0
    %200 = vmatpush1.msra.mxu0 %v73
    %201 = vmatprep.subr.mxu0 0.0
    %202 = vmatpush1.msra.mxu0 %v70
    %203 = vmatprep.subr.mxu0 0.0
    %204 = vmatpush1.msra.mxu0 %v67
    %205 = vmatprep.subr.mxu0 0.0
    %206 = vmatpush1.msra.mxu0 %v64
    %207 = vmatprep.subr.mxu0 0.0
    %208 = vmatpush1.msra.mxu0 %v61
    %209 = vmatprep.subr.mxu0 0.0
    %210 = vmatpush1.msra.mxu0 %v58
    %211 = vmatprep.subr.mxu0 0.0
    %212 = vmatpush2.msra.mxu0 0.0
    %213 = vmatprep.subr.mxu0 0.0
    %214 = vmatpush2.msra.mxu0 0.0
    %215 = vmatprep.subr.mxu0 0.0
    %216 = vmatpush2.msra.mxu0 0.0
    %217 = vmatprep.subr.mxu0 0.0
    %218 = vmatpush2.msra.mxu0 0.0
    %219 = vmatprep.subr.mxu0 0.0
    %220 = vmatpush2.msra.mxu0 0.0
    %221 = vmatprep.subr.mxu0 0.0
    %222 = vmatpush2.msra.mxu0 0.0
    %223 = vmatprep.subr.mxu0 0.0
    %224 = vmatpush2.msra.mxu0 0.0
    %225 = vmatprep.subr.mxu0 0.0
    %226 = vmatpush2.msra.mxu0 0.0
    %227 = vmatprep.subr.mxu0 0.0
    %228 = vmatpush2.msra.mxu0 0.0
    %229 = vmatprep.subr.mxu0 0.0
    %230 = vmatpush2.msra.mxu0 0.0
    %231 = vmatprep.subr.mxu0 0.0
    %232 = vmatpush2.msra.mxu0 0.0
    %233 = vmatprep.subr.mxu0 0.0
    %234 = vmatpush2.msra.mxu0 0.0
    %235 = vmatprep.subr.mxu0 0.0
    %236 = vmatpush2.msra.mxu0 0.0
    %237 = vmatprep.subr.mxu0 0.0
    %238 = vmatpush2.msra.mxu0 0.0
    %239 = vmatprep.subr.mxu0 0.0
    %240 = vmatpush2.msra.mxu0 0.0
    %241 = vmatprep.subr.mxu0 0.0
    %242 = vmatpush2.msra.mxu0 0.0
    %243 = vmatprep.mubr.f32.mxu0 0.0
    %244 = vmatmul.mubr.f32.gmra.mxu0 %v107
    %v245 = vpop.f32.mrf.mxu0
    %v246 = vadd.f32 0.0, %v245
    %v247 = vpop.f32.mrf.mxu0
    %248 = vdwg.mxu0
    %v249 = vld [vmem:[%s0] sm:$0x3f]
    %v250 = vadd.f32 %v249, %v175
    %v251 = vxor.u32 %v250, 2147483648
    %v252 = vmul.f32 %v251, 1.442695
    %v253 = vpow.pop %v252
    %v254 = vadd.f32 %v253, 1.0
    %v255 = vrcp.pop %v254
    %v256 = vmul.f32 1.0, %v255
    %v258 = vrot.slane %v249, 2
    %v260 = vadd.f32 %v258, %v177
    %v261 = vxor.u32 %v260, 2147483648
    %v262 = vmul.f32 %v261, 1.442695
    %v263 = vpow.pop %v262
    %v264 = vadd.f32 %v263, 1.0
    %v265 = vrcp.pop %v264
    %v266 = vmul.f32 1.0, %v265
    %v267 = vmul.f32 %v256, %v246
    %v268 = vrot.slane %v249, 4
    %v270 = vadd.f32 %v268, %v267
    %v271 = vtanh.pop %v270
    %v272 = vsub.f32 1.0, %v266
    %v273 = vmul.f32 %v272, %v271
    %v274 = vmul.f32 %v266, %v107
    %v275 = vadd.f32 %v273, %v274
    %276 = vst [vmem:[#allocation2] sm:$0x3] %v275
    %277 = vmatprep.subr.mxu0 %v102
    %278 = vmatpush1.msra.mxu0 %v101
    %279 = vmatprep.subr.mxu0 %v99
    %280 = vmatpush1.msra.mxu0 %v98
    %281 = vmatprep.subr.mxu0 %v96
    %282 = vmatpush1.msra.mxu0 %v95
    %283 = vmatprep.subr.mxu0 %v93
    %284 = vmatpush1.msra.mxu0 %v92
    %285 = vmatprep.subr.mxu0 %v90
    %286 = vmatpush1.msra.mxu0 %v89
    %287 = vmatprep.subr.mxu0 %v87
    %288 = vmatpush1.msra.mxu0 %v86
    %289 = vmatprep.subr.mxu0 %v84
    %290 = vmatpush1.msra.mxu0 %v83
    %291 = vmatprep.subr.mxu0 %v81
    %292 = vmatpush1.msra.mxu0 %v80
    %293 = vmatprep.subr.mxu0 %v78
    %294 = vmatpush1.msra.mxu0 %v77
    %295 = vmatprep.subr.mxu0 %v75
    %296 = vmatpush1.msra.mxu0 %v74
    %297 = vmatprep.subr.mxu0 %v72
    %298 = vmatpush1.msra.mxu0 %v71
    %299 = vmatprep.subr.mxu0 %v69
    %300 = vmatpush1.msra.mxu0 %v68
    %301 = vmatprep.subr.mxu0 %v66
    %302 = vmatpush1.msra.mxu0 %v65
    %303 = vmatprep.subr.mxu0 %v63
    %304 = vmatpush1.msra.mxu0 %v62
    %305 = vmatprep.subr.mxu0 %v60
    %306 = vmatpush1.msra.mxu0 %v59
    %307 = vmatprep.subr.mxu0 %v57
    %308 = vmatpush1.msra.mxu0 %v56
    %309 = vmatprep.subr.mxu0 0.0
    %310 = vmatpush2.msra.mxu0 0.0
    %311 = vmatprep.subr.mxu0 0.0
    %312 = vmatpush2.msra.mxu0 0.0
    %313 = vmatprep.subr.mxu0 0.0
    %314 = vmatpush2.msra.mxu0 0.0
    %315 = vmatprep.subr.mxu0 0.0
    %316 = vmatpush2.msra.mxu0 0.0
    %317 = vmatprep.subr.mxu0 0.0
    %318 = vmatpush2.msra.mxu0 0.0
    %319 = vmatprep.subr.mxu0 0.0
    %320 = vmatpush2.msra.mxu0 0.0
    %321 = vmatprep.subr.mxu0 0.0
    %322 = vmatpush2.msra.mxu0 0.0
    %323 = vmatprep.subr.mxu0 0.0
    %324 = vmatpush2.msra.mxu0 0.0
    %325 = vmatprep.subr.mxu0 0.0
    %326 = vmatpush2.msra.mxu0 0.0
    %327 = vmatprep.subr.mxu0 0.0
    %328 = vmatpush2.msra.mxu0 0.0
    %329 = vmatprep.subr.mxu0 0.0
    %330 = vmatpush2.msra.mxu0 0.0
    %331 = vmatprep.subr.mxu0 0.0
    %332 = vmatpush2.msra.mxu0 0.0
    %333 = vmatprep.subr.mxu0 0.0
    %334 = vmatpush2.msra.mxu0 0.0
    %335 = vmatprep.subr.mxu0 0.0
    %336 = vmatpush2.msra.mxu0 0.0
    %337 = vmatprep.subr.mxu0 0.0
    %338 = vmatpush2.msra.mxu0 0.0
    %339 = vmatprep.subr.mxu0 0.0
    %340 = vmatpush2.msra.mxu0 0.0
    %341 = vmatprep.mubr.f32.mxu0 0.0
    %342 = vmatmul.mubr.f32.gmra.mxu0 %v275
    %v343 = vpop.f32.mrf.mxu0
    %v344 = vadd.f32 0.0, %v343
    %v345 = vpop.f32.mrf.mxu0
    %v346 = vadd.f32 0.0, %v345
    %347 = vdwg.mxu0
    %348 = vmatprep.subr.mxu0 0.0
    %349 = vmatpush1.msra.mxu0 %v103
    %350 = vmatprep.subr.mxu0 0.0
    %351 = vmatpush1.msra.mxu0 %v100
    %352 = vmatprep.subr.mxu0 0.0
    %353 = vmatpush1.msra.mxu0 %v97
    %354 = vmatprep.subr.mxu0 0.0
    %355 = vmatpush1.msra.mxu0 %v94
    %356 = vmatprep.subr.mxu0 0.0
    %357 = vmatpush1.msra.mxu0 %v91
    %358 = vmatprep.subr.mxu0 0.0
    %359 = vmatpush1.msra.mxu0 %v88
    %360 = vmatprep.subr.mxu0 0.0
    %361 = vmatpush1.msra.mxu0 %v85
    %362 = vmatprep.subr.mxu0 0.0
    %363 = vmatpush1.msra.mxu0 %v82
    %364 = vmatprep.subr.mxu0 0.0
    %365 = vmatpush1.msra.mxu0 %v79
    %366 = vmatprep.subr.mxu0 0.0
    %367 = vmatpush1.msra.mxu0 %v76
    %368 = vmatprep.subr.mxu0 0.0
    %369 = vmatpush1.msra.mxu0 %v73
    %370 = vmatprep.subr.mxu0 0.0
    %371 = vmatpush1.msra.mxu0 %v70
    %372 = vmatprep.subr.mxu0 0.0
    %373 = vmatpush1.msra.mxu0 %v67
    %374 = vmatprep.subr.mxu0 0.0
    %375 = vmatpush1.msra.mxu0 %v64
    %376 = vmatprep.subr.mxu0 0.0
    %377 = vmatpush1.msra.mxu0 %v61
    %378 = vmatprep.subr.mxu0 0.0
    %379 = vmatpush1.msra.mxu0 %v58
    %380 = vmatprep.subr.mxu0 0.0
    %381 = vmatpush2.msra.mxu0 0.0
    %382 = vmatprep.subr.mxu0 0.0
    %383 = vmatpush2.msra.mxu0 0.0
    %384 = vmatprep.subr.mxu0 0.0
    %385 = vmatpush2.msra.mxu0 0.0
    %386 = vmatprep.subr.mxu0 0.0
    %387 = vmatpush2.msra.mxu0 0.0
    %388 = vmatprep.subr.mxu0 0.0
    %389 = vmatpush2.msra.mxu0 0.0
    %390 = vmatprep.subr.mxu0 0.0
    %391 = vmatpush2.msra.mxu0 0.0
    %392 = vmatprep.subr.mxu0 0.0
    %393 = vmatpush2.msra.mxu0 0.0
    %394 = vmatprep.subr.mxu0 0.0
    %395 = vmatpush2.msra.mxu0 0.0
    %396 = vmatprep.subr.mxu0 0.0
    %397 = vmatpush2.msra.mxu0 0.0
    %398 = vmatprep.subr.mxu0 0.0
    %399 = vmatpush2.msra.mxu0 0.0
    %400 = vmatprep.subr.mxu0 0.0
    %401 = vmatpush2.msra.mxu0 0.0
    %402 = vmatprep.subr.mxu0 0.0
    %403 = vmatpush2.msra.mxu0 0.0
    %404 = vmatprep.subr.mxu0 0.0
    %405 = vmatpush2.msra.mxu0 0.0
    %406 = vmatprep.subr.mxu0 0.0
    %407 = vmatpush2.msra.mxu0 0.0
    %408 = vmatprep.subr.mxu0 0.0
    %409 = vmatpush2.msra.mxu0 0.0
    %410 = vmatprep.subr.mxu0 0.0
    %411 = vmatpush2.msra.mxu0 0.0
    %412 = vmatprep.mubr.f32.mxu0 0.0
    %413 = vmatmul.mubr.f32.gmra.mxu0 %v275
    %v414 = vpop.f32.mrf.mxu0
    %v415 = vadd.f32 0.0, %v414
    %v416 = vpop.f32.mrf.mxu0
    %417 = vdwg.mxu0
    %s418 = scalar_lea.vmem %s0, 6
    %v419 = vld [vmem:[%s418] sm:$0x3f]
    %v420 = vadd.f32 %v419, %v344
    %v421 = vxor.u32 %v420, 2147483648
    %v422 = vmul.f32 %v421, 1.442695
    %v423 = vpow.pop %v422
    %v424 = vadd.f32 %v423, 1.0
    %v425 = vrcp.pop %v424
    %v426 = vmul.f32 1.0, %v425
    %v428 = vrot.slane %v419, 2
    %v430 = vadd.f32 %v428, %v346
    %v431 = vxor.u32 %v430, 2147483648
    %v432 = vmul.f32 %v431, 1.442695
    %v433 = vpow.pop %v432
    %v434 = vadd.f32 %v433, 1.0
    %v435 = vrcp.pop %v434
    %v436 = vmul.f32 1.0, %v435
    %v437 = vmul.f32 %v426, %v415
    %v438 = vrot.slane %v419, 4
    %v440 = vadd.f32 %v438, %v437
    %v441 = vtanh.pop %v440
    %v442 = vsub.f32 1.0, %v436
    %v443 = vmul.f32 %v442, %v441
    %v444 = vmul.f32 %v436, %v275
    %v445 = vadd.f32 %v443, %v444
    %446 = vst [vmem:[#allocation2 + $0x2] sm:$0x3] %v445
    %447 = vmatprep.subr.mxu0 %v102
    %448 = vmatpush1.msra.mxu0 %v101
    %449 = vmatprep.subr.mxu0 %v99
    %450 = vmatpush1.msra.mxu0 %v98
    %451 = vmatprep.subr.mxu0 %v96
    %452 = vmatpush1.msra.mxu0 %v95
    %453 = vmatprep.subr.mxu0 %v93
    %454 = vmatpush1.msra.mxu0 %v92
    %455 = vmatprep.subr.mxu0 %v90
    %456 = vmatpush1.msra.mxu0 %v89
    %457 = vmatprep.subr.mxu0 %v87
    %458 = vmatpush1.msra.mxu0 %v86
    %459 = vmatprep.subr.mxu0 %v84
    %460 = vmatpush1.msra.mxu0 %v83
    %461 = vmatprep.subr.mxu0 %v81
    %462 = vmatpush1.msra.mxu0 %v80
    %463 = vmatprep.subr.mxu0 %v78
    %464 = vmatpush1.msra.mxu0 %v77
    %465 = vmatprep.subr.mxu0 %v75
    %466 = vmatpush1.msra.mxu0 %v74
    %467 = vmatprep.subr.mxu0 %v72
    %468 = vmatpush1.msra.mxu0 %v71
    %469 = vmatprep.subr.mxu0 %v69
    %470 = vmatpush1.msra.mxu0 %v68
    %471 = vmatprep.subr.mxu0 %v66
    %472 = vmatpush1.msra.mxu0 %v65
    %473 = vmatprep.subr.mxu0 %v63
    %474 = vmatpush1.msra.mxu0 %v62
    %475 = vmatprep.subr.mxu0 %v60
    %476 = vmatpush1.msra.mxu0 %v59
    %477 = vmatprep.subr.mxu0 %v57
    %478 = vmatpush1.msra.mxu0 %v56
    %479 = vmatprep.subr.mxu0 0.0
    %480 = vmatpush2.msra.mxu0 0.0
    %481 = vmatprep.subr.mxu0 0.0
    %482 = vmatpush2.msra.mxu0 0.0
    %483 = vmatprep.subr.mxu0 0.0
    %484 = vmatpush2.msra.mxu0 0.0
    %485 = vmatprep.subr.mxu0 0.0
    %486 = vmatpush2.msra.mxu0 0.0
    %487 = vmatprep.subr.mxu0 0.0
    %488 = vmatpush2.msra.mxu0 0.0
    %489 = vmatprep.subr.mxu0 0.0
    %490 = vmatpush2.msra.mxu0 0.0
    %491 = vmatprep.subr.mxu0 0.0
    %492 = vmatpush2.msra.mxu0 0.0
    %493 = vmatprep.subr.mxu0 0.0
    %494 = vmatpush2.msra.mxu0 0.0
    %495 = vmatprep.subr.mxu0 0.0
    %496 = vmatpush2.msra.mxu0 0.0
    %497 = vmatprep.subr.mxu0 0.0
    %498 = vmatpush2.msra.mxu0 0.0
    %499 = vmatprep.subr.mxu0 0.0
    %500 = vmatpush2.msra.mxu0 0.0
    %501 = vmatprep.subr.mxu0 0.0
    %502 = vmatpush2.msra.mxu0 0.0
    %503 = vmatprep.subr.mxu0 0.0
    %504 = vmatpush2.msra.mxu0 0.0
    %505 = vmatprep.subr.mxu0 0.0
    %506 = vmatpush2.msra.mxu0 0.0
    %507 = vmatprep.subr.mxu0 0.0
    %508 = vmatpush2.msra.mxu0 0.0
    %509 = vmatprep.subr.mxu0 0.0
    %510 = vmatpush2.msra.mxu0 0.0
    %511 = vmatprep.mubr.f32.mxu0 0.0
    %512 = vmatmul.mubr.f32.gmra.mxu0 %v445
    %v513 = vpop.f32.mrf.mxu0
    %v514 = vadd.f32 0.0, %v513
    %v515 = vpop.f32.mrf.mxu0
    %v516 = vadd.f32 0.0, %v515
    %517 = vdwg.mxu0
    %518 = vmatprep.subr.mxu0 0.0
    %519 = vmatpush1.msra.mxu0 %v103
    %520 = vmatprep.subr.mxu0 0.0
    %521 = vmatpush1.msra.mxu0 %v100
    %522 = vmatprep.subr.mxu0 0.0
    %523 = vmatpush1.msra.mxu0 %v97
    %524 = vmatprep.subr.mxu0 0.0
    %525 = vmatpush1.msra.mxu0 %v94
    %526 = vmatprep.subr.mxu0 0.0
    %527 = vmatpush1.msra.mxu0 %v91
    %528 = vmatprep.subr.mxu0 0.0
    %529 = vmatpush1.msra.mxu0 %v88
    %530 = vmatprep.subr.mxu0 0.0
    %531 = vmatpush1.msra.mxu0 %v85
    %532 = vmatprep.subr.mxu0 0.0
    %533 = vmatpush1.msra.mxu0 %v82
    %534 = vmatprep.subr.mxu0 0.0
    %535 = vmatpush1.msra.mxu0 %v79
    %536 = vmatprep.subr.mxu0 0.0
    %537 = vmatpush1.msra.mxu0 %v76
    %538 = vmatprep.subr.mxu0 0.0
    %539 = vmatpush1.msra.mxu0 %v73
    %540 = vmatprep.subr.mxu0 0.0
    %541 = vmatpush1.msra.mxu0 %v70
    %542 = vmatprep.subr.mxu0 0.0
    %543 = vmatpush1.msra.mxu0 %v67
    %544 = vmatprep.subr.mxu0 0.0
    %545 = vmatpush1.msra.mxu0 %v64
    %546 = vmatprep.subr.mxu0 0.0
    %547 = vmatpush1.msra.mxu0 %v61
    %548 = vmatprep.subr.mxu0 0.0
    %549 = vmatpush1.msra.mxu0 %v58
    %550 = vmatprep.subr.mxu0 0.0
    %551 = vmatpush2.msra.mxu0 0.0
    %552 = vmatprep.subr.mxu0 0.0
    %553 = vmatpush2.msra.mxu0 0.0
    %554 = vmatprep.subr.mxu0 0.0
    %555 = vmatpush2.msra.mxu0 0.0
    %556 = vmatprep.subr.mxu0 0.0
    %557 = vmatpush2.msra.mxu0 0.0
    %558 = vmatprep.subr.mxu0 0.0
    %559 = vmatpush2.msra.mxu0 0.0
    %560 = vmatprep.subr.mxu0 0.0
    %561 = vmatpush2.msra.mxu0 0.0
    %562 = vmatprep.subr.mxu0 0.0
    %563 = vmatpush2.msra.mxu0 0.0
    %564 = vmatprep.subr.mxu0 0.0
    %565 = vmatpush2.msra.mxu0 0.0
    %566 = vmatprep.subr.mxu0 0.0
    %567 = vmatpush2.msra.mxu0 0.0
    %568 = vmatprep.subr.mxu0 0.0
    %569 = vmatpush2.msra.mxu0 0.0
    %570 = vmatprep.subr.mxu0 0.0
    %571 = vmatpush2.msra.mxu0 0.0
    %572 = vmatprep.subr.mxu0 0.0
    %573 = vmatpush2.msra.mxu0 0.0
    %574 = vmatprep.subr.mxu0 0.0
    %575 = vmatpush2.msra.mxu0 0.0
    %576 = vmatprep.subr.mxu0 0.0
    %577 = vmatpush2.msra.mxu0 0.0
    %578 = vmatprep.subr.mxu0 0.0
    %579 = vmatpush2.msra.mxu0 0.0
    %580 = vmatprep.subr.mxu0 0.0
    %581 = vmatpush2.msra.mxu0 0.0
    %582 = vmatprep.mubr.f32.mxu0 0.0
    %583 = vmatmul.mubr.f32.gmra.mxu0 %v445
    %v584 = vpop.f32.mrf.mxu0
    %v585 = vadd.f32 0.0, %v584
    %v586 = vpop.f32.mrf.mxu0
    %587 = vdwg.mxu0
    %s588 = scalar_lea.vmem %s0, 12
    %v589 = vld [vmem:[%s588] sm:$0x3f]
    %v590 = vadd.f32 %v589, %v514
    %v591 = vxor.u32 %v590, 2147483648
    %v592 = vmul.f32 %v591, 1.442695
    %v593 = vpow.pop %v592
    %v594 = vadd.f32 %v593, 1.0
    %v595 = vrcp.pop %v594
    %v596 = vmul.f32 1.0, %v595
    %v598 = vrot.slane %v589, 2
    %v600 = vadd.f32 %v598, %v516
    %v601 = vxor.u32 %v600, 2147483648
    %v602 = vmul.f32 %v601, 1.442695
    %v603 = vpow.pop %v602
    %v604 = vadd.f32 %v603, 1.0
    %v605 = vrcp.pop %v604
    %v606 = vmul.f32 1.0, %v605
    %v607 = vmul.f32 %v596, %v585
    %v608 = vrot.slane %v589, 4
    %v610 = vadd.f32 %v608, %v607
    %v611 = vtanh.pop %v610
    %v612 = vsub.f32 1.0, %v606
    %v613 = vmul.f32 %v612, %v611
    %v614 = vmul.f32 %v606, %v445
    %v615 = vadd.f32 %v613, %v614
    %616 = vst [vmem:[#allocation2 + $0x4] sm:$0x3] %v615
    %617 = vmatprep.subr.mxu0 %v102
    %618 = vmatpush1.msra.mxu0 %v101
    %619 = vmatprep.subr.mxu0 %v99
    %620 = vmatpush1.msra.mxu0 %v98
    %621 = vmatprep.subr.mxu0 %v96
    %622 = vmatpush1.msra.mxu0 %v95
    %623 = vmatprep.subr.mxu0 %v93
    %624 = vmatpush1.msra.mxu0 %v92
    %625 = vmatprep.subr.mxu0 %v90
    %626 = vmatpush1.msra.mxu0 %v89
    %627 = vmatprep.subr.mxu0 %v87
    %628 = vmatpush1.msra.mxu0 %v86
    %629 = vmatprep.subr.mxu0 %v84
    %630 = vmatpush1.msra.mxu0 %v83
    %631 = vmatprep.subr.mxu0 %v81
    %632 = vmatpush1.msra.mxu0 %v80
    %633 = vmatprep.subr.mxu0 %v78
    %634 = vmatpush1.msra.mxu0 %v77
    %635 = vmatprep.subr.mxu0 %v75
    %636 = vmatpush1.msra.mxu0 %v74
    %637 = vmatprep.subr.mxu0 %v72
    %638 = vmatpush1.msra.mxu0 %v71
    %639 = vmatprep.subr.mxu0 %v69
    %640 = vmatpush1.msra.mxu0 %v68
    %641 = vmatprep.subr.mxu0 %v66
    %642 = vmatpush1.msra.mxu0 %v65
    %643 = vmatprep.subr.mxu0 %v63
    %644 = vmatpush1.msra.mxu0 %v62
    %645 = vmatprep.subr.mxu0 %v60
    %646 = vmatpush1.msra.mxu0 %v59
    %647 = vmatprep.subr.mxu0 %v57
    %648 = vmatpush1.msra.mxu0 %v56
    %649 = vmatprep.subr.mxu0 0.0
    %650 = vmatpush2.msra.mxu0 0.0
    %651 = vmatprep.subr.mxu0 0.0
    %652 = vmatpush2.msra.mxu0 0.0
    %653 = vmatprep.subr.mxu0 0.0
    %654 = vmatpush2.msra.mxu0 0.0
    %655 = vmatprep.subr.mxu0 0.0
    %656 = vmatpush2.msra.mxu0 0.0
    %657 = vmatprep.subr.mxu0 0.0
    %658 = vmatpush2.msra.mxu0 0.0
    %659 = vmatprep.subr.mxu0 0.0
    %660 = vmatpush2.msra.mxu0 0.0
    %661 = vmatprep.subr.mxu0 0.0
    %662 = vmatpush2.msra.mxu0 0.0
    %663 = vmatprep.subr.mxu0 0.0
    %664 = vmatpush2.msra.mxu0 0.0
    %665 = vmatprep.subr.mxu0 0.0
    %666 = vmatpush2.msra.mxu0 0.0
    %667 = vmatprep.subr.mxu0 0.0
    %668 = vmatpush2.msra.mxu0 0.0
    %669 = vmatprep.subr.mxu0 0.0
    %670 = vmatpush2.msra.mxu0 0.0
    %671 = vmatprep.subr.mxu0 0.0
    %672 = vmatpush2.msra.mxu0 0.0
    %673 = vmatprep.subr.mxu0 0.0
    %674 = vmatpush2.msra.mxu0 0.0
    %675 = vmatprep.subr.mxu0 0.0
    %676 = vmatpush2.msra.mxu0 0.0
    %677 = vmatprep.subr.mxu0 0.0
    %678 = vmatpush2.msra.mxu0 0.0
    %679 = vmatprep.subr.mxu0 0.0
    %680 = vmatpush2.msra.mxu0 0.0
    %681 = vmatprep.mubr.f32.mxu0 0.0
    %682 = vmatmul.mubr.f32.gmra.mxu0 %v615
    %v683 = vpop.f32.mrf.mxu0
    %v684 = vadd.f32 0.0, %v683
    %v685 = vpop.f32.mrf.mxu0
    %v686 = vadd.f32 0.0, %v685
    %687 = vdwg.mxu0
    %688 = vmatprep.subr.mxu0 0.0
    %689 = vmatpush1.msra.mxu0 %v103
    %690 = vmatprep.subr.mxu0 0.0
    %691 = vmatpush1.msra.mxu0 %v100
    %692 = vmatprep.subr.mxu0 0.0
    %693 = vmatpush1.msra.mxu0 %v97
    %694 = vmatprep.subr.mxu0 0.0
    %695 = vmatpush1.msra.mxu0 %v94
    %696 = vmatprep.subr.mxu0 0.0
    %697 = vmatpush1.msra.mxu0 %v91
    %698 = vmatprep.subr.mxu0 0.0
    %699 = vmatpush1.msra.mxu0 %v88
    %700 = vmatprep.subr.mxu0 0.0
    %701 = vmatpush1.msra.mxu0 %v85
    %702 = vmatprep.subr.mxu0 0.0
    %703 = vmatpush1.msra.mxu0 %v82
    %704 = vmatprep.subr.mxu0 0.0
    %705 = vmatpush1.msra.mxu0 %v79
    %706 = vmatprep.subr.mxu0 0.0
    %707 = vmatpush1.msra.mxu0 %v76
    %708 = vmatprep.subr.mxu0 0.0
    %709 = vmatpush1.msra.mxu0 %v73
    %710 = vmatprep.subr.mxu0 0.0
    %711 = vmatpush1.msra.mxu0 %v70
    %712 = vmatprep.subr.mxu0 0.0
    %713 = vmatpush1.msra.mxu0 %v67
    %714 = vmatprep.subr.mxu0 0.0
    %715 = vmatpush1.msra.mxu0 %v64
    %716 = vmatprep.subr.mxu0 0.0
    %717 = vmatpush1.msra.mxu0 %v61
    %718 = vmatprep.subr.mxu0 0.0
    %719 = vmatpush1.msra.mxu0 %v58
    %720 = vmatprep.subr.mxu0 0.0
    %721 = vmatpush2.msra.mxu0 0.0
    %722 = vmatprep.subr.mxu0 0.0
    %723 = vmatpush2.msra.mxu0 0.0
    %724 = vmatprep.subr.mxu0 0.0
    %725 = vmatpush2.msra.mxu0 0.0
    %726 = vmatprep.subr.mxu0 0.0
    %727 = vmatpush2.msra.mxu0 0.0
    %728 = vmatprep.subr.mxu0 0.0
    %729 = vmatpush2.msra.mxu0 0.0
    %730 = vmatprep.subr.mxu0 0.0
    %731 = vmatpush2.msra.mxu0 0.0
    %732 = vmatprep.subr.mxu0 0.0
    %733 = vmatpush2.msra.mxu0 0.0
    %734 = vmatprep.subr.mxu0 0.0
    %735 = vmatpush2.msra.mxu0 0.0
    %736 = vmatprep.subr.mxu0 0.0
    %737 = vmatpush2.msra.mxu0 0.0
    %738 = vmatprep.subr.mxu0 0.0
    %739 = vmatpush2.msra.mxu0 0.0
    %740 = vmatprep.subr.mxu0 0.0
    %741 = vmatpush2.msra.mxu0 0.0
    %742 = vmatprep.subr.mxu0 0.0
    %743 = vmatpush2.msra.mxu0 0.0
    %744 = vmatprep.subr.mxu0 0.0
    %745 = vmatpush2.msra.mxu0 0.0
    %746 = vmatprep.subr.mxu0 0.0
    %747 = vmatpush2.msra.mxu0 0.0
    %748 = vmatprep.subr.mxu0 0.0
    %749 = vmatpush2.msra.mxu0 0.0
    %750 = vmatprep.subr.mxu0 0.0
    %751 = vmatpush2.msra.mxu0 0.0
    %752 = vmatprep.mubr.f32.mxu0 0.0
    %753 = vmatmul.mubr.f32.gmra.mxu0 %v615
    %v754 = vpop.f32.mrf.mxu0
    %v755 = vadd.f32 0.0, %v754
    %v756 = vpop.f32.mrf.mxu0
    %757 = vdwg.mxu0
    %s758 = scalar_lea.vmem %s0, 18
    %v759 = vld [vmem:[%s758] sm:$0x3f]
    %v760 = vadd.f32 %v759, %v684
    %v761 = vxor.u32 %v760, 2147483648
    %v762 = vmul.f32 %v761, 1.442695
    %v763 = vpow.pop %v762
    %v764 = vadd.f32 %v763, 1.0
    %v765 = vrcp.pop %v764
    %v766 = vmul.f32 1.0, %v765
    %v768 = vrot.slane %v759, 2
    %v770 = vadd.f32 %v768, %v686
    %v771 = vxor.u32 %v770, 2147483648
    %v772 = vmul.f32 %v771, 1.442695
    %v773 = vpow.pop %v772
    %v774 = vadd.f32 %v773, 1.0
    %v775 = vrcp.pop %v774
    %v776 = vmul.f32 1.0, %v775
    %v777 = vmul.f32 %v766, %v755
    %v778 = vrot.slane %v759, 4
    %v780 = vadd.f32 %v778, %v777
    %v781 = vtanh.pop %v780
    %v782 = vsub.f32 1.0, %v776
    %v783 = vmul.f32 %v782, %v781
    %v784 = vmul.f32 %v776, %v615
    %v785 = vadd.f32 %v783, %v784
    %786 = vst [vmem:[#allocation2 + $0x6] sm:$0x3] %v785
    %787 = vmatprep.subr.mxu0 %v102
    %788 = vmatpush1.msra.mxu0 %v101
    %789 = vmatprep.subr.mxu0 %v99
    %790 = vmatpush1.msra.mxu0 %v98
    %791 = vmatprep.subr.mxu0 %v96
    %792 = vmatpush1.msra.mxu0 %v95
    %793 = vmatprep.subr.mxu0 %v93
    %794 = vmatpush1.msra.mxu0 %v92
    %795 = vmatprep.subr.mxu0 %v90
    %796 = vmatpush1.msra.mxu0 %v89
    %797 = vmatprep.subr.mxu0 %v87
    %798 = vmatpush1.msra.mxu0 %v86
    %799 = vmatprep.subr.mxu0 %v84
    %800 = vmatpush1.msra.mxu0 %v83
    %801 = vmatprep.subr.mxu0 %v81
    %802 = vmatpush1.msra.mxu0 %v80
    %803 = vmatprep.subr.mxu0 %v78
    %804 = vmatpush1.msra.mxu0 %v77
    %805 = vmatprep.subr.mxu0 %v75
    %806 = vmatpush1.msra.mxu0 %v74
    %807 = vmatprep.subr.mxu0 %v72
    %808 = vmatpush1.msra.mxu0 %v71
    %809 = vmatprep.subr.mxu0 %v69
    %810 = vmatpush1.msra.mxu0 %v68
    %811 = vmatprep.subr.mxu0 %v66
    %812 = vmatpush1.msra.mxu0 %v65
    %813 = vmatprep.subr.mxu0 %v63
    %814 = vmatpush1.msra.mxu0 %v62
    %815 = vmatprep.subr.mxu0 %v60
    %816 = vmatpush1.msra.mxu0 %v59
    %817 = vmatprep.subr.mxu0 %v57
    %818 = vmatpush1.msra.mxu0 %v56
    %819 = vmatprep.subr.mxu0 0.0
    %820 = vmatpush2.msra.mxu0 0.0
    %821 = vmatprep.subr.mxu0 0.0
    %822 = vmatpush2.msra.mxu0 0.0
    %823 = vmatprep.subr.mxu0 0.0
    %824 = vmatpush2.msra.mxu0 0.0
    %825 = vmatprep.subr.mxu0 0.0
    %826 = vmatpush2.msra.mxu0 0.0
    %827 = vmatprep.subr.mxu0 0.0
    %828 = vmatpush2.msra.mxu0 0.0
    %829 = vmatprep.subr.mxu0 0.0
    %830 = vmatpush2.msra.mxu0 0.0
    %831 = vmatprep.subr.mxu0 0.0
    %832 = vmatpush2.msra.mxu0 0.0
    %833 = vmatprep.subr.mxu0 0.0
    %834 = vmatpush2.msra.mxu0 0.0
    %835 = vmatprep.subr.mxu0 0.0
    %836 = vmatpush2.msra.mxu0 0.0
    %837 = vmatprep.subr.mxu0 0.0
    %838 = vmatpush2.msra.mxu0 0.0
    %839 = vmatprep.subr.mxu0 0.0
    %840 = vmatpush2.msra.mxu0 0.0
    %841 = vmatprep.subr.mxu0 0.0
    %842 = vmatpush2.msra.mxu0 0.0
    %843 = vmatprep.subr.mxu0 0.0
    %844 = vmatpush2.msra.mxu0 0.0
    %845 = vmatprep.subr.mxu0 0.0
    %846 = vmatpush2.msra.mxu0 0.0
    %847 = vmatprep.subr.mxu0 0.0
    %848 = vmatpush2.msra.mxu0 0.0
    %849 = vmatprep.subr.mxu0 0.0
    %850 = vmatpush2.msra.mxu0 0.0
    %851 = vmatprep.mubr.f32.mxu0 0.0
    %852 = vmatmul.mubr.f32.gmra.mxu0 %v785
    %v853 = vpop.f32.mrf.mxu0
    %v854 = vadd.f32 0.0, %v853
    %v855 = vpop.f32.mrf.mxu0
    %v856 = vadd.f32 0.0, %v855
    %857 = vdwg.mxu0
    %858 = vmatprep.subr.mxu0 0.0
    %859 = vmatpush1.msra.mxu0 %v103
    %860 = vmatprep.subr.mxu0 0.0
    %861 = vmatpush1.msra.mxu0 %v100
    %862 = vmatprep.subr.mxu0 0.0
    %863 = vmatpush1.msra.mxu0 %v97
    %864 = vmatprep.subr.mxu0 0.0
    %865 = vmatpush1.msra.mxu0 %v94
    %866 = vmatprep.subr.mxu0 0.0
    %867 = vmatpush1.msra.mxu0 %v91
    %868 = vmatprep.subr.mxu0 0.0
    %869 = vmatpush1.msra.mxu0 %v88
    %870 = vmatprep.subr.mxu0 0.0
    %871 = vmatpush1.msra.mxu0 %v85
    %872 = vmatprep.subr.mxu0 0.0
    %873 = vmatpush1.msra.mxu0 %v82
    %874 = vmatprep.subr.mxu0 0.0
    %875 = vmatpush1.msra.mxu0 %v79
    %876 = vmatprep.subr.mxu0 0.0
    %877 = vmatpush1.msra.mxu0 %v76
    %878 = vmatprep.subr.mxu0 0.0
    %879 = vmatpush1.msra.mxu0 %v73
    %880 = vmatprep.subr.mxu0 0.0
    %881 = vmatpush1.msra.mxu0 %v70
    %882 = vmatprep.subr.mxu0 0.0
    %883 = vmatpush1.msra.mxu0 %v67
    %884 = vmatprep.subr.mxu0 0.0
    %885 = vmatpush1.msra.mxu0 %v64
    %886 = vmatprep.subr.mxu0 0.0
    %887 = vmatpush1.msra.mxu0 %v61
    %888 = vmatprep.subr.mxu0 0.0
    %889 = vmatpush1.msra.mxu0 %v58
    %890 = vmatprep.subr.mxu0 0.0
    %891 = vmatpush2.msra.mxu0 0.0
    %892 = vmatprep.subr.mxu0 0.0
    %893 = vmatpush2.msra.mxu0 0.0
    %894 = vmatprep.subr.mxu0 0.0
    %895 = vmatpush2.msra.mxu0 0.0
    %896 = vmatprep.subr.mxu0 0.0
    %897 = vmatpush2.msra.mxu0 0.0
    %898 = vmatprep.subr.mxu0 0.0
    %899 = vmatpush2.msra.mxu0 0.0
    %900 = vmatprep.subr.mxu0 0.0
    %901 = vmatpush2.msra.mxu0 0.0
    %902 = vmatprep.subr.mxu0 0.0
    %903 = vmatpush2.msra.mxu0 0.0
    %904 = vmatprep.subr.mxu0 0.0
    %905 = vmatpush2.msra.mxu0 0.0
    %906 = vmatprep.subr.mxu0 0.0
    %907 = vmatpush2.msra.mxu0 0.0
    %908 = vmatprep.subr.mxu0 0.0
    %909 = vmatpush2.msra.mxu0 0.0
    %910 = vmatprep.subr.mxu0 0.0
    %911 = vmatpush2.msra.mxu0 0.0
    %912 = vmatprep.subr.mxu0 0.0
    %913 = vmatpush2.msra.mxu0 0.0
    %914 = vmatprep.subr.mxu0 0.0
    %915 = vmatpush2.msra.mxu0 0.0
    %916 = vmatprep.subr.mxu0 0.0
    %917 = vmatpush2.msra.mxu0 0.0
    %918 = vmatprep.subr.mxu0 0.0
    %919 = vmatpush2.msra.mxu0 0.0
    %920 = vmatprep.subr.mxu0 0.0
    %921 = vmatpush2.msra.mxu0 0.0
    %922 = vmatprep.mubr.f32.mxu0 0.0
    %923 = vmatmul.mubr.f32.gmra.mxu0 %v785
    %v924 = vpop.f32.mrf.mxu0
    %v925 = vadd.f32 0.0, %v924
    %v926 = vpop.f32.mrf.mxu0
    %927 = vdwg.mxu0
    %s928 = scalar_lea.vmem %s0, 24
    %v929 = vld [vmem:[%s928] sm:$0x3f]
    %v930 = vadd.f32 %v929, %v854
    %v931 = vxor.u32 %v930, 2147483648
    %v932 = vmul.f32 %v931, 1.442695
    %v933 = vpow.pop %v932
    %v934 = vadd.f32 %v933, 1.0
    %v935 = vrcp.pop %v934
    %v936 = vmul.f32 1.0, %v935
    %v938 = vrot.slane %v929, 2
    %v940 = vadd.f32 %v938, %v856
    %v941 = vxor.u32 %v940, 2147483648
    %v942 = vmul.f32 %v941, 1.442695
    %v943 = vpow.pop %v942
    %v944 = vadd.f32 %v943, 1.0
    %v945 = vrcp.pop %v944
    %v946 = vmul.f32 1.0, %v945
    %v947 = vmul.f32 %v936, %v925
    %v948 = vrot.slane %v929, 4
    %v950 = vadd.f32 %v948, %v947
    %v951 = vtanh.pop %v950
    %v952 = vsub.f32 1.0, %v946
    %v953 = vmul.f32 %v952, %v951
    %v954 = vmul.f32 %v946, %v785
    %v955 = vadd.f32 %v953, %v954
    %956 = vst [vmem:[#allocation2 + $0x8] sm:$0x3] %v955
    %957 = vmatprep.subr.mxu0 %v102
    %958 = vmatpush1.msra.mxu0 %v101
    %959 = vmatprep.subr.mxu0 %v99
    %960 = vmatpush1.msra.mxu0 %v98
    %961 = vmatprep.subr.mxu0 %v96
    %962 = vmatpush1.msra.mxu0 %v95
    %963 = vmatprep.subr.mxu0 %v93
    %964 = vmatpush1.msra.mxu0 %v92
    %965 = vmatprep.subr.mxu0 %v90
    %966 = vmatpush1.msra.mxu0 %v89
    %967 = vmatprep.subr.mxu0 %v87
    %968 = vmatpush1.msra.mxu0 %v86
    %969 = vmatprep.subr.mxu0 %v84
    %970 = vmatpush1.msra.mxu0 %v83
    %971 = vmatprep.subr.mxu0 %v81
    %972 = vmatpush1.msra.mxu0 %v80
    %973 = vmatprep.subr.mxu0 %v78
    %974 = vmatpush1.msra.mxu0 %v77
    %975 = vmatprep.subr.mxu0 %v75
    %976 = vmatpush1.msra.mxu0 %v74
    %977 = vmatprep.subr.mxu0 %v72
    %978 = vmatpush1.msra.mxu0 %v71
    %979 = vmatprep.subr.mxu0 %v69
    %980 = vmatpush1.msra.mxu0 %v68
    %981 = vmatprep.subr.mxu0 %v66
    %982 = vmatpush1.msra.mxu0 %v65
    %983 = vmatprep.subr.mxu0 %v63
    %984 = vmatpush1.msra.mxu0 %v62
    %985 = vmatprep.subr.mxu0 %v60
    %986 = vmatpush1.msra.mxu0 %v59
    %987 = vmatprep.subr.mxu0 %v57
    %988 = vmatpush1.msra.mxu0 %v56
    %989 = vmatprep.subr.mxu0 0.0
    %990 = vmatpush2.msra.mxu0 0.0
    %991 = vmatprep.subr.mxu0 0.0
    %992 = vmatpush2.msra.mxu0 0.0
    %993 = vmatprep.subr.mxu0 0.0
    %994 = vmatpush2.msra.mxu0 0.0
    %995 = vmatprep.subr.mxu0 0.0
    %996 = vmatpush2.msra.mxu0 0.0
    %997 = vmatprep.subr.mxu0 0.0
    %998 = vmatpush2.msra.mxu0 0.0
    %999 = vmatprep.subr.mxu0 0.0
    %1000 = vmatpush2.msra.mxu0 0.0
    %1001 = vmatprep.subr.mxu0 0.0
    %1002 = vmatpush2.msra.mxu0 0.0
    %1003 = vmatprep.subr.mxu0 0.0
    %1004 = vmatpush2.msra.mxu0 0.0
    %1005 = vmatprep.subr.mxu0 0.0
    %1006 = vmatpush2.msra.mxu0 0.0
    %1007 = vmatprep.subr.mxu0 0.0
    %1008 = vmatpush2.msra.mxu0 0.0
    %1009 = vmatprep.subr.mxu0 0.0
    %1010 = vmatpush2.msra.mxu0 0.0
    %1011 = vmatprep.subr.mxu0 0.0
    %1012 = vmatpush2.msra.mxu0 0.0
    %1013 = vmatprep.subr.mxu0 0.0
    %1014 = vmatpush2.msra.mxu0 0.0
    %1015 = vmatprep.subr.mxu0 0.0
    %1016 = vmatpush2.msra.mxu0 0.0
    %1017 = vmatprep.subr.mxu0 0.0
    %1018 = vmatpush2.msra.mxu0 0.0
    %1019 = vmatprep.subr.mxu0 0.0
    %1020 = vmatpush2.msra.mxu0 0.0
    %1021 = vmatprep.mubr.f32.mxu0 0.0
    %1022 = vmatmul.mubr.f32.gmra.mxu0 %v955
    %v1023 = vpop.f32.mrf.mxu0
    %v1024 = vadd.f32 0.0, %v1023
    %v1025 = vpop.f32.mrf.mxu0
    %v1026 = vadd.f32 0.0, %v1025
    %1027 = vdwg.mxu0
    %1028 = vmatprep.subr.mxu0 0.0
    %1029 = vmatpush1.msra.mxu0 %v103
    %1030 = vmatprep.subr.mxu0 0.0
    %1031 = vmatpush1.msra.mxu0 %v100
    %1032 = vmatprep.subr.mxu0 0.0
    %1033 = vmatpush1.msra.mxu0 %v97
    %1034 = vmatprep.subr.mxu0 0.0
    %1035 = vmatpush1.msra.mxu0 %v94
    %1036 = vmatprep.subr.mxu0 0.0
    %1037 = vmatpush1.msra.mxu0 %v91
    %1038 = vmatprep.subr.mxu0 0.0
    %1039 = vmatpush1.msra.mxu0 %v88
    %1040 = vmatprep.subr.mxu0 0.0
    %1041 = vmatpush1.msra.mxu0 %v85
    %1042 = vmatprep.subr.mxu0 0.0
    %1043 = vmatpush1.msra.mxu0 %v82
    %1044 = vmatprep.subr.mxu0 0.0
    %1045 = vmatpush1.msra.mxu0 %v79
    %1046 = vmatprep.subr.mxu0 0.0
    %1047 = vmatpush1.msra.mxu0 %v76
    %1048 = vmatprep.subr.mxu0 0.0
    %1049 = vmatpush1.msra.mxu0 %v73
    %1050 = vmatprep.subr.mxu0 0.0
    %1051 = vmatpush1.msra.mxu0 %v70
    %1052 = vmatprep.subr.mxu0 0.0
    %1053 = vmatpush1.msra.mxu0 %v67
    %1054 = vmatprep.subr.mxu0 0.0
    %1055 = vmatpush1.msra.mxu0 %v64
    %1056 = vmatprep.subr.mxu0 0.0
    %1057 = vmatpush1.msra.mxu0 %v61
    %1058 = vmatprep.subr.mxu0 0.0
    %1059 = vmatpush1.msra.mxu0 %v58
    %1060 = vmatprep.subr.mxu0 0.0
    %1061 = vmatpush2.msra.mxu0 0.0
    %1062 = vmatprep.subr.mxu0 0.0
    %1063 = vmatpush2.msra.mxu0 0.0
    %1064 = vmatprep.subr.mxu0 0.0
    %1065 = vmatpush2.msra.mxu0 0.0
    %1066 = vmatprep.subr.mxu0 0.0
    %1067 = vmatpush2.msra.mxu0 0.0
    %1068 = vmatprep.subr.mxu0 0.0
    %1069 = vmatpush2.msra.mxu0 0.0
    %1070 = vmatprep.subr.mxu0 0.0
    %1071 = vmatpush2.msra.mxu0 0.0
    %1072 = vmatprep.subr.mxu0 0.0
    %1073 = vmatpush2.msra.mxu0 0.0
    %1074 = vmatprep.subr.mxu0 0.0
    %1075 = vmatpush2.msra.mxu0 0.0
    %1076 = vmatprep.subr.mxu0 0.0
    %1077 = vmatpush2.msra.mxu0 0.0
    %1078 = vmatprep.subr.mxu0 0.0
    %1079 = vmatpush2.msra.mxu0 0.0
    %1080 = vmatprep.subr.mxu0 0.0
    %1081 = vmatpush2.msra.mxu0 0.0
    %1082 = vmatprep.subr.mxu0 0.0
    %1083 = vmatpush2.msra.mxu0 0.0
    %1084 = vmatprep.subr.mxu0 0.0
    %1085 = vmatpush2.msra.mxu0 0.0
    %1086 = vmatprep.subr.mxu0 0.0
    %1087 = vmatpush2.msra.mxu0 0.0
    %1088 = vmatprep.subr.mxu0 0.0
    %1089 = vmatpush2.msra.mxu0 0.0
    %1090 = vmatprep.subr.mxu0 0.0
    %1091 = vmatpush2.msra.mxu0 0.0
    %1092 = vmatprep.mubr.f32.mxu0 0.0
    %1093 = vmatmul.mubr.f32.gmra.mxu0 %v955
    %v1094 = vpop.f32.mrf.mxu0
    %v1095 = vadd.f32 0.0, %v1094
    %v1096 = vpop.f32.mrf.mxu0
    %1097 = vdwg.mxu0
    %s1098 = scalar_lea.vmem %s0, 30
    %v1099 = vld [vmem:[%s1098] sm:$0x3f]
    %v1100 = vadd.f32 %v1099, %v1024
    %v1101 = vxor.u32 %v1100, 2147483648
    %v1102 = vmul.f32 %v1101, 1.442695
    %v1103 = vpow.pop %v1102
    %v1104 = vadd.f32 %v1103, 1.0
    %v1105 = vrcp.pop %v1104
    %v1106 = vmul.f32 1.0, %v1105
    %v1108 = vrot.slane %v1099, 2
    %v1110 = vadd.f32 %v1108, %v1026
    %v1111 = vxor.u32 %v1110, 2147483648
    %v1112 = vmul.f32 %v1111, 1.442695
    %v1113 = vpow.pop %v1112
    %v1114 = vadd.f32 %v1113, 1.0
    %v1115 = vrcp.pop %v1114
    %v1116 = vmul.f32 1.0, %v1115
    %v1117 = vmul.f32 %v1106, %v1095
    %v1118 = vrot.slane %v1099, 4
    %v1120 = vadd.f32 %v1118, %v1117
    %v1121 = vtanh.pop %v1120
    %v1122 = vsub.f32 1.0, %v1116
    %v1123 = vmul.f32 %v1122, %v1121
    %v1124 = vmul.f32 %v1116, %v955
    %v1125 = vadd.f32 %v1123, %v1124
    %1126 = vst [vmem:[#allocation2 + $0xa] sm:$0x3] %v1125
    %1127 = vmatprep.subr.mxu0 %v102
    %1128 = vmatpush1.msra.mxu0 %v101
    %1129 = vmatprep.subr.mxu0 %v99
    %1130 = vmatpush1.msra.mxu0 %v98
    %1131 = vmatprep.subr.mxu0 %v96
    %1132 = vmatpush1.msra.mxu0 %v95
    %1133 = vmatprep.subr.mxu0 %v93
    %1134 = vmatpush1.msra.mxu0 %v92
    %1135 = vmatprep.subr.mxu0 %v90
    %1136 = vmatpush1.msra.mxu0 %v89
    %1137 = vmatprep.subr.mxu0 %v87
    %1138 = vmatpush1.msra.mxu0 %v86
    %1139 = vmatprep.subr.mxu0 %v84
    %1140 = vmatpush1.msra.mxu0 %v83
    %1141 = vmatprep.subr.mxu0 %v81
    %1142 = vmatpush1.msra.mxu0 %v80
    %1143 = vmatprep.subr.mxu0 %v78
    %1144 = vmatpush1.msra.mxu0 %v77
    %1145 = vmatprep.subr.mxu0 %v75
    %1146 = vmatpush1.msra.mxu0 %v74
    %1147 = vmatprep.subr.mxu0 %v72
    %1148 = vmatpush1.msra.mxu0 %v71
    %1149 = vmatprep.subr.mxu0 %v69
    %1150 = vmatpush1.msra.mxu0 %v68
    %1151 = vmatprep.subr.mxu0 %v66
    %1152 = vmatpush1.msra.mxu0 %v65
    %1153 = vmatprep.subr.mxu0 %v63
    %1154 = vmatpush1.msra.mxu0 %v62
    %1155 = vmatprep.subr.mxu0 %v60
    %1156 = vmatpush1.msra.mxu0 %v59
    %1157 = vmatprep.subr.mxu0 %v57
    %1158 = vmatpush1.msra.mxu0 %v56
    %1159 = vmatprep.subr.mxu0 0.0
    %1160 = vmatpush2.msra.mxu0 0.0
    %1161 = vmatprep.subr.mxu0 0.0
    %1162 = vmatpush2.msra.mxu0 0.0
    %1163 = vmatprep.subr.mxu0 0.0
    %1164 = vmatpush2.msra.mxu0 0.0
    %1165 = vmatprep.subr.mxu0 0.0
    %1166 = vmatpush2.msra.mxu0 0.0
    %1167 = vmatprep.subr.mxu0 0.0
    %1168 = vmatpush2.msra.mxu0 0.0
    %1169 = vmatprep.subr.mxu0 0.0
    %1170 = vmatpush2.msra.mxu0 0.0
    %1171 = vmatprep.subr.mxu0 0.0
    %1172 = vmatpush2.msra.mxu0 0.0
    %1173 = vmatprep.subr.mxu0 0.0
    %1174 = vmatpush2.msra.mxu0 0.0
    %1175 = vmatprep.subr.mxu0 0.0
    %1176 = vmatpush2.msra.mxu0 0.0
    %1177 = vmatprep.subr.mxu0 0.0
    %1178 = vmatpush2.msra.mxu0 0.0
    %1179 = vmatprep.subr.mxu0 0.0
    %1180 = vmatpush2.msra.mxu0 0.0
    %1181 = vmatprep.subr.mxu0 0.0
    %1182 = vmatpush2.msra.mxu0 0.0
    %1183 = vmatprep.subr.mxu0 0.0
    %1184 = vmatpush2.msra.mxu0 0.0
    %1185 = vmatprep.subr.mxu0 0.0
    %1186 = vmatpush2.msra.mxu0 0.0
    %1187 = vmatprep.subr.mxu0 0.0
    %1188 = vmatpush2.msra.mxu0 0.0
    %1189 = vmatprep.subr.mxu0 0.0
    %1190 = vmatpush2.msra.mxu0 0.0
    %1191 = vmatprep.mubr.f32.mxu0 0.0
    %1192 = vmatmul.mubr.f32.gmra.mxu0 %v1125
    %v1193 = vpop.f32.mrf.mxu0
    %v1194 = vadd.f32 0.0, %v1193
    %v1195 = vpop.f32.mrf.mxu0
    %v1196 = vadd.f32 0.0, %v1195
    %1197 = vdwg.mxu0
    %1198 = vmatprep.subr.mxu0 0.0
    %1199 = vmatpush1.msra.mxu0 %v103
    %1200 = vmatprep.subr.mxu0 0.0
    %1201 = vmatpush1.msra.mxu0 %v100
    %1202 = vmatprep.subr.mxu0 0.0
    %1203 = vmatpush1.msra.mxu0 %v97
    %1204 = vmatprep.subr.mxu0 0.0
    %1205 = vmatpush1.msra.mxu0 %v94
    %1206 = vmatprep.subr.mxu0 0.0
    %1207 = vmatpush1.msra.mxu0 %v91
    %1208 = vmatprep.subr.mxu0 0.0
    %1209 = vmatpush1.msra.mxu0 %v88
    %1210 = vmatprep.subr.mxu0 0.0
    %1211 = vmatpush1.msra.mxu0 %v85
    %1212 = vmatprep.subr.mxu0 0.0
    %1213 = vmatpush1.msra.mxu0 %v82
    %1214 = vmatprep.subr.mxu0 0.0
    %1215 = vmatpush1.msra.mxu0 %v79
    %1216 = vmatprep.subr.mxu0 0.0
    %1217 = vmatpush1.msra.mxu0 %v76
    %1218 = vmatprep.subr.mxu0 0.0
    %1219 = vmatpush1.msra.mxu0 %v73
    %1220 = vmatprep.subr.mxu0 0.0
    %1221 = vmatpush1.msra.mxu0 %v70
    %1222 = vmatprep.subr.mxu0 0.0
    %1223 = vmatpush1.msra.mxu0 %v67
    %1224 = vmatprep.subr.mxu0 0.0
    %1225 = vmatpush1.msra.mxu0 %v64
    %1226 = vmatprep.subr.mxu0 0.0
    %1227 = vmatpush1.msra.mxu0 %v61
    %1228 = vmatprep.subr.mxu0 0.0
    %1229 = vmatpush1.msra.mxu0 %v58
    %1230 = vmatprep.subr.mxu0 0.0
    %1231 = vmatpush2.msra.mxu0 0.0
    %1232 = vmatprep.subr.mxu0 0.0
    %1233 = vmatpush2.msra.mxu0 0.0
    %1234 = vmatprep.subr.mxu0 0.0
    %1235 = vmatpush2.msra.mxu0 0.0
    %1236 = vmatprep.subr.mxu0 0.0
    %1237 = vmatpush2.msra.mxu0 0.0
    %1238 = vmatprep.subr.mxu0 0.0
    %1239 = vmatpush2.msra.mxu0 0.0
    %1240 = vmatprep.subr.mxu0 0.0
    %1241 = vmatpush2.msra.mxu0 0.0
    %1242 = vmatprep.subr.mxu0 0.0
    %1243 = vmatpush2.msra.mxu0 0.0
    %1244 = vmatprep.subr.mxu0 0.0
    %1245 = vmatpush2.msra.mxu0 0.0
    %1246 = vmatprep.subr.mxu0 0.0
    %1247 = vmatpush2.msra.mxu0 0.0
    %1248 = vmatprep.subr.mxu0 0.0
    %1249 = vmatpush2.msra.mxu0 0.0
    %1250 = vmatprep.subr.mxu0 0.0
    %1251 = vmatpush2.msra.mxu0 0.0
    %1252 = vmatprep.subr.mxu0 0.0
    %1253 = vmatpush2.msra.mxu0 0.0
    %1254 = vmatprep.subr.mxu0 0.0
    %1255 = vmatpush2.msra.mxu0 0.0
    %1256 = vmatprep.subr.mxu0 0.0
    %1257 = vmatpush2.msra.mxu0 0.0
    %1258 = vmatprep.subr.mxu0 0.0
    %1259 = vmatpush2.msra.mxu0 0.0
    %1260 = vmatprep.subr.mxu0 0.0
    %1261 = vmatpush2.msra.mxu0 0.0
    %1262 = vmatprep.mubr.f32.mxu0 0.0
    %1263 = vmatmul.mubr.f32.gmra.mxu0 %v1125
    %v1264 = vpop.f32.mrf.mxu0
    %v1265 = vadd.f32 0.0, %v1264
    %v1266 = vpop.f32.mrf.mxu0
    %1267 = vdwg.mxu0
    %s1268 = scalar_lea.vmem %s0, 36
    %v1269 = vld [vmem:[%s1268] sm:$0x3f]
    %v1270 = vadd.f32 %v1269, %v1194
    %v1271 = vxor.u32 %v1270, 2147483648
    %v1272 = vmul.f32 %v1271, 1.442695
    %v1273 = vpow.pop %v1272
    %v1274 = vadd.f32 %v1273, 1.0
    %v1275 = vrcp.pop %v1274
    %v1276 = vmul.f32 1.0, %v1275
    %v1278 = vrot.slane %v1269, 2
    %v1280 = vadd.f32 %v1278, %v1196
    %v1281 = vxor.u32 %v1280, 2147483648
    %v1282 = vmul.f32 %v1281, 1.442695
    %v1283 = vpow.pop %v1282
    %v1284 = vadd.f32 %v1283, 1.0
    %v1285 = vrcp.pop %v1284
    %v1286 = vmul.f32 1.0, %v1285
    %v1287 = vmul.f32 %v1276, %v1265
    %v1288 = vrot.slane %v1269, 4
    %v1290 = vadd.f32 %v1288, %v1287
    %v1291 = vtanh.pop %v1290
    %v1292 = vsub.f32 1.0, %v1286
    %v1293 = vmul.f32 %v1292, %v1291
    %v1294 = vmul.f32 %v1286, %v1125
    %v1295 = vadd.f32 %v1293, %v1294
    %1296 = vst [vmem:[#allocation2 + $0xc] sm:$0x3] %v1295
    %1297 = vmatprep.subr.mxu0 %v102
    %1298 = vmatpush1.msra.mxu0 %v101
    %1299 = vmatprep.subr.mxu0 %v99
    %1300 = vmatpush1.msra.mxu0 %v98
    %1301 = vmatprep.subr.mxu0 %v96
    %1302 = vmatpush1.msra.mxu0 %v95
    %1303 = vmatprep.subr.mxu0 %v93
    %1304 = vmatpush1.msra.mxu0 %v92
    %1305 = vmatprep.subr.mxu0 %v90
    %1306 = vmatpush1.msra.mxu0 %v89
    %1307 = vmatprep.subr.mxu0 %v87
    %1308 = vmatpush1.msra.mxu0 %v86
    %1309 = vmatprep.subr.mxu0 %v84
    %1310 = vmatpush1.msra.mxu0 %v83
    %1311 = vmatprep.subr.mxu0 %v81
    %1312 = vmatpush1.msra.mxu0 %v80
    %1313 = vmatprep.subr.mxu0 %v78
    %1314 = vmatpush1.msra.mxu0 %v77
    %1315 = vmatprep.subr.mxu0 %v75
    %1316 = vmatpush1.msra.mxu0 %v74
    %1317 = vmatprep.subr.mxu0 %v72
    %1318 = vmatpush1.msra.mxu0 %v71
    %1319 = vmatprep.subr.mxu0 %v69
    %1320 = vmatpush1.msra.mxu0 %v68
    %1321 = vmatprep.subr.mxu0 %v66
    %1322 = vmatpush1.msra.mxu0 %v65
    %1323 = vmatprep.subr.mxu0 %v63
    %1324 = vmatpush1.msra.mxu0 %v62
    %1325 = vmatprep.subr.mxu0 %v60
    %1326 = vmatpush1.msra.mxu0 %v59
    %1327 = vmatprep.subr.mxu0 %v57
    %1328 = vmatpush1.msra.mxu0 %v56
    %1329 = vmatprep.subr.mxu0 0.0
    %1330 = vmatpush2.msra.mxu0 0.0
    %1331 = vmatprep.subr.mxu0 0.0
    %1332 = vmatpush2.msra.mxu0 0.0
    %1333 = vmatprep.subr.mxu0 0.0
    %1334 = vmatpush2.msra.mxu0 0.0
    %1335 = vmatprep.subr.mxu0 0.0
    %1336 = vmatpush2.msra.mxu0 0.0
    %1337 = vmatprep.subr.mxu0 0.0
    %1338 = vmatpush2.msra.mxu0 0.0
    %1339 = vmatprep.subr.mxu0 0.0
    %1340 = vmatpush2.msra.mxu0 0.0
    %1341 = vmatprep.subr.mxu0 0.0
    %1342 = vmatpush2.msra.mxu0 0.0
    %1343 = vmatprep.subr.mxu0 0.0
    %1344 = vmatpush2.msra.mxu0 0.0
    %1345 = vmatprep.subr.mxu0 0.0
    %1346 = vmatpush2.msra.mxu0 0.0
    %1347 = vmatprep.subr.mxu0 0.0
    %1348 = vmatpush2.msra.mxu0 0.0
    %1349 = vmatprep.subr.mxu0 0.0
    %1350 = vmatpush2.msra.mxu0 0.0
    %1351 = vmatprep.subr.mxu0 0.0
    %1352 = vmatpush2.msra.mxu0 0.0
    %1353 = vmatprep.subr.mxu0 0.0
    %1354 = vmatpush2.msra.mxu0 0.0
    %1355 = vmatprep.subr.mxu0 0.0
    %1356 = vmatpush2.msra.mxu0 0.0
    %1357 = vmatprep.subr.mxu0 0.0
    %1358 = vmatpush2.msra.mxu0 0.0
    %1359 = vmatprep.subr.mxu0 0.0
    %1360 = vmatpush2.msra.mxu0 0.0
    %1361 = vmatprep.mubr.f32.mxu0 0.0
    %1362 = vmatmul.mubr.f32.gmra.mxu0 %v1295
    %v1363 = vpop.f32.mrf.mxu0
    %v1364 = vadd.f32 0.0, %v1363
    %v1365 = vpop.f32.mrf.mxu0
    %v1366 = vadd.f32 0.0, %v1365
    %1367 = vdwg.mxu0
    %1368 = vmatprep.subr.mxu0 0.0
    %1369 = vmatpush1.msra.mxu0 %v103
    %1370 = vmatprep.subr.mxu0 0.0
    %1371 = vmatpush1.msra.mxu0 %v100
    %1372 = vmatprep.subr.mxu0 0.0
    %1373 = vmatpush1.msra.mxu0 %v97
    %1374 = vmatprep.subr.mxu0 0.0
    %1375 = vmatpush1.msra.mxu0 %v94
    %1376 = vmatprep.subr.mxu0 0.0
    %1377 = vmatpush1.msra.mxu0 %v91
    %1378 = vmatprep.subr.mxu0 0.0
    %1379 = vmatpush1.msra.mxu0 %v88
    %1380 = vmatprep.subr.mxu0 0.0
    %1381 = vmatpush1.msra.mxu0 %v85
    %1382 = vmatprep.subr.mxu0 0.0
    %1383 = vmatpush1.msra.mxu0 %v82
    %1384 = vmatprep.subr.mxu0 0.0
    %1385 = vmatpush1.msra.mxu0 %v79
    %1386 = vmatprep.subr.mxu0 0.0
    %1387 = vmatpush1.msra.mxu0 %v76
    %1388 = vmatprep.subr.mxu0 0.0
    %1389 = vmatpush1.msra.mxu0 %v73
    %1390 = vmatprep.subr.mxu0 0.0
    %1391 = vmatpush1.msra.mxu0 %v70
    %1392 = vmatprep.subr.mxu0 0.0
    %1393 = vmatpush1.msra.mxu0 %v67
    %1394 = vmatprep.subr.mxu0 0.0
    %1395 = vmatpush1.msra.mxu0 %v64
    %1396 = vmatprep.subr.mxu0 0.0
    %1397 = vmatpush1.msra.mxu0 %v61
    %1398 = vmatprep.subr.mxu0 0.0
    %1399 = vmatpush1.msra.mxu0 %v58
    %1400 = vmatprep.subr.mxu0 0.0
    %1401 = vmatpush2.msra.mxu0 0.0
    %1402 = vmatprep.subr.mxu0 0.0
    %1403 = vmatpush2.msra.mxu0 0.0
    %1404 = vmatprep.subr.mxu0 0.0
    %1405 = vmatpush2.msra.mxu0 0.0
    %1406 = vmatprep.subr.mxu0 0.0
    %1407 = vmatpush2.msra.mxu0 0.0
    %1408 = vmatprep.subr.mxu0 0.0
    %1409 = vmatpush2.msra.mxu0 0.0
    %1410 = vmatprep.subr.mxu0 0.0
    %1411 = vmatpush2.msra.mxu0 0.0
    %1412 = vmatprep.subr.mxu0 0.0
    %1413 = vmatpush2.msra.mxu0 0.0
    %1414 = vmatprep.subr.mxu0 0.0
    %1415 = vmatpush2.msra.mxu0 0.0
    %1416 = vmatprep.subr.mxu0 0.0
    %1417 = vmatpush2.msra.mxu0 0.0
    %1418 = vmatprep.subr.mxu0 0.0
    %1419 = vmatpush2.msra.mxu0 0.0
    %1420 = vmatprep.subr.mxu0 0.0
    %1421 = vmatpush2.msra.mxu0 0.0
    %1422 = vmatprep.subr.mxu0 0.0
    %1423 = vmatpush2.msra.mxu0 0.0
    %1424 = vmatprep.subr.mxu0 0.0
    %1425 = vmatpush2.msra.mxu0 0.0
    %1426 = vmatprep.subr.mxu0 0.0
    %1427 = vmatpush2.msra.mxu0 0.0
    %1428 = vmatprep.subr.mxu0 0.0
    %1429 = vmatpush2.msra.mxu0 0.0
    %1430 = vmatprep.subr.mxu0 0.0
    %1431 = vmatpush2.msra.mxu0 0.0
    %1432 = vmatprep.mubr.f32.mxu0 0.0
    %1433 = vmatmul.mubr.f32.gmra.mxu0 %v1295
    %v1434 = vpop.f32.mrf.mxu0
    %v1435 = vadd.f32 0.0, %v1434
    %v1436 = vpop.f32.mrf.mxu0
    %1437 = vdwg.mxu0
    %s1438 = scalar_lea.vmem %s0, 42
    %v1439 = vld [vmem:[%s1438] sm:$0x3f]
    %v1440 = vadd.f32 %v1439, %v1364
    %v1441 = vxor.u32 %v1440, 2147483648
    %v1442 = vmul.f32 %v1441, 1.442695
    %v1443 = vpow.pop %v1442
    %v1444 = vadd.f32 %v1443, 1.0
    %v1445 = vrcp.pop %v1444
    %v1446 = vmul.f32 1.0, %v1445
    %v1448 = vrot.slane %v1439, 2
    %v1450 = vadd.f32 %v1448, %v1366
    %v1451 = vxor.u32 %v1450, 2147483648
    %v1452 = vmul.f32 %v1451, 1.442695
    %v1453 = vpow.pop %v1452
    %v1454 = vadd.f32 %v1453, 1.0
    %v1455 = vrcp.pop %v1454
    %v1456 = vmul.f32 1.0, %v1455
    %v1457 = vmul.f32 %v1446, %v1435
    %v1458 = vrot.slane %v1439, 4
    %v1460 = vadd.f32 %v1458, %v1457
    %v1461 = vtanh.pop %v1460
    %v1462 = vsub.f32 1.0, %v1456
    %v1463 = vmul.f32 %v1462, %v1461
    %v1464 = vmul.f32 %v1456, %v1295
    %v1465 = vadd.f32 %v1463, %v1464
    %1466 = vst [vmem:[#allocation2 + $0xe] sm:$0x3] %v1465
    %1467 = vmatprep.subr.mxu0 %v102
    %1468 = vmatpush1.msra.mxu0 %v101
    %1469 = vmatprep.subr.mxu0 %v99
    %1470 = vmatpush1.msra.mxu0 %v98
    %1471 = vmatprep.subr.mxu0 %v96
    %1472 = vmatpush1.msra.mxu0 %v95
    %1473 = vmatprep.subr.mxu0 %v93
    %1474 = vmatpush1.msra.mxu0 %v92
    %1475 = vmatprep.subr.mxu0 %v90
    %1476 = vmatpush1.msra.mxu0 %v89
    %1477 = vmatprep.subr.mxu0 %v87
    %1478 = vmatpush1.msra.mxu0 %v86
    %1479 = vmatprep.subr.mxu0 %v84
    %1480 = vmatpush1.msra.mxu0 %v83
    %1481 = vmatprep.subr.mxu0 %v81
    %1482 = vmatpush1.msra.mxu0 %v80
    %1483 = vmatprep.subr.mxu0 %v78
    %1484 = vmatpush1.msra.mxu0 %v77
    %1485 = vmatprep.subr.mxu0 %v75
    %1486 = vmatpush1.msra.mxu0 %v74
    %1487 = vmatprep.subr.mxu0 %v72
    %1488 = vmatpush1.msra.mxu0 %v71
    %1489 = vmatprep.subr.mxu0 %v69
    %1490 = vmatpush1.msra.mxu0 %v68
    %1491 = vmatprep.subr.mxu0 %v66
    %1492 = vmatpush1.msra.mxu0 %v65
    %1493 = vmatprep.subr.mxu0 %v63
    %1494 = vmatpush1.msra.mxu0 %v62
    %1495 = vmatprep.subr.mxu0 %v60
    %1496 = vmatpush1.msra.mxu0 %v59
    %1497 = vmatprep.subr.mxu0 %v57
    %1498 = vmatpush1.msra.mxu0 %v56
    %1499 = vmatprep.subr.mxu0 0.0
    %1500 = vmatpush2.msra.mxu0 0.0
    %1501 = vmatprep.subr.mxu0 0.0
    %1502 = vmatpush2.msra.mxu0 0.0
    %1503 = vmatprep.subr.mxu0 0.0
    %1504 = vmatpush2.msra.mxu0 0.0
    %1505 = vmatprep.subr.mxu0 0.0
    %1506 = vmatpush2.msra.mxu0 0.0
    %1507 = vmatprep.subr.mxu0 0.0
    %1508 = vmatpush2.msra.mxu0 0.0
    %1509 = vmatprep.subr.mxu0 0.0
    %1510 = vmatpush2.msra.mxu0 0.0
    %1511 = vmatprep.subr.mxu0 0.0
    %1512 = vmatpush2.msra.mxu0 0.0
    %1513 = vmatprep.subr.mxu0 0.0
    %1514 = vmatpush2.msra.mxu0 0.0
    %1515 = vmatprep.subr.mxu0 0.0
    %1516 = vmatpush2.msra.mxu0 0.0
    %1517 = vmatprep.subr.mxu0 0.0
    %1518 = vmatpush2.msra.mxu0 0.0
    %1519 = vmatprep.subr.mxu0 0.0
    %1520 = vmatpush2.msra.mxu0 0.0
    %1521 = vmatprep.subr.mxu0 0.0
    %1522 = vmatpush2.msra.mxu0 0.0
    %1523 = vmatprep.subr.mxu0 0.0
    %1524 = vmatpush2.msra.mxu0 0.0
    %1525 = vmatprep.subr.mxu0 0.0
    %1526 = vmatpush2.msra.mxu0 0.0
    %1527 = vmatprep.subr.mxu0 0.0
    %1528 = vmatpush2.msra.mxu0 0.0
    %1529 = vmatprep.subr.mxu0 0.0
    %1530 = vmatpush2.msra.mxu0 0.0
    %1531 = vmatprep.mubr.f32.mxu0 0.0
    %1532 = vmatmul.mubr.f32.gmra.mxu0 %v1465
    %v1533 = vpop.f32.mrf.mxu0
    %v1534 = vadd.f32 0.0, %v1533
    %v1535 = vpop.f32.mrf.mxu0
    %v1536 = vadd.f32 0.0, %v1535
    %1537 = vdwg.mxu0
    %1538 = vmatprep.subr.mxu0 0.0
    %1539 = vmatpush1.msra.mxu0 %v103
    %1540 = vmatprep.subr.mxu0 0.0
    %1541 = vmatpush1.msra.mxu0 %v100
    %1542 = vmatprep.subr.mxu0 0.0
    %1543 = vmatpush1.msra.mxu0 %v97
    %1544 = vmatprep.subr.mxu0 0.0
    %1545 = vmatpush1.msra.mxu0 %v94
    %1546 = vmatprep.subr.mxu0 0.0
    %1547 = vmatpush1.msra.mxu0 %v91
    %1548 = vmatprep.subr.mxu0 0.0
    %1549 = vmatpush1.msra.mxu0 %v88
    %1550 = vmatprep.subr.mxu0 0.0
    %1551 = vmatpush1.msra.mxu0 %v85
    %1552 = vmatprep.subr.mxu0 0.0
    %1553 = vmatpush1.msra.mxu0 %v82
    %1554 = vmatprep.subr.mxu0 0.0
    %1555 = vmatpush1.msra.mxu0 %v79
    %1556 = vmatprep.subr.mxu0 0.0
    %1557 = vmatpush1.msra.mxu0 %v76
    %1558 = vmatprep.subr.mxu0 0.0
    %1559 = vmatpush1.msra.mxu0 %v73
    %1560 = vmatprep.subr.mxu0 0.0
    %1561 = vmatpush1.msra.mxu0 %v70
    %1562 = vmatprep.subr.mxu0 0.0
    %1563 = vmatpush1.msra.mxu0 %v67
    %1564 = vmatprep.subr.mxu0 0.0
    %1565 = vmatpush1.msra.mxu0 %v64
    %1566 = vmatprep.subr.mxu0 0.0
    %1567 = vmatpush1.msra.mxu0 %v61
    %1568 = vmatprep.subr.mxu0 0.0
    %1569 = vmatpush1.msra.mxu0 %v58
    %1570 = vmatprep.subr.mxu0 0.0
    %1571 = vmatpush2.msra.mxu0 0.0
    %1572 = vmatprep.subr.mxu0 0.0
    %1573 = vmatpush2.msra.mxu0 0.0
    %1574 = vmatprep.subr.mxu0 0.0
    %1575 = vmatpush2.msra.mxu0 0.0
    %1576 = vmatprep.subr.mxu0 0.0
    %1577 = vmatpush2.msra.mxu0 0.0
    %1578 = vmatprep.subr.mxu0 0.0
    %1579 = vmatpush2.msra.mxu0 0.0
    %1580 = vmatprep.subr.mxu0 0.0
    %1581 = vmatpush2.msra.mxu0 0.0
    %1582 = vmatprep.subr.mxu0 0.0
    %1583 = vmatpush2.msra.mxu0 0.0
    %1584 = vmatprep.subr.mxu0 0.0
    %1585 = vmatpush2.msra.mxu0 0.0
    %1586 = vmatprep.subr.mxu0 0.0
    %1587 = vmatpush2.msra.mxu0 0.0
    %1588 = vmatprep.subr.mxu0 0.0
    %1589 = vmatpush2.msra.mxu0 0.0
    %1590 = vmatprep.subr.mxu0 0.0
    %1591 = vmatpush2.msra.mxu0 0.0
    %1592 = vmatprep.subr.mxu0 0.0
    %1593 = vmatpush2.msra.mxu0 0.0
    %1594 = vmatprep.subr.mxu0 0.0
    %1595 = vmatpush2.msra.mxu0 0.0
    %1596 = vmatprep.subr.mxu0 0.0
    %1597 = vmatpush2.msra.mxu0 0.0
    %1598 = vmatprep.subr.mxu0 0.0
    %1599 = vmatpush2.msra.mxu0 0.0
    %1600 = vmatprep.subr.mxu0 0.0
    %1601 = vmatpush2.msra.mxu0 0.0
    %1602 = vmatprep.mubr.f32.mxu0 0.0
    %1603 = vmatmul.mubr.f32.gmra.mxu0 %v1465
    %v1604 = vpop.f32.mrf.mxu0
    %v1605 = vadd.f32 0.0, %v1604
    %v1606 = vpop.f32.mrf.mxu0
    %1607 = vdwg.mxu0
    %s1608 = scalar_lea.vmem %s0, 48
    %v1609 = vld [vmem:[%s1608] sm:$0x3f]
    %v1610 = vadd.f32 %v1609, %v1534
    %v1611 = vxor.u32 %v1610, 2147483648
    %v1612 = vmul.f32 %v1611, 1.442695
    %v1613 = vpow.pop %v1612
    %v1614 = vadd.f32 %v1613, 1.0
    %v1615 = vrcp.pop %v1614
    %v1616 = vmul.f32 1.0, %v1615
    %v1618 = vrot.slane %v1609, 2
    %v1620 = vadd.f32 %v1618, %v1536
    %v1621 = vxor.u32 %v1620, 2147483648
    %v1622 = vmul.f32 %v1621, 1.442695
    %v1623 = vpow.pop %v1622
    %v1624 = vadd.f32 %v1623, 1.0
    %v1625 = vrcp.pop %v1624
    %v1626 = vmul.f32 1.0, %v1625
    %v1627 = vmul.f32 %v1616, %v1605
    %v1628 = vrot.slane %v1609, 4
    %v1630 = vadd.f32 %v1628, %v1627
    %v1631 = vtanh.pop %v1630
    %v1632 = vsub.f32 1.0, %v1626
    %v1633 = vmul.f32 %v1632, %v1631
    %v1634 = vmul.f32 %v1626, %v1465
    %v1635 = vadd.f32 %v1633, %v1634
    %1636 = vst [vmem:[#allocation2 + $0x10] sm:$0x3] %v1635
    %1637 = vmatprep.subr.mxu0 %v102
    %1638 = vmatpush1.msra.mxu0 %v101
    %1639 = vmatprep.subr.mxu0 %v99
    %1640 = vmatpush1.msra.mxu0 %v98
    %1641 = vmatprep.subr.mxu0 %v96
    %1642 = vmatpush1.msra.mxu0 %v95
    %1643 = vmatprep.subr.mxu0 %v93
    %1644 = vmatpush1.msra.mxu0 %v92
    %1645 = vmatprep.subr.mxu0 %v90
    %1646 = vmatpush1.msra.mxu0 %v89
    %1647 = vmatprep.subr.mxu0 %v87
    %1648 = vmatpush1.msra.mxu0 %v86
    %1649 = vmatprep.subr.mxu0 %v84
    %1650 = vmatpush1.msra.mxu0 %v83
    %1651 = vmatprep.subr.mxu0 %v81
    %1652 = vmatpush1.msra.mxu0 %v80
    %1653 = vmatprep.subr.mxu0 %v78
    %1654 = vmatpush1.msra.mxu0 %v77
    %1655 = vmatprep.subr.mxu0 %v75
    %1656 = vmatpush1.msra.mxu0 %v74
    %1657 = vmatprep.subr.mxu0 %v72
    %1658 = vmatpush1.msra.mxu0 %v71
    %1659 = vmatprep.subr.mxu0 %v69
    %1660 = vmatpush1.msra.mxu0 %v68
    %1661 = vmatprep.subr.mxu0 %v66
    %1662 = vmatpush1.msra.mxu0 %v65
    %1663 = vmatprep.subr.mxu0 %v63
    %1664 = vmatpush1.msra.mxu0 %v62
    %1665 = vmatprep.subr.mxu0 %v60
    %1666 = vmatpush1.msra.mxu0 %v59
    %1667 = vmatprep.subr.mxu0 %v57
    %1668 = vmatpush1.msra.mxu0 %v56
    %1669 = vmatprep.subr.mxu0 0.0
    %1670 = vmatpush2.msra.mxu0 0.0
    %1671 = vmatprep.subr.mxu0 0.0
    %1672 = vmatpush2.msra.mxu0 0.0
    %1673 = vmatprep.subr.mxu0 0.0
    %1674 = vmatpush2.msra.mxu0 0.0
    %1675 = vmatprep.subr.mxu0 0.0
    %1676 = vmatpush2.msra.mxu0 0.0
    %1677 = vmatprep.subr.mxu0 0.0
    %1678 = vmatpush2.msra.mxu0 0.0
    %1679 = vmatprep.subr.mxu0 0.0
    %1680 = vmatpush2.msra.mxu0 0.0
    %1681 = vmatprep.subr.mxu0 0.0
    %1682 = vmatpush2.msra.mxu0 0.0
    %1683 = vmatprep.subr.mxu0 0.0
    %1684 = vmatpush2.msra.mxu0 0.0
    %1685 = vmatprep.subr.mxu0 0.0
    %1686 = vmatpush2.msra.mxu0 0.0
    %1687 = vmatprep.subr.mxu0 0.0
    %1688 = vmatpush2.msra.mxu0 0.0
    %1689 = vmatprep.subr.mxu0 0.0
    %1690 = vmatpush2.msra.mxu0 0.0
    %1691 = vmatprep.subr.mxu0 0.0
    %1692 = vmatpush2.msra.mxu0 0.0
    %1693 = vmatprep.subr.mxu0 0.0
    %1694 = vmatpush2.msra.mxu0 0.0
    %1695 = vmatprep.subr.mxu0 0.0
    %1696 = vmatpush2.msra.mxu0 0.0
    %1697 = vmatprep.subr.mxu0 0.0
    %1698 = vmatpush2.msra.mxu0 0.0
    %1699 = vmatprep.subr.mxu0 0.0
    %1700 = vmatpush2.msra.mxu0 0.0
    %1701 = vmatprep.mubr.f32.mxu0 0.0
    %1702 = vmatmul.mubr.f32.gmra.mxu0 %v1635
    %v1703 = vpop.f32.mrf.mxu0
    %v1704 = vadd.f32 0.0, %v1703
    %v1705 = vpop.f32.mrf.mxu0
    %v1706 = vadd.f32 0.0, %v1705
    %1707 = vdwg.mxu0
    %1708 = vmatprep.subr.mxu0 0.0
    %1709 = vmatpush1.msra.mxu0 %v103
    %1710 = vmatprep.subr.mxu0 0.0
    %1711 = vmatpush1.msra.mxu0 %v100
    %1712 = vmatprep.subr.mxu0 0.0
    %1713 = vmatpush1.msra.mxu0 %v97
    %1714 = vmatprep.subr.mxu0 0.0
    %1715 = vmatpush1.msra.mxu0 %v94
    %1716 = vmatprep.subr.mxu0 0.0
    %1717 = vmatpush1.msra.mxu0 %v91
    %1718 = vmatprep.subr.mxu0 0.0
    %1719 = vmatpush1.msra.mxu0 %v88
    %1720 = vmatprep.subr.mxu0 0.0
    %1721 = vmatpush1.msra.mxu0 %v85
    %1722 = vmatprep.subr.mxu0 0.0
    %1723 = vmatpush1.msra.mxu0 %v82
    %1724 = vmatprep.subr.mxu0 0.0
    %1725 = vmatpush1.msra.mxu0 %v79
    %1726 = vmatprep.subr.mxu0 0.0
    %1727 = vmatpush1.msra.mxu0 %v76
    %1728 = vmatprep.subr.mxu0 0.0
    %1729 = vmatpush1.msra.mxu0 %v73
    %1730 = vmatprep.subr.mxu0 0.0
    %1731 = vmatpush1.msra.mxu0 %v70
    %1732 = vmatprep.subr.mxu0 0.0
    %1733 = vmatpush1.msra.mxu0 %v67
    %1734 = vmatprep.subr.mxu0 0.0
    %1735 = vmatpush1.msra.mxu0 %v64
    %1736 = vmatprep.subr.mxu0 0.0
    %1737 = vmatpush1.msra.mxu0 %v61
    %1738 = vmatprep.subr.mxu0 0.0
    %1739 = vmatpush1.msra.mxu0 %v58
    %1740 = vmatprep.subr.mxu0 0.0
    %1741 = vmatpush2.msra.mxu0 0.0
    %1742 = vmatprep.subr.mxu0 0.0
    %1743 = vmatpush2.msra.mxu0 0.0
    %1744 = vmatprep.subr.mxu0 0.0
    %1745 = vmatpush2.msra.mxu0 0.0
    %1746 = vmatprep.subr.mxu0 0.0
    %1747 = vmatpush2.msra.mxu0 0.0
    %1748 = vmatprep.subr.mxu0 0.0
    %1749 = vmatpush2.msra.mxu0 0.0
    %1750 = vmatprep.subr.mxu0 0.0
    %1751 = vmatpush2.msra.mxu0 0.0
    %1752 = vmatprep.subr.mxu0 0.0
    %1753 = vmatpush2.msra.mxu0 0.0
    %1754 = vmatprep.subr.mxu0 0.0
    %1755 = vmatpush2.msra.mxu0 0.0
    %1756 = vmatprep.subr.mxu0 0.0
    %1757 = vmatpush2.msra.mxu0 0.0
    %1758 = vmatprep.subr.mxu0 0.0
    %1759 = vmatpush2.msra.mxu0 0.0
    %1760 = vmatprep.subr.mxu0 0.0
    %1761 = vmatpush2.msra.mxu0 0.0
    %1762 = vmatprep.subr.mxu0 0.0
    %1763 = vmatpush2.msra.mxu0 0.0
    %1764 = vmatprep.subr.mxu0 0.0
    %1765 = vmatpush2.msra.mxu0 0.0
    %1766 = vmatprep.subr.mxu0 0.0
    %1767 = vmatpush2.msra.mxu0 0.0
    %1768 = vmatprep.subr.mxu0 0.0
    %1769 = vmatpush2.msra.mxu0 0.0
    %1770 = vmatprep.subr.mxu0 0.0
    %1771 = vmatpush2.msra.mxu0 0.0
    %1772 = vmatprep.mubr.f32.mxu0 0.0
    %1773 = vmatmul.mubr.f32.gmra.mxu0 %v1635
    %v1774 = vpop.f32.mrf.mxu0
    %v1775 = vadd.f32 0.0, %v1774
    %v1776 = vpop.f32.mrf.mxu0
    %1777 = vdwg.mxu0
    %s1778 = scalar_lea.vmem %s0, 54
    %v1779 = vld [vmem:[%s1778] sm:$0x3f]
    %v1780 = vadd.f32 %v1779, %v1704
    %v1781 = vxor.u32 %v1780, 2147483648
    %v1782 = vmul.f32 %v1781, 1.442695
    %v1783 = vpow.pop %v1782
    %v1784 = vadd.f32 %v1783, 1.0
    %v1785 = vrcp.pop %v1784
    %v1786 = vmul.f32 1.0, %v1785
    %v1788 = vrot.slane %v1779, 2
    %v1790 = vadd.f32 %v1788, %v1706
    %v1791 = vxor.u32 %v1790, 2147483648
    %v1792 = vmul.f32 %v1791, 1.442695
    %v1793 = vpow.pop %v1792
    %v1794 = vadd.f32 %v1793, 1.0
    %v1795 = vrcp.pop %v1794
    %v1796 = vmul.f32 1.0, %v1795
    %v1797 = vmul.f32 %v1786, %v1775
    %v1798 = vrot.slane %v1779, 4
    %v1800 = vadd.f32 %v1798, %v1797
    %v1801 = vtanh.pop %v1800
    %v1802 = vsub.f32 1.0, %v1796
    %v1803 = vmul.f32 %v1802, %v1801
    %v1804 = vmul.f32 %v1796, %v1635
    %v1805 = vadd.f32 %v1803, %v1804
    %1806 = vst [vmem:[#allocation2 + $0x12] sm:$0x3] %v1805
    %1807 = vmatprep.subr.mxu0 %v102
    %1808 = vmatpush1.msra.mxu0 %v101
    %1809 = vmatprep.subr.mxu0 %v99
    %1810 = vmatpush1.msra.mxu0 %v98
    %1811 = vmatprep.subr.mxu0 %v96
    %1812 = vmatpush1.msra.mxu0 %v95
    %1813 = vmatprep.subr.mxu0 %v93
    %1814 = vmatpush1.msra.mxu0 %v92
    %1815 = vmatprep.subr.mxu0 %v90
    %1816 = vmatpush1.msra.mxu0 %v89
    %1817 = vmatprep.subr.mxu0 %v87
    %1818 = vmatpush1.msra.mxu0 %v86
    %1819 = vmatprep.subr.mxu0 %v84
    %1820 = vmatpush1.msra.mxu0 %v83
    %1821 = vmatprep.subr.mxu0 %v81
    %1822 = vmatpush1.msra.mxu0 %v80
    %1823 = vmatprep.subr.mxu0 %v78
    %1824 = vmatpush1.msra.mxu0 %v77
    %1825 = vmatprep.subr.mxu0 %v75
    %1826 = vmatpush1.msra.mxu0 %v74
    %1827 = vmatprep.subr.mxu0 %v72
    %1828 = vmatpush1.msra.mxu0 %v71
    %1829 = vmatprep.subr.mxu0 %v69
    %1830 = vmatpush1.msra.mxu0 %v68
    %1831 = vmatprep.subr.mxu0 %v66
    %1832 = vmatpush1.msra.mxu0 %v65
    %1833 = vmatprep.subr.mxu0 %v63
    %1834 = vmatpush1.msra.mxu0 %v62
    %1835 = vmatprep.subr.mxu0 %v60
    %1836 = vmatpush1.msra.mxu0 %v59
    %1837 = vmatprep.subr.mxu0 %v57
    %1838 = vmatpush1.msra.mxu0 %v56
    %1839 = vmatprep.subr.mxu0 0.0
    %1840 = vmatpush2.msra.mxu0 0.0
    %1841 = vmatprep.subr.mxu0 0.0
    %1842 = vmatpush2.msra.mxu0 0.0
    %1843 = vmatprep.subr.mxu0 0.0
    %1844 = vmatpush2.msra.mxu0 0.0
    %1845 = vmatprep.subr.mxu0 0.0
    %1846 = vmatpush2.msra.mxu0 0.0
    %1847 = vmatprep.subr.mxu0 0.0
    %1848 = vmatpush2.msra.mxu0 0.0
    %1849 = vmatprep.subr.mxu0 0.0
    %1850 = vmatpush2.msra.mxu0 0.0
    %1851 = vmatprep.subr.mxu0 0.0
    %1852 = vmatpush2.msra.mxu0 0.0
    %1853 = vmatprep.subr.mxu0 0.0
    %1854 = vmatpush2.msra.mxu0 0.0
    %1855 = vmatprep.subr.mxu0 0.0
    %1856 = vmatpush2.msra.mxu0 0.0
    %1857 = vmatprep.subr.mxu0 0.0
    %1858 = vmatpush2.msra.mxu0 0.0
    %1859 = vmatprep.subr.mxu0 0.0
    %1860 = vmatpush2.msra.mxu0 0.0
    %1861 = vmatprep.subr.mxu0 0.0
    %1862 = vmatpush2.msra.mxu0 0.0
    %1863 = vmatprep.subr.mxu0 0.0
    %1864 = vmatpush2.msra.mxu0 0.0
    %1865 = vmatprep.subr.mxu0 0.0
    %1866 = vmatpush2.msra.mxu0 0.0
    %1867 = vmatprep.subr.mxu0 0.0
    %1868 = vmatpush2.msra.mxu0 0.0
    %1869 = vmatprep.subr.mxu0 0.0
    %1870 = vmatpush2.msra.mxu0 0.0
    %1871 = vmatprep.mubr.f32.mxu0 0.0
    %1872 = vmatmul.mubr.f32.gmra.mxu0 %v1805
    %v1873 = vpop.f32.mrf.mxu0
    %v1874 = vadd.f32 0.0, %v1873
    %v1875 = vpop.f32.mrf.mxu0
    %v1876 = vadd.f32 0.0, %v1875
    %1877 = vdwg.mxu0
    %1878 = vmatprep.subr.mxu0 0.0
    %1879 = vmatpush1.msra.mxu0 %v103
    %1880 = vmatprep.subr.mxu0 0.0
    %1881 = vmatpush1.msra.mxu0 %v100
    %1882 = vmatprep.subr.mxu0 0.0
    %1883 = vmatpush1.msra.mxu0 %v97
    %1884 = vmatprep.subr.mxu0 0.0
    %1885 = vmatpush1.msra.mxu0 %v94
    %1886 = vmatprep.subr.mxu0 0.0
    %1887 = vmatpush1.msra.mxu0 %v91
    %1888 = vmatprep.subr.mxu0 0.0
    %1889 = vmatpush1.msra.mxu0 %v88
    %1890 = vmatprep.subr.mxu0 0.0
    %1891 = vmatpush1.msra.mxu0 %v85
    %1892 = vmatprep.subr.mxu0 0.0
    %1893 = vmatpush1.msra.mxu0 %v82
    %1894 = vmatprep.subr.mxu0 0.0
    %1895 = vmatpush1.msra.mxu0 %v79
    %1896 = vmatprep.subr.mxu0 0.0
    %1897 = vmatpush1.msra.mxu0 %v76
    %1898 = vmatprep.subr.mxu0 0.0
    %1899 = vmatpush1.msra.mxu0 %v73
    %1900 = vmatprep.subr.mxu0 0.0
    %1901 = vmatpush1.msra.mxu0 %v70
    %1902 = vmatprep.subr.mxu0 0.0
    %1903 = vmatpush1.msra.mxu0 %v67
    %1904 = vmatprep.subr.mxu0 0.0
    %1905 = vmatpush1.msra.mxu0 %v64
    %1906 = vmatprep.subr.mxu0 0.0
    %1907 = vmatpush1.msra.mxu0 %v61
    %1908 = vmatprep.subr.mxu0 0.0
    %1909 = vmatpush1.msra.mxu0 %v58
    %1910 = vmatprep.subr.mxu0 0.0
    %1911 = vmatpush2.msra.mxu0 0.0
    %1912 = vmatprep.subr.mxu0 0.0
    %1913 = vmatpush2.msra.mxu0 0.0
    %1914 = vmatprep.subr.mxu0 0.0
    %1915 = vmatpush2.msra.mxu0 0.0
    %1916 = vmatprep.subr.mxu0 0.0
    %1917 = vmatpush2.msra.mxu0 0.0
    %1918 = vmatprep.subr.mxu0 0.0
    %1919 = vmatpush2.msra.mxu0 0.0
    %1920 = vmatprep.subr.mxu0 0.0
    %1921 = vmatpush2.msra.mxu0 0.0
    %1922 = vmatprep.subr.mxu0 0.0
    %1923 = vmatpush2.msra.mxu0 0.0
    %1924 = vmatprep.subr.mxu0 0.0
    %1925 = vmatpush2.msra.mxu0 0.0
    %1926 = vmatprep.subr.mxu0 0.0
    %1927 = vmatpush2.msra.mxu0 0.0
    %1928 = vmatprep.subr.mxu0 0.0
    %1929 = vmatpush2.msra.mxu0 0.0
    %1930 = vmatprep.subr.mxu0 0.0
    %1931 = vmatpush2.msra.mxu0 0.0
    %1932 = vmatprep.subr.mxu0 0.0
    %1933 = vmatpush2.msra.mxu0 0.0
    %1934 = vmatprep.subr.mxu0 0.0
    %1935 = vmatpush2.msra.mxu0 0.0
    %1936 = vmatprep.subr.mxu0 0.0
    %1937 = vmatpush2.msra.mxu0 0.0
    %1938 = vmatprep.subr.mxu0 0.0
    %1939 = vmatpush2.msra.mxu0 0.0
    %1940 = vmatprep.subr.mxu0 0.0
    %1941 = vmatpush2.msra.mxu0 0.0
    %1942 = vmatprep.mubr.f32.mxu0 0.0
    %1943 = vmatmul.mubr.f32.gmra.mxu0 %v1805
    %v1944 = vpop.f32.mrf.mxu0
    %v1945 = vadd.f32 0.0, %v1944
    %v1946 = vpop.f32.mrf.mxu0
    %1947 = vdwg.mxu0
    %s1948 = scalar_lea.vmem %s0, 60
    %v1949 = vld [vmem:[%s1948] sm:$0x3f]
    %v1950 = vadd.f32 %v1949, %v1874
    %v1951 = vxor.u32 %v1950, 2147483648
    %v1952 = vmul.f32 %v1951, 1.442695
    %v1953 = vpow.pop %v1952
    %v1954 = vadd.f32 %v1953, 1.0
    %v1955 = vrcp.pop %v1954
    %v1956 = vmul.f32 1.0, %v1955
    %v1958 = vrot.slane %v1949, 2
    %v1960 = vadd.f32 %v1958, %v1876
    %v1961 = vxor.u32 %v1960, 2147483648
    %v1962 = vmul.f32 %v1961, 1.442695
    %v1963 = vpow.pop %v1962
    %v1964 = vadd.f32 %v1963, 1.0
    %v1965 = vrcp.pop %v1964
    %v1966 = vmul.f32 1.0, %v1965
    %v1967 = vmul.f32 %v1956, %v1945
    %v1968 = vrot.slane %v1949, 4
    %v1970 = vadd.f32 %v1968, %v1967
    %v1971 = vtanh.pop %v1970
    %v1972 = vsub.f32 1.0, %v1966
    %v1973 = vmul.f32 %v1972, %v1971
    %v1974 = vmul.f32 %v1966, %v1805
    %v1975 = vadd.f32 %v1973, %v1974
    %1976 = vst [vmem:[#allocation2 + $0x14] sm:$0x3] %v1975
    %1977 = vmatprep.subr.mxu0 %v102
    %1978 = vmatpush1.msra.mxu0 %v101
    %1979 = vmatprep.subr.mxu0 %v99
    %1980 = vmatpush1.msra.mxu0 %v98
    %1981 = vmatprep.subr.mxu0 %v96
    %1982 = vmatpush1.msra.mxu0 %v95
    %1983 = vmatprep.subr.mxu0 %v93
    %1984 = vmatpush1.msra.mxu0 %v92
    %1985 = vmatprep.subr.mxu0 %v90
    %1986 = vmatpush1.msra.mxu0 %v89
    %1987 = vmatprep.subr.mxu0 %v87
    %1988 = vmatpush1.msra.mxu0 %v86
    %1989 = vmatprep.subr.mxu0 %v84
    %1990 = vmatpush1.msra.mxu0 %v83
    %1991 = vmatprep.subr.mxu0 %v81
    %1992 = vmatpush1.msra.mxu0 %v80
    %1993 = vmatprep.subr.mxu0 %v78
    %1994 = vmatpush1.msra.mxu0 %v77
    %1995 = vmatprep.subr.mxu0 %v75
    %1996 = vmatpush1.msra.mxu0 %v74
    %1997 = vmatprep.subr.mxu0 %v72
    %1998 = vmatpush1.msra.mxu0 %v71
    %1999 = vmatprep.subr.mxu0 %v69
    %2000 = vmatpush1.msra.mxu0 %v68
    %2001 = vmatprep.subr.mxu0 %v66
    %2002 = vmatpush1.msra.mxu0 %v65
    %2003 = vmatprep.subr.mxu0 %v63
    %2004 = vmatpush1.msra.mxu0 %v62
    %2005 = vmatprep.subr.mxu0 %v60
    %2006 = vmatpush1.msra.mxu0 %v59
    %2007 = vmatprep.subr.mxu0 %v57
    %2008 = vmatpush1.msra.mxu0 %v56
    %2009 = vmatprep.subr.mxu0 0.0
    %2010 = vmatpush2.msra.mxu0 0.0
    %2011 = vmatprep.subr.mxu0 0.0
    %2012 = vmatpush2.msra.mxu0 0.0
    %2013 = vmatprep.subr.mxu0 0.0
    %2014 = vmatpush2.msra.mxu0 0.0
    %2015 = vmatprep.subr.mxu0 0.0
    %2016 = vmatpush2.msra.mxu0 0.0
    %2017 = vmatprep.subr.mxu0 0.0
    %2018 = vmatpush2.msra.mxu0 0.0
    %2019 = vmatprep.subr.mxu0 0.0
    %2020 = vmatpush2.msra.mxu0 0.0
    %2021 = vmatprep.subr.mxu0 0.0
    %2022 = vmatpush2.msra.mxu0 0.0
    %2023 = vmatprep.subr.mxu0 0.0
    %2024 = vmatpush2.msra.mxu0 0.0
    %2025 = vmatprep.subr.mxu0 0.0
    %2026 = vmatpush2.msra.mxu0 0.0
    %2027 = vmatprep.subr.mxu0 0.0
    %2028 = vmatpush2.msra.mxu0 0.0
    %2029 = vmatprep.subr.mxu0 0.0
    %2030 = vmatpush2.msra.mxu0 0.0
    %2031 = vmatprep.subr.mxu0 0.0
    %2032 = vmatpush2.msra.mxu0 0.0
    %2033 = vmatprep.subr.mxu0 0.0
    %2034 = vmatpush2.msra.mxu0 0.0
    %2035 = vmatprep.subr.mxu0 0.0
    %2036 = vmatpush2.msra.mxu0 0.0
    %2037 = vmatprep.subr.mxu0 0.0
    %2038 = vmatpush2.msra.mxu0 0.0
    %2039 = vmatprep.subr.mxu0 0.0
    %2040 = vmatpush2.msra.mxu0 0.0
    %2041 = vmatprep.mubr.f32.mxu0 0.0
    %2042 = vmatmul.mubr.f32.gmra.mxu0 %v1975
    %v2043 = vpop.f32.mrf.mxu0
    %v2044 = vadd.f32 0.0, %v2043
    %v2045 = vpop.f32.mrf.mxu0
    %v2046 = vadd.f32 0.0, %v2045
    %2047 = vdwg.mxu0
    %2048 = vmatprep.subr.mxu0 0.0
    %2049 = vmatpush1.msra.mxu0 %v103
    %2050 = vmatprep.subr.mxu0 0.0
    %2051 = vmatpush1.msra.mxu0 %v100
    %2052 = vmatprep.subr.mxu0 0.0
    %2053 = vmatpush1.msra.mxu0 %v97
    %2054 = vmatprep.subr.mxu0 0.0
    %2055 = vmatpush1.msra.mxu0 %v94
    %2056 = vmatprep.subr.mxu0 0.0
    %2057 = vmatpush1.msra.mxu0 %v91
    %2058 = vmatprep.subr.mxu0 0.0
    %2059 = vmatpush1.msra.mxu0 %v88
    %2060 = vmatprep.subr.mxu0 0.0
    %2061 = vmatpush1.msra.mxu0 %v85
    %2062 = vmatprep.subr.mxu0 0.0
    %2063 = vmatpush1.msra.mxu0 %v82
    %2064 = vmatprep.subr.mxu0 0.0
    %2065 = vmatpush1.msra.mxu0 %v79
    %2066 = vmatprep.subr.mxu0 0.0
    %2067 = vmatpush1.msra.mxu0 %v76
    %2068 = vmatprep.subr.mxu0 0.0
    %2069 = vmatpush1.msra.mxu0 %v73
    %2070 = vmatprep.subr.mxu0 0.0
    %2071 = vmatpush1.msra.mxu0 %v70
    %2072 = vmatprep.subr.mxu0 0.0
    %2073 = vmatpush1.msra.mxu0 %v67
    %2074 = vmatprep.subr.mxu0 0.0
    %2075 = vmatpush1.msra.mxu0 %v64
    %2076 = vmatprep.subr.mxu0 0.0
    %2077 = vmatpush1.msra.mxu0 %v61
    %2078 = vmatprep.subr.mxu0 0.0
    %2079 = vmatpush1.msra.mxu0 %v58
    %2080 = vmatprep.subr.mxu0 0.0
    %2081 = vmatpush2.msra.mxu0 0.0
    %2082 = vmatprep.subr.mxu0 0.0
    %2083 = vmatpush2.msra.mxu0 0.0
    %2084 = vmatprep.subr.mxu0 0.0
    %2085 = vmatpush2.msra.mxu0 0.0
    %2086 = vmatprep.subr.mxu0 0.0
    %2087 = vmatpush2.msra.mxu0 0.0
    %2088 = vmatprep.subr.mxu0 0.0
    %2089 = vmatpush2.msra.mxu0 0.0
    %2090 = vmatprep.subr.mxu0 0.0
    %2091 = vmatpush2.msra.mxu0 0.0
    %2092 = vmatprep.subr.mxu0 0.0
    %2093 = vmatpush2.msra.mxu0 0.0
    %2094 = vmatprep.subr.mxu0 0.0
    %2095 = vmatpush2.msra.mxu0 0.0
    %2096 = vmatprep.subr.mxu0 0.0
    %2097 = vmatpush2.msra.mxu0 0.0
    %2098 = vmatprep.subr.mxu0 0.0
    %2099 = vmatpush2.msra.mxu0 0.0
    %2100 = vmatprep.subr.mxu0 0.0
    %2101 = vmatpush2.msra.mxu0 0.0
    %2102 = vmatprep.subr.mxu0 0.0
    %2103 = vmatpush2.msra.mxu0 0.0
    %2104 = vmatprep.subr.mxu0 0.0
    %2105 = vmatpush2.msra.mxu0 0.0
    %2106 = vmatprep.subr.mxu0 0.0
    %2107 = vmatpush2.msra.mxu0 0.0
    %2108 = vmatprep.subr.mxu0 0.0
    %2109 = vmatpush2.msra.mxu0 0.0
    %2110 = vmatprep.subr.mxu0 0.0
    %2111 = vmatpush2.msra.mxu0 0.0
    %2112 = vmatprep.mubr.f32.mxu0 0.0
    %2113 = vmatmul.mubr.f32.gmra.mxu0 %v1975
    %v2114 = vpop.f32.mrf.mxu0
    %v2115 = vadd.f32 0.0, %v2114
    %v2116 = vpop.f32.mrf.mxu0
    %2117 = vdwg.mxu0
    %s2118 = scalar_lea.vmem %s0, 66
    %v2119 = vld [vmem:[%s2118] sm:$0x3f]
    %v2120 = vadd.f32 %v2119, %v2044
    %v2121 = vxor.u32 %v2120, 2147483648
    %v2122 = vmul.f32 %v2121, 1.442695
    %v2123 = vpow.pop %v2122
    %v2124 = vadd.f32 %v2123, 1.0
    %v2125 = vrcp.pop %v2124
    %v2126 = vmul.f32 1.0, %v2125
    %v2128 = vrot.slane %v2119, 2
    %v2130 = vadd.f32 %v2128, %v2046
    %v2131 = vxor.u32 %v2130, 2147483648
    %v2132 = vmul.f32 %v2131, 1.442695
    %v2133 = vpow.pop %v2132
    %v2134 = vadd.f32 %v2133, 1.0
    %v2135 = vrcp.pop %v2134
    %v2136 = vmul.f32 1.0, %v2135
    %v2137 = vmul.f32 %v2126, %v2115
    %v2138 = vrot.slane %v2119, 4
    %v2140 = vadd.f32 %v2138, %v2137
    %v2141 = vtanh.pop %v2140
    %v2142 = vsub.f32 1.0, %v2136
    %v2143 = vmul.f32 %v2142, %v2141
    %v2144 = vmul.f32 %v2136, %v1975
    %v2145 = vadd.f32 %v2143, %v2144
    %2146 = vst [vmem:[#allocation2 + $0x16] sm:$0x3] %v2145
    %2147 = vmatprep.subr.mxu0 %v102
    %2148 = vmatpush1.msra.mxu0 %v101
    %2149 = vmatprep.subr.mxu0 %v99
    %2150 = vmatpush1.msra.mxu0 %v98
    %2151 = vmatprep.subr.mxu0 %v96
    %2152 = vmatpush1.msra.mxu0 %v95
    %2153 = vmatprep.subr.mxu0 %v93
    %2154 = vmatpush1.msra.mxu0 %v92
    %2155 = vmatprep.subr.mxu0 %v90
    %2156 = vmatpush1.msra.mxu0 %v89
    %2157 = vmatprep.subr.mxu0 %v87
    %2158 = vmatpush1.msra.mxu0 %v86
    %2159 = vmatprep.subr.mxu0 %v84
    %2160 = vmatpush1.msra.mxu0 %v83
    %2161 = vmatprep.subr.mxu0 %v81
    %2162 = vmatpush1.msra.mxu0 %v80
    %2163 = vmatprep.subr.mxu0 %v78
    %2164 = vmatpush1.msra.mxu0 %v77
    %2165 = vmatprep.subr.mxu0 %v75
    %2166 = vmatpush1.msra.mxu0 %v74
    %2167 = vmatprep.subr.mxu0 %v72
    %2168 = vmatpush1.msra.mxu0 %v71
    %2169 = vmatprep.subr.mxu0 %v69
    %2170 = vmatpush1.msra.mxu0 %v68
    %2171 = vmatprep.subr.mxu0 %v66
    %2172 = vmatpush1.msra.mxu0 %v65
    %2173 = vmatprep.subr.mxu0 %v63
    %2174 = vmatpush1.msra.mxu0 %v62
    %2175 = vmatprep.subr.mxu0 %v60
    %2176 = vmatpush1.msra.mxu0 %v59
    %2177 = vmatprep.subr.mxu0 %v57
    %2178 = vmatpush1.msra.mxu0 %v56
    %2179 = vmatprep.subr.mxu0 0.0
    %2180 = vmatpush2.msra.mxu0 0.0
    %2181 = vmatprep.subr.mxu0 0.0
    %2182 = vmatpush2.msra.mxu0 0.0
    %2183 = vmatprep.subr.mxu0 0.0
    %2184 = vmatpush2.msra.mxu0 0.0
    %2185 = vmatprep.subr.mxu0 0.0
    %2186 = vmatpush2.msra.mxu0 0.0
    %2187 = vmatprep.subr.mxu0 0.0
    %2188 = vmatpush2.msra.mxu0 0.0
    %2189 = vmatprep.subr.mxu0 0.0
    %2190 = vmatpush2.msra.mxu0 0.0
    %2191 = vmatprep.subr.mxu0 0.0
    %2192 = vmatpush2.msra.mxu0 0.0
    %2193 = vmatprep.subr.mxu0 0.0
    %2194 = vmatpush2.msra.mxu0 0.0
    %2195 = vmatprep.subr.mxu0 0.0
    %2196 = vmatpush2.msra.mxu0 0.0
    %2197 = vmatprep.subr.mxu0 0.0
    %2198 = vmatpush2.msra.mxu0 0.0
    %2199 = vmatprep.subr.mxu0 0.0
    %2200 = vmatpush2.msra.mxu0 0.0
    %2201 = vmatprep.subr.mxu0 0.0
    %2202 = vmatpush2.msra.mxu0 0.0
    %2203 = vmatprep.subr.mxu0 0.0
    %2204 = vmatpush2.msra.mxu0 0.0
    %2205 = vmatprep.subr.mxu0 0.0
    %2206 = vmatpush2.msra.mxu0 0.0
    %2207 = vmatprep.subr.mxu0 0.0
    %2208 = vmatpush2.msra.mxu0 0.0
    %2209 = vmatprep.subr.mxu0 0.0
    %2210 = vmatpush2.msra.mxu0 0.0
    %2211 = vmatprep.mubr.f32.mxu0 0.0
    %2212 = vmatmul.mubr.f32.gmra.mxu0 %v2145
    %v2213 = vpop.f32.mrf.mxu0
    %v2214 = vadd.f32 0.0, %v2213
    %v2215 = vpop.f32.mrf.mxu0
    %v2216 = vadd.f32 0.0, %v2215
    %2217 = vdwg.mxu0
    %2218 = vmatprep.subr.mxu0 0.0
    %2219 = vmatpush1.msra.mxu0 %v103
    %2220 = vmatprep.subr.mxu0 0.0
    %2221 = vmatpush1.msra.mxu0 %v100
    %2222 = vmatprep.subr.mxu0 0.0
    %2223 = vmatpush1.msra.mxu0 %v97
    %2224 = vmatprep.subr.mxu0 0.0
    %2225 = vmatpush1.msra.mxu0 %v94
    %2226 = vmatprep.subr.mxu0 0.0
    %2227 = vmatpush1.msra.mxu0 %v91
    %2228 = vmatprep.subr.mxu0 0.0
    %2229 = vmatpush1.msra.mxu0 %v88
    %2230 = vmatprep.subr.mxu0 0.0
    %2231 = vmatpush1.msra.mxu0 %v85
    %2232 = vmatprep.subr.mxu0 0.0
    %2233 = vmatpush1.msra.mxu0 %v82
    %2234 = vmatprep.subr.mxu0 0.0
    %2235 = vmatpush1.msra.mxu0 %v79
    %2236 = vmatprep.subr.mxu0 0.0
    %2237 = vmatpush1.msra.mxu0 %v76
    %2238 = vmatprep.subr.mxu0 0.0
    %2239 = vmatpush1.msra.mxu0 %v73
    %2240 = vmatprep.subr.mxu0 0.0
    %2241 = vmatpush1.msra.mxu0 %v70
    %2242 = vmatprep.subr.mxu0 0.0
    %2243 = vmatpush1.msra.mxu0 %v67
    %2244 = vmatprep.subr.mxu0 0.0
    %2245 = vmatpush1.msra.mxu0 %v64
    %2246 = vmatprep.subr.mxu0 0.0
    %2247 = vmatpush1.msra.mxu0 %v61
    %2248 = vmatprep.subr.mxu0 0.0
    %2249 = vmatpush1.msra.mxu0 %v58
    %2250 = vmatprep.subr.mxu0 0.0
    %2251 = vmatpush2.msra.mxu0 0.0
    %2252 = vmatprep.subr.mxu0 0.0
    %2253 = vmatpush2.msra.mxu0 0.0
    %2254 = vmatprep.subr.mxu0 0.0
    %2255 = vmatpush2.msra.mxu0 0.0
    %2256 = vmatprep.subr.mxu0 0.0
    %2257 = vmatpush2.msra.mxu0 0.0
    %2258 = vmatprep.subr.mxu0 0.0
    %2259 = vmatpush2.msra.mxu0 0.0
    %2260 = vmatprep.subr.mxu0 0.0
    %2261 = vmatpush2.msra.mxu0 0.0
    %2262 = vmatprep.subr.mxu0 0.0
    %2263 = vmatpush2.msra.mxu0 0.0
    %2264 = vmatprep.subr.mxu0 0.0
    %2265 = vmatpush2.msra.mxu0 0.0
    %2266 = vmatprep.subr.mxu0 0.0
    %2267 = vmatpush2.msra.mxu0 0.0
    %2268 = vmatprep.subr.mxu0 0.0
    %2269 = vmatpush2.msra.mxu0 0.0
    %2270 = vmatprep.subr.mxu0 0.0
    %2271 = vmatpush2.msra.mxu0 0.0
    %2272 = vmatprep.subr.mxu0 0.0
    %2273 = vmatpush2.msra.mxu0 0.0
    %2274 = vmatprep.subr.mxu0 0.0
    %2275 = vmatpush2.msra.mxu0 0.0
    %2276 = vmatprep.subr.mxu0 0.0
    %2277 = vmatpush2.msra.mxu0 0.0
    %2278 = vmatprep.subr.mxu0 0.0
    %2279 = vmatpush2.msra.mxu0 0.0
    %2280 = vmatprep.subr.mxu0 0.0
    %2281 = vmatpush2.msra.mxu0 0.0
    %2282 = vmatprep.mubr.f32.mxu0 0.0
    %2283 = vmatmul.mubr.f32.gmra.mxu0 %v2145
    %v2284 = vpop.f32.mrf.mxu0
    %v2285 = vadd.f32 0.0, %v2284
    %v2286 = vpop.f32.mrf.mxu0
    %2287 = vdwg.mxu0
    %s2288 = scalar_lea.vmem %s0, 72
    %v2289 = vld [vmem:[%s2288] sm:$0x3f]
    %v2290 = vadd.f32 %v2289, %v2214
    %v2291 = vxor.u32 %v2290, 2147483648
    %v2292 = vmul.f32 %v2291, 1.442695
    %v2293 = vpow.pop %v2292
    %v2294 = vadd.f32 %v2293, 1.0
    %v2295 = vrcp.pop %v2294
    %v2296 = vmul.f32 1.0, %v2295
    %v2298 = vrot.slane %v2289, 2
    %v2300 = vadd.f32 %v2298, %v2216
    %v2301 = vxor.u32 %v2300, 2147483648
    %v2302 = vmul.f32 %v2301, 1.442695
    %v2303 = vpow.pop %v2302
    %v2304 = vadd.f32 %v2303, 1.0
    %v2305 = vrcp.pop %v2304
    %v2306 = vmul.f32 1.0, %v2305
    %v2307 = vmul.f32 %v2296, %v2285
    %v2308 = vrot.slane %v2289, 4
    %v2310 = vadd.f32 %v2308, %v2307
    %v2311 = vtanh.pop %v2310
    %v2312 = vsub.f32 1.0, %v2306
    %v2313 = vmul.f32 %v2312, %v2311
    %v2314 = vmul.f32 %v2306, %v2145
    %v2315 = vadd.f32 %v2313, %v2314
    %2316 = vst [vmem:[#allocation2 + $0x18] sm:$0x3] %v2315
    %2317 = vmatprep.subr.mxu0 %v102
    %2318 = vmatpush1.msra.mxu0 %v101
    %2319 = vmatprep.subr.mxu0 %v99
    %2320 = vmatpush1.msra.mxu0 %v98
    %2321 = vmatprep.subr.mxu0 %v96
    %2322 = vmatpush1.msra.mxu0 %v95
    %2323 = vmatprep.subr.mxu0 %v93
    %2324 = vmatpush1.msra.mxu0 %v92
    %2325 = vmatprep.subr.mxu0 %v90
    %2326 = vmatpush1.msra.mxu0 %v89
    %2327 = vmatprep.subr.mxu0 %v87
    %2328 = vmatpush1.msra.mxu0 %v86
    %2329 = vmatprep.subr.mxu0 %v84
    %2330 = vmatpush1.msra.mxu0 %v83
    %2331 = vmatprep.subr.mxu0 %v81
    %2332 = vmatpush1.msra.mxu0 %v80
    %2333 = vmatprep.subr.mxu0 %v78
    %2334 = vmatpush1.msra.mxu0 %v77
    %2335 = vmatprep.subr.mxu0 %v75
    %2336 = vmatpush1.msra.mxu0 %v74
    %2337 = vmatprep.subr.mxu0 %v72
    %2338 = vmatpush1.msra.mxu0 %v71
    %2339 = vmatprep.subr.mxu0 %v69
    %2340 = vmatpush1.msra.mxu0 %v68
    %2341 = vmatprep.subr.mxu0 %v66
    %2342 = vmatpush1.msra.mxu0 %v65
    %2343 = vmatprep.subr.mxu0 %v63
    %2344 = vmatpush1.msra.mxu0 %v62
    %2345 = vmatprep.subr.mxu0 %v60
    %2346 = vmatpush1.msra.mxu0 %v59
    %2347 = vmatprep.subr.mxu0 %v57
    %2348 = vmatpush1.msra.mxu0 %v56
    %2349 = vmatprep.subr.mxu0 0.0
    %2350 = vmatpush2.msra.mxu0 0.0
    %2351 = vmatprep.subr.mxu0 0.0
    %2352 = vmatpush2.msra.mxu0 0.0
    %2353 = vmatprep.subr.mxu0 0.0
    %2354 = vmatpush2.msra.mxu0 0.0
    %2355 = vmatprep.subr.mxu0 0.0
    %2356 = vmatpush2.msra.mxu0 0.0
    %2357 = vmatprep.subr.mxu0 0.0
    %2358 = vmatpush2.msra.mxu0 0.0
    %2359 = vmatprep.subr.mxu0 0.0
    %2360 = vmatpush2.msra.mxu0 0.0
    %2361 = vmatprep.subr.mxu0 0.0
    %2362 = vmatpush2.msra.mxu0 0.0
    %2363 = vmatprep.subr.mxu0 0.0
    %2364 = vmatpush2.msra.mxu0 0.0
    %2365 = vmatprep.subr.mxu0 0.0
    %2366 = vmatpush2.msra.mxu0 0.0
    %2367 = vmatprep.subr.mxu0 0.0
    %2368 = vmatpush2.msra.mxu0 0.0
    %2369 = vmatprep.subr.mxu0 0.0
    %2370 = vmatpush2.msra.mxu0 0.0
    %2371 = vmatprep.subr.mxu0 0.0
    %2372 = vmatpush2.msra.mxu0 0.0
    %2373 = vmatprep.subr.mxu0 0.0
    %2374 = vmatpush2.msra.mxu0 0.0
    %2375 = vmatprep.subr.mxu0 0.0
    %2376 = vmatpush2.msra.mxu0 0.0
    %2377 = vmatprep.subr.mxu0 0.0
    %2378 = vmatpush2.msra.mxu0 0.0
    %2379 = vmatprep.subr.mxu0 0.0
    %2380 = vmatpush2.msra.mxu0 0.0
    %2381 = vmatprep.mubr.f32.mxu0 0.0
    %2382 = vmatmul.mubr.f32.gmra.mxu0 %v2315
    %v2383 = vpop.f32.mrf.mxu0
    %v2384 = vadd.f32 0.0, %v2383
    %v2385 = vpop.f32.mrf.mxu0
    %v2386 = vadd.f32 0.0, %v2385
    %2387 = vdwg.mxu0
    %2388 = vmatprep.subr.mxu0 0.0
    %2389 = vmatpush1.msra.mxu0 %v103
    %2390 = vmatprep.subr.mxu0 0.0
    %2391 = vmatpush1.msra.mxu0 %v100
    %2392 = vmatprep.subr.mxu0 0.0
    %2393 = vmatpush1.msra.mxu0 %v97
    %2394 = vmatprep.subr.mxu0 0.0
    %2395 = vmatpush1.msra.mxu0 %v94
    %2396 = vmatprep.subr.mxu0 0.0
    %2397 = vmatpush1.msra.mxu0 %v91
    %2398 = vmatprep.subr.mxu0 0.0
    %2399 = vmatpush1.msra.mxu0 %v88
    %2400 = vmatprep.subr.mxu0 0.0
    %2401 = vmatpush1.msra.mxu0 %v85
    %2402 = vmatprep.subr.mxu0 0.0
    %2403 = vmatpush1.msra.mxu0 %v82
    %2404 = vmatprep.subr.mxu0 0.0
    %2405 = vmatpush1.msra.mxu0 %v79
    %2406 = vmatprep.subr.mxu0 0.0
    %2407 = vmatpush1.msra.mxu0 %v76
    %2408 = vmatprep.subr.mxu0 0.0
    %2409 = vmatpush1.msra.mxu0 %v73
    %2410 = vmatprep.subr.mxu0 0.0
    %2411 = vmatpush1.msra.mxu0 %v70
    %2412 = vmatprep.subr.mxu0 0.0
    %2413 = vmatpush1.msra.mxu0 %v67
    %2414 = vmatprep.subr.mxu0 0.0
    %2415 = vmatpush1.msra.mxu0 %v64
    %2416 = vmatprep.subr.mxu0 0.0
    %2417 = vmatpush1.msra.mxu0 %v61
    %2418 = vmatprep.subr.mxu0 0.0
    %2419 = vmatpush1.msra.mxu0 %v58
    %2420 = vmatprep.subr.mxu0 0.0
    %2421 = vmatpush2.msra.mxu0 0.0
    %2422 = vmatprep.subr.mxu0 0.0
    %2423 = vmatpush2.msra.mxu0 0.0
    %2424 = vmatprep.subr.mxu0 0.0
    %2425 = vmatpush2.msra.mxu0 0.0
    %2426 = vmatprep.subr.mxu0 0.0
    %2427 = vmatpush2.msra.mxu0 0.0
    %2428 = vmatprep.subr.mxu0 0.0
    %2429 = vmatpush2.msra.mxu0 0.0
    %2430 = vmatprep.subr.mxu0 0.0
    %2431 = vmatpush2.msra.mxu0 0.0
    %2432 = vmatprep.subr.mxu0 0.0
    %2433 = vmatpush2.msra.mxu0 0.0
    %2434 = vmatprep.subr.mxu0 0.0
    %2435 = vmatpush2.msra.mxu0 0.0
    %2436 = vmatprep.subr.mxu0 0.0
    %2437 = vmatpush2.msra.mxu0 0.0
    %2438 = vmatprep.subr.mxu0 0.0
    %2439 = vmatpush2.msra.mxu0 0.0
    %2440 = vmatprep.subr.mxu0 0.0
    %2441 = vmatpush2.msra.mxu0 0.0
    %2442 = vmatprep.subr.mxu0 0.0
    %2443 = vmatpush2.msra.mxu0 0.0
    %2444 = vmatprep.subr.mxu0 0.0
    %2445 = vmatpush2.msra.mxu0 0.0
    %2446 = vmatprep.subr.mxu0 0.0
    %2447 = vmatpush2.msra.mxu0 0.0
    %2448 = vmatprep.subr.mxu0 0.0
    %2449 = vmatpush2.msra.mxu0 0.0
    %2450 = vmatprep.subr.mxu0 0.0
    %2451 = vmatpush2.msra.mxu0 0.0
    %2452 = vmatprep.mubr.f32.mxu0 0.0
    %2453 = vmatmul.mubr.f32.gmra.mxu0 %v2315
    %v2454 = vpop.f32.mrf.mxu0
    %v2455 = vadd.f32 0.0, %v2454
    %v2456 = vpop.f32.mrf.mxu0
    %2457 = vdwg.mxu0
    %s2458 = scalar_lea.vmem %s0, 78
    %v2459 = vld [vmem:[%s2458] sm:$0x3f]
    %v2460 = vadd.f32 %v2459, %v2384
    %v2461 = vxor.u32 %v2460, 2147483648
    %v2462 = vmul.f32 %v2461, 1.442695
    %v2463 = vpow.pop %v2462
    %v2464 = vadd.f32 %v2463, 1.0
    %v2465 = vrcp.pop %v2464
    %v2466 = vmul.f32 1.0, %v2465
    %v2468 = vrot.slane %v2459, 2
    %v2470 = vadd.f32 %v2468, %v2386
    %v2471 = vxor.u32 %v2470, 2147483648
    %v2472 = vmul.f32 %v2471, 1.442695
    %v2473 = vpow.pop %v2472
    %v2474 = vadd.f32 %v2473, 1.0
    %v2475 = vrcp.pop %v2474
    %v2476 = vmul.f32 1.0, %v2475
    %v2477 = vmul.f32 %v2466, %v2455
    %v2478 = vrot.slane %v2459, 4
    %v2480 = vadd.f32 %v2478, %v2477
    %v2481 = vtanh.pop %v2480
    %v2482 = vsub.f32 1.0, %v2476
    %v2483 = vmul.f32 %v2482, %v2481
    %v2484 = vmul.f32 %v2476, %v2315
    %v2485 = vadd.f32 %v2483, %v2484
    %2486 = vst [vmem:[#allocation2 + $0x1a] sm:$0x3] %v2485
    %2487 = vmatprep.subr.mxu0 %v102
    %2488 = vmatpush1.msra.mxu0 %v101
    %2489 = vmatprep.subr.mxu0 %v99
    %2490 = vmatpush1.msra.mxu0 %v98
    %2491 = vmatprep.subr.mxu0 %v96
    %2492 = vmatpush1.msra.mxu0 %v95
    %2493 = vmatprep.subr.mxu0 %v93
    %2494 = vmatpush1.msra.mxu0 %v92
    %2495 = vmatprep.subr.mxu0 %v90
    %2496 = vmatpush1.msra.mxu0 %v89
    %2497 = vmatprep.subr.mxu0 %v87
    %2498 = vmatpush1.msra.mxu0 %v86
    %2499 = vmatprep.subr.mxu0 %v84
    %2500 = vmatpush1.msra.mxu0 %v83
    %2501 = vmatprep.subr.mxu0 %v81
    %2502 = vmatpush1.msra.mxu0 %v80
    %2503 = vmatprep.subr.mxu0 %v78
    %2504 = vmatpush1.msra.mxu0 %v77
    %2505 = vmatprep.subr.mxu0 %v75
    %2506 = vmatpush1.msra.mxu0 %v74
    %2507 = vmatprep.subr.mxu0 %v72
    %2508 = vmatpush1.msra.mxu0 %v71
    %2509 = vmatprep.subr.mxu0 %v69
    %2510 = vmatpush1.msra.mxu0 %v68
    %2511 = vmatprep.subr.mxu0 %v66
    %2512 = vmatpush1.msra.mxu0 %v65
    %2513 = vmatprep.subr.mxu0 %v63
    %2514 = vmatpush1.msra.mxu0 %v62
    %2515 = vmatprep.subr.mxu0 %v60
    %2516 = vmatpush1.msra.mxu0 %v59
    %2517 = vmatprep.subr.mxu0 %v57
    %2518 = vmatpush1.msra.mxu0 %v56
    %2519 = vmatprep.subr.mxu0 0.0
    %2520 = vmatpush2.msra.mxu0 0.0
    %2521 = vmatprep.subr.mxu0 0.0
    %2522 = vmatpush2.msra.mxu0 0.0
    %2523 = vmatprep.subr.mxu0 0.0
    %2524 = vmatpush2.msra.mxu0 0.0
    %2525 = vmatprep.subr.mxu0 0.0
    %2526 = vmatpush2.msra.mxu0 0.0
    %2527 = vmatprep.subr.mxu0 0.0
    %2528 = vmatpush2.msra.mxu0 0.0
    %2529 = vmatprep.subr.mxu0 0.0
    %2530 = vmatpush2.msra.mxu0 0.0
    %2531 = vmatprep.subr.mxu0 0.0
    %2532 = vmatpush2.msra.mxu0 0.0
    %2533 = vmatprep.subr.mxu0 0.0
    %2534 = vmatpush2.msra.mxu0 0.0
    %2535 = vmatprep.subr.mxu0 0.0
    %2536 = vmatpush2.msra.mxu0 0.0
    %2537 = vmatprep.subr.mxu0 0.0
    %2538 = vmatpush2.msra.mxu0 0.0
    %2539 = vmatprep.subr.mxu0 0.0
    %2540 = vmatpush2.msra.mxu0 0.0
    %2541 = vmatprep.subr.mxu0 0.0
    %2542 = vmatpush2.msra.mxu0 0.0
    %2543 = vmatprep.subr.mxu0 0.0
    %2544 = vmatpush2.msra.mxu0 0.0
    %2545 = vmatprep.subr.mxu0 0.0
    %2546 = vmatpush2.msra.mxu0 0.0
    %2547 = vmatprep.subr.mxu0 0.0
    %2548 = vmatpush2.msra.mxu0 0.0
    %2549 = vmatprep.subr.mxu0 0.0
    %2550 = vmatpush2.msra.mxu0 0.0
    %2551 = vmatprep.mubr.f32.mxu0 0.0
    %2552 = vmatmul.mubr.f32.gmra.mxu0 %v2485
    %v2553 = vpop.f32.mrf.mxu0
    %v2554 = vadd.f32 0.0, %v2553
    %v2555 = vpop.f32.mrf.mxu0
    %v2556 = vadd.f32 0.0, %v2555
    %2557 = vdwg.mxu0
    %2558 = vmatprep.subr.mxu0 0.0
    %2559 = vmatpush1.msra.mxu0 %v103
    %2560 = vmatprep.subr.mxu0 0.0
    %2561 = vmatpush1.msra.mxu0 %v100
    %2562 = vmatprep.subr.mxu0 0.0
    %2563 = vmatpush1.msra.mxu0 %v97
    %2564 = vmatprep.subr.mxu0 0.0
    %2565 = vmatpush1.msra.mxu0 %v94
    %2566 = vmatprep.subr.mxu0 0.0
    %2567 = vmatpush1.msra.mxu0 %v91
    %2568 = vmatprep.subr.mxu0 0.0
    %2569 = vmatpush1.msra.mxu0 %v88
    %2570 = vmatprep.subr.mxu0 0.0
    %2571 = vmatpush1.msra.mxu0 %v85
    %2572 = vmatprep.subr.mxu0 0.0
    %2573 = vmatpush1.msra.mxu0 %v82
    %2574 = vmatprep.subr.mxu0 0.0
    %2575 = vmatpush1.msra.mxu0 %v79
    %2576 = vmatprep.subr.mxu0 0.0
    %2577 = vmatpush1.msra.mxu0 %v76
    %2578 = vmatprep.subr.mxu0 0.0
    %2579 = vmatpush1.msra.mxu0 %v73
    %2580 = vmatprep.subr.mxu0 0.0
    %2581 = vmatpush1.msra.mxu0 %v70
    %2582 = vmatprep.subr.mxu0 0.0
    %2583 = vmatpush1.msra.mxu0 %v67
    %2584 = vmatprep.subr.mxu0 0.0
    %2585 = vmatpush1.msra.mxu0 %v64
    %2586 = vmatprep.subr.mxu0 0.0
    %2587 = vmatpush1.msra.mxu0 %v61
    %2588 = vmatprep.subr.mxu0 0.0
    %2589 = vmatpush1.msra.mxu0 %v58
    %2590 = vmatprep.subr.mxu0 0.0
    %2591 = vmatpush2.msra.mxu0 0.0
    %2592 = vmatprep.subr.mxu0 0.0
    %2593 = vmatpush2.msra.mxu0 0.0
    %2594 = vmatprep.subr.mxu0 0.0
    %2595 = vmatpush2.msra.mxu0 0.0
    %2596 = vmatprep.subr.mxu0 0.0
    %2597 = vmatpush2.msra.mxu0 0.0
    %2598 = vmatprep.subr.mxu0 0.0
    %2599 = vmatpush2.msra.mxu0 0.0
    %2600 = vmatprep.subr.mxu0 0.0
    %2601 = vmatpush2.msra.mxu0 0.0
    %2602 = vmatprep.subr.mxu0 0.0
    %2603 = vmatpush2.msra.mxu0 0.0
    %2604 = vmatprep.subr.mxu0 0.0
    %2605 = vmatpush2.msra.mxu0 0.0
    %2606 = vmatprep.subr.mxu0 0.0
    %2607 = vmatpush2.msra.mxu0 0.0
    %2608 = vmatprep.subr.mxu0 0.0
    %2609 = vmatpush2.msra.mxu0 0.0
    %2610 = vmatprep.subr.mxu0 0.0
    %2611 = vmatpush2.msra.mxu0 0.0
    %2612 = vmatprep.subr.mxu0 0.0
    %2613 = vmatpush2.msra.mxu0 0.0
    %2614 = vmatprep.subr.mxu0 0.0
    %2615 = vmatpush2.msra.mxu0 0.0
    %2616 = vmatprep.subr.mxu0 0.0
    %2617 = vmatpush2.msra.mxu0 0.0
    %2618 = vmatprep.subr.mxu0 0.0
    %2619 = vmatpush2.msra.mxu0 0.0
    %2620 = vmatprep.subr.mxu0 0.0
    %2621 = vmatpush2.msra.mxu0 0.0
    %2622 = vmatprep.mubr.f32.mxu0 0.0
    %2623 = vmatmul.mubr.f32.gmra.mxu0 %v2485
    %v2624 = vpop.f32.mrf.mxu0
    %v2625 = vadd.f32 0.0, %v2624
    %v2626 = vpop.f32.mrf.mxu0
    %2627 = vdwg.mxu0
    %s2628 = scalar_lea.vmem %s0, 84
    %v2629 = vld [vmem:[%s2628] sm:$0x3f]
    %v2630 = vadd.f32 %v2629, %v2554
    %v2631 = vxor.u32 %v2630, 2147483648
    %v2632 = vmul.f32 %v2631, 1.442695
    %v2633 = vpow.pop %v2632
    %v2634 = vadd.f32 %v2633, 1.0
    %v2635 = vrcp.pop %v2634
    %v2636 = vmul.f32 1.0, %v2635
    %v2638 = vrot.slane %v2629, 2
    %v2640 = vadd.f32 %v2638, %v2556
    %v2641 = vxor.u32 %v2640, 2147483648
    %v2642 = vmul.f32 %v2641, 1.442695
    %v2643 = vpow.pop %v2642
    %v2644 = vadd.f32 %v2643, 1.0
    %v2645 = vrcp.pop %v2644
    %v2646 = vmul.f32 1.0, %v2645
    %v2647 = vmul.f32 %v2636, %v2625
    %v2648 = vrot.slane %v2629, 4
    %v2650 = vadd.f32 %v2648, %v2647
    %v2651 = vtanh.pop %v2650
    %v2652 = vsub.f32 1.0, %v2646
    %v2653 = vmul.f32 %v2652, %v2651
    %v2654 = vmul.f32 %v2646, %v2485
    %v2655 = vadd.f32 %v2653, %v2654
    %2656 = vst [vmem:[#allocation2 + $0x1c] sm:$0x3] %v2655
    %2657 = vmatprep.subr.mxu0 %v102
    %2658 = vmatpush1.msra.mxu0 %v101
    %2659 = vmatprep.subr.mxu0 %v99
    %2660 = vmatpush1.msra.mxu0 %v98
    %2661 = vmatprep.subr.mxu0 %v96
    %2662 = vmatpush1.msra.mxu0 %v95
    %2663 = vmatprep.subr.mxu0 %v93
    %2664 = vmatpush1.msra.mxu0 %v92
    %2665 = vmatprep.subr.mxu0 %v90
    %2666 = vmatpush1.msra.mxu0 %v89
    %2667 = vmatprep.subr.mxu0 %v87
    %2668 = vmatpush1.msra.mxu0 %v86
    %2669 = vmatprep.subr.mxu0 %v84
    %2670 = vmatpush1.msra.mxu0 %v83
    %2671 = vmatprep.subr.mxu0 %v81
    %2672 = vmatpush1.msra.mxu0 %v80
    %2673 = vmatprep.subr.mxu0 %v78
    %2674 = vmatpush1.msra.mxu0 %v77
    %2675 = vmatprep.subr.mxu0 %v75
    %2676 = vmatpush1.msra.mxu0 %v74
    %2677 = vmatprep.subr.mxu0 %v72
    %2678 = vmatpush1.msra.mxu0 %v71
    %2679 = vmatprep.subr.mxu0 %v69
    %2680 = vmatpush1.msra.mxu0 %v68
    %2681 = vmatprep.subr.mxu0 %v66
    %2682 = vmatpush1.msra.mxu0 %v65
    %2683 = vmatprep.subr.mxu0 %v63
    %2684 = vmatpush1.msra.mxu0 %v62
    %2685 = vmatprep.subr.mxu0 %v60
    %2686 = vmatpush1.msra.mxu0 %v59
    %2687 = vmatprep.subr.mxu0 %v57
    %2688 = vmatpush1.msra.mxu0 %v56
    %2689 = vmatprep.subr.mxu0 0.0
    %2690 = vmatpush2.msra.mxu0 0.0
    %2691 = vmatprep.subr.mxu0 0.0
    %2692 = vmatpush2.msra.mxu0 0.0
    %2693 = vmatprep.subr.mxu0 0.0
    %2694 = vmatpush2.msra.mxu0 0.0
    %2695 = vmatprep.subr.mxu0 0.0
    %2696 = vmatpush2.msra.mxu0 0.0
    %2697 = vmatprep.subr.mxu0 0.0
    %2698 = vmatpush2.msra.mxu0 0.0
    %2699 = vmatprep.subr.mxu0 0.0
    %2700 = vmatpush2.msra.mxu0 0.0
    %2701 = vmatprep.subr.mxu0 0.0
    %2702 = vmatpush2.msra.mxu0 0.0
    %2703 = vmatprep.subr.mxu0 0.0
    %2704 = vmatpush2.msra.mxu0 0.0
    %2705 = vmatprep.subr.mxu0 0.0
    %2706 = vmatpush2.msra.mxu0 0.0
    %2707 = vmatprep.subr.mxu0 0.0
    %2708 = vmatpush2.msra.mxu0 0.0
    %2709 = vmatprep.subr.mxu0 0.0
    %2710 = vmatpush2.msra.mxu0 0.0
    %2711 = vmatprep.subr.mxu0 0.0
    %2712 = vmatpush2.msra.mxu0 0.0
    %2713 = vmatprep.subr.mxu0 0.0
    %2714 = vmatpush2.msra.mxu0 0.0
    %2715 = vmatprep.subr.mxu0 0.0
    %2716 = vmatpush2.msra.mxu0 0.0
    %2717 = vmatprep.subr.mxu0 0.0
    %2718 = vmatpush2.msra.mxu0 0.0
    %2719 = vmatprep.subr.mxu0 0.0
    %2720 = vmatpush2.msra.mxu0 0.0
    %2721 = vmatprep.mubr.f32.mxu0 0.0
    %2722 = vmatmul.mubr.f32.gmra.mxu0 %v2655
    %v2723 = vpop.f32.mrf.mxu0
    %v2724 = vadd.f32 0.0, %v2723
    %v2725 = vpop.f32.mrf.mxu0
    %v2726 = vadd.f32 0.0, %v2725
    %2727 = vdwg.mxu0
    %2728 = vmatprep.subr.mxu0 0.0
    %2729 = vmatpush1.msra.mxu0 %v103
    %2730 = vmatprep.subr.mxu0 0.0
    %2731 = vmatpush1.msra.mxu0 %v100
    %2732 = vmatprep.subr.mxu0 0.0
    %2733 = vmatpush1.msra.mxu0 %v97
    %2734 = vmatprep.subr.mxu0 0.0
    %2735 = vmatpush1.msra.mxu0 %v94
    %2736 = vmatprep.subr.mxu0 0.0
    %2737 = vmatpush1.msra.mxu0 %v91
    %2738 = vmatprep.subr.mxu0 0.0
    %2739 = vmatpush1.msra.mxu0 %v88
    %2740 = vmatprep.subr.mxu0 0.0
    %2741 = vmatpush1.msra.mxu0 %v85
    %2742 = vmatprep.subr.mxu0 0.0
    %2743 = vmatpush1.msra.mxu0 %v82
    %2744 = vmatprep.subr.mxu0 0.0
    %2745 = vmatpush1.msra.mxu0 %v79
    %2746 = vmatprep.subr.mxu0 0.0
    %2747 = vmatpush1.msra.mxu0 %v76
    %2748 = vmatprep.subr.mxu0 0.0
    %2749 = vmatpush1.msra.mxu0 %v73
    %2750 = vmatprep.subr.mxu0 0.0
    %2751 = vmatpush1.msra.mxu0 %v70
    %2752 = vmatprep.subr.mxu0 0.0
    %2753 = vmatpush1.msra.mxu0 %v67
    %2754 = vmatprep.subr.mxu0 0.0
    %2755 = vmatpush1.msra.mxu0 %v64
    %2756 = vmatprep.subr.mxu0 0.0
    %2757 = vmatpush1.msra.mxu0 %v61
    %2758 = vmatprep.subr.mxu0 0.0
    %2759 = vmatpush1.msra.mxu0 %v58
    %2760 = vmatprep.subr.mxu0 0.0
    %2761 = vmatpush2.msra.mxu0 0.0
    %2762 = vmatprep.subr.mxu0 0.0
    %2763 = vmatpush2.msra.mxu0 0.0
    %2764 = vmatprep.subr.mxu0 0.0
    %2765 = vmatpush2.msra.mxu0 0.0
    %2766 = vmatprep.subr.mxu0 0.0
    %2767 = vmatpush2.msra.mxu0 0.0
    %2768 = vmatprep.subr.mxu0 0.0
    %2769 = vmatpush2.msra.mxu0 0.0
    %2770 = vmatprep.subr.mxu0 0.0
    %2771 = vmatpush2.msra.mxu0 0.0
    %2772 = vmatprep.subr.mxu0 0.0
    %2773 = vmatpush2.msra.mxu0 0.0
    %2774 = vmatprep.subr.mxu0 0.0
    %2775 = vmatpush2.msra.mxu0 0.0
    %2776 = vmatprep.subr.mxu0 0.0
    %2777 = vmatpush2.msra.mxu0 0.0
    %2778 = vmatprep.subr.mxu0 0.0
    %2779 = vmatpush2.msra.mxu0 0.0
    %2780 = vmatprep.subr.mxu0 0.0
    %2781 = vmatpush2.msra.mxu0 0.0
    %2782 = vmatprep.subr.mxu0 0.0
    %2783 = vmatpush2.msra.mxu0 0.0
    %2784 = vmatprep.subr.mxu0 0.0
    %2785 = vmatpush2.msra.mxu0 0.0
    %2786 = vmatprep.subr.mxu0 0.0
    %2787 = vmatpush2.msra.mxu0 0.0
    %2788 = vmatprep.subr.mxu0 0.0
    %2789 = vmatpush2.msra.mxu0 0.0
    %2790 = vmatprep.subr.mxu0 0.0
    %2791 = vmatpush2.msra.mxu0 0.0
    %2792 = vmatprep.mubr.f32.mxu0 0.0
    %2793 = vmatmul.mubr.f32.gmra.mxu0 %v2655
    %v2794 = vpop.f32.mrf.mxu0
    %v2795 = vadd.f32 0.0, %v2794
    %v2796 = vpop.f32.mrf.mxu0
    %2797 = vdwg.mxu0
    %s2798 = scalar_lea.vmem %s0, 90
    %v2799 = vld [vmem:[%s2798] sm:$0x3f]
    %v2800 = vadd.f32 %v2799, %v2724
    %v2801 = vxor.u32 %v2800, 2147483648
    %v2802 = vmul.f32 %v2801, 1.442695
    %v2803 = vpow.pop %v2802
    %v2804 = vadd.f32 %v2803, 1.0
    %v2805 = vrcp.pop %v2804
    %v2806 = vmul.f32 1.0, %v2805
    %v2808 = vrot.slane %v2799, 2
    %v2810 = vadd.f32 %v2808, %v2726
    %v2811 = vxor.u32 %v2810, 2147483648
    %v2812 = vmul.f32 %v2811, 1.442695
    %v2813 = vpow.pop %v2812
    %v2814 = vadd.f32 %v2813, 1.0
    %v2815 = vrcp.pop %v2814
    %v2816 = vmul.f32 1.0, %v2815
    %v2817 = vmul.f32 %v2806, %v2795
    %v2818 = vrot.slane %v2799, 4
    %v2820 = vadd.f32 %v2818, %v2817
    %v2821 = vtanh.pop %v2820
    %v2822 = vsub.f32 1.0, %v2816
    %v2823 = vmul.f32 %v2822, %v2821
    %v2824 = vmul.f32 %v2816, %v2655
    %v2825 = vadd.f32 %v2823, %v2824
    %2826 = vst [vmem:[#allocation2 + $0x1e] sm:$0x3] %v2825
    %2827 = vmatprep.subr.mxu0 %v102
    %2828 = vmatpush1.msra.mxu0 %v101
    %2829 = vmatprep.subr.mxu0 %v99
    %2830 = vmatpush1.msra.mxu0 %v98
    %2831 = vmatprep.subr.mxu0 %v96
    %2832 = vmatpush1.msra.mxu0 %v95
    %2833 = vmatprep.subr.mxu0 %v93
    %2834 = vmatpush1.msra.mxu0 %v92
    %2835 = vmatprep.subr.mxu0 %v90
    %2836 = vmatpush1.msra.mxu0 %v89
    %2837 = vmatprep.subr.mxu0 %v87
    %2838 = vmatpush1.msra.mxu0 %v86
    %2839 = vmatprep.subr.mxu0 %v84
    %2840 = vmatpush1.msra.mxu0 %v83
    %2841 = vmatprep.subr.mxu0 %v81
    %2842 = vmatpush1.msra.mxu0 %v80
    %2843 = vmatprep.subr.mxu0 %v78
    %2844 = vmatpush1.msra.mxu0 %v77
    %2845 = vmatprep.subr.mxu0 %v75
    %2846 = vmatpush1.msra.mxu0 %v74
    %2847 = vmatprep.subr.mxu0 %v72
    %2848 = vmatpush1.msra.mxu0 %v71
    %2849 = vmatprep.subr.mxu0 %v69
    %2850 = vmatpush1.msra.mxu0 %v68
    %2851 = vmatprep.subr.mxu0 %v66
    %2852 = vmatpush1.msra.mxu0 %v65
    %2853 = vmatprep.subr.mxu0 %v63
    %2854 = vmatpush1.msra.mxu0 %v62
    %2855 = vmatprep.subr.mxu0 %v60
    %2856 = vmatpush1.msra.mxu0 %v59
    %2857 = vmatprep.subr.mxu0 %v57
    %2858 = vmatpush1.msra.mxu0 %v56
    %2859 = vmatprep.subr.mxu0 0.0
    %2860 = vmatpush2.msra.mxu0 0.0
    %2861 = vmatprep.subr.mxu0 0.0
    %2862 = vmatpush2.msra.mxu0 0.0
    %2863 = vmatprep.subr.mxu0 0.0
    %2864 = vmatpush2.msra.mxu0 0.0
    %2865 = vmatprep.subr.mxu0 0.0
    %2866 = vmatpush2.msra.mxu0 0.0
    %2867 = vmatprep.subr.mxu0 0.0
    %2868 = vmatpush2.msra.mxu0 0.0
    %2869 = vmatprep.subr.mxu0 0.0
    %2870 = vmatpush2.msra.mxu0 0.0
    %2871 = vmatprep.subr.mxu0 0.0
    %2872 = vmatpush2.msra.mxu0 0.0
    %2873 = vmatprep.subr.mxu0 0.0
    %2874 = vmatpush2.msra.mxu0 0.0
    %2875 = vmatprep.subr.mxu0 0.0
    %2876 = vmatpush2.msra.mxu0 0.0
    %2877 = vmatprep.subr.mxu0 0.0
    %2878 = vmatpush2.msra.mxu0 0.0
    %2879 = vmatprep.subr.mxu0 0.0
    %2880 = vmatpush2.msra.mxu0 0.0
    %2881 = vmatprep.subr.mxu0 0.0
    %2882 = vmatpush2.msra.mxu0 0.0
    %2883 = vmatprep.subr.mxu0 0.0
    %2884 = vmatpush2.msra.mxu0 0.0
    %2885 = vmatprep.subr.mxu0 0.0
    %2886 = vmatpush2.msra.mxu0 0.0
    %2887 = vmatprep.subr.mxu0 0.0
    %2888 = vmatpush2.msra.mxu0 0.0
    %2889 = vmatprep.subr.mxu0 0.0
    %2890 = vmatpush2.msra.mxu0 0.0
    %2891 = vmatprep.mubr.f32.mxu0 0.0
    %2892 = vmatmul.mubr.f32.gmra.mxu0 %v2825
    %v2893 = vpop.f32.mrf.mxu0
    %v2894 = vadd.f32 0.0, %v2893
    %v2895 = vpop.f32.mrf.mxu0
    %v2896 = vadd.f32 0.0, %v2895
    %2897 = vdwg.mxu0
    %2898 = vmatprep.subr.mxu0 0.0
    %2899 = vmatpush1.msra.mxu0 %v103
    %2900 = vmatprep.subr.mxu0 0.0
    %2901 = vmatpush1.msra.mxu0 %v100
    %2902 = vmatprep.subr.mxu0 0.0
    %2903 = vmatpush1.msra.mxu0 %v97
    %2904 = vmatprep.subr.mxu0 0.0
    %2905 = vmatpush1.msra.mxu0 %v94
    %2906 = vmatprep.subr.mxu0 0.0
    %2907 = vmatpush1.msra.mxu0 %v91
    %2908 = vmatprep.subr.mxu0 0.0
    %2909 = vmatpush1.msra.mxu0 %v88
    %2910 = vmatprep.subr.mxu0 0.0
    %2911 = vmatpush1.msra.mxu0 %v85
    %2912 = vmatprep.subr.mxu0 0.0
    %2913 = vmatpush1.msra.mxu0 %v82
    %2914 = vmatprep.subr.mxu0 0.0
    %2915 = vmatpush1.msra.mxu0 %v79
    %2916 = vmatprep.subr.mxu0 0.0
    %2917 = vmatpush1.msra.mxu0 %v76
    %2918 = vmatprep.subr.mxu0 0.0
    %2919 = vmatpush1.msra.mxu0 %v73
    %2920 = vmatprep.subr.mxu0 0.0
    %2921 = vmatpush1.msra.mxu0 %v70
    %2922 = vmatprep.subr.mxu0 0.0
    %2923 = vmatpush1.msra.mxu0 %v67
    %2924 = vmatprep.subr.mxu0 0.0
    %2925 = vmatpush1.msra.mxu0 %v64
    %2926 = vmatprep.subr.mxu0 0.0
    %2927 = vmatpush1.msra.mxu0 %v61
    %2928 = vmatprep.subr.mxu0 0.0
    %2929 = vmatpush1.msra.mxu0 %v58
    %2930 = vmatprep.subr.mxu0 0.0
    %2931 = vmatpush2.msra.mxu0 0.0
    %2932 = vmatprep.subr.mxu0 0.0
    %2933 = vmatpush2.msra.mxu0 0.0
    %2934 = vmatprep.subr.mxu0 0.0
    %2935 = vmatpush2.msra.mxu0 0.0
    %2936 = vmatprep.subr.mxu0 0.0
    %2937 = vmatpush2.msra.mxu0 0.0
    %2938 = vmatprep.subr.mxu0 0.0
    %2939 = vmatpush2.msra.mxu0 0.0
    %2940 = vmatprep.subr.mxu0 0.0
    %2941 = vmatpush2.msra.mxu0 0.0
    %2942 = vmatprep.subr.mxu0 0.0
    %2943 = vmatpush2.msra.mxu0 0.0
    %2944 = vmatprep.subr.mxu0 0.0
    %2945 = vmatpush2.msra.mxu0 0.0
    %2946 = vmatprep.subr.mxu0 0.0
    %2947 = vmatpush2.msra.mxu0 0.0
    %2948 = vmatprep.subr.mxu0 0.0
    %2949 = vmatpush2.msra.mxu0 0.0
    %2950 = vmatprep.subr.mxu0 0.0
    %2951 = vmatpush2.msra.mxu0 0.0
    %2952 = vmatprep.subr.mxu0 0.0
    %2953 = vmatpush2.msra.mxu0 0.0
    %2954 = vmatprep.subr.mxu0 0.0
    %2955 = vmatpush2.msra.mxu0 0.0
    %2956 = vmatprep.subr.mxu0 0.0
    %2957 = vmatpush2.msra.mxu0 0.0
    %2958 = vmatprep.subr.mxu0 0.0
    %2959 = vmatpush2.msra.mxu0 0.0
    %2960 = vmatprep.subr.mxu0 0.0
    %2961 = vmatpush2.msra.mxu0 0.0
    %2962 = vmatprep.mubr.f32.mxu0 0.0
    %2963 = vmatmul.mubr.f32.gmra.mxu0 %v2825
    %v2964 = vpop.f32.mrf.mxu0
    %v2965 = vadd.f32 0.0, %v2964
    %v2966 = vpop.f32.mrf.mxu0
    %2967 = vdwg.mxu0
    %s2968 = scalar_lea.vmem %s0, 96
    %v2969 = vld [vmem:[%s2968] sm:$0x3f]
    %v2970 = vadd.f32 %v2969, %v2894
    %v2971 = vxor.u32 %v2970, 2147483648
    %v2972 = vmul.f32 %v2971, 1.442695
    %v2973 = vpow.pop %v2972
    %v2974 = vadd.f32 %v2973, 1.0
    %v2975 = vrcp.pop %v2974
    %v2976 = vmul.f32 1.0, %v2975
    %v2978 = vrot.slane %v2969, 2
    %v2980 = vadd.f32 %v2978, %v2896
    %v2981 = vxor.u32 %v2980, 2147483648
    %v2982 = vmul.f32 %v2981, 1.442695
    %v2983 = vpow.pop %v2982
    %v2984 = vadd.f32 %v2983, 1.0
    %v2985 = vrcp.pop %v2984
    %v2986 = vmul.f32 1.0, %v2985
    %v2987 = vmul.f32 %v2976, %v2965
    %v2988 = vrot.slane %v2969, 4
    %v2990 = vadd.f32 %v2988, %v2987
    %v2991 = vtanh.pop %v2990
    %v2992 = vsub.f32 1.0, %v2986
    %v2993 = vmul.f32 %v2992, %v2991
    %v2994 = vmul.f32 %v2986, %v2825
    %v2995 = vadd.f32 %v2993, %v2994
    %2996 = vst [vmem:[#allocation2 + $0x20] sm:$0x3] %v2995
    %2997 = vmatprep.subr.mxu0 %v102
    %2998 = vmatpush1.msra.mxu0 %v101
    %2999 = vmatprep.subr.mxu0 %v99
    %3000 = vmatpush1.msra.mxu0 %v98
    %3001 = vmatprep.subr.mxu0 %v96
    %3002 = vmatpush1.msra.mxu0 %v95
    %3003 = vmatprep.subr.mxu0 %v93
    %3004 = vmatpush1.msra.mxu0 %v92
    %3005 = vmatprep.subr.mxu0 %v90
    %3006 = vmatpush1.msra.mxu0 %v89
    %3007 = vmatprep.subr.mxu0 %v87
    %3008 = vmatpush1.msra.mxu0 %v86
    %3009 = vmatprep.subr.mxu0 %v84
    %3010 = vmatpush1.msra.mxu0 %v83
    %3011 = vmatprep.subr.mxu0 %v81
    %3012 = vmatpush1.msra.mxu0 %v80
    %3013 = vmatprep.subr.mxu0 %v78
    %3014 = vmatpush1.msra.mxu0 %v77
    %3015 = vmatprep.subr.mxu0 %v75
    %3016 = vmatpush1.msra.mxu0 %v74
    %3017 = vmatprep.subr.mxu0 %v72
    %3018 = vmatpush1.msra.mxu0 %v71
    %3019 = vmatprep.subr.mxu0 %v69
    %3020 = vmatpush1.msra.mxu0 %v68
    %3021 = vmatprep.subr.mxu0 %v66
    %3022 = vmatpush1.msra.mxu0 %v65
    %3023 = vmatprep.subr.mxu0 %v63
    %3024 = vmatpush1.msra.mxu0 %v62
    %3025 = vmatprep.subr.mxu0 %v60
    %3026 = vmatpush1.msra.mxu0 %v59
    %3027 = vmatprep.subr.mxu0 %v57
    %3028 = vmatpush1.msra.mxu0 %v56
    %3029 = vmatprep.subr.mxu0 0.0
    %3030 = vmatpush2.msra.mxu0 0.0
    %3031 = vmatprep.subr.mxu0 0.0
    %3032 = vmatpush2.msra.mxu0 0.0
    %3033 = vmatprep.subr.mxu0 0.0
    %3034 = vmatpush2.msra.mxu0 0.0
    %3035 = vmatprep.subr.mxu0 0.0
    %3036 = vmatpush2.msra.mxu0 0.0
    %3037 = vmatprep.subr.mxu0 0.0
    %3038 = vmatpush2.msra.mxu0 0.0
    %3039 = vmatprep.subr.mxu0 0.0
    %3040 = vmatpush2.msra.mxu0 0.0
    %3041 = vmatprep.subr.mxu0 0.0
    %3042 = vmatpush2.msra.mxu0 0.0
    %3043 = vmatprep.subr.mxu0 0.0
    %3044 = vmatpush2.msra.mxu0 0.0
    %3045 = vmatprep.subr.mxu0 0.0
    %3046 = vmatpush2.msra.mxu0 0.0
    %3047 = vmatprep.subr.mxu0 0.0
    %3048 = vmatpush2.msra.mxu0 0.0
    %3049 = vmatprep.subr.mxu0 0.0
    %3050 = vmatpush2.msra.mxu0 0.0
    %3051 = vmatprep.subr.mxu0 0.0
    %3052 = vmatpush2.msra.mxu0 0.0
    %3053 = vmatprep.subr.mxu0 0.0
    %3054 = vmatpush2.msra.mxu0 0.0
    %3055 = vmatprep.subr.mxu0 0.0
    %3056 = vmatpush2.msra.mxu0 0.0
    %3057 = vmatprep.subr.mxu0 0.0
    %3058 = vmatpush2.msra.mxu0 0.0
    %3059 = vmatprep.subr.mxu0 0.0
    %3060 = vmatpush2.msra.mxu0 0.0
    %3061 = vmatprep.mubr.f32.mxu0 0.0
    %3062 = vmatmul.mubr.f32.gmra.mxu0 %v2995
    %v3063 = vpop.f32.mrf.mxu0
    %v3064 = vadd.f32 0.0, %v3063
    %v3065 = vpop.f32.mrf.mxu0
    %v3066 = vadd.f32 0.0, %v3065
    %3067 = vdwg.mxu0
    %3068 = vmatprep.subr.mxu0 0.0
    %3069 = vmatpush1.msra.mxu0 %v103
    %3070 = vmatprep.subr.mxu0 0.0
    %3071 = vmatpush1.msra.mxu0 %v100
    %3072 = vmatprep.subr.mxu0 0.0
    %3073 = vmatpush1.msra.mxu0 %v97
    %3074 = vmatprep.subr.mxu0 0.0
    %3075 = vmatpush1.msra.mxu0 %v94
    %3076 = vmatprep.subr.mxu0 0.0
    %3077 = vmatpush1.msra.mxu0 %v91
    %3078 = vmatprep.subr.mxu0 0.0
    %3079 = vmatpush1.msra.mxu0 %v88
    %3080 = vmatprep.subr.mxu0 0.0
    %3081 = vmatpush1.msra.mxu0 %v85
    %3082 = vmatprep.subr.mxu0 0.0
    %3083 = vmatpush1.msra.mxu0 %v82
    %3084 = vmatprep.subr.mxu0 0.0
    %3085 = vmatpush1.msra.mxu0 %v79
    %3086 = vmatprep.subr.mxu0 0.0
    %3087 = vmatpush1.msra.mxu0 %v76
    %3088 = vmatprep.subr.mxu0 0.0
    %3089 = vmatpush1.msra.mxu0 %v73
    %3090 = vmatprep.subr.mxu0 0.0
    %3091 = vmatpush1.msra.mxu0 %v70
    %3092 = vmatprep.subr.mxu0 0.0
    %3093 = vmatpush1.msra.mxu0 %v67
    %3094 = vmatprep.subr.mxu0 0.0
    %3095 = vmatpush1.msra.mxu0 %v64
    %3096 = vmatprep.subr.mxu0 0.0
    %3097 = vmatpush1.msra.mxu0 %v61
    %3098 = vmatprep.subr.mxu0 0.0
    %3099 = vmatpush1.msra.mxu0 %v58
    %3100 = vmatprep.subr.mxu0 0.0
    %3101 = vmatpush2.msra.mxu0 0.0
    %3102 = vmatprep.subr.mxu0 0.0
    %3103 = vmatpush2.msra.mxu0 0.0
    %3104 = vmatprep.subr.mxu0 0.0
    %3105 = vmatpush2.msra.mxu0 0.0
    %3106 = vmatprep.subr.mxu0 0.0
    %3107 = vmatpush2.msra.mxu0 0.0
    %3108 = vmatprep.subr.mxu0 0.0
    %3109 = vmatpush2.msra.mxu0 0.0
    %3110 = vmatprep.subr.mxu0 0.0
    %3111 = vmatpush2.msra.mxu0 0.0
    %3112 = vmatprep.subr.mxu0 0.0
    %3113 = vmatpush2.msra.mxu0 0.0
    %3114 = vmatprep.subr.mxu0 0.0
    %3115 = vmatpush2.msra.mxu0 0.0
    %3116 = vmatprep.subr.mxu0 0.0
    %3117 = vmatpush2.msra.mxu0 0.0
    %3118 = vmatprep.subr.mxu0 0.0
    %3119 = vmatpush2.msra.mxu0 0.0
    %3120 = vmatprep.subr.mxu0 0.0
    %3121 = vmatpush2.msra.mxu0 0.0
    %3122 = vmatprep.subr.mxu0 0.0
    %3123 = vmatpush2.msra.mxu0 0.0
    %3124 = vmatprep.subr.mxu0 0.0
    %3125 = vmatpush2.msra.mxu0 0.0
    %3126 = vmatprep.subr.mxu0 0.0
    %3127 = vmatpush2.msra.mxu0 0.0
    %3128 = vmatprep.subr.mxu0 0.0
    %3129 = vmatpush2.msra.mxu0 0.0
    %3130 = vmatprep.subr.mxu0 0.0
    %3131 = vmatpush2.msra.mxu0 0.0
    %3132 = vmatprep.mubr.f32.mxu0 0.0
    %3133 = vmatmul.mubr.f32.gmra.mxu0 %v2995
    %v3134 = vpop.f32.mrf.mxu0
    %v3135 = vadd.f32 0.0, %v3134
    %v3136 = vpop.f32.mrf.mxu0
    %3137 = vdwg.mxu0
    %s3138 = scalar_lea.vmem %s0, 102
    %v3139 = vld [vmem:[%s3138] sm:$0x3f]
    %v3140 = vadd.f32 %v3139, %v3064
    %v3141 = vxor.u32 %v3140, 2147483648
    %v3142 = vmul.f32 %v3141, 1.442695
    %v3143 = vpow.pop %v3142
    %v3144 = vadd.f32 %v3143, 1.0
    %v3145 = vrcp.pop %v3144
    %v3146 = vmul.f32 1.0, %v3145
    %v3148 = vrot.slane %v3139, 2
    %v3150 = vadd.f32 %v3148, %v3066
    %v3151 = vxor.u32 %v3150, 2147483648
    %v3152 = vmul.f32 %v3151, 1.442695
    %v3153 = vpow.pop %v3152
    %v3154 = vadd.f32 %v3153, 1.0
    %v3155 = vrcp.pop %v3154
    %v3156 = vmul.f32 1.0, %v3155
    %v3157 = vmul.f32 %v3146, %v3135
    %v3158 = vrot.slane %v3139, 4
    %v3160 = vadd.f32 %v3158, %v3157
    %v3161 = vtanh.pop %v3160
    %v3162 = vsub.f32 1.0, %v3156
    %v3163 = vmul.f32 %v3162, %v3161
    %v3164 = vmul.f32 %v3156, %v2995
    %v3165 = vadd.f32 %v3163, %v3164
    %3166 = vst [vmem:[#allocation2 + $0x22] sm:$0x3] %v3165
    %3167 = vmatprep.subr.mxu0 %v102
    %3168 = vmatpush1.msra.mxu0 %v101
    %3169 = vmatprep.subr.mxu0 %v99
    %3170 = vmatpush1.msra.mxu0 %v98
    %3171 = vmatprep.subr.mxu0 %v96
    %3172 = vmatpush1.msra.mxu0 %v95
    %3173 = vmatprep.subr.mxu0 %v93
    %3174 = vmatpush1.msra.mxu0 %v92
    %3175 = vmatprep.subr.mxu0 %v90
    %3176 = vmatpush1.msra.mxu0 %v89
    %3177 = vmatprep.subr.mxu0 %v87
    %3178 = vmatpush1.msra.mxu0 %v86
    %3179 = vmatprep.subr.mxu0 %v84
    %3180 = vmatpush1.msra.mxu0 %v83
    %3181 = vmatprep.subr.mxu0 %v81
    %3182 = vmatpush1.msra.mxu0 %v80
    %3183 = vmatprep.subr.mxu0 %v78
    %3184 = vmatpush1.msra.mxu0 %v77
    %3185 = vmatprep.subr.mxu0 %v75
    %3186 = vmatpush1.msra.mxu0 %v74
    %3187 = vmatprep.subr.mxu0 %v72
    %3188 = vmatpush1.msra.mxu0 %v71
    %3189 = vmatprep.subr.mxu0 %v69
    %3190 = vmatpush1.msra.mxu0 %v68
    %3191 = vmatprep.subr.mxu0 %v66
    %3192 = vmatpush1.msra.mxu0 %v65
    %3193 = vmatprep.subr.mxu0 %v63
    %3194 = vmatpush1.msra.mxu0 %v62
    %3195 = vmatprep.subr.mxu0 %v60
    %3196 = vmatpush1.msra.mxu0 %v59
    %3197 = vmatprep.subr.mxu0 %v57
    %3198 = vmatpush1.msra.mxu0 %v56
    %3199 = vmatprep.subr.mxu0 0.0
    %3200 = vmatpush2.msra.mxu0 0.0
    %3201 = vmatprep.subr.mxu0 0.0
    %3202 = vmatpush2.msra.mxu0 0.0
    %3203 = vmatprep.subr.mxu0 0.0
    %3204 = vmatpush2.msra.mxu0 0.0
    %3205 = vmatprep.subr.mxu0 0.0
    %3206 = vmatpush2.msra.mxu0 0.0
    %3207 = vmatprep.subr.mxu0 0.0
    %3208 = vmatpush2.msra.mxu0 0.0
    %3209 = vmatprep.subr.mxu0 0.0
    %3210 = vmatpush2.msra.mxu0 0.0
    %3211 = vmatprep.subr.mxu0 0.0
    %3212 = vmatpush2.msra.mxu0 0.0
    %3213 = vmatprep.subr.mxu0 0.0
    %3214 = vmatpush2.msra.mxu0 0.0
    %3215 = vmatprep.subr.mxu0 0.0
    %3216 = vmatpush2.msra.mxu0 0.0
    %3217 = vmatprep.subr.mxu0 0.0
    %3218 = vmatpush2.msra.mxu0 0.0
    %3219 = vmatprep.subr.mxu0 0.0
    %3220 = vmatpush2.msra.mxu0 0.0
    %3221 = vmatprep.subr.mxu0 0.0
    %3222 = vmatpush2.msra.mxu0 0.0
    %3223 = vmatprep.subr.mxu0 0.0
    %3224 = vmatpush2.msra.mxu0 0.0
    %3225 = vmatprep.subr.mxu0 0.0
    %3226 = vmatpush2.msra.mxu0 0.0
    %3227 = vmatprep.subr.mxu0 0.0
    %3228 = vmatpush2.msra.mxu0 0.0
    %3229 = vmatprep.subr.mxu0 0.0
    %3230 = vmatpush2.msra.mxu0 0.0
    %3231 = vmatprep.mubr.f32.mxu0 0.0
    %3232 = vmatmul.mubr.f32.gmra.mxu0 %v3165
    %v3233 = vpop.f32.mrf.mxu0
    %v3234 = vadd.f32 0.0, %v3233
    %v3235 = vpop.f32.mrf.mxu0
    %v3236 = vadd.f32 0.0, %v3235
    %3237 = vdwg.mxu0
    %3238 = vmatprep.subr.mxu0 0.0
    %3239 = vmatpush1.msra.mxu0 %v103
    %3240 = vmatprep.subr.mxu0 0.0
    %3241 = vmatpush1.msra.mxu0 %v100
    %3242 = vmatprep.subr.mxu0 0.0
    %3243 = vmatpush1.msra.mxu0 %v97
    %3244 = vmatprep.subr.mxu0 0.0
    %3245 = vmatpush1.msra.mxu0 %v94
    %3246 = vmatprep.subr.mxu0 0.0
    %3247 = vmatpush1.msra.mxu0 %v91
    %3248 = vmatprep.subr.mxu0 0.0
    %3249 = vmatpush1.msra.mxu0 %v88
    %3250 = vmatprep.subr.mxu0 0.0
    %3251 = vmatpush1.msra.mxu0 %v85
    %3252 = vmatprep.subr.mxu0 0.0
    %3253 = vmatpush1.msra.mxu0 %v82
    %3254 = vmatprep.subr.mxu0 0.0
    %3255 = vmatpush1.msra.mxu0 %v79
    %3256 = vmatprep.subr.mxu0 0.0
    %3257 = vmatpush1.msra.mxu0 %v76
    %3258 = vmatprep.subr.mxu0 0.0
    %3259 = vmatpush1.msra.mxu0 %v73
    %3260 = vmatprep.subr.mxu0 0.0
    %3261 = vmatpush1.msra.mxu0 %v70
    %3262 = vmatprep.subr.mxu0 0.0
    %3263 = vmatpush1.msra.mxu0 %v67
    %3264 = vmatprep.subr.mxu0 0.0
    %3265 = vmatpush1.msra.mxu0 %v64
    %3266 = vmatprep.subr.mxu0 0.0
    %3267 = vmatpush1.msra.mxu0 %v61
    %3268 = vmatprep.subr.mxu0 0.0
    %3269 = vmatpush1.msra.mxu0 %v58
    %3270 = vmatprep.subr.mxu0 0.0
    %3271 = vmatpush2.msra.mxu0 0.0
    %3272 = vmatprep.subr.mxu0 0.0
    %3273 = vmatpush2.msra.mxu0 0.0
    %3274 = vmatprep.subr.mxu0 0.0
    %3275 = vmatpush2.msra.mxu0 0.0
    %3276 = vmatprep.subr.mxu0 0.0
    %3277 = vmatpush2.msra.mxu0 0.0
    %3278 = vmatprep.subr.mxu0 0.0
    %3279 = vmatpush2.msra.mxu0 0.0
    %3280 = vmatprep.subr.mxu0 0.0
    %3281 = vmatpush2.msra.mxu0 0.0
    %3282 = vmatprep.subr.mxu0 0.0
    %3283 = vmatpush2.msra.mxu0 0.0
    %3284 = vmatprep.subr.mxu0 0.0
    %3285 = vmatpush2.msra.mxu0 0.0
    %3286 = vmatprep.subr.mxu0 0.0
    %3287 = vmatpush2.msra.mxu0 0.0
    %3288 = vmatprep.subr.mxu0 0.0
    %3289 = vmatpush2.msra.mxu0 0.0
    %3290 = vmatprep.subr.mxu0 0.0
    %3291 = vmatpush2.msra.mxu0 0.0
    %3292 = vmatprep.subr.mxu0 0.0
    %3293 = vmatpush2.msra.mxu0 0.0
    %3294 = vmatprep.subr.mxu0 0.0
    %3295 = vmatpush2.msra.mxu0 0.0
    %3296 = vmatprep.subr.mxu0 0.0
    %3297 = vmatpush2.msra.mxu0 0.0
    %3298 = vmatprep.subr.mxu0 0.0
    %3299 = vmatpush2.msra.mxu0 0.0
    %3300 = vmatprep.subr.mxu0 0.0
    %3301 = vmatpush2.msra.mxu0 0.0
    %3302 = vmatprep.mubr.f32.mxu0 0.0
    %3303 = vmatmul.mubr.f32.gmra.mxu0 %v3165
    %v3304 = vpop.f32.mrf.mxu0
    %v3305 = vadd.f32 0.0, %v3304
    %v3306 = vpop.f32.mrf.mxu0
    %3307 = vdwg.mxu0
    %s3308 = scalar_lea.vmem %s0, 108
    %v3309 = vld [vmem:[%s3308] sm:$0x3f]
    %v3310 = vadd.f32 %v3309, %v3234
    %v3311 = vxor.u32 %v3310, 2147483648
    %v3312 = vmul.f32 %v3311, 1.442695
    %v3313 = vpow.pop %v3312
    %v3314 = vadd.f32 %v3313, 1.0
    %v3315 = vrcp.pop %v3314
    %v3316 = vmul.f32 1.0, %v3315
    %v3318 = vrot.slane %v3309, 2
    %v3320 = vadd.f32 %v3318, %v3236
    %v3321 = vxor.u32 %v3320, 2147483648
    %v3322 = vmul.f32 %v3321, 1.442695
    %v3323 = vpow.pop %v3322
    %v3324 = vadd.f32 %v3323, 1.0
    %v3325 = vrcp.pop %v3324
    %v3326 = vmul.f32 1.0, %v3325
    %v3327 = vmul.f32 %v3316, %v3305
    %v3328 = vrot.slane %v3309, 4
    %v3330 = vadd.f32 %v3328, %v3327
    %v3331 = vtanh.pop %v3330
    %v3332 = vsub.f32 1.0, %v3326
    %v3333 = vmul.f32 %v3332, %v3331
    %v3334 = vmul.f32 %v3326, %v3165
    %v3335 = vadd.f32 %v3333, %v3334
    %3336 = vst [vmem:[#allocation2 + $0x24] sm:$0x3] %v3335
    %3337 = vmatprep.subr.mxu0 %v102
    %3338 = vmatpush1.msra.mxu0 %v101
    %3339 = vmatprep.subr.mxu0 %v99
    %3340 = vmatpush1.msra.mxu0 %v98
    %3341 = vmatprep.subr.mxu0 %v96
    %3342 = vmatpush1.msra.mxu0 %v95
    %3343 = vmatprep.subr.mxu0 %v93
    %3344 = vmatpush1.msra.mxu0 %v92
    %3345 = vmatprep.subr.mxu0 %v90
    %3346 = vmatpush1.msra.mxu0 %v89
    %3347 = vmatprep.subr.mxu0 %v87
    %3348 = vmatpush1.msra.mxu0 %v86
    %3349 = vmatprep.subr.mxu0 %v84
    %3350 = vmatpush1.msra.mxu0 %v83
    %3351 = vmatprep.subr.mxu0 %v81
    %3352 = vmatpush1.msra.mxu0 %v80
    %3353 = vmatprep.subr.mxu0 %v78
    %3354 = vmatpush1.msra.mxu0 %v77
    %3355 = vmatprep.subr.mxu0 %v75
    %3356 = vmatpush1.msra.mxu0 %v74
    %3357 = vmatprep.subr.mxu0 %v72
    %3358 = vmatpush1.msra.mxu0 %v71
    %3359 = vmatprep.subr.mxu0 %v69
    %3360 = vmatpush1.msra.mxu0 %v68
    %3361 = vmatprep.subr.mxu0 %v66
    %3362 = vmatpush1.msra.mxu0 %v65
    %3363 = vmatprep.subr.mxu0 %v63
    %3364 = vmatpush1.msra.mxu0 %v62
    %3365 = vmatprep.subr.mxu0 %v60
    %3366 = vmatpush1.msra.mxu0 %v59
    %3367 = vmatprep.subr.mxu0 %v57
    %3368 = vmatpush1.msra.mxu0 %v56
    %3369 = vmatprep.subr.mxu0 0.0
    %3370 = vmatpush2.msra.mxu0 0.0
    %3371 = vmatprep.subr.mxu0 0.0
    %3372 = vmatpush2.msra.mxu0 0.0
    %3373 = vmatprep.subr.mxu0 0.0
    %3374 = vmatpush2.msra.mxu0 0.0
    %3375 = vmatprep.subr.mxu0 0.0
    %3376 = vmatpush2.msra.mxu0 0.0
    %3377 = vmatprep.subr.mxu0 0.0
    %3378 = vmatpush2.msra.mxu0 0.0
    %3379 = vmatprep.subr.mxu0 0.0
    %3380 = vmatpush2.msra.mxu0 0.0
    %3381 = vmatprep.subr.mxu0 0.0
    %3382 = vmatpush2.msra.mxu0 0.0
    %3383 = vmatprep.subr.mxu0 0.0
    %3384 = vmatpush2.msra.mxu0 0.0
    %3385 = vmatprep.subr.mxu0 0.0
    %3386 = vmatpush2.msra.mxu0 0.0
    %3387 = vmatprep.subr.mxu0 0.0
    %3388 = vmatpush2.msra.mxu0 0.0
    %3389 = vmatprep.subr.mxu0 0.0
    %3390 = vmatpush2.msra.mxu0 0.0
    %3391 = vmatprep.subr.mxu0 0.0
    %3392 = vmatpush2.msra.mxu0 0.0
    %3393 = vmatprep.subr.mxu0 0.0
    %3394 = vmatpush2.msra.mxu0 0.0
    %3395 = vmatprep.subr.mxu0 0.0
    %3396 = vmatpush2.msra.mxu0 0.0
    %3397 = vmatprep.subr.mxu0 0.0
    %3398 = vmatpush2.msra.mxu0 0.0
    %3399 = vmatprep.subr.mxu0 0.0
    %3400 = vmatpush2.msra.mxu0 0.0
    %3401 = vmatprep.mubr.f32.mxu0 0.0
    %3402 = vmatmul.mubr.f32.gmra.mxu0 %v3335
    %v3403 = vpop.f32.mrf.mxu0
    %v3404 = vadd.f32 0.0, %v3403
    %v3405 = vpop.f32.mrf.mxu0
    %v3406 = vadd.f32 0.0, %v3405
    %3407 = vdwg.mxu0
    %3408 = vmatprep.subr.mxu0 0.0
    %3409 = vmatpush1.msra.mxu0 %v103
    %3410 = vmatprep.subr.mxu0 0.0
    %3411 = vmatpush1.msra.mxu0 %v100
    %3412 = vmatprep.subr.mxu0 0.0
    %3413 = vmatpush1.msra.mxu0 %v97
    %3414 = vmatprep.subr.mxu0 0.0
    %3415 = vmatpush1.msra.mxu0 %v94
    %3416 = vmatprep.subr.mxu0 0.0
    %3417 = vmatpush1.msra.mxu0 %v91
    %3418 = vmatprep.subr.mxu0 0.0
    %3419 = vmatpush1.msra.mxu0 %v88
    %3420 = vmatprep.subr.mxu0 0.0
    %3421 = vmatpush1.msra.mxu0 %v85
    %3422 = vmatprep.subr.mxu0 0.0
    %3423 = vmatpush1.msra.mxu0 %v82
    %3424 = vmatprep.subr.mxu0 0.0
    %3425 = vmatpush1.msra.mxu0 %v79
    %3426 = vmatprep.subr.mxu0 0.0
    %3427 = vmatpush1.msra.mxu0 %v76
    %3428 = vmatprep.subr.mxu0 0.0
    %3429 = vmatpush1.msra.mxu0 %v73
    %3430 = vmatprep.subr.mxu0 0.0
    %3431 = vmatpush1.msra.mxu0 %v70
    %3432 = vmatprep.subr.mxu0 0.0
    %3433 = vmatpush1.msra.mxu0 %v67
    %3434 = vmatprep.subr.mxu0 0.0
    %3435 = vmatpush1.msra.mxu0 %v64
    %3436 = vmatprep.subr.mxu0 0.0
    %3437 = vmatpush1.msra.mxu0 %v61
    %3438 = vmatprep.subr.mxu0 0.0
    %3439 = vmatpush1.msra.mxu0 %v58
    %3440 = vmatprep.subr.mxu0 0.0
    %3441 = vmatpush2.msra.mxu0 0.0
    %3442 = vmatprep.subr.mxu0 0.0
    %3443 = vmatpush2.msra.mxu0 0.0
    %3444 = vmatprep.subr.mxu0 0.0
    %3445 = vmatpush2.msra.mxu0 0.0
    %3446 = vmatprep.subr.mxu0 0.0
    %3447 = vmatpush2.msra.mxu0 0.0
    %3448 = vmatprep.subr.mxu0 0.0
    %3449 = vmatpush2.msra.mxu0 0.0
    %3450 = vmatprep.subr.mxu0 0.0
    %3451 = vmatpush2.msra.mxu0 0.0
    %3452 = vmatprep.subr.mxu0 0.0
    %3453 = vmatpush2.msra.mxu0 0.0
    %3454 = vmatprep.subr.mxu0 0.0
    %3455 = vmatpush2.msra.mxu0 0.0
    %3456 = vmatprep.subr.mxu0 0.0
    %3457 = vmatpush2.msra.mxu0 0.0
    %3458 = vmatprep.subr.mxu0 0.0
    %3459 = vmatpush2.msra.mxu0 0.0
    %3460 = vmatprep.subr.mxu0 0.0
    %3461 = vmatpush2.msra.mxu0 0.0
    %3462 = vmatprep.subr.mxu0 0.0
    %3463 = vmatpush2.msra.mxu0 0.0
    %3464 = vmatprep.subr.mxu0 0.0
    %3465 = vmatpush2.msra.mxu0 0.0
    %3466 = vmatprep.subr.mxu0 0.0
    %3467 = vmatpush2.msra.mxu0 0.0
    %3468 = vmatprep.subr.mxu0 0.0
    %3469 = vmatpush2.msra.mxu0 0.0
    %3470 = vmatprep.subr.mxu0 0.0
    %3471 = vmatpush2.msra.mxu0 0.0
    %3472 = vmatprep.mubr.f32.mxu0 0.0
    %3473 = vmatmul.mubr.f32.gmra.mxu0 %v3335
    %v3474 = vpop.f32.mrf.mxu0
    %v3475 = vadd.f32 0.0, %v3474
    %v3476 = vpop.f32.mrf.mxu0
    %3477 = vdwg.mxu0
    %s3478 = scalar_lea.vmem %s0, 114
    %v3479 = vld [vmem:[%s3478] sm:$0x3f]
    %v3480 = vadd.f32 %v3479, %v3404
    %v3481 = vxor.u32 %v3480, 2147483648
    %v3482 = vmul.f32 %v3481, 1.442695
    %v3483 = vpow.pop %v3482
    %v3484 = vadd.f32 %v3483, 1.0
    %v3485 = vrcp.pop %v3484
    %v3486 = vmul.f32 1.0, %v3485
    %v3488 = vrot.slane %v3479, 2
    %v3490 = vadd.f32 %v3488, %v3406
    %v3491 = vxor.u32 %v3490, 2147483648
    %v3492 = vmul.f32 %v3491, 1.442695
    %v3493 = vpow.pop %v3492
    %v3494 = vadd.f32 %v3493, 1.0
    %v3495 = vrcp.pop %v3494
    %v3496 = vmul.f32 1.0, %v3495
    %v3497 = vmul.f32 %v3486, %v3475
    %v3498 = vrot.slane %v3479, 4
    %v3500 = vadd.f32 %v3498, %v3497
    %v3501 = vtanh.pop %v3500
    %v3502 = vsub.f32 1.0, %v3496
    %v3503 = vmul.f32 %v3502, %v3501
    %v3504 = vmul.f32 %v3496, %v3335
    %v3505 = vadd.f32 %v3503, %v3504
    %3506 = vst [vmem:[#allocation2 + $0x26] sm:$0x3] %v3505
    %3507 = vmatprep.subr.mxu0 %v102
    %3508 = vmatpush1.msra.mxu0 %v101
    %3509 = vmatprep.subr.mxu0 %v99
    %3510 = vmatpush1.msra.mxu0 %v98
    %3511 = vmatprep.subr.mxu0 %v96
    %3512 = vmatpush1.msra.mxu0 %v95
    %3513 = vmatprep.subr.mxu0 %v93
    %3514 = vmatpush1.msra.mxu0 %v92
    %3515 = vmatprep.subr.mxu0 %v90
    %3516 = vmatpush1.msra.mxu0 %v89
    %3517 = vmatprep.subr.mxu0 %v87
    %3518 = vmatpush1.msra.mxu0 %v86
    %3519 = vmatprep.subr.mxu0 %v84
    %3520 = vmatpush1.msra.mxu0 %v83
    %3521 = vmatprep.subr.mxu0 %v81
    %3522 = vmatpush1.msra.mxu0 %v80
    %3523 = vmatprep.subr.mxu0 %v78
    %3524 = vmatpush1.msra.mxu0 %v77
    %3525 = vmatprep.subr.mxu0 %v75
    %3526 = vmatpush1.msra.mxu0 %v74
    %3527 = vmatprep.subr.mxu0 %v72
    %3528 = vmatpush1.msra.mxu0 %v71
    %3529 = vmatprep.subr.mxu0 %v69
    %3530 = vmatpush1.msra.mxu0 %v68
    %3531 = vmatprep.subr.mxu0 %v66
    %3532 = vmatpush1.msra.mxu0 %v65
    %3533 = vmatprep.subr.mxu0 %v63
    %3534 = vmatpush1.msra.mxu0 %v62
    %3535 = vmatprep.subr.mxu0 %v60
    %3536 = vmatpush1.msra.mxu0 %v59
    %3537 = vmatprep.subr.mxu0 %v57
    %3538 = vmatpush1.msra.mxu0 %v56
    %3539 = vmatprep.subr.mxu0 0.0
    %3540 = vmatpush2.msra.mxu0 0.0
    %3541 = vmatprep.subr.mxu0 0.0
    %3542 = vmatpush2.msra.mxu0 0.0
    %3543 = vmatprep.subr.mxu0 0.0
    %3544 = vmatpush2.msra.mxu0 0.0
    %3545 = vmatprep.subr.mxu0 0.0
    %3546 = vmatpush2.msra.mxu0 0.0
    %3547 = vmatprep.subr.mxu0 0.0
    %3548 = vmatpush2.msra.mxu0 0.0
    %3549 = vmatprep.subr.mxu0 0.0
    %3550 = vmatpush2.msra.mxu0 0.0
    %3551 = vmatprep.subr.mxu0 0.0
    %3552 = vmatpush2.msra.mxu0 0.0
    %3553 = vmatprep.subr.mxu0 0.0
    %3554 = vmatpush2.msra.mxu0 0.0
    %3555 = vmatprep.subr.mxu0 0.0
    %3556 = vmatpush2.msra.mxu0 0.0
    %3557 = vmatprep.subr.mxu0 0.0
    %3558 = vmatpush2.msra.mxu0 0.0
    %3559 = vmatprep.subr.mxu0 0.0
    %3560 = vmatpush2.msra.mxu0 0.0
    %3561 = vmatprep.subr.mxu0 0.0
    %3562 = vmatpush2.msra.mxu0 0.0
    %3563 = vmatprep.subr.mxu0 0.0
    %3564 = vmatpush2.msra.mxu0 0.0
    %3565 = vmatprep.subr.mxu0 0.0
    %3566 = vmatpush2.msra.mxu0 0.0
    %3567 = vmatprep.subr.mxu0 0.0
    %3568 = vmatpush2.msra.mxu0 0.0
    %3569 = vmatprep.subr.mxu0 0.0
    %3570 = vmatpush2.msra.mxu0 0.0
    %3571 = vmatprep.mubr.f32.mxu0 0.0
    %3572 = vmatmul.mubr.f32.gmra.mxu0 %v3505
    %v3573 = vpop.f32.mrf.mxu0
    %v3574 = vadd.f32 0.0, %v3573
    %v3575 = vpop.f32.mrf.mxu0
    %v3576 = vadd.f32 0.0, %v3575
    %3577 = vdwg.mxu0
    %3578 = vmatprep.subr.mxu0 0.0
    %3579 = vmatpush1.msra.mxu0 %v103
    %3580 = vmatprep.subr.mxu0 0.0
    %3581 = vmatpush1.msra.mxu0 %v100
    %3582 = vmatprep.subr.mxu0 0.0
    %3583 = vmatpush1.msra.mxu0 %v97
    %3584 = vmatprep.subr.mxu0 0.0
    %3585 = vmatpush1.msra.mxu0 %v94
    %3586 = vmatprep.subr.mxu0 0.0
    %3587 = vmatpush1.msra.mxu0 %v91
    %3588 = vmatprep.subr.mxu0 0.0
    %3589 = vmatpush1.msra.mxu0 %v88
    %3590 = vmatprep.subr.mxu0 0.0
    %3591 = vmatpush1.msra.mxu0 %v85
    %3592 = vmatprep.subr.mxu0 0.0
    %3593 = vmatpush1.msra.mxu0 %v82
    %3594 = vmatprep.subr.mxu0 0.0
    %3595 = vmatpush1.msra.mxu0 %v79
    %3596 = vmatprep.subr.mxu0 0.0
    %3597 = vmatpush1.msra.mxu0 %v76
    %3598 = vmatprep.subr.mxu0 0.0
    %3599 = vmatpush1.msra.mxu0 %v73
    %3600 = vmatprep.subr.mxu0 0.0
    %3601 = vmatpush1.msra.mxu0 %v70
    %3602 = vmatprep.subr.mxu0 0.0
    %3603 = vmatpush1.msra.mxu0 %v67
    %3604 = vmatprep.subr.mxu0 0.0
    %3605 = vmatpush1.msra.mxu0 %v64
    %3606 = vmatprep.subr.mxu0 0.0
    %3607 = vmatpush1.msra.mxu0 %v61
    %3608 = vmatprep.subr.mxu0 0.0
    %3609 = vmatpush1.msra.mxu0 %v58
    %3610 = vmatprep.subr.mxu0 0.0
    %3611 = vmatpush2.msra.mxu0 0.0
    %3612 = vmatprep.subr.mxu0 0.0
    %3613 = vmatpush2.msra.mxu0 0.0
    %3614 = vmatprep.subr.mxu0 0.0
    %3615 = vmatpush2.msra.mxu0 0.0
    %3616 = vmatprep.subr.mxu0 0.0
    %3617 = vmatpush2.msra.mxu0 0.0
    %3618 = vmatprep.subr.mxu0 0.0
    %3619 = vmatpush2.msra.mxu0 0.0
    %3620 = vmatprep.subr.mxu0 0.0
    %3621 = vmatpush2.msra.mxu0 0.0
    %3622 = vmatprep.subr.mxu0 0.0
    %3623 = vmatpush2.msra.mxu0 0.0
    %3624 = vmatprep.subr.mxu0 0.0
    %3625 = vmatpush2.msra.mxu0 0.0
    %3626 = vmatprep.subr.mxu0 0.0
    %3627 = vmatpush2.msra.mxu0 0.0
    %3628 = vmatprep.subr.mxu0 0.0
    %3629 = vmatpush2.msra.mxu0 0.0
    %3630 = vmatprep.subr.mxu0 0.0
    %3631 = vmatpush2.msra.mxu0 0.0
    %3632 = vmatprep.subr.mxu0 0.0
    %3633 = vmatpush2.msra.mxu0 0.0
    %3634 = vmatprep.subr.mxu0 0.0
    %3635 = vmatpush2.msra.mxu0 0.0
    %3636 = vmatprep.subr.mxu0 0.0
    %3637 = vmatpush2.msra.mxu0 0.0
    %3638 = vmatprep.subr.mxu0 0.0
    %3639 = vmatpush2.msra.mxu0 0.0
    %3640 = vmatprep.subr.mxu0 0.0
    %3641 = vmatpush2.msra.mxu0 0.0
    %3642 = vmatprep.mubr.f32.mxu0 0.0
    %3643 = vmatmul.mubr.f32.gmra.mxu0 %v3505
    %v3644 = vpop.f32.mrf.mxu0
    %v3645 = vadd.f32 0.0, %v3644
    %v3646 = vpop.f32.mrf.mxu0
    %3647 = vdwg.mxu0
    %s3648 = scalar_lea.vmem %s0, 120
    %v3649 = vld [vmem:[%s3648] sm:$0x3f]
    %v3650 = vadd.f32 %v3649, %v3574
    %v3651 = vxor.u32 %v3650, 2147483648
    %v3652 = vmul.f32 %v3651, 1.442695
    %v3653 = vpow.pop %v3652
    %v3654 = vadd.f32 %v3653, 1.0
    %v3655 = vrcp.pop %v3654
    %v3656 = vmul.f32 1.0, %v3655
    %v3658 = vrot.slane %v3649, 2
    %v3660 = vadd.f32 %v3658, %v3576
    %v3661 = vxor.u32 %v3660, 2147483648
    %v3662 = vmul.f32 %v3661, 1.442695
    %v3663 = vpow.pop %v3662
    %v3664 = vadd.f32 %v3663, 1.0
    %v3665 = vrcp.pop %v3664
    %v3666 = vmul.f32 1.0, %v3665
    %v3667 = vmul.f32 %v3656, %v3645
    %v3668 = vrot.slane %v3649, 4
    %v3670 = vadd.f32 %v3668, %v3667
    %v3671 = vtanh.pop %v3670
    %v3672 = vsub.f32 1.0, %v3666
    %v3673 = vmul.f32 %v3672, %v3671
    %v3674 = vmul.f32 %v3666, %v3505
    %v3675 = vadd.f32 %v3673, %v3674
    %3676 = vst [vmem:[#allocation2 + $0x28] sm:$0x3] %v3675
    %3677 = vmatprep.subr.mxu0 %v102
    %3678 = vmatpush1.msra.mxu0 %v101
    %3679 = vmatprep.subr.mxu0 %v99
    %3680 = vmatpush1.msra.mxu0 %v98
    %3681 = vmatprep.subr.mxu0 %v96
    %3682 = vmatpush1.msra.mxu0 %v95
    %3683 = vmatprep.subr.mxu0 %v93
    %3684 = vmatpush1.msra.mxu0 %v92
    %3685 = vmatprep.subr.mxu0 %v90
    %3686 = vmatpush1.msra.mxu0 %v89
    %3687 = vmatprep.subr.mxu0 %v87
    %3688 = vmatpush1.msra.mxu0 %v86
    %3689 = vmatprep.subr.mxu0 %v84
    %3690 = vmatpush1.msra.mxu0 %v83
    %3691 = vmatprep.subr.mxu0 %v81
    %3692 = vmatpush1.msra.mxu0 %v80
    %3693 = vmatprep.subr.mxu0 %v78
    %3694 = vmatpush1.msra.mxu0 %v77
    %3695 = vmatprep.subr.mxu0 %v75
    %3696 = vmatpush1.msra.mxu0 %v74
    %3697 = vmatprep.subr.mxu0 %v72
    %3698 = vmatpush1.msra.mxu0 %v71
    %3699 = vmatprep.subr.mxu0 %v69
    %3700 = vmatpush1.msra.mxu0 %v68
    %3701 = vmatprep.subr.mxu0 %v66
    %3702 = vmatpush1.msra.mxu0 %v65
    %3703 = vmatprep.subr.mxu0 %v63
    %3704 = vmatpush1.msra.mxu0 %v62
    %3705 = vmatprep.subr.mxu0 %v60
    %3706 = vmatpush1.msra.mxu0 %v59
    %3707 = vmatprep.subr.mxu0 %v57
    %3708 = vmatpush1.msra.mxu0 %v56
    %3709 = vmatprep.subr.mxu0 0.0
    %3710 = vmatpush2.msra.mxu0 0.0
    %3711 = vmatprep.subr.mxu0 0.0
    %3712 = vmatpush2.msra.mxu0 0.0
    %3713 = vmatprep.subr.mxu0 0.0
    %3714 = vmatpush2.msra.mxu0 0.0
    %3715 = vmatprep.subr.mxu0 0.0
    %3716 = vmatpush2.msra.mxu0 0.0
    %3717 = vmatprep.subr.mxu0 0.0
    %3718 = vmatpush2.msra.mxu0 0.0
    %3719 = vmatprep.subr.mxu0 0.0
    %3720 = vmatpush2.msra.mxu0 0.0
    %3721 = vmatprep.subr.mxu0 0.0
    %3722 = vmatpush2.msra.mxu0 0.0
    %3723 = vmatprep.subr.mxu0 0.0
    %3724 = vmatpush2.msra.mxu0 0.0
    %3725 = vmatprep.subr.mxu0 0.0
    %3726 = vmatpush2.msra.mxu0 0.0
    %3727 = vmatprep.subr.mxu0 0.0
    %3728 = vmatpush2.msra.mxu0 0.0
    %3729 = vmatprep.subr.mxu0 0.0
    %3730 = vmatpush2.msra.mxu0 0.0
    %3731 = vmatprep.subr.mxu0 0.0
    %3732 = vmatpush2.msra.mxu0 0.0
    %3733 = vmatprep.subr.mxu0 0.0
    %3734 = vmatpush2.msra.mxu0 0.0
    %3735 = vmatprep.subr.mxu0 0.0
    %3736 = vmatpush2.msra.mxu0 0.0
    %3737 = vmatprep.subr.mxu0 0.0
    %3738 = vmatpush2.msra.mxu0 0.0
    %3739 = vmatprep.subr.mxu0 0.0
    %3740 = vmatpush2.msra.mxu0 0.0
    %3741 = vmatprep.mubr.f32.mxu0 0.0
    %3742 = vmatmul.mubr.f32.gmra.mxu0 %v3675
    %v3743 = vpop.f32.mrf.mxu0
    %v3744 = vadd.f32 0.0, %v3743
    %v3745 = vpop.f32.mrf.mxu0
    %v3746 = vadd.f32 0.0, %v3745
    %3747 = vdwg.mxu0
    %3748 = vmatprep.subr.mxu0 0.0
    %3749 = vmatpush1.msra.mxu0 %v103
    %3750 = vmatprep.subr.mxu0 0.0
    %3751 = vmatpush1.msra.mxu0 %v100
    %3752 = vmatprep.subr.mxu0 0.0
    %3753 = vmatpush1.msra.mxu0 %v97
    %3754 = vmatprep.subr.mxu0 0.0
    %3755 = vmatpush1.msra.mxu0 %v94
    %3756 = vmatprep.subr.mxu0 0.0
    %3757 = vmatpush1.msra.mxu0 %v91
    %3758 = vmatprep.subr.mxu0 0.0
    %3759 = vmatpush1.msra.mxu0 %v88
    %3760 = vmatprep.subr.mxu0 0.0
    %3761 = vmatpush1.msra.mxu0 %v85
    %3762 = vmatprep.subr.mxu0 0.0
    %3763 = vmatpush1.msra.mxu0 %v82
    %3764 = vmatprep.subr.mxu0 0.0
    %3765 = vmatpush1.msra.mxu0 %v79
    %3766 = vmatprep.subr.mxu0 0.0
    %3767 = vmatpush1.msra.mxu0 %v76
    %3768 = vmatprep.subr.mxu0 0.0
    %3769 = vmatpush1.msra.mxu0 %v73
    %3770 = vmatprep.subr.mxu0 0.0
    %3771 = vmatpush1.msra.mxu0 %v70
    %3772 = vmatprep.subr.mxu0 0.0
    %3773 = vmatpush1.msra.mxu0 %v67
    %3774 = vmatprep.subr.mxu0 0.0
    %3775 = vmatpush1.msra.mxu0 %v64
    %3776 = vmatprep.subr.mxu0 0.0
    %3777 = vmatpush1.msra.mxu0 %v61
    %3778 = vmatprep.subr.mxu0 0.0
    %3779 = vmatpush1.msra.mxu0 %v58
    %3780 = vmatprep.subr.mxu0 0.0
    %3781 = vmatpush2.msra.mxu0 0.0
    %3782 = vmatprep.subr.mxu0 0.0
    %3783 = vmatpush2.msra.mxu0 0.0
    %3784 = vmatprep.subr.mxu0 0.0
    %3785 = vmatpush2.msra.mxu0 0.0
    %3786 = vmatprep.subr.mxu0 0.0
    %3787 = vmatpush2.msra.mxu0 0.0
    %3788 = vmatprep.subr.mxu0 0.0
    %3789 = vmatpush2.msra.mxu0 0.0
    %3790 = vmatprep.subr.mxu0 0.0
    %3791 = vmatpush2.msra.mxu0 0.0
    %3792 = vmatprep.subr.mxu0 0.0
    %3793 = vmatpush2.msra.mxu0 0.0
    %3794 = vmatprep.subr.mxu0 0.0
    %3795 = vmatpush2.msra.mxu0 0.0
    %3796 = vmatprep.subr.mxu0 0.0
    %3797 = vmatpush2.msra.mxu0 0.0
    %3798 = vmatprep.subr.mxu0 0.0
    %3799 = vmatpush2.msra.mxu0 0.0
    %3800 = vmatprep.subr.mxu0 0.0
    %3801 = vmatpush2.msra.mxu0 0.0
    %3802 = vmatprep.subr.mxu0 0.0
    %3803 = vmatpush2.msra.mxu0 0.0
    %3804 = vmatprep.subr.mxu0 0.0
    %3805 = vmatpush2.msra.mxu0 0.0
    %3806 = vmatprep.subr.mxu0 0.0
    %3807 = vmatpush2.msra.mxu0 0.0
    %3808 = vmatprep.subr.mxu0 0.0
    %3809 = vmatpush2.msra.mxu0 0.0
    %3810 = vmatprep.subr.mxu0 0.0
    %3811 = vmatpush2.msra.mxu0 0.0
    %3812 = vmatprep.mubr.f32.mxu0 0.0
    %3813 = vmatmul.mubr.f32.gmra.mxu0 %v3675
    %v3814 = vpop.f32.mrf.mxu0
    %v3815 = vadd.f32 0.0, %v3814
    %v3816 = vpop.f32.mrf.mxu0
    %3817 = vdwg.mxu0
    %s3818 = scalar_lea.vmem %s0, 126
    %v3819 = vld [vmem:[%s3818] sm:$0x3f]
    %v3820 = vadd.f32 %v3819, %v3744
    %v3821 = vxor.u32 %v3820, 2147483648
    %v3822 = vmul.f32 %v3821, 1.442695
    %v3823 = vpow.pop %v3822
    %v3824 = vadd.f32 %v3823, 1.0
    %v3825 = vrcp.pop %v3824
    %v3826 = vmul.f32 1.0, %v3825
    %v3828 = vrot.slane %v3819, 2
    %v3830 = vadd.f32 %v3828, %v3746
    %v3831 = vxor.u32 %v3830, 2147483648
    %v3832 = vmul.f32 %v3831, 1.442695
    %v3833 = vpow.pop %v3832
    %v3834 = vadd.f32 %v3833, 1.0
    %v3835 = vrcp.pop %v3834
    %v3836 = vmul.f32 1.0, %v3835
    %v3837 = vmul.f32 %v3826, %v3815
    %v3838 = vrot.slane %v3819, 4
    %v3840 = vadd.f32 %v3838, %v3837
    %v3841 = vtanh.pop %v3840
    %v3842 = vsub.f32 1.0, %v3836
    %v3843 = vmul.f32 %v3842, %v3841
    %v3844 = vmul.f32 %v3836, %v3675
    %v3845 = vadd.f32 %v3843, %v3844
    %3846 = vst [vmem:[#allocation2 + $0x2a] sm:$0x3] %v3845
    %3847 = vmatprep.subr.mxu0 %v102
    %3848 = vmatpush1.msra.mxu0 %v101
    %3849 = vmatprep.subr.mxu0 %v99
    %3850 = vmatpush1.msra.mxu0 %v98
    %3851 = vmatprep.subr.mxu0 %v96
    %3852 = vmatpush1.msra.mxu0 %v95
    %3853 = vmatprep.subr.mxu0 %v93
    %3854 = vmatpush1.msra.mxu0 %v92
    %3855 = vmatprep.subr.mxu0 %v90
    %3856 = vmatpush1.msra.mxu0 %v89
    %3857 = vmatprep.subr.mxu0 %v87
    %3858 = vmatpush1.msra.mxu0 %v86
    %3859 = vmatprep.subr.mxu0 %v84
    %3860 = vmatpush1.msra.mxu0 %v83
    %3861 = vmatprep.subr.mxu0 %v81
    %3862 = vmatpush1.msra.mxu0 %v80
    %3863 = vmatprep.subr.mxu0 %v78
    %3864 = vmatpush1.msra.mxu0 %v77
    %3865 = vmatprep.subr.mxu0 %v75
    %3866 = vmatpush1.msra.mxu0 %v74
    %3867 = vmatprep.subr.mxu0 %v72
    %3868 = vmatpush1.msra.mxu0 %v71
    %3869 = vmatprep.subr.mxu0 %v69
    %3870 = vmatpush1.msra.mxu0 %v68
    %3871 = vmatprep.subr.mxu0 %v66
    %3872 = vmatpush1.msra.mxu0 %v65
    %3873 = vmatprep.subr.mxu0 %v63
    %3874 = vmatpush1.msra.mxu0 %v62
    %3875 = vmatprep.subr.mxu0 %v60
    %3876 = vmatpush1.msra.mxu0 %v59
    %3877 = vmatprep.subr.mxu0 %v57
    %3878 = vmatpush1.msra.mxu0 %v56
    %3879 = vmatprep.subr.mxu0 0.0
    %3880 = vmatpush2.msra.mxu0 0.0
    %3881 = vmatprep.subr.mxu0 0.0
    %3882 = vmatpush2.msra.mxu0 0.0
    %3883 = vmatprep.subr.mxu0 0.0
    %3884 = vmatpush2.msra.mxu0 0.0
    %3885 = vmatprep.subr.mxu0 0.0
    %3886 = vmatpush2.msra.mxu0 0.0
    %3887 = vmatprep.subr.mxu0 0.0
    %3888 = vmatpush2.msra.mxu0 0.0
    %3889 = vmatprep.subr.mxu0 0.0
    %3890 = vmatpush2.msra.mxu0 0.0
    %3891 = vmatprep.subr.mxu0 0.0
    %3892 = vmatpush2.msra.mxu0 0.0
    %3893 = vmatprep.subr.mxu0 0.0
    %3894 = vmatpush2.msra.mxu0 0.0
    %3895 = vmatprep.subr.mxu0 0.0
    %3896 = vmatpush2.msra.mxu0 0.0
    %3897 = vmatprep.subr.mxu0 0.0
    %3898 = vmatpush2.msra.mxu0 0.0
    %3899 = vmatprep.subr.mxu0 0.0
    %3900 = vmatpush2.msra.mxu0 0.0
    %3901 = vmatprep.subr.mxu0 0.0
    %3902 = vmatpush2.msra.mxu0 0.0
    %3903 = vmatprep.subr.mxu0 0.0
    %3904 = vmatpush2.msra.mxu0 0.0
    %3905 = vmatprep.subr.mxu0 0.0
    %3906 = vmatpush2.msra.mxu0 0.0
    %3907 = vmatprep.subr.mxu0 0.0
    %3908 = vmatpush2.msra.mxu0 0.0
    %3909 = vmatprep.subr.mxu0 0.0
    %3910 = vmatpush2.msra.mxu0 0.0
    %3911 = vmatprep.mubr.f32.mxu0 0.0
    %3912 = vmatmul.mubr.f32.gmra.mxu0 %v3845
    %v3913 = vpop.f32.mrf.mxu0
    %v3914 = vadd.f32 0.0, %v3913
    %v3915 = vpop.f32.mrf.mxu0
    %v3916 = vadd.f32 0.0, %v3915
    %3917 = vdwg.mxu0
    %3918 = vmatprep.subr.mxu0 0.0
    %3919 = vmatpush1.msra.mxu0 %v103
    %3920 = vmatprep.subr.mxu0 0.0
    %3921 = vmatpush1.msra.mxu0 %v100
    %3922 = vmatprep.subr.mxu0 0.0
    %3923 = vmatpush1.msra.mxu0 %v97
    %3924 = vmatprep.subr.mxu0 0.0
    %3925 = vmatpush1.msra.mxu0 %v94
    %3926 = vmatprep.subr.mxu0 0.0
    %3927 = vmatpush1.msra.mxu0 %v91
    %3928 = vmatprep.subr.mxu0 0.0
    %3929 = vmatpush1.msra.mxu0 %v88
    %3930 = vmatprep.subr.mxu0 0.0
    %3931 = vmatpush1.msra.mxu0 %v85
    %3932 = vmatprep.subr.mxu0 0.0
    %3933 = vmatpush1.msra.mxu0 %v82
    %3934 = vmatprep.subr.mxu0 0.0
    %3935 = vmatpush1.msra.mxu0 %v79
    %3936 = vmatprep.subr.mxu0 0.0
    %3937 = vmatpush1.msra.mxu0 %v76
    %3938 = vmatprep.subr.mxu0 0.0
    %3939 = vmatpush1.msra.mxu0 %v73
    %3940 = vmatprep.subr.mxu0 0.0
    %3941 = vmatpush1.msra.mxu0 %v70
    %3942 = vmatprep.subr.mxu0 0.0
    %3943 = vmatpush1.msra.mxu0 %v67
    %3944 = vmatprep.subr.mxu0 0.0
    %3945 = vmatpush1.msra.mxu0 %v64
    %3946 = vmatprep.subr.mxu0 0.0
    %3947 = vmatpush1.msra.mxu0 %v61
    %3948 = vmatprep.subr.mxu0 0.0
    %3949 = vmatpush1.msra.mxu0 %v58
    %3950 = vmatprep.subr.mxu0 0.0
    %3951 = vmatpush2.msra.mxu0 0.0
    %3952 = vmatprep.subr.mxu0 0.0
    %3953 = vmatpush2.msra.mxu0 0.0
    %3954 = vmatprep.subr.mxu0 0.0
    %3955 = vmatpush2.msra.mxu0 0.0
    %3956 = vmatprep.subr.mxu0 0.0
    %3957 = vmatpush2.msra.mxu0 0.0
    %3958 = vmatprep.subr.mxu0 0.0
    %3959 = vmatpush2.msra.mxu0 0.0
    %3960 = vmatprep.subr.mxu0 0.0
    %3961 = vmatpush2.msra.mxu0 0.0
    %3962 = vmatprep.subr.mxu0 0.0
    %3963 = vmatpush2.msra.mxu0 0.0
    %3964 = vmatprep.subr.mxu0 0.0
    %3965 = vmatpush2.msra.mxu0 0.0
    %3966 = vmatprep.subr.mxu0 0.0
    %3967 = vmatpush2.msra.mxu0 0.0
    %3968 = vmatprep.subr.mxu0 0.0
    %3969 = vmatpush2.msra.mxu0 0.0
    %3970 = vmatprep.subr.mxu0 0.0
    %3971 = vmatpush2.msra.mxu0 0.0
    %3972 = vmatprep.subr.mxu0 0.0
    %3973 = vmatpush2.msra.mxu0 0.0
    %3974 = vmatprep.subr.mxu0 0.0
    %3975 = vmatpush2.msra.mxu0 0.0
    %3976 = vmatprep.subr.mxu0 0.0
    %3977 = vmatpush2.msra.mxu0 0.0
    %3978 = vmatprep.subr.mxu0 0.0
    %3979 = vmatpush2.msra.mxu0 0.0
    %3980 = vmatprep.subr.mxu0 0.0
    %3981 = vmatpush2.msra.mxu0 0.0
    %3982 = vmatprep.mubr.f32.mxu0 0.0
    %3983 = vmatmul.mubr.f32.gmra.mxu0 %v3845
    %v3984 = vpop.f32.mrf.mxu0
    %v3985 = vadd.f32 0.0, %v3984
    %v3986 = vpop.f32.mrf.mxu0
    %3987 = vdwg.mxu0
    %s3988 = scalar_lea.vmem %s0, 132
    %v3989 = vld [vmem:[%s3988] sm:$0x3f]
    %v3990 = vadd.f32 %v3989, %v3914
    %v3991 = vxor.u32 %v3990, 2147483648
    %v3992 = vmul.f32 %v3991, 1.442695
    %v3993 = vpow.pop %v3992
    %v3994 = vadd.f32 %v3993, 1.0
    %v3995 = vrcp.pop %v3994
    %v3996 = vmul.f32 1.0, %v3995
    %v3998 = vrot.slane %v3989, 2
    %v4000 = vadd.f32 %v3998, %v3916
    %v4001 = vxor.u32 %v4000, 2147483648
    %v4002 = vmul.f32 %v4001, 1.442695
    %v4003 = vpow.pop %v4002
    %v4004 = vadd.f32 %v4003, 1.0
    %v4005 = vrcp.pop %v4004
    %v4006 = vmul.f32 1.0, %v4005
    %v4007 = vmul.f32 %v3996, %v3985
    %v4008 = vrot.slane %v3989, 4
    %v4010 = vadd.f32 %v4008, %v4007
    %v4011 = vtanh.pop %v4010
    %v4012 = vsub.f32 1.0, %v4006
    %v4013 = vmul.f32 %v4012, %v4011
    %v4014 = vmul.f32 %v4006, %v3845
    %v4015 = vadd.f32 %v4013, %v4014
    %4016 = vst [vmem:[#allocation2 + $0x2c] sm:$0x3] %v4015
    %4017 = vmatprep.subr.mxu0 %v102
    %4018 = vmatpush1.msra.mxu0 %v101
    %4019 = vmatprep.subr.mxu0 %v99
    %4020 = vmatpush1.msra.mxu0 %v98
    %4021 = vmatprep.subr.mxu0 %v96
    %4022 = vmatpush1.msra.mxu0 %v95
    %4023 = vmatprep.subr.mxu0 %v93
    %4024 = vmatpush1.msra.mxu0 %v92
    %4025 = vmatprep.subr.mxu0 %v90
    %4026 = vmatpush1.msra.mxu0 %v89
    %4027 = vmatprep.subr.mxu0 %v87
    %4028 = vmatpush1.msra.mxu0 %v86
    %4029 = vmatprep.subr.mxu0 %v84
    %4030 = vmatpush1.msra.mxu0 %v83
    %4031 = vmatprep.subr.mxu0 %v81
    %4032 = vmatpush1.msra.mxu0 %v80
    %4033 = vmatprep.subr.mxu0 %v78
    %4034 = vmatpush1.msra.mxu0 %v77
    %4035 = vmatprep.subr.mxu0 %v75
    %4036 = vmatpush1.msra.mxu0 %v74
    %4037 = vmatprep.subr.mxu0 %v72
    %4038 = vmatpush1.msra.mxu0 %v71
    %4039 = vmatprep.subr.mxu0 %v69
    %4040 = vmatpush1.msra.mxu0 %v68
    %4041 = vmatprep.subr.mxu0 %v66
    %4042 = vmatpush1.msra.mxu0 %v65
    %4043 = vmatprep.subr.mxu0 %v63
    %4044 = vmatpush1.msra.mxu0 %v62
    %4045 = vmatprep.subr.mxu0 %v60
    %4046 = vmatpush1.msra.mxu0 %v59
    %4047 = vmatprep.subr.mxu0 %v57
    %4048 = vmatpush1.msra.mxu0 %v56
    %4049 = vmatprep.subr.mxu0 0.0
    %4050 = vmatpush2.msra.mxu0 0.0
    %4051 = vmatprep.subr.mxu0 0.0
    %4052 = vmatpush2.msra.mxu0 0.0
    %4053 = vmatprep.subr.mxu0 0.0
    %4054 = vmatpush2.msra.mxu0 0.0
    %4055 = vmatprep.subr.mxu0 0.0
    %4056 = vmatpush2.msra.mxu0 0.0
    %4057 = vmatprep.subr.mxu0 0.0
    %4058 = vmatpush2.msra.mxu0 0.0
    %4059 = vmatprep.subr.mxu0 0.0
    %4060 = vmatpush2.msra.mxu0 0.0
    %4061 = vmatprep.subr.mxu0 0.0
    %4062 = vmatpush2.msra.mxu0 0.0
    %4063 = vmatprep.subr.mxu0 0.0
    %4064 = vmatpush2.msra.mxu0 0.0
    %4065 = vmatprep.subr.mxu0 0.0
    %4066 = vmatpush2.msra.mxu0 0.0
    %4067 = vmatprep.subr.mxu0 0.0
    %4068 = vmatpush2.msra.mxu0 0.0
    %4069 = vmatprep.subr.mxu0 0.0
    %4070 = vmatpush2.msra.mxu0 0.0
    %4071 = vmatprep.subr.mxu0 0.0
    %4072 = vmatpush2.msra.mxu0 0.0
    %4073 = vmatprep.subr.mxu0 0.0
    %4074 = vmatpush2.msra.mxu0 0.0
    %4075 = vmatprep.subr.mxu0 0.0
    %4076 = vmatpush2.msra.mxu0 0.0
    %4077 = vmatprep.subr.mxu0 0.0
    %4078 = vmatpush2.msra.mxu0 0.0
    %4079 = vmatprep.subr.mxu0 0.0
    %4080 = vmatpush2.msra.mxu0 0.0
    %4081 = vmatprep.mubr.f32.mxu0 0.0
    %4082 = vmatmul.mubr.f32.gmra.mxu0 %v4015
    %v4083 = vpop.f32.mrf.mxu0
    %v4084 = vadd.f32 0.0, %v4083
    %v4085 = vpop.f32.mrf.mxu0
    %v4086 = vadd.f32 0.0, %v4085
    %4087 = vdwg.mxu0
    %4088 = vmatprep.subr.mxu0 0.0
    %4089 = vmatpush1.msra.mxu0 %v103
    %4090 = vmatprep.subr.mxu0 0.0
    %4091 = vmatpush1.msra.mxu0 %v100
    %4092 = vmatprep.subr.mxu0 0.0
    %4093 = vmatpush1.msra.mxu0 %v97
    %4094 = vmatprep.subr.mxu0 0.0
    %4095 = vmatpush1.msra.mxu0 %v94
    %4096 = vmatprep.subr.mxu0 0.0
    %4097 = vmatpush1.msra.mxu0 %v91
    %4098 = vmatprep.subr.mxu0 0.0
    %4099 = vmatpush1.msra.mxu0 %v88
    %4100 = vmatprep.subr.mxu0 0.0
    %4101 = vmatpush1.msra.mxu0 %v85
    %4102 = vmatprep.subr.mxu0 0.0
    %4103 = vmatpush1.msra.mxu0 %v82
    %4104 = vmatprep.subr.mxu0 0.0
    %4105 = vmatpush1.msra.mxu0 %v79
    %4106 = vmatprep.subr.mxu0 0.0
    %4107 = vmatpush1.msra.mxu0 %v76
    %4108 = vmatprep.subr.mxu0 0.0
    %4109 = vmatpush1.msra.mxu0 %v73
    %4110 = vmatprep.subr.mxu0 0.0
    %4111 = vmatpush1.msra.mxu0 %v70
    %4112 = vmatprep.subr.mxu0 0.0
    %4113 = vmatpush1.msra.mxu0 %v67
    %4114 = vmatprep.subr.mxu0 0.0
    %4115 = vmatpush1.msra.mxu0 %v64
    %4116 = vmatprep.subr.mxu0 0.0
    %4117 = vmatpush1.msra.mxu0 %v61
    %4118 = vmatprep.subr.mxu0 0.0
    %4119 = vmatpush1.msra.mxu0 %v58
    %4120 = vmatprep.subr.mxu0 0.0
    %4121 = vmatpush2.msra.mxu0 0.0
    %4122 = vmatprep.subr.mxu0 0.0
    %4123 = vmatpush2.msra.mxu0 0.0
    %4124 = vmatprep.subr.mxu0 0.0
    %4125 = vmatpush2.msra.mxu0 0.0
    %4126 = vmatprep.subr.mxu0 0.0
    %4127 = vmatpush2.msra.mxu0 0.0
    %4128 = vmatprep.subr.mxu0 0.0
    %4129 = vmatpush2.msra.mxu0 0.0
    %4130 = vmatprep.subr.mxu0 0.0
    %4131 = vmatpush2.msra.mxu0 0.0
    %4132 = vmatprep.subr.mxu0 0.0
    %4133 = vmatpush2.msra.mxu0 0.0
    %4134 = vmatprep.subr.mxu0 0.0
    %4135 = vmatpush2.msra.mxu0 0.0
    %4136 = vmatprep.subr.mxu0 0.0
    %4137 = vmatpush2.msra.mxu0 0.0
    %4138 = vmatprep.subr.mxu0 0.0
    %4139 = vmatpush2.msra.mxu0 0.0
    %4140 = vmatprep.subr.mxu0 0.0
    %4141 = vmatpush2.msra.mxu0 0.0
    %4142 = vmatprep.subr.mxu0 0.0
    %4143 = vmatpush2.msra.mxu0 0.0
    %4144 = vmatprep.subr.mxu0 0.0
    %4145 = vmatpush2.msra.mxu0 0.0
    %4146 = vmatprep.subr.mxu0 0.0
    %4147 = vmatpush2.msra.mxu0 0.0
    %4148 = vmatprep.subr.mxu0 0.0
    %4149 = vmatpush2.msra.mxu0 0.0
    %4150 = vmatprep.subr.mxu0 0.0
    %4151 = vmatpush2.msra.mxu0 0.0
    %4152 = vmatprep.mubr.f32.mxu0 0.0
    %4153 = vmatmul.mubr.f32.gmra.mxu0 %v4015
    %v4154 = vpop.f32.mrf.mxu0
    %v4155 = vadd.f32 0.0, %v4154
    %v4156 = vpop.f32.mrf.mxu0
    %4157 = vdwg.mxu0
    %s4158 = scalar_lea.vmem %s0, 138
    %v4159 = vld [vmem:[%s4158] sm:$0x3f]
    %v4160 = vadd.f32 %v4159, %v4084
    %v4161 = vxor.u32 %v4160, 2147483648
    %v4162 = vmul.f32 %v4161, 1.442695
    %v4163 = vpow.pop %v4162
    %v4164 = vadd.f32 %v4163, 1.0
    %v4165 = vrcp.pop %v4164
    %v4166 = vmul.f32 1.0, %v4165
    %v4168 = vrot.slane %v4159, 2
    %v4170 = vadd.f32 %v4168, %v4086
    %v4171 = vxor.u32 %v4170, 2147483648
    %v4172 = vmul.f32 %v4171, 1.442695
    %v4173 = vpow.pop %v4172
    %v4174 = vadd.f32 %v4173, 1.0
    %v4175 = vrcp.pop %v4174
    %v4176 = vmul.f32 1.0, %v4175
    %v4177 = vmul.f32 %v4166, %v4155
    %v4178 = vrot.slane %v4159, 4
    %v4180 = vadd.f32 %v4178, %v4177
    %v4181 = vtanh.pop %v4180
    %v4182 = vsub.f32 1.0, %v4176
    %v4183 = vmul.f32 %v4182, %v4181
    %v4184 = vmul.f32 %v4176, %v4015
    %v4185 = vadd.f32 %v4183, %v4184
    %4186 = vst [vmem:[#allocation2 + $0x2e] sm:$0x3] %v4185
    %v4187 = vld [vmem:[#allocation2] sm:$0xff]
    %v4188 = vld [vmem:[#allocation2 + $0x8] sm:$0xff]
    %v4189 = vld [vmem:[#allocation2 + $0x10] sm:$0xff]
    %v4190 = vld [vmem:[#allocation2 + $0x18] sm:$0xff]
    %v4191 = vld [vmem:[#allocation2 + $0x20] sm:$0xff]
    %v4192 = vld [vmem:[#allocation2 + $0x28] sm:$0xff]
    %v4193 = vld [vmem:[#allocation5] sm:$0xff]
    %v4194 = vld [vmem:[#allocation5 + $0x8] sm:$0xff]
    %v4195 = vld [vmem:[#allocation5 + $0x10] sm:$0xff]
    %v4196 = vld [vmem:[#allocation5 + $0x18] sm:$0xff]
    %v4197 = vld [vmem:[#allocation5 + $0x20] sm:$0xff]
    %v4198 = vld [vmem:[#allocation5 + $0x28] sm:$0xff]
    %v4199 = vld [vmem:[#allocation5 + $0x30] sm:$0xff]
    %v4200 = vld [vmem:[#allocation5 + $0x38] sm:$0xff]
    %v4201 = vld [vmem:[#allocation5 + $0x40] sm:$0xff]
    %v4202 = vld [vmem:[#allocation5 + $0x48] sm:$0xff]
    %v4203 = vld [vmem:[#allocation5 + $0x50] sm:$0xff]
    %v4204 = vld [vmem:[#allocation5 + $0x58] sm:$0xff]
    %v4205 = vld [vmem:[#allocation5 + $0x60] sm:$0xff]
    %v4206 = vld [vmem:[#allocation5 + $0x68] sm:$0xff]
    %v4207 = vld [vmem:[#allocation5 + $0x70] sm:$0xff]
    %v4208 = vld [vmem:[#allocation5 + $0x78] sm:$0xff]
    %v4209 = vld [vmem:[#allocation5 + $0x80] sm:$0xff]
    %v4210 = vld [vmem:[#allocation5 + $0x88] sm:$0xff]
    %v4211 = vld [vmem:[#allocation5 + $0x90] sm:$0xff]
    %v4212 = vld [vmem:[#allocation5 + $0x98] sm:$0xff]
    %v4213 = vld [vmem:[#allocation5 + $0xa0] sm:$0xff]
    %v4214 = vld [vmem:[#allocation5 + $0xa8] sm:$0xff]
    %v4215 = vld [vmem:[#allocation5 + $0xb0] sm:$0xff]
    %v4216 = vld [vmem:[#allocation5 + $0xb8] sm:$0xff]
    %v4217 = vld [vmem:[#allocation5 + $0xc0] sm:$0xff]
    %v4218 = vld [vmem:[#allocation5 + $0xc8] sm:$0xff]
    %v4219 = vld [vmem:[#allocation5 + $0xd0] sm:$0xff]
    %v4220 = vld [vmem:[#allocation5 + $0xd8] sm:$0xff]
    %v4221 = vld [vmem:[#allocation5 + $0xe0] sm:$0xff]
    %v4222 = vld [vmem:[#allocation5 + $0xe8] sm:$0xff]
    %v4223 = vld [vmem:[#allocation5 + $0xf0] sm:$0xff]
    %v4224 = vld [vmem:[#allocation5 + $0xf8] sm:$0xff]
    %v4225 = vld [vmem:[#allocation5 + $0x100] sm:$0xff]
    %v4226 = vld [vmem:[#allocation5 + $0x108] sm:$0xff]
    %v4227 = vld [vmem:[#allocation5 + $0x110] sm:$0xff]
    %v4228 = vld [vmem:[#allocation5 + $0x118] sm:$0xff]
    %v4229 = vld [vmem:[#allocation5 + $0x120] sm:$0xff]
    %v4230 = vld [vmem:[#allocation5 + $0x128] sm:$0xff]
    %v4231 = vld [vmem:[#allocation5 + $0x130] sm:$0xff]
    %v4232 = vld [vmem:[#allocation5 + $0x138] sm:$0xff]
    %v4233 = vld [vmem:[#allocation5 + $0x140] sm:$0xff]
    %v4234 = vld [vmem:[#allocation5 + $0x148] sm:$0xff]
    %v4235 = vld [vmem:[#allocation5 + $0x150] sm:$0xff]
    %v4236 = vld [vmem:[#allocation5 + $0x158] sm:$0xff]
    %v4237 = vld [vmem:[#allocation5 + $0x160] sm:$0xff]
    %v4238 = vld [vmem:[#allocation5 + $0x168] sm:$0xff]
    %v4239 = vld [vmem:[#allocation5 + $0x170] sm:$0xff]
    %v4240 = vld [vmem:[#allocation5 + $0x178] sm:$0xff]
    %v4241 = vld [vmem:[#allocation5 + $0x180] sm:$0xff]
    %v4242 = vld [vmem:[#allocation5 + $0x188] sm:$0xff]
    %v4243 = vld [vmem:[#allocation5 + $0x190] sm:$0xff]
    %v4244 = vld [vmem:[#allocation5 + $0x198] sm:$0xff]
    %v4245 = vld [vmem:[#allocation5 + $0x1a0] sm:$0xff]
    %v4246 = vld [vmem:[#allocation5 + $0x1a8] sm:$0xff]
    %v4247 = vld [vmem:[#allocation5 + $0x1b0] sm:$0xff]
    %v4248 = vld [vmem:[#allocation5 + $0x1b8] sm:$0xff]
    %v4249 = vld [vmem:[#allocation5 + $0x1c0] sm:$0xff]
    %v4250 = vld [vmem:[#allocation5 + $0x1c8] sm:$0xff]
    %v4251 = vld [vmem:[#allocation5 + $0x1d0] sm:$0xff]
    %v4252 = vld [vmem:[#allocation5 + $0x1d8] sm:$0xff]
    %v4253 = vld [vmem:[#allocation5 + $0x1e0] sm:$0xff]
    %v4254 = vld [vmem:[#allocation5 + $0x1e8] sm:$0xff]
    %v4255 = vld [vmem:[#allocation5 + $0x1f0] sm:$0xff]
    %v4256 = vld [vmem:[#allocation5 + $0x1f8] sm:$0xff]
    %v4257 = vld [vmem:[#allocation5 + $0x200] sm:$0xff]
    %v4258 = vld [vmem:[#allocation5 + $0x208] sm:$0xff]
    %v4259 = vld [vmem:[#allocation5 + $0x210] sm:$0xff]
    %v4260 = vld [vmem:[#allocation5 + $0x218] sm:$0xff]
    %v4261 = vld [vmem:[#allocation5 + $0x220] sm:$0xff]
    %v4262 = vld [vmem:[#allocation5 + $0x228] sm:$0xff]
    %v4263 = vld [vmem:[#allocation5 + $0x230] sm:$0xff]
    %v4264 = vld [vmem:[#allocation5 + $0x238] sm:$0xff]
    %v4265 = vld [vmem:[#allocation5 + $0x240] sm:$0xff]
    %v4266 = vld [vmem:[#allocation5 + $0x248] sm:$0xff]
    %v4267 = vld [vmem:[#allocation5 + $0x250] sm:$0xff]
    %v4268 = vld [vmem:[#allocation5 + $0x258] sm:$0xff]
    %v4269 = vld [vmem:[#allocation5 + $0x260] sm:$0xff]
    %v4270 = vld [vmem:[#allocation5 + $0x268] sm:$0xff]
    %v4271 = vld [vmem:[#allocation5 + $0x270] sm:$0xff]
    %v4272 = vld [vmem:[#allocation5 + $0x278] sm:$0xff]
    %v4273 = vld [vmem:[#allocation5 + $0x280] sm:$0xff]
    %v4274 = vld [vmem:[#allocation5 + $0x288] sm:$0xff]
    %v4275 = vld [vmem:[#allocation5 + $0x290] sm:$0xff]
    %v4276 = vld [vmem:[#allocation5 + $0x298] sm:$0xff]
    %v4277 = vld [vmem:[#allocation5 + $0x2a0] sm:$0xff]
    %v4278 = vld [vmem:[#allocation5 + $0x2a8] sm:$0xff]
    %v4279 = vld [vmem:[#allocation5 + $0x2b0] sm:$0xff]
    %v4280 = vld [vmem:[#allocation5 + $0x2b8] sm:$0xff]
    %v4281 = vld [vmem:[#allocation5 + $0x2c0] sm:$0xff]
    %v4282 = vld [vmem:[#allocation5 + $0x2c8] sm:$0xff]
    %v4283 = vld [vmem:[#allocation5 + $0x2d0] sm:$0xff]
    %v4284 = vld [vmem:[#allocation5 + $0x2d8] sm:$0xff]
    %v4285 = vld [vmem:[#allocation5 + $0x2e0] sm:$0xff]
    %v4286 = vld [vmem:[#allocation5 + $0x2e8] sm:$0xff]
    %v4287 = vld [vmem:[#allocation5 + $0x2f0] sm:$0xff]
    %v4288 = vld [vmem:[#allocation5 + $0x2f8] sm:$0xff]
    %v4289 = vld [vmem:[#allocation5 + $0x300] sm:$0xff]
    %v4290 = vld [vmem:[#allocation5 + $0x308] sm:$0xff]
    %v4291 = vld [vmem:[#allocation5 + $0x310] sm:$0xff]
    %v4292 = vld [vmem:[#allocation5 + $0x318] sm:$0xff]
    %v4293 = vld [vmem:[#allocation5 + $0x320] sm:$0xff]
    %v4294 = vld [vmem:[#allocation5 + $0x328] sm:$0xff]
    %v4295 = vld [vmem:[#allocation5 + $0x330] sm:$0xff]
    %v4296 = vld [vmem:[#allocation5 + $0x338] sm:$0xff]
    %v4297 = vld [vmem:[#allocation5 + $0x340] sm:$0xff]
    %v4298 = vld [vmem:[#allocation5 + $0x348] sm:$0xff]
    %v4299 = vld [vmem:[#allocation5 + $0x350] sm:$0xff]
    %v4300 = vld [vmem:[#allocation5 + $0x358] sm:$0xff]
    %v4301 = vld [vmem:[#allocation5 + $0x360] sm:$0xff]
    %v4302 = vld [vmem:[#allocation5 + $0x368] sm:$0xff]
    %v4303 = vld [vmem:[#allocation5 + $0x370] sm:$0xff]
    %v4304 = vld [vmem:[#allocation5 + $0x378] sm:$0xff]
    %v4305 = vld [vmem:[#allocation5 + $0x380] sm:$0xff]
    %v4306 = vld [vmem:[#allocation5 + $0x388] sm:$0xff]
    %v4307 = vld [vmem:[#allocation5 + $0x390] sm:$0xff]
    %v4308 = vld [vmem:[#allocation5 + $0x398] sm:$0xff]
    %v4309 = vld [vmem:[#allocation5 + $0x3a0] sm:$0xff]
    %v4310 = vld [vmem:[#allocation5 + $0x3a8] sm:$0xff]
    %v4311 = vld [vmem:[#allocation5 + $0x3b0] sm:$0xff]
    %v4312 = vld [vmem:[#allocation5 + $0x3b8] sm:$0xff]
    %v4313 = vld [vmem:[#allocation5 + $0x3c0] sm:$0xff]
    %v4314 = vld [vmem:[#allocation5 + $0x3c8] sm:$0xff]
    %v4315 = vld [vmem:[#allocation5 + $0x3d0] sm:$0xff]
    %v4316 = vld [vmem:[#allocation5 + $0x3d8] sm:$0xff]
    %v4317 = vld [vmem:[#allocation5 + $0x3e0] sm:$0xff]
    %v4318 = vld [vmem:[#allocation5 + $0x3e8] sm:$0xff]
    %v4319 = vld [vmem:[#allocation5 + $0x3f0] sm:$0xff]
    %v4320 = vld [vmem:[#allocation5 + $0x3f8] sm:$0xff]
    %v4321 = vld [vmem:[#allocation5 + $0x400] sm:$0xff]
    %v4322 = vld [vmem:[#allocation5 + $0x408] sm:$0xff]
    %v4323 = vld [vmem:[#allocation5 + $0x410] sm:$0xff]
    %v4324 = vld [vmem:[#allocation5 + $0x418] sm:$0xff]
    %v4325 = vld [vmem:[#allocation5 + $0x420] sm:$0xff]
    %v4326 = vld [vmem:[#allocation5 + $0x428] sm:$0xff]
    %v4327 = vld [vmem:[#allocation5 + $0x430] sm:$0xff]
    %v4328 = vld [vmem:[#allocation5 + $0x438] sm:$0xff]
    %v4329 = vld [vmem:[#allocation5 + $0x440] sm:$0xff]
    %v4330 = vld [vmem:[#allocation5 + $0x448] sm:$0xff]
    %v4331 = vld [vmem:[#allocation5 + $0x450] sm:$0xff]
    %v4332 = vld [vmem:[#allocation5 + $0x458] sm:$0xff]
    %v4333 = vld [vmem:[#allocation5 + $0x460] sm:$0xff]
    %v4334 = vld [vmem:[#allocation5 + $0x468] sm:$0xff]
    %v4335 = vld [vmem:[#allocation5 + $0x470] sm:$0xff]
    %v4336 = vld [vmem:[#allocation5 + $0x478] sm:$0xff]
    %v4337 = vld [vmem:[#allocation5 + $0x480] sm:$0xff]
    %v4338 = vld [vmem:[#allocation5 + $0x488] sm:$0xff]
    %v4339 = vld [vmem:[#allocation5 + $0x490] sm:$0xff]
    %v4340 = vld [vmem:[#allocation5 + $0x498] sm:$0xff]
    %v4341 = vld [vmem:[#allocation5 + $0x4a0] sm:$0xff]
    %v4342 = vld [vmem:[#allocation5 + $0x4a8] sm:$0xff]
    %v4343 = vld [vmem:[#allocation5 + $0x4b0] sm:$0xff]
    %v4344 = vld [vmem:[#allocation5 + $0x4b8] sm:$0xff]
    %v4345 = vld [vmem:[#allocation5 + $0x4c0] sm:$0xff]
    %v4346 = vld [vmem:[#allocation5 + $0x4c8] sm:$0xff]
    %v4347 = vld [vmem:[#allocation5 + $0x4d0] sm:$0xff]
    %v4348 = vld [vmem:[#allocation5 + $0x4d8] sm:$0xff]
    %v4349 = vld [vmem:[#allocation5 + $0x4e0] sm:$0xff]
    %v4350 = vld [vmem:[#allocation5 + $0x4e8] sm:$0xff]
    %v4351 = vld [vmem:[#allocation5 + $0x4f0] sm:$0xff]
    %v4352 = vld [vmem:[#allocation5 + $0x4f8] sm:$0xff]
    %v4353 = vld [vmem:[#allocation5 + $0x500] sm:$0xff]
    %v4354 = vld [vmem:[#allocation5 + $0x508] sm:$0xff]
    %v4355 = vld [vmem:[#allocation5 + $0x510] sm:$0xff]
    %v4356 = vld [vmem:[#allocation5 + $0x518] sm:$0xff]
    %v4357 = vld [vmem:[#allocation5 + $0x520] sm:$0xff]
    %v4358 = vld [vmem:[#allocation5 + $0x528] sm:$0xff]
    %v4359 = vld [vmem:[#allocation5 + $0x530] sm:$0xff]
    %v4360 = vld [vmem:[#allocation5 + $0x538] sm:$0xff]
    %v4361 = vld [vmem:[#allocation5 + $0x540] sm:$0xff]
    %v4362 = vld [vmem:[#allocation5 + $0x548] sm:$0xff]
    %v4363 = vld [vmem:[#allocation5 + $0x550] sm:$0xff]
    %v4364 = vld [vmem:[#allocation5 + $0x558] sm:$0xff]
    %v4365 = vld [vmem:[#allocation5 + $0x560] sm:$0xff]
    %v4366 = vld [vmem:[#allocation5 + $0x568] sm:$0xff]
    %v4367 = vld [vmem:[#allocation5 + $0x570] sm:$0xff]
    %v4368 = vld [vmem:[#allocation5 + $0x578] sm:$0xff]
    %v4369 = vld [vmem:[#allocation5 + $0x580] sm:$0xff]
    %v4370 = vld [vmem:[#allocation5 + $0x588] sm:$0xff]
    %v4371 = vld [vmem:[#allocation5 + $0x590] sm:$0xff]
    %v4372 = vld [vmem:[#allocation5 + $0x598] sm:$0xff]
    %v4373 = vld [vmem:[#allocation5 + $0x5a0] sm:$0xff]
    %v4374 = vld [vmem:[#allocation5 + $0x5a8] sm:$0xff]
    %v4375 = vld [vmem:[#allocation5 + $0x5b0] sm:$0xff]
    %v4376 = vld [vmem:[#allocation5 + $0x5b8] sm:$0xff]
    %v4377 = vld [vmem:[#allocation5 + $0x5c0] sm:$0xff]
    %v4378 = vld [vmem:[#allocation5 + $0x5c8] sm:$0xff]
    %v4379 = vld [vmem:[#allocation5 + $0x5d0] sm:$0xff]
    %v4380 = vld [vmem:[#allocation5 + $0x5d8] sm:$0xff]
    %v4381 = vld [vmem:[#allocation5 + $0x5e0] sm:$0xff]
    %v4382 = vld [vmem:[#allocation5 + $0x5e8] sm:$0xff]
    %v4383 = vld [vmem:[#allocation5 + $0x5f0] sm:$0xff]
    %v4384 = vld [vmem:[#allocation5 + $0x5f8] sm:$0xff]
    %v4385 = vld [vmem:[#allocation5 + $0x600] sm:$0xff]
    %v4386 = vld [vmem:[#allocation5 + $0x608] sm:$0xff]
    %v4387 = vld [vmem:[#allocation5 + $0x610] sm:$0xff]
    %v4388 = vld [vmem:[#allocation5 + $0x618] sm:$0xff]
    %v4389 = vld [vmem:[#allocation5 + $0x620] sm:$0xff]
    %v4390 = vld [vmem:[#allocation5 + $0x628] sm:$0xff]
    %v4391 = vld [vmem:[#allocation5 + $0x630] sm:$0xff]
    %v4392 = vld [vmem:[#allocation5 + $0x638] sm:$0xff]
    %v4393 = vld [vmem:[#allocation5 + $0x640] sm:$0xff]
    %v4394 = vld [vmem:[#allocation5 + $0x648] sm:$0xff]
    %v4395 = vld [vmem:[#allocation5 + $0x650] sm:$0xff]
    %v4396 = vld [vmem:[#allocation5 + $0x658] sm:$0xff]
    %v4397 = vld [vmem:[#allocation5 + $0x660] sm:$0xff]
    %v4398 = vld [vmem:[#allocation5 + $0x668] sm:$0xff]
    %v4399 = vld [vmem:[#allocation5 + $0x670] sm:$0xff]
    %v4400 = vld [vmem:[#allocation5 + $0x678] sm:$0xff]
    %v4401 = vld [vmem:[#allocation5 + $0x680] sm:$0xff]
    %v4402 = vld [vmem:[#allocation5 + $0x688] sm:$0xff]
    %v4403 = vld [vmem:[#allocation5 + $0x690] sm:$0xff]
    %v4404 = vld [vmem:[#allocation5 + $0x698] sm:$0xff]
    %v4405 = vld [vmem:[#allocation5 + $0x6a0] sm:$0xff]
    %v4406 = vld [vmem:[#allocation5 + $0x6a8] sm:$0xff]
    %v4407 = vld [vmem:[#allocation5 + $0x6b0] sm:$0xff]
    %v4408 = vld [vmem:[#allocation5 + $0x6b8] sm:$0xff]
    %v4409 = vld [vmem:[#allocation5 + $0x6c0] sm:$0xff]
    %v4410 = vld [vmem:[#allocation5 + $0x6c8] sm:$0xff]
    %v4411 = vld [vmem:[#allocation5 + $0x6d0] sm:$0xff]
    %v4412 = vld [vmem:[#allocation5 + $0x6d8] sm:$0xff]
    %v4413 = vld [vmem:[#allocation5 + $0x6e0] sm:$0xff]
    %v4414 = vld [vmem:[#allocation5 + $0x6e8] sm:$0xff]
    %v4415 = vld [vmem:[#allocation5 + $0x6f0] sm:$0xff]
    %v4416 = vld [vmem:[#allocation5 + $0x6f8] sm:$0xff]
    %v4417 = vld [vmem:[#allocation5 + $0x700] sm:$0xff]
    %v4418 = vld [vmem:[#allocation5 + $0x708] sm:$0xff]
    %v4419 = vld [vmem:[#allocation5 + $0x710] sm:$0xff]
    %v4420 = vld [vmem:[#allocation5 + $0x718] sm:$0xff]
    %v4421 = vld [vmem:[#allocation5 + $0x720] sm:$0xff]
    %v4422 = vld [vmem:[#allocation5 + $0x728] sm:$0xff]
    %v4423 = vld [vmem:[#allocation5 + $0x730] sm:$0xff]
    %v4424 = vld [vmem:[#allocation5 + $0x738] sm:$0xff]
    %v4425 = vld [vmem:[#allocation5 + $0x740] sm:$0xff]
    %v4426 = vld [vmem:[#allocation5 + $0x748] sm:$0xff]
    %v4427 = vld [vmem:[#allocation5 + $0x750] sm:$0xff]
    %v4428 = vld [vmem:[#allocation5 + $0x758] sm:$0xff]
    %v4429 = vld [vmem:[#allocation5 + $0x760] sm:$0xff]
    %v4430 = vld [vmem:[#allocation5 + $0x768] sm:$0xff]
    %v4431 = vld [vmem:[#allocation5 + $0x770] sm:$0xff]
    %v4432 = vld [vmem:[#allocation5 + $0x778] sm:$0xff]
    %v4433 = vld [vmem:[#allocation5 + $0x780] sm:$0xff]
    %v4434 = vld [vmem:[#allocation5 + $0x788] sm:$0xff]
    %v4435 = vld [vmem:[#allocation5 + $0x790] sm:$0xff]
    %v4436 = vld [vmem:[#allocation5 + $0x798] sm:$0xff]
    %v4437 = vld [vmem:[#allocation5 + $0x7a0] sm:$0xff]
    %v4438 = vld [vmem:[#allocation5 + $0x7a8] sm:$0xff]
    %v4439 = vld [vmem:[#allocation5 + $0x7b0] sm:$0xff]
    %v4440 = vld [vmem:[#allocation5 + $0x7b8] sm:$0xff]
    %v4441 = vld [vmem:[#allocation5 + $0x7c0] sm:$0xff]
    %v4442 = vld [vmem:[#allocation5 + $0x7c8] sm:$0xff]
    %v4443 = vld [vmem:[#allocation5 + $0x7d0] sm:$0xff]
    %v4444 = vld [vmem:[#allocation5 + $0x7d8] sm:$0xff]
    %v4445 = vld [vmem:[#allocation5 + $0x7e0] sm:$0xff]
    %v4446 = vld [vmem:[#allocation5 + $0x7e8] sm:$0xff]
    %v4447 = vld [vmem:[#allocation5 + $0x7f0] sm:$0xff]
    %v4448 = vld [vmem:[#allocation5 + $0x7f8] sm:$0xff]
    %v4449 = vld [vmem:[#allocation5 + $0x800] sm:$0xff]
    %v4450 = vld [vmem:[#allocation5 + $0x808] sm:$0xff]
    %v4451 = vld [vmem:[#allocation5 + $0x810] sm:$0xff]
    %v4452 = vld [vmem:[#allocation5 + $0x818] sm:$0xff]
    %v4453 = vld [vmem:[#allocation5 + $0x820] sm:$0xff]
    %v4454 = vld [vmem:[#allocation5 + $0x828] sm:$0xff]
    %v4455 = vld [vmem:[#allocation5 + $0x830] sm:$0xff]
    %v4456 = vld [vmem:[#allocation5 + $0x838] sm:$0xff]
    %v4457 = vld [vmem:[#allocation5 + $0x840] sm:$0xff]
    %v4458 = vld [vmem:[#allocation5 + $0x848] sm:$0xff]
    %v4459 = vld [vmem:[#allocation5 + $0x850] sm:$0xff]
    %v4460 = vld [vmem:[#allocation5 + $0x858] sm:$0xff]
    %v4461 = vld [vmem:[#allocation5 + $0x860] sm:$0xff]
    %v4462 = vld [vmem:[#allocation5 + $0x868] sm:$0xff]
    %v4463 = vld [vmem:[#allocation5 + $0x870] sm:$0xff]
    %v4464 = vld [vmem:[#allocation5 + $0x878] sm:$0xff]
    %v4465 = vld [vmem:[#allocation5 + $0x880] sm:$0xff]
    %v4466 = vld [vmem:[#allocation5 + $0x888] sm:$0xff]
    %v4467 = vld [vmem:[#allocation5 + $0x890] sm:$0xff]
    %v4468 = vld [vmem:[#allocation5 + $0x898] sm:$0xff]
    %v4469 = vld [vmem:[#allocation5 + $0x8a0] sm:$0xff]
    %v4470 = vld [vmem:[#allocation5 + $0x8a8] sm:$0xff]
    %v4471 = vld [vmem:[#allocation5 + $0x8b0] sm:$0xff]
    %v4472 = vld [vmem:[#allocation5 + $0x8b8] sm:$0xff]
    %v4473 = vld [vmem:[#allocation5 + $0x8c0] sm:$0xff]
    %v4474 = vld [vmem:[#allocation5 + $0x8c8] sm:$0xff]
    %v4475 = vld [vmem:[#allocation5 + $0x8d0] sm:$0xff]
    %v4476 = vld [vmem:[#allocation5 + $0x8d8] sm:$0xff]
    %v4477 = vld [vmem:[#allocation5 + $0x8e0] sm:$0xff]
    %v4478 = vld [vmem:[#allocation5 + $0x8e8] sm:$0xff]
    %v4479 = vld [vmem:[#allocation5 + $0x8f0] sm:$0xff]
    %v4480 = vld [vmem:[#allocation5 + $0x8f8] sm:$0xff]
    %v4481 = vld [vmem:[#allocation5 + $0x900] sm:$0xff]
    %v4482 = vld [vmem:[#allocation5 + $0x908] sm:$0xff]
    %v4483 = vld [vmem:[#allocation5 + $0x910] sm:$0xff]
    %v4484 = vld [vmem:[#allocation5 + $0x918] sm:$0xff]
    %v4485 = vld [vmem:[#allocation5 + $0x920] sm:$0xff]
    %v4486 = vld [vmem:[#allocation5 + $0x928] sm:$0xff]
    %v4487 = vld [vmem:[#allocation5 + $0x930] sm:$0xff]
    %v4488 = vld [vmem:[#allocation5 + $0x938] sm:$0xff]
    %v4489 = vld [vmem:[#allocation5 + $0x940] sm:$0xff]
    %v4490 = vld [vmem:[#allocation5 + $0x948] sm:$0xff]
    %v4491 = vld [vmem:[#allocation5 + $0x950] sm:$0xff]
    %v4492 = vld [vmem:[#allocation5 + $0x958] sm:$0xff]
    %v4493 = vld [vmem:[#allocation5 + $0x960] sm:$0xff]
    %v4494 = vld [vmem:[#allocation5 + $0x968] sm:$0xff]
    %v4495 = vld [vmem:[#allocation5 + $0x970] sm:$0xff]
    %v4496 = vld [vmem:[#allocation5 + $0x978] sm:$0xff]
    %v4497 = vld [vmem:[#allocation5 + $0x980] sm:$0xff]
    %v4498 = vld [vmem:[#allocation5 + $0x988] sm:$0xff]
    %v4499 = vld [vmem:[#allocation5 + $0x990] sm:$0xff]
    %v4500 = vld [vmem:[#allocation5 + $0x998] sm:$0xff]
    %v4501 = vld [vmem:[#allocation5 + $0x9a0] sm:$0xff]
    %v4502 = vld [vmem:[#allocation5 + $0x9a8] sm:$0xff]
    %v4503 = vld [vmem:[#allocation5 + $0x9b0] sm:$0xff]
    %v4504 = vld [vmem:[#allocation5 + $0x9b8] sm:$0xff]
    %v4505 = vld [vmem:[#allocation5 + $0x9c0] sm:$0xff]
    %v4506 = vld [vmem:[#allocation5 + $0x9c8] sm:$0xff]
    %v4507 = vld [vmem:[#allocation5 + $0x9d0] sm:$0xff]
    %v4508 = vld [vmem:[#allocation5 + $0x9d8] sm:$0xff]
    %v4509 = vld [vmem:[#allocation5 + $0x9e0] sm:$0xff]
    %v4510 = vld [vmem:[#allocation5 + $0x9e8] sm:$0xff]
    %v4511 = vld [vmem:[#allocation5 + $0x9f0] sm:$0xff]
    %v4512 = vld [vmem:[#allocation5 + $0x9f8] sm:$0xff]
    %v4513 = vld [vmem:[#allocation5 + $0xa00] sm:$0xff]
    %v4514 = vld [vmem:[#allocation5 + $0xa08] sm:$0xff]
    %v4515 = vld [vmem:[#allocation5 + $0xa10] sm:$0xff]
    %v4516 = vld [vmem:[#allocation5 + $0xa18] sm:$0xff]
    %v4517 = vld [vmem:[#allocation5 + $0xa20] sm:$0xff]
    %v4518 = vld [vmem:[#allocation5 + $0xa28] sm:$0xff]
    %v4519 = vld [vmem:[#allocation5 + $0xa30] sm:$0xff]
    %v4520 = vld [vmem:[#allocation5 + $0xa38] sm:$0xff]
    %v4521 = vld [vmem:[#allocation5 + $0xa40] sm:$0xff]
    %v4522 = vld [vmem:[#allocation5 + $0xa48] sm:$0xff]
    %v4523 = vld [vmem:[#allocation5 + $0xa50] sm:$0xff]
    %v4524 = vld [vmem:[#allocation5 + $0xa58] sm:$0xff]
    %v4525 = vld [vmem:[#allocation5 + $0xa60] sm:$0xff]
    %v4526 = vld [vmem:[#allocation5 + $0xa68] sm:$0xff]
    %v4527 = vld [vmem:[#allocation5 + $0xa70] sm:$0xff]
    %v4528 = vld [vmem:[#allocation5 + $0xa78] sm:$0xff]
    %v4529 = vld [vmem:[#allocation5 + $0xa80] sm:$0xff]
    %v4530 = vld [vmem:[#allocation5 + $0xa88] sm:$0xff]
    %v4531 = vld [vmem:[#allocation5 + $0xa90] sm:$0xff]
    %v4532 = vld [vmem:[#allocation5 + $0xa98] sm:$0xff]
    %v4533 = vld [vmem:[#allocation5 + $0xaa0] sm:$0xff]
    %v4534 = vld [vmem:[#allocation5 + $0xaa8] sm:$0xff]
    %v4535 = vld [vmem:[#allocation5 + $0xab0] sm:$0xff]
    %v4536 = vld [vmem:[#allocation5 + $0xab8] sm:$0xff]
    %v4537 = vld [vmem:[#allocation5 + $0xac0] sm:$0xff]
    %v4538 = vld [vmem:[#allocation5 + $0xac8] sm:$0xff]
    %v4539 = vld [vmem:[#allocation5 + $0xad0] sm:$0xff]
    %v4540 = vld [vmem:[#allocation5 + $0xad8] sm:$0xff]
    %v4541 = vld [vmem:[#allocation5 + $0xae0] sm:$0xff]
    %v4542 = vld [vmem:[#allocation5 + $0xae8] sm:$0xff]
    %v4543 = vld [vmem:[#allocation5 + $0xaf0] sm:$0xff]
    %v4544 = vld [vmem:[#allocation5 + $0xaf8] sm:$0xff]
    %v4545 = vld [vmem:[#allocation5 + $0xb00] sm:$0xff]
    %v4546 = vld [vmem:[#allocation5 + $0xb08] sm:$0xff]
    %v4547 = vld [vmem:[#allocation5 + $0xb10] sm:$0xff]
    %v4548 = vld [vmem:[#allocation5 + $0xb18] sm:$0xff]
    %v4549 = vld [vmem:[#allocation5 + $0xb20] sm:$0xff]
    %v4550 = vld [vmem:[#allocation5 + $0xb28] sm:$0xff]
    %v4551 = vld [vmem:[#allocation5 + $0xb30] sm:$0xff]
    %v4552 = vld [vmem:[#allocation5 + $0xb38] sm:$0xff]
    %v4553 = vld [vmem:[#allocation5 + $0xb40] sm:$0xff]
    %v4554 = vld [vmem:[#allocation5 + $0xb48] sm:$0xff]
    %v4555 = vld [vmem:[#allocation5 + $0xb50] sm:$0xff]
    %v4556 = vld [vmem:[#allocation5 + $0xb58] sm:$0xff]
    %v4557 = vld [vmem:[#allocation5 + $0xb60] sm:$0xff]
    %v4558 = vld [vmem:[#allocation5 + $0xb68] sm:$0xff]
    %v4559 = vld [vmem:[#allocation5 + $0xb70] sm:$0xff]
    %v4560 = vld [vmem:[#allocation5 + $0xb78] sm:$0xff]
    %v4561 = vld [vmem:[#allocation5 + $0xb80] sm:$0xff]
    %v4562 = vld [vmem:[#allocation5 + $0xb88] sm:$0xff]
    %v4563 = vld [vmem:[#allocation5 + $0xb90] sm:$0xff]
    %v4564 = vld [vmem:[#allocation5 + $0xb98] sm:$0xff]
    %v4565 = vld [vmem:[#allocation5 + $0xba0] sm:$0xff]
    %v4566 = vld [vmem:[#allocation5 + $0xba8] sm:$0xff]
    %v4567 = vld [vmem:[#allocation5 + $0xbb0] sm:$0xff]
    %v4568 = vld [vmem:[#allocation5 + $0xbb8] sm:$0xff]
    %v4569 = vld [vmem:[#allocation5 + $0xbc0] sm:$0xff]
    %v4570 = vld [vmem:[#allocation5 + $0xbc8] sm:$0xff]
    %v4571 = vld [vmem:[#allocation5 + $0xbd0] sm:$0xff]
    %v4572 = vld [vmem:[#allocation5 + $0xbd8] sm:$0xff]
    %v4573 = vld [vmem:[#allocation5 + $0xbe0] sm:$0xff]
    %v4574 = vld [vmem:[#allocation5 + $0xbe8] sm:$0xff]
    %v4575 = vld [vmem:[#allocation5 + $0xbf0] sm:$0xff]
    %v4576 = vld [vmem:[#allocation5 + $0xbf8] sm:$0xff]
    %v4577 = vld [vmem:[#allocation7] sm:$0x1]
    %v4579 = vlaneseq
    %v4580 = vshrl.u32 %v4579, 7
    %v4581 = vsub.s32 0, %v4580
    %v4582 = vrot.slane %v4577, %v4581
    %v4590 = vcombine.high %v4187, %v4187
    %v4592 = vunpack.c.l.s4 1983009808
    %v4593 = vunpack.c.0.s8 %v4592
    %v4594 = vlaneseq
    %v4595 = vshrl.u32 %v4594, 7
    %v4596 = vsub.s32 %v4593, %v4595
    %v4597 = vrot.slane %v4187, %v4596
    %v4599 = vunpack.c.l.s4 1983009808
    %v4600 = vunpack.c.0.s8 %v4599
    %v4601 = vlaneseq
    %v4602 = vshrl.u32 %v4601, 7
    %v4603 = vsub.s32 %v4600, %v4602
    %v4604 = vrot.slane %v4590, %v4603
    %v4605 = vcombine.high %v4597, %v4597
    %v4606 = vcombine.high %v4604, %v4604
    %v4607 = vcombine.high %v4188, %v4188
    %v4609 = vunpack.c.l.s4 1983009808
    %v4610 = vunpack.c.0.s8 %v4609
    %v4611 = vlaneseq
    %v4612 = vshrl.u32 %v4611, 7
    %v4613 = vsub.s32 %v4610, %v4612
    %v4614 = vrot.slane %v4188, %v4613
    %v4616 = vunpack.c.l.s4 1983009808
    %v4617 = vunpack.c.0.s8 %v4616
    %v4618 = vlaneseq
    %v4619 = vshrl.u32 %v4618, 7
    %v4620 = vsub.s32 %v4617, %v4619
    %v4621 = vrot.slane %v4607, %v4620
    %v4622 = vcombine.high %v4614, %v4614
    %v4623 = vcombine.high %v4621, %v4621
    %v4624 = vcombine.high %v4189, %v4189
    %v4626 = vunpack.c.l.s4 1983009808
    %v4627 = vunpack.c.0.s8 %v4626
    %v4628 = vlaneseq
    %v4629 = vshrl.u32 %v4628, 7
    %v4630 = vsub.s32 %v4627, %v4629
    %v4631 = vrot.slane %v4189, %v4630
    %v4633 = vunpack.c.l.s4 1983009808
    %v4634 = vunpack.c.0.s8 %v4633
    %v4635 = vlaneseq
    %v4636 = vshrl.u32 %v4635, 7
    %v4637 = vsub.s32 %v4634, %v4636
    %v4638 = vrot.slane %v4624, %v4637
    %v4639 = vcombine.high %v4631, %v4631
    %v4640 = vcombine.high %v4638, %v4638
    %v4641 = vcombine.high %v4190, %v4190
    %v4643 = vunpack.c.l.s4 1983009808
    %v4644 = vunpack.c.0.s8 %v4643
    %v4645 = vlaneseq
    %v4646 = vshrl.u32 %v4645, 7
    %v4647 = vsub.s32 %v4644, %v4646
    %v4648 = vrot.slane %v4190, %v4647
    %v4650 = vunpack.c.l.s4 1983009808
    %v4651 = vunpack.c.0.s8 %v4650
    %v4652 = vlaneseq
    %v4653 = vshrl.u32 %v4652, 7
    %v4654 = vsub.s32 %v4651, %v4653
    %v4655 = vrot.slane %v4641, %v4654
    %v4656 = vcombine.high %v4648, %v4648
    %v4657 = vcombine.high %v4655, %v4655
    %v4658 = vcombine.high %v4191, %v4191
    %v4660 = vunpack.c.l.s4 1983009808
    %v4661 = vunpack.c.0.s8 %v4660
    %v4662 = vlaneseq
    %v4663 = vshrl.u32 %v4662, 7
    %v4664 = vsub.s32 %v4661, %v4663
    %v4665 = vrot.slane %v4191, %v4664
    %v4667 = vunpack.c.l.s4 1983009808
    %v4668 = vunpack.c.0.s8 %v4667
    %v4669 = vlaneseq
    %v4670 = vshrl.u32 %v4669, 7
    %v4671 = vsub.s32 %v4668, %v4670
    %v4672 = vrot.slane %v4658, %v4671
    %v4673 = vcombine.high %v4665, %v4665
    %v4674 = vcombine.high %v4672, %v4672
    %v4675 = vcombine.high %v4192, %v4192
    %v4677 = vunpack.c.l.s4 1983009808
    %v4678 = vunpack.c.0.s8 %v4677
    %v4679 = vlaneseq
    %v4680 = vshrl.u32 %v4679, 7
    %v4681 = vsub.s32 %v4678, %v4680
    %v4682 = vrot.slane %v4192, %v4681
    %v4684 = vunpack.c.l.s4 1983009808
    %v4685 = vunpack.c.0.s8 %v4684
    %v4686 = vlaneseq
    %v4687 = vshrl.u32 %v4686, 7
    %v4688 = vsub.s32 %v4685, %v4687
    %v4689 = vrot.slane %v4675, %v4688
    %v4690 = vcombine.high %v4682, %v4682
    %v4691 = vcombine.high %v4689, %v4689
    %4716 = vmatprep.subr.mxu0 0.0
    %4717 = vmatpush1.msra.mxu0 %v4208
    %4718 = vmatprep.subr.mxu0 0.0
    %4719 = vmatpush1.msra.mxu0 %v4207
    %4720 = vmatprep.subr.mxu0 0.0
    %4721 = vmatpush1.msra.mxu0 %v4206
    %4722 = vmatprep.subr.mxu0 0.0
    %4723 = vmatpush1.msra.mxu0 %v4205
    %4724 = vmatprep.subr.mxu0 0.0
    %4725 = vmatpush1.msra.mxu0 %v4204
    %4726 = vmatprep.subr.mxu0 0.0
    %4727 = vmatpush1.msra.mxu0 %v4203
    %4728 = vmatprep.subr.mxu0 0.0
    %4729 = vmatpush1.msra.mxu0 %v4202
    %4730 = vmatprep.subr.mxu0 0.0
    %4731 = vmatpush1.msra.mxu0 %v4201
    %4732 = vmatprep.subr.mxu0 0.0
    %4733 = vmatpush1.msra.mxu0 %v4200
    %4734 = vmatprep.subr.mxu0 0.0
    %4735 = vmatpush1.msra.mxu0 %v4199
    %4736 = vmatprep.subr.mxu0 0.0
    %4737 = vmatpush1.msra.mxu0 %v4198
    %4738 = vmatprep.subr.mxu0 0.0
    %4739 = vmatpush1.msra.mxu0 %v4197
    %4740 = vmatprep.subr.mxu0 0.0
    %4741 = vmatpush1.msra.mxu0 %v4196
    %4742 = vmatprep.subr.mxu0 0.0
    %4743 = vmatpush1.msra.mxu0 %v4195
    %4744 = vmatprep.subr.mxu0 0.0
    %4745 = vmatpush1.msra.mxu0 %v4194
    %4746 = vmatprep.subr.mxu0 0.0
    %4747 = vmatpush1.msra.mxu0 %v4193
    %4748 = vmatprep.subr.mxu0 0.0
    %4749 = vmatpush2.msra.mxu0 %v4224
    %4750 = vmatprep.subr.mxu0 0.0
    %4751 = vmatpush2.msra.mxu0 %v4223
    %4752 = vmatprep.subr.mxu0 0.0
    %4753 = vmatpush2.msra.mxu0 %v4222
    %4754 = vmatprep.subr.mxu0 0.0
    %4755 = vmatpush2.msra.mxu0 %v4221
    %4756 = vmatprep.subr.mxu0 0.0
    %4757 = vmatpush2.msra.mxu0 %v4220
    %4758 = vmatprep.subr.mxu0 0.0
    %4759 = vmatpush2.msra.mxu0 %v4219
    %4760 = vmatprep.subr.mxu0 0.0
    %4761 = vmatpush2.msra.mxu0 %v4218
    %4762 = vmatprep.subr.mxu0 0.0
    %4763 = vmatpush2.msra.mxu0 %v4217
    %4764 = vmatprep.subr.mxu0 0.0
    %4765 = vmatpush2.msra.mxu0 %v4216
    %4766 = vmatprep.subr.mxu0 0.0
    %4767 = vmatpush2.msra.mxu0 %v4215
    %4768 = vmatprep.subr.mxu0 0.0
    %4769 = vmatpush2.msra.mxu0 %v4214
    %4770 = vmatprep.subr.mxu0 0.0
    %4771 = vmatpush2.msra.mxu0 %v4213
    %4772 = vmatprep.subr.mxu0 0.0
    %4773 = vmatpush2.msra.mxu0 %v4212
    %4774 = vmatprep.subr.mxu0 0.0
    %4775 = vmatpush2.msra.mxu0 %v4211
    %4776 = vmatprep.subr.mxu0 0.0
    %4777 = vmatpush2.msra.mxu0 %v4210
    %4778 = vmatprep.subr.mxu0 0.0
    %4779 = vmatpush2.msra.mxu0 %v4209
    %4780 = vmatprep.mubr.f32.mxu0 %v4605
    %4781 = vmatmul.mubr.f32.gmra.mxu0 %v4597
    %v4782 = vpop.f32.mrf.mxu0
    %v4783 = vadd.f32 %v4582, %v4782
    %v4784 = vpop.f32.mrf.mxu0
    %4785 = vdwg.mxu0
    %4786 = vmatprep.subr.mxu0 0.0
    %4787 = vmatpush1.msra.mxu0 %v4240
    %4788 = vmatprep.subr.mxu0 0.0
    %4789 = vmatpush1.msra.mxu0 %v4239
    %4790 = vmatprep.subr.mxu0 0.0
    %4791 = vmatpush1.msra.mxu0 %v4238
    %4792 = vmatprep.subr.mxu0 0.0
    %4793 = vmatpush1.msra.mxu0 %v4237
    %4794 = vmatprep.subr.mxu0 0.0
    %4795 = vmatpush1.msra.mxu0 %v4236
    %4796 = vmatprep.subr.mxu0 0.0
    %4797 = vmatpush1.msra.mxu0 %v4235
    %4798 = vmatprep.subr.mxu0 0.0
    %4799 = vmatpush1.msra.mxu0 %v4234
    %4800 = vmatprep.subr.mxu0 0.0
    %4801 = vmatpush1.msra.mxu0 %v4233
    %4802 = vmatprep.subr.mxu0 0.0
    %4803 = vmatpush1.msra.mxu0 %v4232
    %4804 = vmatprep.subr.mxu0 0.0
    %4805 = vmatpush1.msra.mxu0 %v4231
    %4806 = vmatprep.subr.mxu0 0.0
    %4807 = vmatpush1.msra.mxu0 %v4230
    %4808 = vmatprep.subr.mxu0 0.0
    %4809 = vmatpush1.msra.mxu0 %v4229
    %4810 = vmatprep.subr.mxu0 0.0
    %4811 = vmatpush1.msra.mxu0 %v4228
    %4812 = vmatprep.subr.mxu0 0.0
    %4813 = vmatpush1.msra.mxu0 %v4227
    %4814 = vmatprep.subr.mxu0 0.0
    %4815 = vmatpush1.msra.mxu0 %v4226
    %4816 = vmatprep.subr.mxu0 0.0
    %4817 = vmatpush1.msra.mxu0 %v4225
    %4818 = vmatprep.subr.mxu0 0.0
    %4819 = vmatpush2.msra.mxu0 %v4256
    %4820 = vmatprep.subr.mxu0 0.0
    %4821 = vmatpush2.msra.mxu0 %v4255
    %4822 = vmatprep.subr.mxu0 0.0
    %4823 = vmatpush2.msra.mxu0 %v4254
    %4824 = vmatprep.subr.mxu0 0.0
    %4825 = vmatpush2.msra.mxu0 %v4253
    %4826 = vmatprep.subr.mxu0 0.0
    %4827 = vmatpush2.msra.mxu0 %v4252
    %4828 = vmatprep.subr.mxu0 0.0
    %4829 = vmatpush2.msra.mxu0 %v4251
    %4830 = vmatprep.subr.mxu0 0.0
    %4831 = vmatpush2.msra.mxu0 %v4250
    %4832 = vmatprep.subr.mxu0 0.0
    %4833 = vmatpush2.msra.mxu0 %v4249
    %4834 = vmatprep.subr.mxu0 0.0
    %4835 = vmatpush2.msra.mxu0 %v4248
    %4836 = vmatprep.subr.mxu0 0.0
    %4837 = vmatpush2.msra.mxu0 %v4247
    %4838 = vmatprep.subr.mxu0 0.0
    %4839 = vmatpush2.msra.mxu0 %v4246
    %4840 = vmatprep.subr.mxu0 0.0
    %4841 = vmatpush2.msra.mxu0 %v4245
    %4842 = vmatprep.subr.mxu0 0.0
    %4843 = vmatpush2.msra.mxu0 %v4244
    %4844 = vmatprep.subr.mxu0 0.0
    %4845 = vmatpush2.msra.mxu0 %v4243
    %4846 = vmatprep.subr.mxu0 0.0
    %4847 = vmatpush2.msra.mxu0 %v4242
    %4848 = vmatprep.subr.mxu0 0.0
    %4849 = vmatpush2.msra.mxu0 %v4241
    %4850 = vmatprep.mubr.f32.mxu0 %v4606
    %4851 = vmatmul.mubr.f32.gmra.mxu0 %v4604
    %v4852 = vpop.f32.mrf.mxu0
    %v4853 = vadd.f32 %v4783, %v4852
    %v4854 = vpop.f32.mrf.mxu0
    %4855 = vdwg.mxu0
    %4856 = vmatprep.subr.mxu0 0.0
    %4857 = vmatpush1.msra.mxu0 %v4272
    %4858 = vmatprep.subr.mxu0 0.0
    %4859 = vmatpush1.msra.mxu0 %v4271
    %4860 = vmatprep.subr.mxu0 0.0
    %4861 = vmatpush1.msra.mxu0 %v4270
    %4862 = vmatprep.subr.mxu0 0.0
    %4863 = vmatpush1.msra.mxu0 %v4269
    %4864 = vmatprep.subr.mxu0 0.0
    %4865 = vmatpush1.msra.mxu0 %v4268
    %4866 = vmatprep.subr.mxu0 0.0
    %4867 = vmatpush1.msra.mxu0 %v4267
    %4868 = vmatprep.subr.mxu0 0.0
    %4869 = vmatpush1.msra.mxu0 %v4266
    %4870 = vmatprep.subr.mxu0 0.0
    %4871 = vmatpush1.msra.mxu0 %v4265
    %4872 = vmatprep.subr.mxu0 0.0
    %4873 = vmatpush1.msra.mxu0 %v4264
    %4874 = vmatprep.subr.mxu0 0.0
    %4875 = vmatpush1.msra.mxu0 %v4263
    %4876 = vmatprep.subr.mxu0 0.0
    %4877 = vmatpush1.msra.mxu0 %v4262
    %4878 = vmatprep.subr.mxu0 0.0
    %4879 = vmatpush1.msra.mxu0 %v4261
    %4880 = vmatprep.subr.mxu0 0.0
    %4881 = vmatpush1.msra.mxu0 %v4260
    %4882 = vmatprep.subr.mxu0 0.0
    %4883 = vmatpush1.msra.mxu0 %v4259
    %4884 = vmatprep.subr.mxu0 0.0
    %4885 = vmatpush1.msra.mxu0 %v4258
    %4886 = vmatprep.subr.mxu0 0.0
    %4887 = vmatpush1.msra.mxu0 %v4257
    %4888 = vmatprep.subr.mxu0 0.0
    %4889 = vmatpush2.msra.mxu0 %v4288
    %4890 = vmatprep.subr.mxu0 0.0
    %4891 = vmatpush2.msra.mxu0 %v4287
    %4892 = vmatprep.subr.mxu0 0.0
    %4893 = vmatpush2.msra.mxu0 %v4286
    %4894 = vmatprep.subr.mxu0 0.0
    %4895 = vmatpush2.msra.mxu0 %v4285
    %4896 = vmatprep.subr.mxu0 0.0
    %4897 = vmatpush2.msra.mxu0 %v4284
    %4898 = vmatprep.subr.mxu0 0.0
    %4899 = vmatpush2.msra.mxu0 %v4283
    %4900 = vmatprep.subr.mxu0 0.0
    %4901 = vmatpush2.msra.mxu0 %v4282
    %4902 = vmatprep.subr.mxu0 0.0
    %4903 = vmatpush2.msra.mxu0 %v4281
    %4904 = vmatprep.subr.mxu0 0.0
    %4905 = vmatpush2.msra.mxu0 %v4280
    %4906 = vmatprep.subr.mxu0 0.0
    %4907 = vmatpush2.msra.mxu0 %v4279
    %4908 = vmatprep.subr.mxu0 0.0
    %4909 = vmatpush2.msra.mxu0 %v4278
    %4910 = vmatprep.subr.mxu0 0.0
    %4911 = vmatpush2.msra.mxu0 %v4277
    %4912 = vmatprep.subr.mxu0 0.0
    %4913 = vmatpush2.msra.mxu0 %v4276
    %4914 = vmatprep.subr.mxu0 0.0
    %4915 = vmatpush2.msra.mxu0 %v4275
    %4916 = vmatprep.subr.mxu0 0.0
    %4917 = vmatpush2.msra.mxu0 %v4274
    %4918 = vmatprep.subr.mxu0 0.0
    %4919 = vmatpush2.msra.mxu0 %v4273
    %4920 = vmatprep.mubr.f32.mxu0 %v4622
    %4921 = vmatmul.mubr.f32.gmra.mxu0 %v4614
    %v4922 = vpop.f32.mrf.mxu0
    %v4923 = vadd.f32 %v4853, %v4922
    %v4924 = vpop.f32.mrf.mxu0
    %4925 = vdwg.mxu0
    %4926 = vmatprep.subr.mxu0 0.0
    %4927 = vmatpush1.msra.mxu0 %v4304
    %4928 = vmatprep.subr.mxu0 0.0
    %4929 = vmatpush1.msra.mxu0 %v4303
    %4930 = vmatprep.subr.mxu0 0.0
    %4931 = vmatpush1.msra.mxu0 %v4302
    %4932 = vmatprep.subr.mxu0 0.0
    %4933 = vmatpush1.msra.mxu0 %v4301
    %4934 = vmatprep.subr.mxu0 0.0
    %4935 = vmatpush1.msra.mxu0 %v4300
    %4936 = vmatprep.subr.mxu0 0.0
    %4937 = vmatpush1.msra.mxu0 %v4299
    %4938 = vmatprep.subr.mxu0 0.0
    %4939 = vmatpush1.msra.mxu0 %v4298
    %4940 = vmatprep.subr.mxu0 0.0
    %4941 = vmatpush1.msra.mxu0 %v4297
    %4942 = vmatprep.subr.mxu0 0.0
    %4943 = vmatpush1.msra.mxu0 %v4296
    %4944 = vmatprep.subr.mxu0 0.0
    %4945 = vmatpush1.msra.mxu0 %v4295
    %4946 = vmatprep.subr.mxu0 0.0
    %4947 = vmatpush1.msra.mxu0 %v4294
    %4948 = vmatprep.subr.mxu0 0.0
    %4949 = vmatpush1.msra.mxu0 %v4293
    %4950 = vmatprep.subr.mxu0 0.0
    %4951 = vmatpush1.msra.mxu0 %v4292
    %4952 = vmatprep.subr.mxu0 0.0
    %4953 = vmatpush1.msra.mxu0 %v4291
    %4954 = vmatprep.subr.mxu0 0.0
    %4955 = vmatpush1.msra.mxu0 %v4290
    %4956 = vmatprep.subr.mxu0 0.0
    %4957 = vmatpush1.msra.mxu0 %v4289
    %4958 = vmatprep.subr.mxu0 0.0
    %4959 = vmatpush2.msra.mxu0 %v4320
    %4960 = vmatprep.subr.mxu0 0.0
    %4961 = vmatpush2.msra.mxu0 %v4319
    %4962 = vmatprep.subr.mxu0 0.0
    %4963 = vmatpush2.msra.mxu0 %v4318
    %4964 = vmatprep.subr.mxu0 0.0
    %4965 = vmatpush2.msra.mxu0 %v4317
    %4966 = vmatprep.subr.mxu0 0.0
    %4967 = vmatpush2.msra.mxu0 %v4316
    %4968 = vmatprep.subr.mxu0 0.0
    %4969 = vmatpush2.msra.mxu0 %v4315
    %4970 = vmatprep.subr.mxu0 0.0
    %4971 = vmatpush2.msra.mxu0 %v4314
    %4972 = vmatprep.subr.mxu0 0.0
    %4973 = vmatpush2.msra.mxu0 %v4313
    %4974 = vmatprep.subr.mxu0 0.0
    %4975 = vmatpush2.msra.mxu0 %v4312
    %4976 = vmatprep.subr.mxu0 0.0
    %4977 = vmatpush2.msra.mxu0 %v4311
    %4978 = vmatprep.subr.mxu0 0.0
    %4979 = vmatpush2.msra.mxu0 %v4310
    %4980 = vmatprep.subr.mxu0 0.0
    %4981 = vmatpush2.msra.mxu0 %v4309
    %4982 = vmatprep.subr.mxu0 0.0
    %4983 = vmatpush2.msra.mxu0 %v4308
    %4984 = vmatprep.subr.mxu0 0.0
    %4985 = vmatpush2.msra.mxu0 %v4307
    %4986 = vmatprep.subr.mxu0 0.0
    %4987 = vmatpush2.msra.mxu0 %v4306
    %4988 = vmatprep.subr.mxu0 0.0
    %4989 = vmatpush2.msra.mxu0 %v4305
    %4990 = vmatprep.mubr.f32.mxu0 %v4623
    %4991 = vmatmul.mubr.f32.gmra.mxu0 %v4621
    %v4992 = vpop.f32.mrf.mxu0
    %v4993 = vadd.f32 %v4923, %v4992
    %v4994 = vpop.f32.mrf.mxu0
    %4995 = vdwg.mxu0
    %4996 = vmatprep.subr.mxu0 0.0
    %4997 = vmatpush1.msra.mxu0 %v4336
    %4998 = vmatprep.subr.mxu0 0.0
    %4999 = vmatpush1.msra.mxu0 %v4335
    %5000 = vmatprep.subr.mxu0 0.0
    %5001 = vmatpush1.msra.mxu0 %v4334
    %5002 = vmatprep.subr.mxu0 0.0
    %5003 = vmatpush1.msra.mxu0 %v4333
    %5004 = vmatprep.subr.mxu0 0.0
    %5005 = vmatpush1.msra.mxu0 %v4332
    %5006 = vmatprep.subr.mxu0 0.0
    %5007 = vmatpush1.msra.mxu0 %v4331
    %5008 = vmatprep.subr.mxu0 0.0
    %5009 = vmatpush1.msra.mxu0 %v4330
    %5010 = vmatprep.subr.mxu0 0.0
    %5011 = vmatpush1.msra.mxu0 %v4329
    %5012 = vmatprep.subr.mxu0 0.0
    %5013 = vmatpush1.msra.mxu0 %v4328
    %5014 = vmatprep.subr.mxu0 0.0
    %5015 = vmatpush1.msra.mxu0 %v4327
    %5016 = vmatprep.subr.mxu0 0.0
    %5017 = vmatpush1.msra.mxu0 %v4326
    %5018 = vmatprep.subr.mxu0 0.0
    %5019 = vmatpush1.msra.mxu0 %v4325
    %5020 = vmatprep.subr.mxu0 0.0
    %5021 = vmatpush1.msra.mxu0 %v4324
    %5022 = vmatprep.subr.mxu0 0.0
    %5023 = vmatpush1.msra.mxu0 %v4323
    %5024 = vmatprep.subr.mxu0 0.0
    %5025 = vmatpush1.msra.mxu0 %v4322
    %5026 = vmatprep.subr.mxu0 0.0
    %5027 = vmatpush1.msra.mxu0 %v4321
    %5028 = vmatprep.subr.mxu0 0.0
    %5029 = vmatpush2.msra.mxu0 %v4352
    %5030 = vmatprep.subr.mxu0 0.0
    %5031 = vmatpush2.msra.mxu0 %v4351
    %5032 = vmatprep.subr.mxu0 0.0
    %5033 = vmatpush2.msra.mxu0 %v4350
    %5034 = vmatprep.subr.mxu0 0.0
    %5035 = vmatpush2.msra.mxu0 %v4349
    %5036 = vmatprep.subr.mxu0 0.0
    %5037 = vmatpush2.msra.mxu0 %v4348
    %5038 = vmatprep.subr.mxu0 0.0
    %5039 = vmatpush2.msra.mxu0 %v4347
    %5040 = vmatprep.subr.mxu0 0.0
    %5041 = vmatpush2.msra.mxu0 %v4346
    %5042 = vmatprep.subr.mxu0 0.0
    %5043 = vmatpush2.msra.mxu0 %v4345
    %5044 = vmatprep.subr.mxu0 0.0
    %5045 = vmatpush2.msra.mxu0 %v4344
    %5046 = vmatprep.subr.mxu0 0.0
    %5047 = vmatpush2.msra.mxu0 %v4343
    %5048 = vmatprep.subr.mxu0 0.0
    %5049 = vmatpush2.msra.mxu0 %v4342
    %5050 = vmatprep.subr.mxu0 0.0
    %5051 = vmatpush2.msra.mxu0 %v4341
    %5052 = vmatprep.subr.mxu0 0.0
    %5053 = vmatpush2.msra.mxu0 %v4340
    %5054 = vmatprep.subr.mxu0 0.0
    %5055 = vmatpush2.msra.mxu0 %v4339
    %5056 = vmatprep.subr.mxu0 0.0
    %5057 = vmatpush2.msra.mxu0 %v4338
    %5058 = vmatprep.subr.mxu0 0.0
    %5059 = vmatpush2.msra.mxu0 %v4337
    %5060 = vmatprep.mubr.f32.mxu0 %v4639
    %5061 = vmatmul.mubr.f32.gmra.mxu0 %v4631
    %v5062 = vpop.f32.mrf.mxu0
    %v5063 = vadd.f32 %v4993, %v5062
    %v5064 = vpop.f32.mrf.mxu0
    %5065 = vdwg.mxu0
    %5066 = vmatprep.subr.mxu0 0.0
    %5067 = vmatpush1.msra.mxu0 %v4368
    %5068 = vmatprep.subr.mxu0 0.0
    %5069 = vmatpush1.msra.mxu0 %v4367
    %5070 = vmatprep.subr.mxu0 0.0
    %5071 = vmatpush1.msra.mxu0 %v4366
    %5072 = vmatprep.subr.mxu0 0.0
    %5073 = vmatpush1.msra.mxu0 %v4365
    %5074 = vmatprep.subr.mxu0 0.0
    %5075 = vmatpush1.msra.mxu0 %v4364
    %5076 = vmatprep.subr.mxu0 0.0
    %5077 = vmatpush1.msra.mxu0 %v4363
    %5078 = vmatprep.subr.mxu0 0.0
    %5079 = vmatpush1.msra.mxu0 %v4362
    %5080 = vmatprep.subr.mxu0 0.0
    %5081 = vmatpush1.msra.mxu0 %v4361
    %5082 = vmatprep.subr.mxu0 0.0
    %5083 = vmatpush1.msra.mxu0 %v4360
    %5084 = vmatprep.subr.mxu0 0.0
    %5085 = vmatpush1.msra.mxu0 %v4359
    %5086 = vmatprep.subr.mxu0 0.0
    %5087 = vmatpush1.msra.mxu0 %v4358
    %5088 = vmatprep.subr.mxu0 0.0
    %5089 = vmatpush1.msra.mxu0 %v4357
    %5090 = vmatprep.subr.mxu0 0.0
    %5091 = vmatpush1.msra.mxu0 %v4356
    %5092 = vmatprep.subr.mxu0 0.0
    %5093 = vmatpush1.msra.mxu0 %v4355
    %5094 = vmatprep.subr.mxu0 0.0
    %5095 = vmatpush1.msra.mxu0 %v4354
    %5096 = vmatprep.subr.mxu0 0.0
    %5097 = vmatpush1.msra.mxu0 %v4353
    %5098 = vmatprep.subr.mxu0 0.0
    %5099 = vmatpush2.msra.mxu0 %v4384
    %5100 = vmatprep.subr.mxu0 0.0
    %5101 = vmatpush2.msra.mxu0 %v4383
    %5102 = vmatprep.subr.mxu0 0.0
    %5103 = vmatpush2.msra.mxu0 %v4382
    %5104 = vmatprep.subr.mxu0 0.0
    %5105 = vmatpush2.msra.mxu0 %v4381
    %5106 = vmatprep.subr.mxu0 0.0
    %5107 = vmatpush2.msra.mxu0 %v4380
    %5108 = vmatprep.subr.mxu0 0.0
    %5109 = vmatpush2.msra.mxu0 %v4379
    %5110 = vmatprep.subr.mxu0 0.0
    %5111 = vmatpush2.msra.mxu0 %v4378
    %5112 = vmatprep.subr.mxu0 0.0
    %5113 = vmatpush2.msra.mxu0 %v4377
    %5114 = vmatprep.subr.mxu0 0.0
    %5115 = vmatpush2.msra.mxu0 %v4376
    %5116 = vmatprep.subr.mxu0 0.0
    %5117 = vmatpush2.msra.mxu0 %v4375
    %5118 = vmatprep.subr.mxu0 0.0
    %5119 = vmatpush2.msra.mxu0 %v4374
    %5120 = vmatprep.subr.mxu0 0.0
    %5121 = vmatpush2.msra.mxu0 %v4373
    %5122 = vmatprep.subr.mxu0 0.0
    %5123 = vmatpush2.msra.mxu0 %v4372
    %5124 = vmatprep.subr.mxu0 0.0
    %5125 = vmatpush2.msra.mxu0 %v4371
    %5126 = vmatprep.subr.mxu0 0.0
    %5127 = vmatpush2.msra.mxu0 %v4370
    %5128 = vmatprep.subr.mxu0 0.0
    %5129 = vmatpush2.msra.mxu0 %v4369
    %5130 = vmatprep.mubr.f32.mxu0 %v4640
    %5131 = vmatmul.mubr.f32.gmra.mxu0 %v4638
    %v5132 = vpop.f32.mrf.mxu0
    %v5133 = vadd.f32 %v5063, %v5132
    %v5134 = vpop.f32.mrf.mxu0
    %5135 = vdwg.mxu0
    %5136 = vmatprep.subr.mxu0 0.0
    %5137 = vmatpush1.msra.mxu0 %v4400
    %5138 = vmatprep.subr.mxu0 0.0
    %5139 = vmatpush1.msra.mxu0 %v4399
    %5140 = vmatprep.subr.mxu0 0.0
    %5141 = vmatpush1.msra.mxu0 %v4398
    %5142 = vmatprep.subr.mxu0 0.0
    %5143 = vmatpush1.msra.mxu0 %v4397
    %5144 = vmatprep.subr.mxu0 0.0
    %5145 = vmatpush1.msra.mxu0 %v4396
    %5146 = vmatprep.subr.mxu0 0.0
    %5147 = vmatpush1.msra.mxu0 %v4395
    %5148 = vmatprep.subr.mxu0 0.0
    %5149 = vmatpush1.msra.mxu0 %v4394
    %5150 = vmatprep.subr.mxu0 0.0
    %5151 = vmatpush1.msra.mxu0 %v4393
    %5152 = vmatprep.subr.mxu0 0.0
    %5153 = vmatpush1.msra.mxu0 %v4392
    %5154 = vmatprep.subr.mxu0 0.0
    %5155 = vmatpush1.msra.mxu0 %v4391
    %5156 = vmatprep.subr.mxu0 0.0
    %5157 = vmatpush1.msra.mxu0 %v4390
    %5158 = vmatprep.subr.mxu0 0.0
    %5159 = vmatpush1.msra.mxu0 %v4389
    %5160 = vmatprep.subr.mxu0 0.0
    %5161 = vmatpush1.msra.mxu0 %v4388
    %5162 = vmatprep.subr.mxu0 0.0
    %5163 = vmatpush1.msra.mxu0 %v4387
    %5164 = vmatprep.subr.mxu0 0.0
    %5165 = vmatpush1.msra.mxu0 %v4386
    %5166 = vmatprep.subr.mxu0 0.0
    %5167 = vmatpush1.msra.mxu0 %v4385
    %5168 = vmatprep.subr.mxu0 0.0
    %5169 = vmatpush2.msra.mxu0 %v4416
    %5170 = vmatprep.subr.mxu0 0.0
    %5171 = vmatpush2.msra.mxu0 %v4415
    %5172 = vmatprep.subr.mxu0 0.0
    %5173 = vmatpush2.msra.mxu0 %v4414
    %5174 = vmatprep.subr.mxu0 0.0
    %5175 = vmatpush2.msra.mxu0 %v4413
    %5176 = vmatprep.subr.mxu0 0.0
    %5177 = vmatpush2.msra.mxu0 %v4412
    %5178 = vmatprep.subr.mxu0 0.0
    %5179 = vmatpush2.msra.mxu0 %v4411
    %5180 = vmatprep.subr.mxu0 0.0
    %5181 = vmatpush2.msra.mxu0 %v4410
    %5182 = vmatprep.subr.mxu0 0.0
    %5183 = vmatpush2.msra.mxu0 %v4409
    %5184 = vmatprep.subr.mxu0 0.0
    %5185 = vmatpush2.msra.mxu0 %v4408
    %5186 = vmatprep.subr.mxu0 0.0
    %5187 = vmatpush2.msra.mxu0 %v4407
    %5188 = vmatprep.subr.mxu0 0.0
    %5189 = vmatpush2.msra.mxu0 %v4406
    %5190 = vmatprep.subr.mxu0 0.0
    %5191 = vmatpush2.msra.mxu0 %v4405
    %5192 = vmatprep.subr.mxu0 0.0
    %5193 = vmatpush2.msra.mxu0 %v4404
    %5194 = vmatprep.subr.mxu0 0.0
    %5195 = vmatpush2.msra.mxu0 %v4403
    %5196 = vmatprep.subr.mxu0 0.0
    %5197 = vmatpush2.msra.mxu0 %v4402
    %5198 = vmatprep.subr.mxu0 0.0
    %5199 = vmatpush2.msra.mxu0 %v4401
    %5200 = vmatprep.mubr.f32.mxu0 %v4656
    %5201 = vmatmul.mubr.f32.gmra.mxu0 %v4648
    %v5202 = vpop.f32.mrf.mxu0
    %v5203 = vadd.f32 %v5133, %v5202
    %v5204 = vpop.f32.mrf.mxu0
    %5205 = vdwg.mxu0
    %5206 = vmatprep.subr.mxu0 0.0
    %5207 = vmatpush1.msra.mxu0 %v4432
    %5208 = vmatprep.subr.mxu0 0.0
    %5209 = vmatpush1.msra.mxu0 %v4431
    %5210 = vmatprep.subr.mxu0 0.0
    %5211 = vmatpush1.msra.mxu0 %v4430
    %5212 = vmatprep.subr.mxu0 0.0
    %5213 = vmatpush1.msra.mxu0 %v4429
    %5214 = vmatprep.subr.mxu0 0.0
    %5215 = vmatpush1.msra.mxu0 %v4428
    %5216 = vmatprep.subr.mxu0 0.0
    %5217 = vmatpush1.msra.mxu0 %v4427
    %5218 = vmatprep.subr.mxu0 0.0
    %5219 = vmatpush1.msra.mxu0 %v4426
    %5220 = vmatprep.subr.mxu0 0.0
    %5221 = vmatpush1.msra.mxu0 %v4425
    %5222 = vmatprep.subr.mxu0 0.0
    %5223 = vmatpush1.msra.mxu0 %v4424
    %5224 = vmatprep.subr.mxu0 0.0
    %5225 = vmatpush1.msra.mxu0 %v4423
    %5226 = vmatprep.subr.mxu0 0.0
    %5227 = vmatpush1.msra.mxu0 %v4422
    %5228 = vmatprep.subr.mxu0 0.0
    %5229 = vmatpush1.msra.mxu0 %v4421
    %5230 = vmatprep.subr.mxu0 0.0
    %5231 = vmatpush1.msra.mxu0 %v4420
    %5232 = vmatprep.subr.mxu0 0.0
    %5233 = vmatpush1.msra.mxu0 %v4419
    %5234 = vmatprep.subr.mxu0 0.0
    %5235 = vmatpush1.msra.mxu0 %v4418
    %5236 = vmatprep.subr.mxu0 0.0
    %5237 = vmatpush1.msra.mxu0 %v4417
    %5238 = vmatprep.subr.mxu0 0.0
    %5239 = vmatpush2.msra.mxu0 %v4448
    %5240 = vmatprep.subr.mxu0 0.0
    %5241 = vmatpush2.msra.mxu0 %v4447
    %5242 = vmatprep.subr.mxu0 0.0
    %5243 = vmatpush2.msra.mxu0 %v4446
    %5244 = vmatprep.subr.mxu0 0.0
    %5245 = vmatpush2.msra.mxu0 %v4445
    %5246 = vmatprep.subr.mxu0 0.0
    %5247 = vmatpush2.msra.mxu0 %v4444
    %5248 = vmatprep.subr.mxu0 0.0
    %5249 = vmatpush2.msra.mxu0 %v4443
    %5250 = vmatprep.subr.mxu0 0.0
    %5251 = vmatpush2.msra.mxu0 %v4442
    %5252 = vmatprep.subr.mxu0 0.0
    %5253 = vmatpush2.msra.mxu0 %v4441
    %5254 = vmatprep.subr.mxu0 0.0
    %5255 = vmatpush2.msra.mxu0 %v4440
    %5256 = vmatprep.subr.mxu0 0.0
    %5257 = vmatpush2.msra.mxu0 %v4439
    %5258 = vmatprep.subr.mxu0 0.0
    %5259 = vmatpush2.msra.mxu0 %v4438
    %5260 = vmatprep.subr.mxu0 0.0
    %5261 = vmatpush2.msra.mxu0 %v4437
    %5262 = vmatprep.subr.mxu0 0.0
    %5263 = vmatpush2.msra.mxu0 %v4436
    %5264 = vmatprep.subr.mxu0 0.0
    %5265 = vmatpush2.msra.mxu0 %v4435
    %5266 = vmatprep.subr.mxu0 0.0
    %5267 = vmatpush2.msra.mxu0 %v4434
    %5268 = vmatprep.subr.mxu0 0.0
    %5269 = vmatpush2.msra.mxu0 %v4433
    %5270 = vmatprep.mubr.f32.mxu0 %v4657
    %5271 = vmatmul.mubr.f32.gmra.mxu0 %v4655
    %v5272 = vpop.f32.mrf.mxu0
    %v5273 = vadd.f32 %v5203, %v5272
    %v5274 = vpop.f32.mrf.mxu0
    %5275 = vdwg.mxu0
    %5276 = vmatprep.subr.mxu0 0.0
    %5277 = vmatpush1.msra.mxu0 %v4464
    %5278 = vmatprep.subr.mxu0 0.0
    %5279 = vmatpush1.msra.mxu0 %v4463
    %5280 = vmatprep.subr.mxu0 0.0
    %5281 = vmatpush1.msra.mxu0 %v4462
    %5282 = vmatprep.subr.mxu0 0.0
    %5283 = vmatpush1.msra.mxu0 %v4461
    %5284 = vmatprep.subr.mxu0 0.0
    %5285 = vmatpush1.msra.mxu0 %v4460
    %5286 = vmatprep.subr.mxu0 0.0
    %5287 = vmatpush1.msra.mxu0 %v4459
    %5288 = vmatprep.subr.mxu0 0.0
    %5289 = vmatpush1.msra.mxu0 %v4458
    %5290 = vmatprep.subr.mxu0 0.0
    %5291 = vmatpush1.msra.mxu0 %v4457
    %5292 = vmatprep.subr.mxu0 0.0
    %5293 = vmatpush1.msra.mxu0 %v4456
    %5294 = vmatprep.subr.mxu0 0.0
    %5295 = vmatpush1.msra.mxu0 %v4455
    %5296 = vmatprep.subr.mxu0 0.0
    %5297 = vmatpush1.msra.mxu0 %v4454
    %5298 = vmatprep.subr.mxu0 0.0
    %5299 = vmatpush1.msra.mxu0 %v4453
    %5300 = vmatprep.subr.mxu0 0.0
    %5301 = vmatpush1.msra.mxu0 %v4452
    %5302 = vmatprep.subr.mxu0 0.0
    %5303 = vmatpush1.msra.mxu0 %v4451
    %5304 = vmatprep.subr.mxu0 0.0
    %5305 = vmatpush1.msra.mxu0 %v4450
    %5306 = vmatprep.subr.mxu0 0.0
    %5307 = vmatpush1.msra.mxu0 %v4449
    %5308 = vmatprep.subr.mxu0 0.0
    %5309 = vmatpush2.msra.mxu0 %v4480
    %5310 = vmatprep.subr.mxu0 0.0
    %5311 = vmatpush2.msra.mxu0 %v4479
    %5312 = vmatprep.subr.mxu0 0.0
    %5313 = vmatpush2.msra.mxu0 %v4478
    %5314 = vmatprep.subr.mxu0 0.0
    %5315 = vmatpush2.msra.mxu0 %v4477
    %5316 = vmatprep.subr.mxu0 0.0
    %5317 = vmatpush2.msra.mxu0 %v4476
    %5318 = vmatprep.subr.mxu0 0.0
    %5319 = vmatpush2.msra.mxu0 %v4475
    %5320 = vmatprep.subr.mxu0 0.0
    %5321 = vmatpush2.msra.mxu0 %v4474
    %5322 = vmatprep.subr.mxu0 0.0
    %5323 = vmatpush2.msra.mxu0 %v4473
    %5324 = vmatprep.subr.mxu0 0.0
    %5325 = vmatpush2.msra.mxu0 %v4472
    %5326 = vmatprep.subr.mxu0 0.0
    %5327 = vmatpush2.msra.mxu0 %v4471
    %5328 = vmatprep.subr.mxu0 0.0
    %5329 = vmatpush2.msra.mxu0 %v4470
    %5330 = vmatprep.subr.mxu0 0.0
    %5331 = vmatpush2.msra.mxu0 %v4469
    %5332 = vmatprep.subr.mxu0 0.0
    %5333 = vmatpush2.msra.mxu0 %v4468
    %5334 = vmatprep.subr.mxu0 0.0
    %5335 = vmatpush2.msra.mxu0 %v4467
    %5336 = vmatprep.subr.mxu0 0.0
    %5337 = vmatpush2.msra.mxu0 %v4466
    %5338 = vmatprep.subr.mxu0 0.0
    %5339 = vmatpush2.msra.mxu0 %v4465
    %5340 = vmatprep.mubr.f32.mxu0 %v4673
    %5341 = vmatmul.mubr.f32.gmra.mxu0 %v4665
    %v5342 = vpop.f32.mrf.mxu0
    %v5343 = vadd.f32 %v5273, %v5342
    %v5344 = vpop.f32.mrf.mxu0
    %5345 = vdwg.mxu0
    %5346 = vmatprep.subr.mxu0 0.0
    %5347 = vmatpush1.msra.mxu0 %v4496
    %5348 = vmatprep.subr.mxu0 0.0
    %5349 = vmatpush1.msra.mxu0 %v4495
    %5350 = vmatprep.subr.mxu0 0.0
    %5351 = vmatpush1.msra.mxu0 %v4494
    %5352 = vmatprep.subr.mxu0 0.0
    %5353 = vmatpush1.msra.mxu0 %v4493
    %5354 = vmatprep.subr.mxu0 0.0
    %5355 = vmatpush1.msra.mxu0 %v4492
    %5356 = vmatprep.subr.mxu0 0.0
    %5357 = vmatpush1.msra.mxu0 %v4491
    %5358 = vmatprep.subr.mxu0 0.0
    %5359 = vmatpush1.msra.mxu0 %v4490
    %5360 = vmatprep.subr.mxu0 0.0
    %5361 = vmatpush1.msra.mxu0 %v4489
    %5362 = vmatprep.subr.mxu0 0.0
    %5363 = vmatpush1.msra.mxu0 %v4488
    %5364 = vmatprep.subr.mxu0 0.0
    %5365 = vmatpush1.msra.mxu0 %v4487
    %5366 = vmatprep.subr.mxu0 0.0
    %5367 = vmatpush1.msra.mxu0 %v4486
    %5368 = vmatprep.subr.mxu0 0.0
    %5369 = vmatpush1.msra.mxu0 %v4485
    %5370 = vmatprep.subr.mxu0 0.0
    %5371 = vmatpush1.msra.mxu0 %v4484
    %5372 = vmatprep.subr.mxu0 0.0
    %5373 = vmatpush1.msra.mxu0 %v4483
    %5374 = vmatprep.subr.mxu0 0.0
    %5375 = vmatpush1.msra.mxu0 %v4482
    %5376 = vmatprep.subr.mxu0 0.0
    %5377 = vmatpush1.msra.mxu0 %v4481
    %5378 = vmatprep.subr.mxu0 0.0
    %5379 = vmatpush2.msra.mxu0 %v4512
    %5380 = vmatprep.subr.mxu0 0.0
    %5381 = vmatpush2.msra.mxu0 %v4511
    %5382 = vmatprep.subr.mxu0 0.0
    %5383 = vmatpush2.msra.mxu0 %v4510
    %5384 = vmatprep.subr.mxu0 0.0
    %5385 = vmatpush2.msra.mxu0 %v4509
    %5386 = vmatprep.subr.mxu0 0.0
    %5387 = vmatpush2.msra.mxu0 %v4508
    %5388 = vmatprep.subr.mxu0 0.0
    %5389 = vmatpush2.msra.mxu0 %v4507
    %5390 = vmatprep.subr.mxu0 0.0
    %5391 = vmatpush2.msra.mxu0 %v4506
    %5392 = vmatprep.subr.mxu0 0.0
    %5393 = vmatpush2.msra.mxu0 %v4505
    %5394 = vmatprep.subr.mxu0 0.0
    %5395 = vmatpush2.msra.mxu0 %v4504
    %5396 = vmatprep.subr.mxu0 0.0
    %5397 = vmatpush2.msra.mxu0 %v4503
    %5398 = vmatprep.subr.mxu0 0.0
    %5399 = vmatpush2.msra.mxu0 %v4502
    %5400 = vmatprep.subr.mxu0 0.0
    %5401 = vmatpush2.msra.mxu0 %v4501
    %5402 = vmatprep.subr.mxu0 0.0
    %5403 = vmatpush2.msra.mxu0 %v4500
    %5404 = vmatprep.subr.mxu0 0.0
    %5405 = vmatpush2.msra.mxu0 %v4499
    %5406 = vmatprep.subr.mxu0 0.0
    %5407 = vmatpush2.msra.mxu0 %v4498
    %5408 = vmatprep.subr.mxu0 0.0
    %5409 = vmatpush2.msra.mxu0 %v4497
    %5410 = vmatprep.mubr.f32.mxu0 %v4674
    %5411 = vmatmul.mubr.f32.gmra.mxu0 %v4672
    %v5412 = vpop.f32.mrf.mxu0
    %v5413 = vadd.f32 %v5343, %v5412
    %v5414 = vpop.f32.mrf.mxu0
    %5415 = vdwg.mxu0
    %5416 = vmatprep.subr.mxu0 0.0
    %5417 = vmatpush1.msra.mxu0 %v4528
    %5418 = vmatprep.subr.mxu0 0.0
    %5419 = vmatpush1.msra.mxu0 %v4527
    %5420 = vmatprep.subr.mxu0 0.0
    %5421 = vmatpush1.msra.mxu0 %v4526
    %5422 = vmatprep.subr.mxu0 0.0
    %5423 = vmatpush1.msra.mxu0 %v4525
    %5424 = vmatprep.subr.mxu0 0.0
    %5425 = vmatpush1.msra.mxu0 %v4524
    %5426 = vmatprep.subr.mxu0 0.0
    %5427 = vmatpush1.msra.mxu0 %v4523
    %5428 = vmatprep.subr.mxu0 0.0
    %5429 = vmatpush1.msra.mxu0 %v4522
    %5430 = vmatprep.subr.mxu0 0.0
    %5431 = vmatpush1.msra.mxu0 %v4521
    %5432 = vmatprep.subr.mxu0 0.0
    %5433 = vmatpush1.msra.mxu0 %v4520
    %5434 = vmatprep.subr.mxu0 0.0
    %5435 = vmatpush1.msra.mxu0 %v4519
    %5436 = vmatprep.subr.mxu0 0.0
    %5437 = vmatpush1.msra.mxu0 %v4518
    %5438 = vmatprep.subr.mxu0 0.0
    %5439 = vmatpush1.msra.mxu0 %v4517
    %5440 = vmatprep.subr.mxu0 0.0
    %5441 = vmatpush1.msra.mxu0 %v4516
    %5442 = vmatprep.subr.mxu0 0.0
    %5443 = vmatpush1.msra.mxu0 %v4515
    %5444 = vmatprep.subr.mxu0 0.0
    %5445 = vmatpush1.msra.mxu0 %v4514
    %5446 = vmatprep.subr.mxu0 0.0
    %5447 = vmatpush1.msra.mxu0 %v4513
    %5448 = vmatprep.subr.mxu0 0.0
    %5449 = vmatpush2.msra.mxu0 %v4544
    %5450 = vmatprep.subr.mxu0 0.0
    %5451 = vmatpush2.msra.mxu0 %v4543
    %5452 = vmatprep.subr.mxu0 0.0
    %5453 = vmatpush2.msra.mxu0 %v4542
    %5454 = vmatprep.subr.mxu0 0.0
    %5455 = vmatpush2.msra.mxu0 %v4541
    %5456 = vmatprep.subr.mxu0 0.0
    %5457 = vmatpush2.msra.mxu0 %v4540
    %5458 = vmatprep.subr.mxu0 0.0
    %5459 = vmatpush2.msra.mxu0 %v4539
    %5460 = vmatprep.subr.mxu0 0.0
    %5461 = vmatpush2.msra.mxu0 %v4538
    %5462 = vmatprep.subr.mxu0 0.0
    %5463 = vmatpush2.msra.mxu0 %v4537
    %5464 = vmatprep.subr.mxu0 0.0
    %5465 = vmatpush2.msra.mxu0 %v4536
    %5466 = vmatprep.subr.mxu0 0.0
    %5467 = vmatpush2.msra.mxu0 %v4535
    %5468 = vmatprep.subr.mxu0 0.0
    %5469 = vmatpush2.msra.mxu0 %v4534
    %5470 = vmatprep.subr.mxu0 0.0
    %5471 = vmatpush2.msra.mxu0 %v4533
    %5472 = vmatprep.subr.mxu0 0.0
    %5473 = vmatpush2.msra.mxu0 %v4532
    %5474 = vmatprep.subr.mxu0 0.0
    %5475 = vmatpush2.msra.mxu0 %v4531
    %5476 = vmatprep.subr.mxu0 0.0
    %5477 = vmatpush2.msra.mxu0 %v4530
    %5478 = vmatprep.subr.mxu0 0.0
    %5479 = vmatpush2.msra.mxu0 %v4529
    %5480 = vmatprep.mubr.f32.mxu0 %v4690
    %5481 = vmatmul.mubr.f32.gmra.mxu0 %v4682
    %v5482 = vpop.f32.mrf.mxu0
    %v5483 = vadd.f32 %v5413, %v5482
    %v5484 = vpop.f32.mrf.mxu0
    %5485 = vdwg.mxu0
    %5486 = vmatprep.subr.mxu0 0.0
    %5487 = vmatpush1.msra.mxu0 %v4560
    %5488 = vmatprep.subr.mxu0 0.0
    %5489 = vmatpush1.msra.mxu0 %v4559
    %5490 = vmatprep.subr.mxu0 0.0
    %5491 = vmatpush1.msra.mxu0 %v4558
    %5492 = vmatprep.subr.mxu0 0.0
    %5493 = vmatpush1.msra.mxu0 %v4557
    %5494 = vmatprep.subr.mxu0 0.0
    %5495 = vmatpush1.msra.mxu0 %v4556
    %5496 = vmatprep.subr.mxu0 0.0
    %5497 = vmatpush1.msra.mxu0 %v4555
    %5498 = vmatprep.subr.mxu0 0.0
    %5499 = vmatpush1.msra.mxu0 %v4554
    %5500 = vmatprep.subr.mxu0 0.0
    %5501 = vmatpush1.msra.mxu0 %v4553
    %5502 = vmatprep.subr.mxu0 0.0
    %5503 = vmatpush1.msra.mxu0 %v4552
    %5504 = vmatprep.subr.mxu0 0.0
    %5505 = vmatpush1.msra.mxu0 %v4551
    %5506 = vmatprep.subr.mxu0 0.0
    %5507 = vmatpush1.msra.mxu0 %v4550
    %5508 = vmatprep.subr.mxu0 0.0
    %5509 = vmatpush1.msra.mxu0 %v4549
    %5510 = vmatprep.subr.mxu0 0.0
    %5511 = vmatpush1.msra.mxu0 %v4548
    %5512 = vmatprep.subr.mxu0 0.0
    %5513 = vmatpush1.msra.mxu0 %v4547
    %5514 = vmatprep.subr.mxu0 0.0
    %5515 = vmatpush1.msra.mxu0 %v4546
    %5516 = vmatprep.subr.mxu0 0.0
    %5517 = vmatpush1.msra.mxu0 %v4545
    %5518 = vmatprep.subr.mxu0 0.0
    %5519 = vmatpush2.msra.mxu0 %v4576
    %5520 = vmatprep.subr.mxu0 0.0
    %5521 = vmatpush2.msra.mxu0 %v4575
    %5522 = vmatprep.subr.mxu0 0.0
    %5523 = vmatpush2.msra.mxu0 %v4574
    %5524 = vmatprep.subr.mxu0 0.0
    %5525 = vmatpush2.msra.mxu0 %v4573
    %5526 = vmatprep.subr.mxu0 0.0
    %5527 = vmatpush2.msra.mxu0 %v4572
    %5528 = vmatprep.subr.mxu0 0.0
    %5529 = vmatpush2.msra.mxu0 %v4571
    %5530 = vmatprep.subr.mxu0 0.0
    %5531 = vmatpush2.msra.mxu0 %v4570
    %5532 = vmatprep.subr.mxu0 0.0
    %5533 = vmatpush2.msra.mxu0 %v4569
    %5534 = vmatprep.subr.mxu0 0.0
    %5535 = vmatpush2.msra.mxu0 %v4568
    %5536 = vmatprep.subr.mxu0 0.0
    %5537 = vmatpush2.msra.mxu0 %v4567
    %5538 = vmatprep.subr.mxu0 0.0
    %5539 = vmatpush2.msra.mxu0 %v4566
    %5540 = vmatprep.subr.mxu0 0.0
    %5541 = vmatpush2.msra.mxu0 %v4565
    %5542 = vmatprep.subr.mxu0 0.0
    %5543 = vmatpush2.msra.mxu0 %v4564
    %5544 = vmatprep.subr.mxu0 0.0
    %5545 = vmatpush2.msra.mxu0 %v4563
    %5546 = vmatprep.subr.mxu0 0.0
    %5547 = vmatpush2.msra.mxu0 %v4562
    %5548 = vmatprep.subr.mxu0 0.0
    %5549 = vmatpush2.msra.mxu0 %v4561
    %5550 = vmatprep.mubr.f32.mxu0 %v4691
    %5551 = vmatmul.mubr.f32.gmra.mxu0 %v4689
    %v5552 = vpop.f32.mrf.mxu0
    %v5553 = vadd.f32 %v5483, %v5552
    %v5554 = vpop.f32.mrf.mxu0
    %5555 = vdwg.mxu0
    %v5556 = vtanh.pop %v5553
    %5557 = vst [vmem:[%s4] sm:$0x3] %v5556
    // Predicated region
    $region30: #{_lambda_.1} parent=1 // pred_check
      _
    $region31: #{_lambda_.1} parent=1 // pred_check_branch
      %5559 = sbr.rel (0) target = $region33
    $region32: #{_lambda_.1} parent=1 // pred_region
      _
    $region33: #{_lambda_.1} parent=1 // pred_fallthru
      _
    // Predicated region
    $region34: #{_lambda_.1} parent=1 // pred_check
      _
    $region35: #{_lambda_.1} parent=1 // pred_check_branch
      %5561 = sbr.rel (0) target = $region37
    $region36: #{_lambda_.1} parent=1 // pred_region
      _
    $region37: #{_lambda_.1} parent=1 // pred_fallthru
      _
    %5562 = vsyncpa [#allocation4], 1
    %5563 = vsyncpa [#allocation6], 1

</llo_original>
